<compile_context>
chip_gen: v7x
topology: tpu7x:2x2x1
jax: 0.10.0
libtpu: 0.0.40
codegen_flags: <defaults>
</compile_context>

<pallas_src>
import functools

import jax
import jax.numpy as jnp
from jax import lax
from jax.experimental import pallas as pl
from jax.experimental.pallas import tpu as pltpu


# ----------------------------------------------------------------------------
# Fused kernel: one grid step == B images (batch folded into the lane dim).
# ----------------------------------------------------------------------------
def _cnn_kernel(x_ref, w1_ref, b1_ref, w2_ref, b2_ref, wfc_ref, bfc_ref,
                o_ref, p1_ref, *, B):
    f32 = jnp.float32
    W16 = 16 * B            # lanes per padded pooled-row block
    W28 = 28 * B            # conv1 output row width (28 cols x B images)
    NC = 224 * B            # conv2 output columns (14 row-blocks x 16B)

    # ---- Stage 0: zero only p1's halo row-blocks (interior fully rewritten) ----
    # p1 layout: (8 cin, col) with col = r*16B + w16*B + b.
    #   r=0 / r=15: vertical halo, r=16: tap-overhang block, w16=0/15: horiz halo.
    p1_ref[:, 0:W16] = jnp.zeros((8, W16), f32)
    p1_ref[:, 15 * W16:17 * W16] = jnp.zeros((8, 2 * W16), f32)

    # ---- Stage 1: conv1 (Cin=1, VPU) + ReLU + 2x2 maxpool, batched lanes ----
    xs = x_ref[0]                                            # (30, 30B) padded input
    # Hoist the three dx-shifted slabs once (avoid re-emitting lane shifts).
    x_sh = [xs[:, dx * B: dx * B + W28] for dx in range(3)]  # 3 x (30, 28B)
    w1v = w1_ref[...]                                        # (8, 9)  [cout, tap]
    b1v = b1_ref[...]                                        # (8, 1)
    w1c = [w1v[:, t:t + 1] for t in range(9)]                # 9 x (8, 1)
    zside = jnp.zeros((8, B), f32)

    for ph in range(14):                                     # pooled output row
        r0 = 2 * ph
        acc0 = jnp.zeros((8, W28), f32)                      # conv row 2*ph (raw)
        acc1 = jnp.zeros((8, W28), f32)                      # conv row 2*ph+1 (raw)
        for dy in range(3):
            for dx in range(3):
                wc = w1c[dy * 3 + dx]                        # (8,1)
                acc0 = acc0 + wc * x_sh[dx][r0 + dy: r0 + dy + 1, :]
                acc1 = acc1 + wc * x_sh[dx][r0 + dy + 1: r0 + dy + 2, :]
        vm = jnp.maximum(acc0, acc1)                         # pool over the H pair
        hm = jnp.maximum(vm[:, :27 * B], vm[:, B:])          # pool over (w, w+1)
        core = jnp.concatenate(
            [hm[:, (2 * w) * B:(2 * w + 1) * B] for w in range(14)], axis=1)
        core = jnp.maximum(core + b1v, 0.0)                  # bias+ReLU commute with max
        blk = jnp.concatenate([zside, core, zside], axis=1)  # (8, 16B) incl. halo cols
        p1_ref[:, (ph + 1) * W16:(ph + 2) * W16] = blk

    # ---- Stage 2: conv2 as ONE (16,72)@(72,224B) MXU matmul ----
    p1v = p1_ref[...]                                        # (8, 272B)
    rhs = jnp.concatenate(
        [p1v[:, (dy * 16 + dx) * B:(dy * 16 + dx) * B + NC]
         for dy in range(3) for dx in range(3)], axis=0)     # (72, 224B)
    z2 = jnp.dot(w2_ref[...], rhs, preferred_element_type=f32)   # (16, 224B)
    z2 = jnp.maximum(z2 + b2_ref[...], 0.0)

    # ---- Stage 3: 2x2 maxpool of conv2 -> (784, B) feature slab ----
    parts = []
    for ph in range(7):
        top = z2[:, (2 * ph) * W16:(2 * ph) * W16 + 14 * B]
        bot = z2[:, (2 * ph + 1) * W16:(2 * ph + 1) * W16 + 14 * B]
        vm = jnp.maximum(top, bot)                           # (16, 14B)
        hm = jnp.maximum(vm[:, :13 * B], vm[:, B:])          # (16, 13B)
        parts += [hm[:, (2 * pw) * B:(2 * pw + 1) * B] for pw in range(7)]
    feat = jnp.concatenate(parts, axis=0)                    # (784, B)

    # ---- Stage 4: fully connected as ONE (10,784)@(784,B) matmul ----
    o_ref[0] = jnp.dot(wfc_ref[...], feat,
                       preferred_element_type=f32) + bfc_ref[...]


# ----------------------------------------------------------------------------
# Wrapper: layout plumbing only (done once per call, plain XLA).
# ----------------------------------------------------------------------------
def cnn_forward(x_nchw, params, block_batch=8):
    w1, b1, w2, b2, wfc, bfc = params
    n = x_nchw.shape[0]
    B = int(block_batch)
    G = (n + B - 1) // B
    npad = G * B

    x2 = x_nchw[:, 0, :, :].astype(jnp.float32)              # (N, 28, 28)
    if npad != n:
        x2 = jnp.pad(x2, ((0, npad - n), (0, 0), (0, 0)))
    xp = jnp.pad(x2, ((0, 0), (1, 1), (1, 1)))                # (npad, 30, 30) zero halo
    # slab[g, r, w*B + b] = padded image (g*B + b) at (r, w)
    xs = xp.reshape(G, B, 30, 30).transpose(0, 2, 3, 1).reshape(G, 30, 30 * B)

    w1k = w1.reshape(9, 8).T                                  # (8, 9)  [cout, tap]
    b1k = b1.reshape(8, 1)
    w2k = jnp.transpose(w2.reshape(9, 8, 16), (2, 0, 1)).reshape(16, 72)  # [cout, tap*8+cin]
    b2k = b2.reshape(16, 1)
    # feature rows are ordered (ph, pw, c) -> permute the NCHW-flatten FC weight.
    wfck = jnp.transpose(wfc.reshape(10, 16, 7, 7), (0, 2, 3, 1)).reshape(10, 784)
    bfck = bfc.reshape(10, 1)

    kernel = functools.partial(_cnn_kernel, B=B)

    out = pl.pallas_call(
        kernel,
        out_shape=jax.ShapeDtypeStruct((G, 10, B), jnp.float32),
        grid_spec=pltpu.PrefetchScalarGridSpec(
            num_scalar_prefetch=0,
            grid=(G,),
            in_specs=[
                pl.BlockSpec((1, 30, 30 * B), lambda g: (g, 0, 0)),
                pl.BlockSpec((8, 9), lambda g: (0, 0)),
                pl.BlockSpec((8, 1), lambda g: (0, 0)),
                pl.BlockSpec((16, 72), lambda g: (0, 0)),
                pl.BlockSpec((16, 1), lambda g: (0, 0)),
                pl.BlockSpec((10, 784), lambda g: (0, 0)),
                pl.BlockSpec((10, 1), lambda g: (0, 0)),
            ],
            out_specs=pl.BlockSpec((1, 10, B), lambda g: (g, 0, 0)),
            scratch_shapes=[pltpu.VMEM((8, 272 * B), jnp.float32)],
        ),
        compiler_params=pltpu.CompilerParams(
            dimension_semantics=("parallel",)),
    )(xs, w1k, b1k, w2k, b2k, wfck, bfck)

    # (G, 10, B) -> (N, 10)
    return out.transpose(0, 2, 1).reshape(npad, 10)[:n]


# ----------------------------------------------------------------------------
# Deterministic parameter init + pure-JAX reference (full f32 precision)
# ----------------------------------------------------------------------------
def init_params(key):
    k1, k2, k3, k4, k5, k6 = jax.random.split(key, 6)
    w1 = jax.random.normal(k1, (3, 3, 1, 8), jnp.float32) * 0.1        # HWIO
    b1 = jax.random.normal(k2, (8,), jnp.float32) * 0.1
    w2 = jax.random.normal(k3, (3, 3, 8, 16), jnp.float32) * 0.1       # HWIO
    b2 = jax.random.normal(k4, (16,), jnp.float32) * 0.1
    wfc = jax.random.normal(k5, (10, 16 * 7 * 7), jnp.float32) * 0.05  # (out, in)
    bfc = jax.random.normal(k6, (10,), jnp.float32) * 0.05
    return w1, b1, w2, b2, wfc, bfc


def cnn_reference(x_nchw, params):
    w1, b1, w2, b2, wfc, bfc = params

    def conv(x, w_hwio, b):
        y = lax.conv_general_dilated(
            x, w_hwio, window_strides=(1, 1), padding=((1, 1), (1, 1)),
            dimension_numbers=("NCHW", "HWIO", "NCHW"),
            precision=lax.Precision.HIGHEST)
        return jax.nn.relu(y + b[None, :, None, None])

    def pool(x):
        return lax.reduce_window(x, -jnp.inf, lax.max,
                                 (1, 1, 2, 2), (1, 1, 2, 2), "VALID")

    x = pool(conv(x_nchw, w1, b1))
    x = pool(conv(x, w2, b2))
    x = x.reshape(x.shape[0], -1)
    return jnp.dot(x, wfc.T, precision=lax.Precision.HIGHEST) + bfc


if __name__ == "__main__":
    key = jax.random.PRNGKey(0)
    kx, kp = jax.random.split(key)
    # Input shape implied by fc1 = Linear(16*7*7, 10): 1x28x28 images (NCHW).
    # batch=10 exercises a 2-step grid (B=8 per step) plus batch padding.
    x = jax.random.normal(kx, (10, 1, 28, 28), jnp.float32)
    params = init_params(kp)

    out = jax.jit(cnn_forward)(x, params)
    out = jax.block_until_ready(out)

    ref = cnn_reference(x, params)
    assert out.shape == (10, 10), out.shape
    # conv2 / fc run at default MXU precision, so allow bf16-level rounding
    # versus the full-precision reference.
    if not jnp.allclose(out, ref, atol=1e-2, rtol=1e-2):
        raise AssertionError(
            f"Pallas output mismatch; max abs err = {jnp.max(jnp.abs(out - ref))}")
    print("KERNEL_OK")
</pallas_src>

<mosaic_0001>
module attributes {stable_mosaic.version = 11 : i64} {
  func.func @_cnn_kernel(%arg0: i32, %arg1: memref<1x30x240xf32, #tpu.memory_space<vmem>>, %arg2: memref<8x9xf32, #tpu.memory_space<vmem>>, %arg3: memref<8x1xf32, #tpu.memory_space<vmem>>, %arg4: memref<16x72xf32, #tpu.memory_space<vmem>>, %arg5: memref<16x1xf32, #tpu.memory_space<vmem>>, %arg6: memref<10x784xf32, #tpu.memory_space<vmem>>, %arg7: memref<10x1xf32, #tpu.memory_space<vmem>>, %arg8: memref<1x10x8xf32, #tpu.memory_space<vmem>>, %arg9: memref<8x2176xf32, #tpu.memory_space<vmem>>) attributes {dimension_semantics = [#tpu.dimension_semantics<parallel>], iteration_bounds = array<i64: 2>, scalar_prefetch = 0 : i64, scratch_operands = 1 : i64, tpu.core_type = #tpu.core_type<tc>, window_params = [{transform_indices = @transform_0, window_bounds = array<i64: 1, 30, 240>}, {pipeline_mode = #tpu.pipeline_mode<synchronous>, transform_indices = @transform_1, window_bounds = array<i64: 8, 9>}, {pipeline_mode = #tpu.pipeline_mode<synchronous>, transform_indices = @transform_2, window_bounds = array<i64: 8, 1>}, {pipeline_mode = #tpu.pipeline_mode<synchronous>, transform_indices = @transform_3, window_bounds = array<i64: 16, 72>}, {pipeline_mode = #tpu.pipeline_mode<synchronous>, transform_indices = @transform_4, window_bounds = array<i64: 16, 1>}, {pipeline_mode = #tpu.pipeline_mode<synchronous>, transform_indices = @transform_5, window_bounds = array<i64: 10, 784>}, {pipeline_mode = #tpu.pipeline_mode<synchronous>, transform_indices = @transform_6, window_bounds = array<i64: 10, 1>}, {transform_indices = @transform_7, window_bounds = array<i64: 1, 10, 8>}]} {
    %cst = arith.constant 0.000000e+00 : f32
    %0 = vector.broadcast %cst : f32 to vector<8x128xf32>
    %c0 = arith.constant 0 : index
    %c0_0 = arith.constant 0 : index
    %1 = vector.load %arg9[%c0, %c0_0] : memref<8x2176xf32, #tpu.memory_space<vmem>>, vector<8x128xf32>
    tpu.vector_store %arg9[%c0, %c0_0], %0 {strides = array<i32>} : memref<8x2176xf32, #tpu.memory_space<vmem>>, vector<8x128xf32>,
    %cst_1 = arith.constant 0.000000e+00 : f32
    %2 = vector.broadcast %cst_1 : f32 to vector<8x256xf32>
    %c0_2 = arith.constant 0 : index
    %c1920 = arith.constant 1920 : index
    %3 = vector.load %arg9[%c0_2, %c1920] : memref<8x2176xf32, #tpu.memory_space<vmem>>, vector<8x256xf32>
    tpu.vector_store %arg9[%c0_2, %c1920], %2 {strides = array<i32>} : memref<8x2176xf32, #tpu.memory_space<vmem>>, vector<8x256xf32>,
    %c0_3 = arith.constant 0 : index
    %c0_4 = arith.constant 0 : index
    %c0_5 = arith.constant 0 : index
    %4 = vector.load %arg1[%c0_3, %c0_4, %c0_5] : memref<1x30x240xf32, #tpu.memory_space<vmem>>, vector<1x30x240xf32>
    %5 = vector.shape_cast %4 : vector<1x30x240xf32> to vector<30x240xf32>
    %6 = vector.extract_strided_slice %5 {offsets = [0, 0], sizes = [30, 224], strides = [1, 1]} : vector<30x240xf32> to vector<30x224xf32>
    %7 = vector.extract_strided_slice %5 {offsets = [0, 8], sizes = [30, 224], strides = [1, 1]} : vector<30x240xf32> to vector<30x224xf32>
    %8 = vector.extract_strided_slice %5 {offsets = [0, 16], sizes = [30, 224], strides = [1, 1]} : vector<30x240xf32> to vector<30x224xf32>
    %c0_6 = arith.constant 0 : index
    %c0_7 = arith.constant 0 : index
    %9 = vector.load %arg2[%c0_6, %c0_7] : memref<8x9xf32, #tpu.memory_space<vmem>>, vector<8x9xf32>
    %c0_8 = arith.constant 0 : index
    %c0_9 = arith.constant 0 : index
    %10 = vector.load %arg3[%c0_8, %c0_9] : memref<8x1xf32, #tpu.memory_space<vmem>>, vector<8x1xf32>
    %11 = vector.extract_strided_slice %9 {offsets = [0, 0], sizes = [8, 1], strides = [1, 1]} : vector<8x9xf32> to vector<8x1xf32>
    %12 = vector.extract_strided_slice %9 {offsets = [0, 1], sizes = [8, 1], strides = [1, 1]} : vector<8x9xf32> to vector<8x1xf32>
    %13 = vector.extract_strided_slice %9 {offsets = [0, 2], sizes = [8, 1], strides = [1, 1]} : vector<8x9xf32> to vector<8x1xf32>
    %14 = vector.extract_strided_slice %9 {offsets = [0, 3], sizes = [8, 1], strides = [1, 1]} : vector<8x9xf32> to vector<8x1xf32>
    %15 = vector.extract_strided_slice %9 {offsets = [0, 4], sizes = [8, 1], strides = [1, 1]} : vector<8x9xf32> to vector<8x1xf32>
    %16 = vector.extract_strided_slice %9 {offsets = [0, 5], sizes = [8, 1], strides = [1, 1]} : vector<8x9xf32> to vector<8x1xf32>
    %17 = vector.extract_strided_slice %9 {offsets = [0, 6], sizes = [8, 1], strides = [1, 1]} : vector<8x9xf32> to vector<8x1xf32>
    %18 = vector.extract_strided_slice %9 {offsets = [0, 7], sizes = [8, 1], strides = [1, 1]} : vector<8x9xf32> to vector<8x1xf32>
    %19 = vector.extract_strided_slice %9 {offsets = [0, 8], sizes = [8, 1], strides = [1, 1]} : vector<8x9xf32> to vector<8x1xf32>
    %cst_10 = arith.constant 0.000000e+00 : f32
    %20 = vector.broadcast %cst_10 : f32 to vector<8x8xf32>
    %cst_11 = arith.constant 0.000000e+00 : f32
    %21 = vector.broadcast %cst_11 : f32 to vector<8x224xf32>
    %cst_12 = arith.constant 0.000000e+00 : f32
    %22 = vector.broadcast %cst_12 : f32 to vector<8x224xf32>
    %23 = vector.extract_strided_slice %6 {offsets = [0, 0], sizes = [1, 224], strides = [1, 1]} : vector<30x224xf32> to vector<1x224xf32>
    %24 = vector.broadcast %11 : vector<8x1xf32> to vector<8x224xf32>
    %25 = vector.broadcast %23 : vector<1x224xf32> to vector<8x224xf32>
    %26 = arith.mulf %24, %25 : vector<8x224xf32>
    %27 = arith.addf %21, %26 : vector<8x224xf32>
    %28 = vector.extract_strided_slice %6 {offsets = [1, 0], sizes = [1, 224], strides = [1, 1]} : vector<30x224xf32> to vector<1x224xf32>
    %29 = vector.broadcast %11 : vector<8x1xf32> to vector<8x224xf32>
    %30 = vector.broadcast %28 : vector<1x224xf32> to vector<8x224xf32>
    %31 = arith.mulf %29, %30 : vector<8x224xf32>
    %32 = arith.addf %22, %31 : vector<8x224xf32>
    %33 = vector.extract_strided_slice %7 {offsets = [0, 0], sizes = [1, 224], strides = [1, 1]} : vector<30x224xf32> to vector<1x224xf32>
    %34 = vector.broadcast %12 : vector<8x1xf32> to vector<8x224xf32>
    %35 = vector.broadcast %33 : vector<1x224xf32> to vector<8x224xf32>
    %36 = arith.mulf %34, %35 : vector<8x224xf32>
    %37 = arith.addf %27, %36 : vector<8x224xf32>
    %38 = vector.extract_strided_slice %7 {offsets = [1, 0], sizes = [1, 224], strides = [1, 1]} : vector<30x224xf32> to vector<1x224xf32>
    %39 = vector.broadcast %12 : vector<8x1xf32> to vector<8x224xf32>
    %40 = vector.broadcast %38 : vector<1x224xf32> to vector<8x224xf32>
    %41 = arith.mulf %39, %40 : vector<8x224xf32>
    %42 = arith.addf %32, %41 : vector<8x224xf32>
    %43 = vector.extract_strided_slice %8 {offsets = [0, 0], sizes = [1, 224], strides = [1, 1]} : vector<30x224xf32> to vector<1x224xf32>
    %44 = vector.broadcast %13 : vector<8x1xf32> to vector<8x224xf32>
    %45 = vector.broadcast %43 : vector<1x224xf32> to vector<8x224xf32>
    %46 = arith.mulf %44, %45 : vector<8x224xf32>
    %47 = arith.addf %37, %46 : vector<8x224xf32>
    %48 = vector.extract_strided_slice %8 {offsets = [1, 0], sizes = [1, 224], strides = [1, 1]} : vector<30x224xf32> to vector<1x224xf32>
    %49 = vector.broadcast %13 : vector<8x1xf32> to vector<8x224xf32>
    %50 = vector.broadcast %48 : vector<1x224xf32> to vector<8x224xf32>
    %51 = arith.mulf %49, %50 : vector<8x224xf32>
    %52 = arith.addf %42, %51 : vector<8x224xf32>
    %53 = vector.extract_strided_slice %6 {offsets = [1, 0], sizes = [1, 224], strides = [1, 1]} : vector<30x224xf32> to vector<1x224xf32>
    %54 = vector.broadcast %14 : vector<8x1xf32> to vector<8x224xf32>
    %55 = vector.broadcast %53 : vector<1x224xf32> to vector<8x224xf32>
    %56 = arith.mulf %54, %55 : vector<8x224xf32>
    %57 = arith.addf %47, %56 : vector<8x224xf32>
    %58 = vector.extract_strided_slice %6 {offsets = [2, 0], sizes = [1, 224], strides = [1, 1]} : vector<30x224xf32> to vector<1x224xf32>
    %59 = vector.broadcast %14 : vector<8x1xf32> to vector<8x224xf32>
    %60 = vector.broadcast %58 : vector<1x224xf32> to vector<8x224xf32>
    %61 = arith.mulf %59, %60 : vector<8x224xf32>
    %62 = arith.addf %52, %61 : vector<8x224xf32>
    %63 = vector.extract_strided_slice %7 {offsets = [1, 0], sizes = [1, 224], strides = [1, 1]} : vector<30x224xf32> to vector<1x224xf32>
    %64 = vector.broadcast %15 : vector<8x1xf32> to vector<8x224xf32>
    %65 = vector.broadcast %63 : vector<1x224xf32> to vector<8x224xf32>
    %66 = arith.mulf %64, %65 : vector<8x224xf32>
    %67 = arith.addf %57, %66 : vector<8x224xf32>
    %68 = vector.extract_strided_slice %7 {offsets = [2, 0], sizes = [1, 224], strides = [1, 1]} : vector<30x224xf32> to vector<1x224xf32>
    %69 = vector.broadcast %15 : vector<8x1xf32> to vector<8x224xf32>
    %70 = vector.broadcast %68 : vector<1x224xf32> to vector<8x224xf32>
    %71 = arith.mulf %69, %70 : vector<8x224xf32>
    %72 = arith.addf %62, %71 : vector<8x224xf32>
    %73 = vector.extract_strided_slice %8 {offsets = [1, 0], sizes = [1, 224], strides = [1, 1]} : vector<30x224xf32> to vector<1x224xf32>
    %74 = vector.broadcast %16 : vector<8x1xf32> to vector<8x224xf32>
    %75 = vector.broadcast %73 : vector<1x224xf32> to vector<8x224xf32>
    %76 = arith.mulf %74, %75 : vector<8x224xf32>
    %77 = arith.addf %67, %76 : vector<8x224xf32>
    %78 = vector.extract_strided_slice %8 {offsets = [2, 0], sizes = [1, 224], strides = [1, 1]} : vector<30x224xf32> to vector<1x224xf32>
    %79 = vector.broadcast %16 : vector<8x1xf32> to vector<8x224xf32>
    %80 = vector.broadcast %78 : vector<1x224xf32> to vector<8x224xf32>
    %81 = arith.mulf %79, %80 : vector<8x224xf32>
    %82 = arith.addf %72, %81 : vector<8x224xf32>
    %83 = vector.extract_strided_slice %6 {offsets = [2, 0], sizes = [1, 224], strides = [1, 1]} : vector<30x224xf32> to vector<1x224xf32>
    %84 = vector.broadcast %17 : vector<8x1xf32> to vector<8x224xf32>
    %85 = vector.broadcast %83 : vector<1x224xf32> to vector<8x224xf32>
    %86 = arith.mulf %84, %85 : vector<8x224xf32>
    %87 = arith.addf %77, %86 : vector<8x224xf32>
    %88 = vector.extract_strided_slice %6 {offsets = [3, 0], sizes = [1, 224], strides = [1, 1]} : vector<30x224xf32> to vector<1x224xf32>
    %89 = vector.broadcast %17 : vector<8x1xf32> to vector<8x224xf32>
    %90 = vector.broadcast %88 : vector<1x224xf32> to vector<8x224xf32>
    %91 = arith.mulf %89, %90 : vector<8x224xf32>
    %92 = arith.addf %82, %91 : vector<8x224xf32>
    %93 = vector.extract_strided_slice %7 {offsets = [2, 0], sizes = [1, 224], strides = [1, 1]} : vector<30x224xf32> to vector<1x224xf32>
    %94 = vector.broadcast %18 : vector<8x1xf32> to vector<8x224xf32>
    %95 = vector.broadcast %93 : vector<1x224xf32> to vector<8x224xf32>
    %96 = arith.mulf %94, %95 : vector<8x224xf32>
    %97 = arith.addf %87, %96 : vector<8x224xf32>
    %98 = vector.extract_strided_slice %7 {offsets = [3, 0], sizes = [1, 224], strides = [1, 1]} : vector<30x224xf32> to vector<1x224xf32>
    %99 = vector.broadcast %18 : vector<8x1xf32> to vector<8x224xf32>
    %100 = vector.broadcast %98 : vector<1x224xf32> to vector<8x224xf32>
    %101 = arith.mulf %99, %100 : vector<8x224xf32>
    %102 = arith.addf %92, %101 : vector<8x224xf32>
    %103 = vector.extract_strided_slice %8 {offsets = [2, 0], sizes = [1, 224], strides = [1, 1]} : vector<30x224xf32> to vector<1x224xf32>
    %104 = vector.broadcast %19 : vector<8x1xf32> to vector<8x224xf32>
    %105 = vector.broadcast %103 : vector<1x224xf32> to vector<8x224xf32>
    %106 = arith.mulf %104, %105 : vector<8x224xf32>
    %107 = arith.addf %97, %106 : vector<8x224xf32>
    %108 = vector.extract_strided_slice %8 {offsets = [3, 0], sizes = [1, 224], strides = [1, 1]} : vector<30x224xf32> to vector<1x224xf32>
    %109 = vector.broadcast %19 : vector<8x1xf32> to vector<8x224xf32>
    %110 = vector.broadcast %108 : vector<1x224xf32> to vector<8x224xf32>
    %111 = arith.mulf %109, %110 : vector<8x224xf32>
    %112 = arith.addf %102, %111 : vector<8x224xf32>
    %113 = arith.maximumf %107, %112 : vector<8x224xf32>
    %114 = vector.extract_strided_slice %113 {offsets = [0, 0], sizes = [8, 216], strides = [1, 1]} : vector<8x224xf32> to vector<8x216xf32>
    %115 = vector.extract_strided_slice %113 {offsets = [0, 8], sizes = [8, 216], strides = [1, 1]} : vector<8x224xf32> to vector<8x216xf32>
    %116 = arith.maximumf %114, %115 : vector<8x216xf32>
    %117 = vector.extract_strided_slice %116 {offsets = [0, 0], sizes = [8, 8], strides = [1, 1]} : vector<8x216xf32> to vector<8x8xf32>
    %118 = vector.extract_strided_slice %116 {offsets = [0, 16], sizes = [8, 8], strides = [1, 1]} : vector<8x216xf32> to vector<8x8xf32>
    %119 = vector.extract_strided_slice %116 {offsets = [0, 32], sizes = [8, 8], strides = [1, 1]} : vector<8x216xf32> to vector<8x8xf32>
    %120 = vector.extract_strided_slice %116 {offsets = [0, 48], sizes = [8, 8], strides = [1, 1]} : vector<8x216xf32> to vector<8x8xf32>
    %121 = vector.extract_strided_slice %116 {offsets = [0, 64], sizes = [8, 8], strides = [1, 1]} : vector<8x216xf32> to vector<8x8xf32>
    %122 = vector.extract_strided_slice %116 {offsets = [0, 80], sizes = [8, 8], strides = [1, 1]} : vector<8x216xf32> to vector<8x8xf32>
    %123 = vector.extract_strided_slice %116 {offsets = [0, 96], sizes = [8, 8], strides = [1, 1]} : vector<8x216xf32> to vector<8x8xf32>
    %124 = vector.extract_strided_slice %116 {offsets = [0, 112], sizes = [8, 8], strides = [1, 1]} : vector<8x216xf32> to vector<8x8xf32>
    %125 = vector.extract_strided_slice %116 {offsets = [0, 128], sizes = [8, 8], strides = [1, 1]} : vector<8x216xf32> to vector<8x8xf32>
    %126 = vector.extract_strided_slice %116 {offsets = [0, 144], sizes = [8, 8], strides = [1, 1]} : vector<8x216xf32> to vector<8x8xf32>
    %127 = vector.extract_strided_slice %116 {offsets = [0, 160], sizes = [8, 8], strides = [1, 1]} : vector<8x216xf32> to vector<8x8xf32>
    %128 = vector.extract_strided_slice %116 {offsets = [0, 176], sizes = [8, 8], strides = [1, 1]} : vector<8x216xf32> to vector<8x8xf32>
    %129 = vector.extract_strided_slice %116 {offsets = [0, 192], sizes = [8, 8], strides = [1, 1]} : vector<8x216xf32> to vector<8x8xf32>
    %130 = vector.extract_strided_slice %116 {offsets = [0, 208], sizes = [8, 8], strides = [1, 1]} : vector<8x216xf32> to vector<8x8xf32>
    %131 = tpu.concatenate %117, %118, %119, %120, %121, %122, %123, %124, %125, %126, %127, %128, %129, %130 in 1 : vector<8x8xf32>, vector<8x8xf32>, vector<8x8xf32>, vector<8x8xf32>, vector<8x8xf32>, vector<8x8xf32>, vector<8x8xf32>, vector<8x8xf32>, vector<8x8xf32>, vector<8x8xf32>, vector<8x8xf32>, vector<8x8xf32>, vector<8x8xf32>, vector<8x8xf32> -> vector<8x112xf32>
    %132 = vector.broadcast %10 : vector<8x1xf32> to vector<8x112xf32>
    %133 = arith.addf %131, %132 : vector<8x112xf32>
    %cst_13 = arith.constant 0.000000e+00 : f32
    %134 = vector.broadcast %cst_13 : f32 to vector<8x112xf32>
    %135 = arith.maximumf %133, %134 : vector<8x112xf32>
    %136 = tpu.concatenate %20, %135, %20 in 1 : vector<8x8xf32>, vector<8x112xf32>, vector<8x8xf32> -> vector<8x128xf32>
    %c0_14 = arith.constant 0 : index
    %c128 = arith.constant 128 : index
    %137 = vector.load %arg9[%c0_14, %c128] : memref<8x2176xf32, #tpu.memory_space<vmem>>, vector<8x128xf32>
    tpu.vector_store %arg9[%c0_14, %c128], %136 {strides = array<i32>} : memref<8x2176xf32, #tpu.memory_space<vmem>>, vector<8x128xf32>,
    %cst_15 = arith.constant 0.000000e+00 : f32
    %138 = vector.broadcast %cst_15 : f32 to vector<8x224xf32>
    %cst_16 = arith.constant 0.000000e+00 : f32
    %139 = vector.broadcast %cst_16 : f32 to vector<8x224xf32>
    %140 = vector.extract_strided_slice %6 {offsets = [2, 0], sizes = [1, 224], strides = [1, 1]} : vector<30x224xf32> to vector<1x224xf32>
    %141 = vector.broadcast %11 : vector<8x1xf32> to vector<8x224xf32>
    %142 = vector.broadcast %140 : vector<1x224xf32> to vector<8x224xf32>
    %143 = arith.mulf %141, %142 : vector<8x224xf32>
    %144 = arith.addf %138, %143 : vector<8x224xf32>
    %145 = vector.extract_strided_slice %6 {offsets = [3, 0], sizes = [1, 224], strides = [1, 1]} : vector<30x224xf32> to vector<1x224xf32>
    %146 = vector.broadcast %11 : vector<8x1xf32> to vector<8x224xf32>
    %147 = vector.broadcast %145 : vector<1x224xf32> to vector<8x224xf32>
    %148 = arith.mulf %146, %147 : vector<8x224xf32>
    %149 = arith.addf %139, %148 : vector<8x224xf32>
    %150 = vector.extract_strided_slice %7 {offsets = [2, 0], sizes = [1, 224], strides = [1, 1]} : vector<30x224xf32> to vector<1x224xf32>
    %151 = vector.broadcast %12 : vector<8x1xf32> to vector<8x224xf32>
    %152 = vector.broadcast %150 : vector<1x224xf32> to vector<8x224xf32>
    %153 = arith.mulf %151, %152 : vector<8x224xf32>
    %154 = arith.addf %144, %153 : vector<8x224xf32>
    %155 = vector.extract_strided_slice %7 {offsets = [3, 0], sizes = [1, 224], strides = [1, 1]} : vector<30x224xf32> to vector<1x224xf32>
    %156 = vector.broadcast %12 : vector<8x1xf32> to vector<8x224xf32>
    %157 = vector.broadcast %155 : vector<1x224xf32> to vector<8x224xf32>
    %158 = arith.mulf %156, %157 : vector<8x224xf32>
    %159 = arith.addf %149, %158 : vector<8x224xf32>
    %160 = vector.extract_strided_slice %8 {offsets = [2, 0], sizes = [1, 224], strides = [1, 1]} : vector<30x224xf32> to vector<1x224xf32>
    %161 = vector.broadcast %13 : vector<8x1xf32> to vector<8x224xf32>
    %162 = vector.broadcast %160 : vector<1x224xf32> to vector<8x224xf32>
    %163 = arith.mulf %161, %162 : vector<8x224xf32>
    %164 = arith.addf %154, %163 : vector<8x224xf32>
    %165 = vector.extract_strided_slice %8 {offsets = [3, 0], sizes = [1, 224], strides = [1, 1]} : vector<30x224xf32> to vector<1x224xf32>
    %166 = vector.broadcast %13 : vector<8x1xf32> to vector<8x224xf32>
    %167 = vector.broadcast %165 : vector<1x224xf32> to vector<8x224xf32>
    %168 = arith.mulf %166, %167 : vector<8x224xf32>
    %169 = arith.addf %159, %168 : vector<8x224xf32>
    %170 = vector.extract_strided_slice %6 {offsets = [3, 0], sizes = [1, 224], strides = [1, 1]} : vector<30x224xf32> to vector<1x224xf32>
    %171 = vector.broadcast %14 : vector<8x1xf32> to vector<8x224xf32>
    %172 = vector.broadcast %170 : vector<1x224xf32> to vector<8x224xf32>
    %173 = arith.mulf %171, %172 : vector<8x224xf32>
    %174 = arith.addf %164, %173 : vector<8x224xf32>
    %175 = vector.extract_strided_slice %6 {offsets = [4, 0], sizes = [1, 224], strides = [1, 1]} : vector<30x224xf32> to vector<1x224xf32>
    %176 = vector.broadcast %14 : vector<8x1xf32> to vector<8x224xf32>
    %177 = vector.broadcast %175 : vector<1x224xf32> to vector<8x224xf32>
    %178 = arith.mulf %176, %177 : vector<8x224xf32>
    %179 = arith.addf %169, %178 : vector<8x224xf32>
    %180 = vector.extract_strided_slice %7 {offsets = [3, 0], sizes = [1, 224], strides = [1, 1]} : vector<30x224xf32> to vector<1x224xf32>
    %181 = vector.broadcast %15 : vector<8x1xf32> to vector<8x224xf32>
    %182 = vector.broadcast %180 : vector<1x224xf32> to vector<8x224xf32>
    %183 = arith.mulf %181, %182 : vector<8x224xf32>
    %184 = arith.addf %174, %183 : vector<8x224xf32>
    %185 = vector.extract_strided_slice %7 {offsets = [4, 0], sizes = [1, 224], strides = [1, 1]} : vector<30x224xf32> to vector<1x224xf32>
    %186 = vector.broadcast %15 : vector<8x1xf32> to vector<8x224xf32>
    %187 = vector.broadcast %185 : vector<1x224xf32> to vector<8x224xf32>
    %188 = arith.mulf %186, %187 : vector<8x224xf32>
    %189 = arith.addf %179, %188 : vector<8x224xf32>
    %190 = vector.extract_strided_slice %8 {offsets = [3, 0], sizes = [1, 224], strides = [1, 1]} : vector<30x224xf32> to vector<1x224xf32>
    %191 = vector.broadcast %16 : vector<8x1xf32> to vector<8x224xf32>
    %192 = vector.broadcast %190 : vector<1x224xf32> to vector<8x224xf32>
    %193 = arith.mulf %191, %192 : vector<8x224xf32>
    %194 = arith.addf %184, %193 : vector<8x224xf32>
    %195 = vector.extract_strided_slice %8 {offsets = [4, 0], sizes = [1, 224], strides = [1, 1]} : vector<30x224xf32> to vector<1x224xf32>
    %196 = vector.broadcast %16 : vector<8x1xf32> to vector<8x224xf32>
    %197 = vector.broadcast %195 : vector<1x224xf32> to vector<8x224xf32>
    %198 = arith.mulf %196, %197 : vector<8x224xf32>
    %199 = arith.addf %189, %198 : vector<8x224xf32>
    %200 = vector.extract_strided_slice %6 {offsets = [4, 0], sizes = [1, 224], strides = [1, 1]} : vector<30x224xf32> to vector<1x224xf32>
    %201 = vector.broadcast %17 : vector<8x1xf32> to vector<8x224xf32>
    %202 = vector.broadcast %200 : vector<1x224xf32> to vector<8x224xf32>
    %203 = arith.mulf %201, %202 : vector<8x224xf32>
    %204 = arith.addf %194, %203 : vector<8x224xf32>
    %205 = vector.extract_strided_slice %6 {offsets = [5, 0], sizes = [1, 224], strides = [1, 1]} : vector<30x224xf32> to vector<1x224xf32>
    %206 = vector.broadcast %17 : vector<8x1xf32> to vector<8x224xf32>
    %207 = vector.broadcast %205 : vector<1x224xf32> to vector<8x224xf32>
    %208 = arith.mulf %206, %207 : vector<8x224xf32>
    %209 = arith.addf %199, %208 : vector<8x224xf32>
    %210 = vector.extract_strided_slice %7 {offsets = [4, 0], sizes = [1, 224], strides = [1, 1]} : vector<30x224xf32> to vector<1x224xf32>
    %211 = vector.broadcast %18 : vector<8x1xf32> to vector<8x224xf32>
    %212 = vector.broadcast %210 : vector<1x224xf32> to vector<8x224xf32>
    %213 = arith.mulf %211, %212 : vector<8x224xf32>
    %214 = arith.addf %204, %213 : vector<8x224xf32>
    %215 = vector.extract_strided_slice %7 {offsets = [5, 0], sizes = [1, 224], strides = [1, 1]} : vector<30x224xf32> to vector<1x224xf32>
    %216 = vector.broadcast %18 : vector<8x1xf32> to vector<8x224xf32>
    %217 = vector.broadcast %215 : vector<1x224xf32> to vector<8x224xf32>
    %218 = arith.mulf %216, %217 : vector<8x224xf32>
    %219 = arith.addf %209, %218 : vector<8x224xf32>
    %220 = vector.extract_strided_slice %8 {offsets = [4, 0], sizes = [1, 224], strides = [1, 1]} : vector<30x224xf32> to vector<1x224xf32>
    %221 = vector.broadcast %19 : vector<8x1xf32> to vector<8x224xf32>
    %222 = vector.broadcast %220 : vector<1x224xf32> to vector<8x224xf32>
    %223 = arith.mulf %221, %222 : vector<8x224xf32>
    %224 = arith.addf %214, %223 : vector<8x224xf32>
    %225 = vector.extract_strided_slice %8 {offsets = [5, 0], sizes = [1, 224], strides = [1, 1]} : vector<30x224xf32> to vector<1x224xf32>
    %226 = vector.broadcast %19 : vector<8x1xf32> to vector<8x224xf32>
    %227 = vector.broadcast %225 : vector<1x224xf32> to vector<8x224xf32>
    %228 = arith.mulf %226, %227 : vector<8x224xf32>
    %229 = arith.addf %219, %228 : vector<8x224xf32>
    %230 = arith.maximumf %224, %229 : vector<8x224xf32>
    %231 = vector.extract_strided_slice %230 {offsets = [0, 0], sizes = [8, 216], strides = [1, 1]} : vector<8x224xf32> to vector<8x216xf32>
    %232 = vector.extract_strided_slice %230 {offsets = [0, 8], sizes = [8, 216], strides = [1, 1]} : vector<8x224xf32> to vector<8x216xf32>
    %233 = arith.maximumf %231, %232 : vector<8x216xf32>
    %234 = vector.extract_strided_slice %233 {offsets = [0, 0], sizes = [8, 8], strides = [1, 1]} : vector<8x216xf32> to vector<8x8xf32>
    %235 = vector.extract_strided_slice %233 {offsets = [0, 16], sizes = [8, 8], strides = [1, 1]} : vector<8x216xf32> to vector<8x8xf32>
    %236 = vector.extract_strided_slice %233 {offsets = [0, 32], sizes = [8, 8], strides = [1, 1]} : vector<8x216xf32> to vector<8x8xf32>
    %237 = vector.extract_strided_slice %233 {offsets = [0, 48], sizes = [8, 8], strides = [1, 1]} : vector<8x216xf32> to vector<8x8xf32>
    %238 = vector.extract_strided_slice %233 {offsets = [0, 64], sizes = [8, 8], strides = [1, 1]} : vector<8x216xf32> to vector<8x8xf32>
    %239 = vector.extract_strided_slice %233 {offsets = [0, 80], sizes = [8, 8], strides = [1, 1]} : vector<8x216xf32> to vector<8x8xf32>
    %240 = vector.extract_strided_slice %233 {offsets = [0, 96], sizes = [8, 8], strides = [1, 1]} : vector<8x216xf32> to vector<8x8xf32>
    %241 = vector.extract_strided_slice %233 {offsets = [0, 112], sizes = [8, 8], strides = [1, 1]} : vector<8x216xf32> to vector<8x8xf32>
    %242 = vector.extract_strided_slice %233 {offsets = [0, 128], sizes = [8, 8], strides = [1, 1]} : vector<8x216xf32> to vector<8x8xf32>
    %243 = vector.extract_strided_slice %233 {offsets = [0, 144], sizes = [8, 8], strides = [1, 1]} : vector<8x216xf32> to vector<8x8xf32>
    %244 = vector.extract_strided_slice %233 {offsets = [0, 160], sizes = [8, 8], strides = [1, 1]} : vector<8x216xf32> to vector<8x8xf32>
    %245 = vector.extract_strided_slice %233 {offsets = [0, 176], sizes = [8, 8], strides = [1, 1]} : vector<8x216xf32> to vector<8x8xf32>
    %246 = vector.extract_strided_slice %233 {offsets = [0, 192], sizes = [8, 8], strides = [1, 1]} : vector<8x216xf32> to vector<8x8xf32>
    %247 = vector.extract_strided_slice %233 {offsets = [0, 208], sizes = [8, 8], strides = [1, 1]} : vector<8x216xf32> to vector<8x8xf32>
    %248 = tpu.concatenate %234, %235, %236, %237, %238, %239, %240, %241, %242, %243, %244, %245, %246, %247 in 1 : vector<8x8xf32>, vector<8x8xf32>, vector<8x8xf32>, vector<8x8xf32>, vector<8x8xf32>, vector<8x8xf32>, vector<8x8xf32>, vector<8x8xf32>, vector<8x8xf32>, vector<8x8xf32>, vector<8x8xf32>, vector<8x8xf32>, vector<8x8xf32>, vector<8x8xf32> -> vector<8x112xf32>
    %249 = vector.broadcast %10 : vector<8x1xf32> to vector<8x112xf32>
    %250 = arith.addf %248, %249 : vector<8x112xf32>
    %cst_17 = arith.constant 0.000000e+00 : f32
    %251 = vector.broadcast %cst_17 : f32 to vector<8x112xf32>
    %252 = arith.maximumf %250, %251 : vector<8x112xf32>
    %253 = tpu.concatenate %20, %252, %20 in 1 : vector<8x8xf32>, vector<8x112xf32>, vector<8x8xf32> -> vector<8x128xf32>
    %c0_18 = arith.constant 0 : index
    %c256 = arith.constant 256 : index
    %254 = vector.load %arg9[%c0_18, %c256] : memref<8x2176xf32, #tpu.memory_space<vmem>>, vector<8x128xf32>
    tpu.vector_store %arg9[%c0_18, %c256], %253 {strides = array<i32>} : memref<8x2176xf32, #tpu.memory_space<vmem>>, vector<8x128xf32>,
    %cst_19 = arith.constant 0.000000e+00 : f32
    %255 = vector.broadcast %cst_19 : f32 to vector<8x224xf32>
    %cst_20 = arith.constant 0.000000e+00 : f32
    %256 = vector.broadcast %cst_20 : f32 to vector<8x224xf32>
    %257 = vector.extract_strided_slice %6 {offsets = [4, 0], sizes = [1, 224], strides = [1, 1]} : vector<30x224xf32> to vector<1x224xf32>
    %258 = vector.broadcast %11 : vector<8x1xf32> to vector<8x224xf32>
    %259 = vector.broadcast %257 : vector<1x224xf32> to vector<8x224xf32>
    %260 = arith.mulf %258, %259 : vector<8x224xf32>
    %261 = arith.addf %255, %260 : vector<8x224xf32>
    %262 = vector.extract_strided_slice %6 {offsets = [5, 0], sizes = [1, 224], strides = [1, 1]} : vector<30x224xf32> to vector<1x224xf32>
    %263 = vector.broadcast %11 : vector<8x1xf32> to vector<8x224xf32>
    %264 = vector.broadcast %262 : vector<1x224xf32> to vector<8x224xf32>
    %265 = arith.mulf %263, %264 : vector<8x224xf32>
    %266 = arith.addf %256, %265 : vector<8x224xf32>
    %267 = vector.extract_strided_slice %7 {offsets = [4, 0], sizes = [1, 224], strides = [1, 1]} : vector<30x224xf32> to vector<1x224xf32>
    %268 = vector.broadcast %12 : vector<8x1xf32> to vector<8x224xf32>
    %269 = vector.broadcast %267 : vector<1x224xf32> to vector<8x224xf32>
    %270 = arith.mulf %268, %269 : vector<8x224xf32>
    %271 = arith.addf %261, %270 : vector<8x224xf32>
    %272 = vector.extract_strided_slice %7 {offsets = [5, 0], sizes = [1, 224], strides = [1, 1]} : vector<30x224xf32> to vector<1x224xf32>
    %273 = vector.broadcast %12 : vector<8x1xf32> to vector<8x224xf32>
    %274 = vector.broadcast %272 : vector<1x224xf32> to vector<8x224xf32>
    %275 = arith.mulf %273, %274 : vector<8x224xf32>
    %276 = arith.addf %266, %275 : vector<8x224xf32>
    %277 = vector.extract_strided_slice %8 {offsets = [4, 0], sizes = [1, 224], strides = [1, 1]} : vector<30x224xf32> to vector<1x224xf32>
    %278 = vector.broadcast %13 : vector<8x1xf32> to vector<8x224xf32>
    %279 = vector.broadcast %277 : vector<1x224xf32> to vector<8x224xf32>
    %280 = arith.mulf %278, %279 : vector<8x224xf32>
    %281 = arith.addf %271, %280 : vector<8x224xf32>
    %282 = vector.extract_strided_slice %8 {offsets = [5, 0], sizes = [1, 224], strides = [1, 1]} : vector<30x224xf32> to vector<1x224xf32>
    %283 = vector.broadcast %13 : vector<8x1xf32> to vector<8x224xf32>
    %284 = vector.broadcast %282 : vector<1x224xf32> to vector<8x224xf32>
    %285 = arith.mulf %283, %284 : vector<8x224xf32>
    %286 = arith.addf %276, %285 : vector<8x224xf32>
    %287 = vector.extract_strided_slice %6 {offsets = [5, 0], sizes = [1, 224], strides = [1, 1]} : vector<30x224xf32> to vector<1x224xf32>
    %288 = vector.broadcast %14 : vector<8x1xf32> to vector<8x224xf32>
    %289 = vector.broadcast %287 : vector<1x224xf32> to vector<8x224xf32>
    %290 = arith.mulf %288, %289 : vector<8x224xf32>
    %291 = arith.addf %281, %290 : vector<8x224xf32>
    %292 = vector.extract_strided_slice %6 {offsets = [6, 0], sizes = [1, 224], strides = [1, 1]} : vector<30x224xf32> to vector<1x224xf32>
    %293 = vector.broadcast %14 : vector<8x1xf32> to vector<8x224xf32>
    %294 = vector.broadcast %292 : vector<1x224xf32> to vector<8x224xf32>
    %295 = arith.mulf %293, %294 : vector<8x224xf32>
    %296 = arith.addf %286, %295 : vector<8x224xf32>
    %297 = vector.extract_strided_slice %7 {offsets = [5, 0], sizes = [1, 224], strides = [1, 1]} : vector<30x224xf32> to vector<1x224xf32>
    %298 = vector.broadcast %15 : vector<8x1xf32> to vector<8x224xf32>
    %299 = vector.broadcast %297 : vector<1x224xf32> to vector<8x224xf32>
    %300 = arith.mulf %298, %299 : vector<8x224xf32>
    %301 = arith.addf %291, %300 : vector<8x224xf32>
    %302 = vector.extract_strided_slice %7 {offsets = [6, 0], sizes = [1, 224], strides = [1, 1]} : vector<30x224xf32> to vector<1x224xf32>
    %303 = vector.broadcast %15 : vector<8x1xf32> to vector<8x224xf32>
    %304 = vector.broadcast %302 : vector<1x224xf32> to vector<8x224xf32>
    %305 = arith.mulf %303, %304 : vector<8x224xf32>
    %306 = arith.addf %296, %305 : vector<8x224xf32>
    %307 = vector.extract_strided_slice %8 {offsets = [5, 0], sizes = [1, 224], strides = [1, 1]} : vector<30x224xf32> to vector<1x224xf32>
    %308 = vector.broadcast %16 : vector<8x1xf32> to vector<8x224xf32>
    %309 = vector.broadcast %307 : vector<1x224xf32> to vector<8x224xf32>
    %310 = arith.mulf %308, %309 : vector<8x224xf32>
    %311 = arith.addf %301, %310 : vector<8x224xf32>
    %312 = vector.extract_strided_slice %8 {offsets = [6, 0], sizes = [1, 224], strides = [1, 1]} : vector<30x224xf32> to vector<1x224xf32>
    %313 = vector.broadcast %16 : vector<8x1xf32> to vector<8x224xf32>
    %314 = vector.broadcast %312 : vector<1x224xf32> to vector<8x224xf32>
    %315 = arith.mulf %313, %314 : vector<8x224xf32>
    %316 = arith.addf %306, %315 : vector<8x224xf32>
    %317 = vector.extract_strided_slice %6 {offsets = [6, 0], sizes = [1, 224], strides = [1, 1]} : vector<30x224xf32> to vector<1x224xf32>
    %318 = vector.broadcast %17 : vector<8x1xf32> to vector<8x224xf32>
    %319 = vector.broadcast %317 : vector<1x224xf32> to vector<8x224xf32>
    %320 = arith.mulf %318, %319 : vector<8x224xf32>
    %321 = arith.addf %311, %320 : vector<8x224xf32>
    %322 = vector.extract_strided_slice %6 {offsets = [7, 0], sizes = [1, 224], strides = [1, 1]} : vector<30x224xf32> to vector<1x224xf32>
    %323 = vector.broadcast %17 : vector<8x1xf32> to vector<8x224xf32>
    %324 = vector.broadcast %322 : vector<1x224xf32> to vector<8x224xf32>
    %325 = arith.mulf %323, %324 : vector<8x224xf32>
    %326 = arith.addf %316, %325 : vector<8x224xf32>
    %327 = vector.extract_strided_slice %7 {offsets = [6, 0], sizes = [1, 224], strides = [1, 1]} : vector<30x224xf32> to vector<1x224xf32>
    %328 = vector.broadcast %18 : vector<8x1xf32> to vector<8x224xf32>
    %329 = vector.broadcast %327 : vector<1x224xf32> to vector<8x224xf32>
    %330 = arith.mulf %328, %329 : vector<8x224xf32>
    %331 = arith.addf %321, %330 : vector<8x224xf32>
    %332 = vector.extract_strided_slice %7 {offsets = [7, 0], sizes = [1, 224], strides = [1, 1]} : vector<30x224xf32> to vector<1x224xf32>
    %333 = vector.broadcast %18 : vector<8x1xf32> to vector<8x224xf32>
    %334 = vector.broadcast %332 : vector<1x224xf32> to vector<8x224xf32>
    %335 = arith.mulf %333, %334 : vector<8x224xf32>
    %336 = arith.addf %326, %335 : vector<8x224xf32>
    %337 = vector.extract_strided_slice %8 {offsets = [6, 0], sizes = [1, 224], strides = [1, 1]} : vector<30x224xf32> to vector<1x224xf32>
    %338 = vector.broadcast %19 : vector<8x1xf32> to vector<8x224xf32>
    %339 = vector.broadcast %337 : vector<1x224xf32> to vector<8x224xf32>
    %340 = arith.mulf %338, %339 : vector<8x224xf32>
    %341 = arith.addf %331, %340 : vector<8x224xf32>
    %342 = vector.extract_strided_slice %8 {offsets = [7, 0], sizes = [1, 224], strides = [1, 1]} : vector<30x224xf32> to vector<1x224xf32>
    %343 = vector.broadcast %19 : vector<8x1xf32> to vector<8x224xf32>
    %344 = vector.broadcast %342 : vector<1x224xf32> to vector<8x224xf32>
    %345 = arith.mulf %343, %344 : vector<8x224xf32>
    %346 = arith.addf %336, %345 : vector<8x224xf32>
    %347 = arith.maximumf %341, %346 : vector<8x224xf32>
    %348 = vector.extract_strided_slice %347 {offsets = [0, 0], sizes = [8, 216], strides = [1, 1]} : vector<8x224xf32> to vector<8x216xf32>
    %349 = vector.extract_strided_slice %347 {offsets = [0, 8], sizes = [8, 216], strides = [1, 1]} : vector<8x224xf32> to vector<8x216xf32>
    %350 = arith.maximumf %348, %349 : vector<8x216xf32>
    %351 = vector.extract_strided_slice %350 {offsets = [0, 0], sizes = [8, 8], strides = [1, 1]} : vector<8x216xf32> to vector<8x8xf32>
    %352 = vector.extract_strided_slice %350 {offsets = [0, 16], sizes = [8, 8], strides = [1, 1]} : vector<8x216xf32> to vector<8x8xf32>
    %353 = vector.extract_strided_slice %350 {offsets = [0, 32], sizes = [8, 8], strides = [1, 1]} : vector<8x216xf32> to vector<8x8xf32>
    %354 = vector.extract_strided_slice %350 {offsets = [0, 48], sizes = [8, 8], strides = [1, 1]} : vector<8x216xf32> to vector<8x8xf32>
    %355 = vector.extract_strided_slice %350 {offsets = [0, 64], sizes = [8, 8], strides = [1, 1]} : vector<8x216xf32> to vector<8x8xf32>
    %356 = vector.extract_strided_slice %350 {offsets = [0, 80], sizes = [8, 8], strides = [1, 1]} : vector<8x216xf32> to vector<8x8xf32>
    %357 = vector.extract_strided_slice %350 {offsets = [0, 96], sizes = [8, 8], strides = [1, 1]} : vector<8x216xf32> to vector<8x8xf32>
    %358 = vector.extract_strided_slice %350 {offsets = [0, 112], sizes = [8, 8], strides = [1, 1]} : vector<8x216xf32> to vector<8x8xf32>
    %359 = vector.extract_strided_slice %350 {offsets = [0, 128], sizes = [8, 8], strides = [1, 1]} : vector<8x216xf32> to vector<8x8xf32>
    %360 = vector.extract_strided_slice %350 {offsets = [0, 144], sizes = [8, 8], strides = [1, 1]} : vector<8x216xf32> to vector<8x8xf32>
    %361 = vector.extract_strided_slice %350 {offsets = [0, 160], sizes = [8, 8], strides = [1, 1]} : vector<8x216xf32> to vector<8x8xf32>
    %362 = vector.extract_strided_slice %350 {offsets = [0, 176], sizes = [8, 8], strides = [1, 1]} : vector<8x216xf32> to vector<8x8xf32>
    %363 = vector.extract_strided_slice %350 {offsets = [0, 192], sizes = [8, 8], strides = [1, 1]} : vector<8x216xf32> to vector<8x8xf32>
    %364 = vector.extract_strided_slice %350 {offsets = [0, 208], sizes = [8, 8], strides = [1, 1]} : vector<8x216xf32> to vector<8x8xf32>
    %365 = tpu.concatenate %351, %352, %353, %354, %355, %356, %357, %358, %359, %360, %361, %362, %363, %364 in 1 : vector<8x8xf32>, vector<8x8xf32>, vector<8x8xf32>, vector<8x8xf32>, vector<8x8xf32>, vector<8x8xf32>, vector<8x8xf32>, vector<8x8xf32>, vector<8x8xf32>, vector<8x8xf32>, vector<8x8xf32>, vector<8x8xf32>, vector<8x8xf32>, vector<8x8xf32> -> vector<8x112xf32>
    %366 = vector.broadcast %10 : vector<8x1xf32> to vector<8x112xf32>
    %367 = arith.addf %365, %366 : vector<8x112xf32>
    %cst_21 = arith.constant 0.000000e+00 : f32
    %368 = vector.broadcast %cst_21 : f32 to vector<8x112xf32>
    %369 = arith.maximumf %367, %368 : vector<8x112xf32>
    %370 = tpu.concatenate %20, %369, %20 in 1 : vector<8x8xf32>, vector<8x112xf32>, vector<8x8xf32> -> vector<8x128xf32>
    %c0_22 = arith.constant 0 : index
    %c384 = arith.constant 384 : index
    %371 = vector.load %arg9[%c0_22, %c384] : memref<8x2176xf32, #tpu.memory_space<vmem>>, vector<8x128xf32>
    tpu.vector_store %arg9[%c0_22, %c384], %370 {strides = array<i32>} : memref<8x2176xf32, #tpu.memory_space<vmem>>, vector<8x128xf32>,
    %cst_23 = arith.constant 0.000000e+00 : f32
    %372 = vector.broadcast %cst_23 : f32 to vector<8x224xf32>
    %cst_24 = arith.constant 0.000000e+00 : f32
    %373 = vector.broadcast %cst_24 : f32 to vector<8x224xf32>
    %374 = vector.extract_strided_slice %6 {offsets = [6, 0], sizes = [1, 224], strides = [1, 1]} : vector<30x224xf32> to vector<1x224xf32>
    %375 = vector.broadcast %11 : vector<8x1xf32> to vector<8x224xf32>
    %376 = vector.broadcast %374 : vector<1x224xf32> to vector<8x224xf32>
    %377 = arith.mulf %375, %376 : vector<8x224xf32>
    %378 = arith.addf %372, %377 : vector<8x224xf32>
    %379 = vector.extract_strided_slice %6 {offsets = [7, 0], sizes = [1, 224], strides = [1, 1]} : vector<30x224xf32> to vector<1x224xf32>
    %380 = vector.broadcast %11 : vector<8x1xf32> to vector<8x224xf32>
    %381 = vector.broadcast %379 : vector<1x224xf32> to vector<8x224xf32>
    %382 = arith.mulf %380, %381 : vector<8x224xf32>
    %383 = arith.addf %373, %382 : vector<8x224xf32>
    %384 = vector.extract_strided_slice %7 {offsets = [6, 0], sizes = [1, 224], strides = [1, 1]} : vector<30x224xf32> to vector<1x224xf32>
    %385 = vector.broadcast %12 : vector<8x1xf32> to vector<8x224xf32>
    %386 = vector.broadcast %384 : vector<1x224xf32> to vector<8x224xf32>
    %387 = arith.mulf %385, %386 : vector<8x224xf32>
    %388 = arith.addf %378, %387 : vector<8x224xf32>
    %389 = vector.extract_strided_slice %7 {offsets = [7, 0], sizes = [1, 224], strides = [1, 1]} : vector<30x224xf32> to vector<1x224xf32>
    %390 = vector.broadcast %12 : vector<8x1xf32> to vector<8x224xf32>
    %391 = vector.broadcast %389 : vector<1x224xf32> to vector<8x224xf32>
    %392 = arith.mulf %390, %391 : vector<8x224xf32>
    %393 = arith.addf %383, %392 : vector<8x224xf32>
    %394 = vector.extract_strided_slice %8 {offsets = [6, 0], sizes = [1, 224], strides = [1, 1]} : vector<30x224xf32> to vector<1x224xf32>
    %395 = vector.broadcast %13 : vector<8x1xf32> to vector<8x224xf32>
    %396 = vector.broadcast %394 : vector<1x224xf32> to vector<8x224xf32>
    %397 = arith.mulf %395, %396 : vector<8x224xf32>
    %398 = arith.addf %388, %397 : vector<8x224xf32>
    %399 = vector.extract_strided_slice %8 {offsets = [7, 0], sizes = [1, 224], strides = [1, 1]} : vector<30x224xf32> to vector<1x224xf32>
    %400 = vector.broadcast %13 : vector<8x1xf32> to vector<8x224xf32>
    %401 = vector.broadcast %399 : vector<1x224xf32> to vector<8x224xf32>
    %402 = arith.mulf %400, %401 : vector<8x224xf32>
    %403 = arith.addf %393, %402 : vector<8x224xf32>
    %404 = vector.extract_strided_slice %6 {offsets = [7, 0], sizes = [1, 224], strides = [1, 1]} : vector<30x224xf32> to vector<1x224xf32>
    %405 = vector.broadcast %14 : vector<8x1xf32> to vector<8x224xf32>
    %406 = vector.broadcast %404 : vector<1x224xf32> to vector<8x224xf32>
    %407 = arith.mulf %405, %406 : vector<8x224xf32>
    %408 = arith.addf %398, %407 : vector<8x224xf32>
    %409 = vector.extract_strided_slice %6 {offsets = [8, 0], sizes = [1, 224], strides = [1, 1]} : vector<30x224xf32> to vector<1x224xf32>
    %410 = vector.broadcast %14 : vector<8x1xf32> to vector<8x224xf32>
    %411 = vector.broadcast %409 : vector<1x224xf32> to vector<8x224xf32>
    %412 = arith.mulf %410, %411 : vector<8x224xf32>
    %413 = arith.addf %403, %412 : vector<8x224xf32>
    %414 = vector.extract_strided_slice %7 {offsets = [7, 0], sizes = [1, 224], strides = [1, 1]} : vector<30x224xf32> to vector<1x224xf32>
    %415 = vector.broadcast %15 : vector<8x1xf32> to vector<8x224xf32>
    %416 = vector.broadcast %414 : vector<1x224xf32> to vector<8x224xf32>
    %417 = arith.mulf %415, %416 : vector<8x224xf32>
    %418 = arith.addf %408, %417 : vector<8x224xf32>
    %419 = vector.extract_strided_slice %7 {offsets = [8, 0], sizes = [1, 224], strides = [1, 1]} : vector<30x224xf32> to vector<1x224xf32>
    %420 = vector.broadcast %15 : vector<8x1xf32> to vector<8x224xf32>
    %421 = vector.broadcast %419 : vector<1x224xf32> to vector<8x224xf32>
    %422 = arith.mulf %420, %421 : vector<8x224xf32>
    %423 = arith.addf %413, %422 : vector<8x224xf32>
    %424 = vector.extract_strided_slice %8 {offsets = [7, 0], sizes = [1, 224], strides = [1, 1]} : vector<30x224xf32> to vector<1x224xf32>
    %425 = vector.broadcast %16 : vector<8x1xf32> to vector<8x224xf32>
    %426 = vector.broadcast %424 : vector<1x224xf32> to vector<8x224xf32>
    %427 = arith.mulf %425, %426 : vector<8x224xf32>
    %428 = arith.addf %418, %427 : vector<8x224xf32>
    %429 = vector.extract_strided_slice %8 {offsets = [8, 0], sizes = [1, 224], strides = [1, 1]} : vector<30x224xf32> to vector<1x224xf32>
    %430 = vector.broadcast %16 : vector<8x1xf32> to vector<8x224xf32>
    %431 = vector.broadcast %429 : vector<1x224xf32> to vector<8x224xf32>
    %432 = arith.mulf %430, %431 : vector<8x224xf32>
    %433 = arith.addf %423, %432 : vector<8x224xf32>
    %434 = vector.extract_strided_slice %6 {offsets = [8, 0], sizes = [1, 224], strides = [1, 1]} : vector<30x224xf32> to vector<1x224xf32>
    %435 = vector.broadcast %17 : vector<8x1xf32> to vector<8x224xf32>
    %436 = vector.broadcast %434 : vector<1x224xf32> to vector<8x224xf32>
    %437 = arith.mulf %435, %436 : vector<8x224xf32>
    %438 = arith.addf %428, %437 : vector<8x224xf32>
    %439 = vector.extract_strided_slice %6 {offsets = [9, 0], sizes = [1, 224], strides = [1, 1]} : vector<30x224xf32> to vector<1x224xf32>
    %440 = vector.broadcast %17 : vector<8x1xf32> to vector<8x224xf32>
    %441 = vector.broadcast %439 : vector<1x224xf32> to vector<8x224xf32>
    %442 = arith.mulf %440, %441 : vector<8x224xf32>
    %443 = arith.addf %433, %442 : vector<8x224xf32>
    %444 = vector.extract_strided_slice %7 {offsets = [8, 0], sizes = [1, 224], strides = [1, 1]} : vector<30x224xf32> to vector<1x224xf32>
    %445 = vector.broadcast %18 : vector<8x1xf32> to vector<8x224xf32>
    %446 = vector.broadcast %444 : vector<1x224xf32> to vector<8x224xf32>
    %447 = arith.mulf %445, %446 : vector<8x224xf32>
    %448 = arith.addf %438, %447 : vector<8x224xf32>
    %449 = vector.extract_strided_slice %7 {offsets = [9, 0], sizes = [1, 224], strides = [1, 1]} : vector<30x224xf32> to vector<1x224xf32>
    %450 = vector.broadcast %18 : vector<8x1xf32> to vector<8x224xf32>
    %451 = vector.broadcast %449 : vector<1x224xf32> to vector<8x224xf32>
    %452 = arith.mulf %450, %451 : vector<8x224xf32>
    %453 = arith.addf %443, %452 : vector<8x224xf32>
    %454 = vector.extract_strided_slice %8 {offsets = [8, 0], sizes = [1, 224], strides = [1, 1]} : vector<30x224xf32> to vector<1x224xf32>
    %455 = vector.broadcast %19 : vector<8x1xf32> to vector<8x224xf32>
    %456 = vector.broadcast %454 : vector<1x224xf32> to vector<8x224xf32>
    %457 = arith.mulf %455, %456 : vector<8x224xf32>
    %458 = arith.addf %448, %457 : vector<8x224xf32>
    %459 = vector.extract_strided_slice %8 {offsets = [9, 0], sizes = [1, 224], strides = [1, 1]} : vector<30x224xf32> to vector<1x224xf32>
    %460 = vector.broadcast %19 : vector<8x1xf32> to vector<8x224xf32>
    %461 = vector.broadcast %459 : vector<1x224xf32> to vector<8x224xf32>
    %462 = arith.mulf %460, %461 : vector<8x224xf32>
    %463 = arith.addf %453, %462 : vector<8x224xf32>
    %464 = arith.maximumf %458, %463 : vector<8x224xf32>
    %465 = vector.extract_strided_slice %464 {offsets = [0, 0], sizes = [8, 216], strides = [1, 1]} : vector<8x224xf32> to vector<8x216xf32>
    %466 = vector.extract_strided_slice %464 {offsets = [0, 8], sizes = [8, 216], strides = [1, 1]} : vector<8x224xf32> to vector<8x216xf32>
    %467 = arith.maximumf %465, %466 : vector<8x216xf32>
    %468 = vector.extract_strided_slice %467 {offsets = [0, 0], sizes = [8, 8], strides = [1, 1]} : vector<8x216xf32> to vector<8x8xf32>
    %469 = vector.extract_strided_slice %467 {offsets = [0, 16], sizes = [8, 8], strides = [1, 1]} : vector<8x216xf32> to vector<8x8xf32>
    %470 = vector.extract_strided_slice %467 {offsets = [0, 32], sizes = [8, 8], strides = [1, 1]} : vector<8x216xf32> to vector<8x8xf32>
    %471 = vector.extract_strided_slice %467 {offsets = [0, 48], sizes = [8, 8], strides = [1, 1]} : vector<8x216xf32> to vector<8x8xf32>
    %472 = vector.extract_strided_slice %467 {offsets = [0, 64], sizes = [8, 8], strides = [1, 1]} : vector<8x216xf32> to vector<8x8xf32>
    %473 = vector.extract_strided_slice %467 {offsets = [0, 80], sizes = [8, 8], strides = [1, 1]} : vector<8x216xf32> to vector<8x8xf32>
    %474 = vector.extract_strided_slice %467 {offsets = [0, 96], sizes = [8, 8], strides = [1, 1]} : vector<8x216xf32> to vector<8x8xf32>
    %475 = vector.extract_strided_slice %467 {offsets = [0, 112], sizes = [8, 8], strides = [1, 1]} : vector<8x216xf32> to vector<8x8xf32>
    %476 = vector.extract_strided_slice %467 {offsets = [0, 128], sizes = [8, 8], strides = [1, 1]} : vector<8x216xf32> to vector<8x8xf32>
    %477 = vector.extract_strided_slice %467 {offsets = [0, 144], sizes = [8, 8], strides = [1, 1]} : vector<8x216xf32> to vector<8x8xf32>
    %478 = vector.extract_strided_slice %467 {offsets = [0, 160], sizes = [8, 8], strides = [1, 1]} : vector<8x216xf32> to vector<8x8xf32>
    %479 = vector.extract_strided_slice %467 {offsets = [0, 176], sizes = [8, 8], strides = [1, 1]} : vector<8x216xf32> to vector<8x8xf32>
    %480 = vector.extract_strided_slice %467 {offsets = [0, 192], sizes = [8, 8], strides = [1, 1]} : vector<8x216xf32> to vector<8x8xf32>
    %481 = vector.extract_strided_slice %467 {offsets = [0, 208], sizes = [8, 8], strides = [1, 1]} : vector<8x216xf32> to vector<8x8xf32>
    %482 = tpu.concatenate %468, %469, %470, %471, %472, %473, %474, %475, %476, %477, %478, %479, %480, %481 in 1 : vector<8x8xf32>, vector<8x8xf32>, vector<8x8xf32>, vector<8x8xf32>, vector<8x8xf32>, vector<8x8xf32>, vector<8x8xf32>, vector<8x8xf32>, vector<8x8xf32>, vector<8x8xf32>, vector<8x8xf32>, vector<8x8xf32>, vector<8x8xf32>, vector<8x8xf32> -> vector<8x112xf32>
    %483 = vector.broadcast %10 : vector<8x1xf32> to vector<8x112xf32>
    %484 = arith.addf %482, %483 : vector<8x112xf32>
    %cst_25 = arith.constant 0.000000e+00 : f32
    %485 = vector.broadcast %cst_25 : f32 to vector<8x112xf32>
    %486 = arith.maximumf %484, %485 : vector<8x112xf32>
    %487 = tpu.concatenate %20, %486, %20 in 1 : vector<8x8xf32>, vector<8x112xf32>, vector<8x8xf32> -> vector<8x128xf32>
    %c0_26 = arith.constant 0 : index
    %c512 = arith.constant 512 : index
    %488 = vector.load %arg9[%c0_26, %c512] : memref<8x2176xf32, #tpu.memory_space<vmem>>, vector<8x128xf32>
    tpu.vector_store %arg9[%c0_26, %c512], %487 {strides = array<i32>} : memref<8x2176xf32, #tpu.memory_space<vmem>>, vector<8x128xf32>,
    %cst_27 = arith.constant 0.000000e+00 : f32
    %489 = vector.broadcast %cst_27 : f32 to vector<8x224xf32>
    %cst_28 = arith.constant 0.000000e+00 : f32
    %490 = vector.broadcast %cst_28 : f32 to vector<8x224xf32>
    %491 = vector.extract_strided_slice %6 {offsets = [8, 0], sizes = [1, 224], strides = [1, 1]} : vector<30x224xf32> to vector<1x224xf32>
    %492 = vector.broadcast %11 : vector<8x1xf32> to vector<8x224xf32>
    %493 = vector.broadcast %491 : vector<1x224xf32> to vector<8x224xf32>
    %494 = arith.mulf %492, %493 : vector<8x224xf32>
    %495 = arith.addf %489, %494 : vector<8x224xf32>
    %496 = vector.extract_strided_slice %6 {offsets = [9, 0], sizes = [1, 224], strides = [1, 1]} : vector<30x224xf32> to vector<1x224xf32>
    %497 = vector.broadcast %11 : vector<8x1xf32> to vector<8x224xf32>
    %498 = vector.broadcast %496 : vector<1x224xf32> to vector<8x224xf32>
    %499 = arith.mulf %497, %498 : vector<8x224xf32>
    %500 = arith.addf %490, %499 : vector<8x224xf32>
    %501 = vector.extract_strided_slice %7 {offsets = [8, 0], sizes = [1, 224], strides = [1, 1]} : vector<30x224xf32> to vector<1x224xf32>
    %502 = vector.broadcast %12 : vector<8x1xf32> to vector<8x224xf32>
    %503 = vector.broadcast %501 : vector<1x224xf32> to vector<8x224xf32>
    %504 = arith.mulf %502, %503 : vector<8x224xf32>
    %505 = arith.addf %495, %504 : vector<8x224xf32>
    %506 = vector.extract_strided_slice %7 {offsets = [9, 0], sizes = [1, 224], strides = [1, 1]} : vector<30x224xf32> to vector<1x224xf32>
    %507 = vector.broadcast %12 : vector<8x1xf32> to vector<8x224xf32>
    %508 = vector.broadcast %506 : vector<1x224xf32> to vector<8x224xf32>
    %509 = arith.mulf %507, %508 : vector<8x224xf32>
    %510 = arith.addf %500, %509 : vector<8x224xf32>
    %511 = vector.extract_strided_slice %8 {offsets = [8, 0], sizes = [1, 224], strides = [1, 1]} : vector<30x224xf32> to vector<1x224xf32>
    %512 = vector.broadcast %13 : vector<8x1xf32> to vector<8x224xf32>
    %513 = vector.broadcast %511 : vector<1x224xf32> to vector<8x224xf32>
    %514 = arith.mulf %512, %513 : vector<8x224xf32>
    %515 = arith.addf %505, %514 : vector<8x224xf32>
    %516 = vector.extract_strided_slice %8 {offsets = [9, 0], sizes = [1, 224], strides = [1, 1]} : vector<30x224xf32> to vector<1x224xf32>
    %517 = vector.broadcast %13 : vector<8x1xf32> to vector<8x224xf32>
    %518 = vector.broadcast %516 : vector<1x224xf32> to vector<8x224xf32>
    %519 = arith.mulf %517, %518 : vector<8x224xf32>
    %520 = arith.addf %510, %519 : vector<8x224xf32>
    %521 = vector.extract_strided_slice %6 {offsets = [9, 0], sizes = [1, 224], strides = [1, 1]} : vector<30x224xf32> to vector<1x224xf32>
    %522 = vector.broadcast %14 : vector<8x1xf32> to vector<8x224xf32>
    %523 = vector.broadcast %521 : vector<1x224xf32> to vector<8x224xf32>
    %524 = arith.mulf %522, %523 : vector<8x224xf32>
    %525 = arith.addf %515, %524 : vector<8x224xf32>
    %526 = vector.extract_strided_slice %6 {offsets = [10, 0], sizes = [1, 224], strides = [1, 1]} : vector<30x224xf32> to vector<1x224xf32>
    %527 = vector.broadcast %14 : vector<8x1xf32> to vector<8x224xf32>
    %528 = vector.broadcast %526 : vector<1x224xf32> to vector<8x224xf32>
    %529 = arith.mulf %527, %528 : vector<8x224xf32>
    %530 = arith.addf %520, %529 : vector<8x224xf32>
    %531 = vector.extract_strided_slice %7 {offsets = [9, 0], sizes = [1, 224], strides = [1, 1]} : vector<30x224xf32> to vector<1x224xf32>
    %532 = vector.broadcast %15 : vector<8x1xf32> to vector<8x224xf32>
    %533 = vector.broadcast %531 : vector<1x224xf32> to vector<8x224xf32>
    %534 = arith.mulf %532, %533 : vector<8x224xf32>
    %535 = arith.addf %525, %534 : vector<8x224xf32>
    %536 = vector.extract_strided_slice %7 {offsets = [10, 0], sizes = [1, 224], strides = [1, 1]} : vector<30x224xf32> to vector<1x224xf32>
    %537 = vector.broadcast %15 : vector<8x1xf32> to vector<8x224xf32>
    %538 = vector.broadcast %536 : vector<1x224xf32> to vector<8x224xf32>
    %539 = arith.mulf %537, %538 : vector<8x224xf32>
    %540 = arith.addf %530, %539 : vector<8x224xf32>
    %541 = vector.extract_strided_slice %8 {offsets = [9, 0], sizes = [1, 224], strides = [1, 1]} : vector<30x224xf32> to vector<1x224xf32>
    %542 = vector.broadcast %16 : vector<8x1xf32> to vector<8x224xf32>
    %543 = vector.broadcast %541 : vector<1x224xf32> to vector<8x224xf32>
    %544 = arith.mulf %542, %543 : vector<8x224xf32>
    %545 = arith.addf %535, %544 : vector<8x224xf32>
    %546 = vector.extract_strided_slice %8 {offsets = [10, 0], sizes = [1, 224], strides = [1, 1]} : vector<30x224xf32> to vector<1x224xf32>
    %547 = vector.broadcast %16 : vector<8x1xf32> to vector<8x224xf32>
    %548 = vector.broadcast %546 : vector<1x224xf32> to vector<8x224xf32>
    %549 = arith.mulf %547, %548 : vector<8x224xf32>
    %550 = arith.addf %540, %549 : vector<8x224xf32>
    %551 = vector.extract_strided_slice %6 {offsets = [10, 0], sizes = [1, 224], strides = [1, 1]} : vector<30x224xf32> to vector<1x224xf32>
    %552 = vector.broadcast %17 : vector<8x1xf32> to vector<8x224xf32>
    %553 = vector.broadcast %551 : vector<1x224xf32> to vector<8x224xf32>
    %554 = arith.mulf %552, %553 : vector<8x224xf32>
    %555 = arith.addf %545, %554 : vector<8x224xf32>
    %556 = vector.extract_strided_slice %6 {offsets = [11, 0], sizes = [1, 224], strides = [1, 1]} : vector<30x224xf32> to vector<1x224xf32>
    %557 = vector.broadcast %17 : vector<8x1xf32> to vector<8x224xf32>
    %558 = vector.broadcast %556 : vector<1x224xf32> to vector<8x224xf32>
    %559 = arith.mulf %557, %558 : vector<8x224xf32>
    %560 = arith.addf %550, %559 : vector<8x224xf32>
    %561 = vector.extract_strided_slice %7 {offsets = [10, 0], sizes = [1, 224], strides = [1, 1]} : vector<30x224xf32> to vector<1x224xf32>
    %562 = vector.broadcast %18 : vector<8x1xf32> to vector<8x224xf32>
    %563 = vector.broadcast %561 : vector<1x224xf32> to vector<8x224xf32>
    %564 = arith.mulf %562, %563 : vector<8x224xf32>
    %565 = arith.addf %555, %564 : vector<8x224xf32>
    %566 = vector.extract_strided_slice %7 {offsets = [11, 0], sizes = [1, 224], strides = [1, 1]} : vector<30x224xf32> to vector<1x224xf32>
    %567 = vector.broadcast %18 : vector<8x1xf32> to vector<8x224xf32>
    %568 = vector.broadcast %566 : vector<1x224xf32> to vector<8x224xf32>
    %569 = arith.mulf %567, %568 : vector<8x224xf32>
    %570 = arith.addf %560, %569 : vector<8x224xf32>
    %571 = vector.extract_strided_slice %8 {offsets = [10, 0], sizes = [1, 224], strides = [1, 1]} : vector<30x224xf32> to vector<1x224xf32>
    %572 = vector.broadcast %19 : vector<8x1xf32> to vector<8x224xf32>
    %573 = vector.broadcast %571 : vector<1x224xf32> to vector<8x224xf32>
    %574 = arith.mulf %572, %573 : vector<8x224xf32>
    %575 = arith.addf %565, %574 : vector<8x224xf32>
    %576 = vector.extract_strided_slice %8 {offsets = [11, 0], sizes = [1, 224], strides = [1, 1]} : vector<30x224xf32> to vector<1x224xf32>
    %577 = vector.broadcast %19 : vector<8x1xf32> to vector<8x224xf32>
    %578 = vector.broadcast %576 : vector<1x224xf32> to vector<8x224xf32>
    %579 = arith.mulf %577, %578 : vector<8x224xf32>
    %580 = arith.addf %570, %579 : vector<8x224xf32>
    %581 = arith.maximumf %575, %580 : vector<8x224xf32>
    %582 = vector.extract_strided_slice %581 {offsets = [0, 0], sizes = [8, 216], strides = [1, 1]} : vector<8x224xf32> to vector<8x216xf32>
    %583 = vector.extract_strided_slice %581 {offsets = [0, 8], sizes = [8, 216], strides = [1, 1]} : vector<8x224xf32> to vector<8x216xf32>
    %584 = arith.maximumf %582, %583 : vector<8x216xf32>
    %585 = vector.extract_strided_slice %584 {offsets = [0, 0], sizes = [8, 8], strides = [1, 1]} : vector<8x216xf32> to vector<8x8xf32>
    %586 = vector.extract_strided_slice %584 {offsets = [0, 16], sizes = [8, 8], strides = [1, 1]} : vector<8x216xf32> to vector<8x8xf32>
    %587 = vector.extract_strided_slice %584 {offsets = [0, 32], sizes = [8, 8], strides = [1, 1]} : vector<8x216xf32> to vector<8x8xf32>
    %588 = vector.extract_strided_slice %584 {offsets = [0, 48], sizes = [8, 8], strides = [1, 1]} : vector<8x216xf32> to vector<8x8xf32>
    %589 = vector.extract_strided_slice %584 {offsets = [0, 64], sizes = [8, 8], strides = [1, 1]} : vector<8x216xf32> to vector<8x8xf32>
    %590 = vector.extract_strided_slice %584 {offsets = [0, 80], sizes = [8, 8], strides = [1, 1]} : vector<8x216xf32> to vector<8x8xf32>
    %591 = vector.extract_strided_slice %584 {offsets = [0, 96], sizes = [8, 8], strides = [1, 1]} : vector<8x216xf32> to vector<8x8xf32>
    %592 = vector.extract_strided_slice %584 {offsets = [0, 112], sizes = [8, 8], strides = [1, 1]} : vector<8x216xf32> to vector<8x8xf32>
    %593 = vector.extract_strided_slice %584 {offsets = [0, 128], sizes = [8, 8], strides = [1, 1]} : vector<8x216xf32> to vector<8x8xf32>
    %594 = vector.extract_strided_slice %584 {offsets = [0, 144], sizes = [8, 8], strides = [1, 1]} : vector<8x216xf32> to vector<8x8xf32>
    %595 = vector.extract_strided_slice %584 {offsets = [0, 160], sizes = [8, 8], strides = [1, 1]} : vector<8x216xf32> to vector<8x8xf32>
    %596 = vector.extract_strided_slice %584 {offsets = [0, 176], sizes = [8, 8], strides = [1, 1]} : vector<8x216xf32> to vector<8x8xf32>
    %597 = vector.extract_strided_slice %584 {offsets = [0, 192], sizes = [8, 8], strides = [1, 1]} : vector<8x216xf32> to vector<8x8xf32>
    %598 = vector.extract_strided_slice %584 {offsets = [0, 208], sizes = [8, 8], strides = [1, 1]} : vector<8x216xf32> to vector<8x8xf32>
    %599 = tpu.concatenate %585, %586, %587, %588, %589, %590, %591, %592, %593, %594, %595, %596, %597, %598 in 1 : vector<8x8xf32>, vector<8x8xf32>, vector<8x8xf32>, vector<8x8xf32>, vector<8x8xf32>, vector<8x8xf32>, vector<8x8xf32>, vector<8x8xf32>, vector<8x8xf32>, vector<8x8xf32>, vector<8x8xf32>, vector<8x8xf32>, vector<8x8xf32>, vector<8x8xf32> -> vector<8x112xf32>
    %600 = vector.broadcast %10 : vector<8x1xf32> to vector<8x112xf32>
    %601 = arith.addf %599, %600 : vector<8x112xf32>
    %cst_29 = arith.constant 0.000000e+00 : f32
    %602 = vector.broadcast %cst_29 : f32 to vector<8x112xf32>
    %603 = arith.maximumf %601, %602 : vector<8x112xf32>
    %604 = tpu.concatenate %20, %603, %20 in 1 : vector<8x8xf32>, vector<8x112xf32>, vector<8x8xf32> -> vector<8x128xf32>
    %c0_30 = arith.constant 0 : index
    %c640 = arith.constant 640 : index
    %605 = vector.load %arg9[%c0_30, %c640] : memref<8x2176xf32, #tpu.memory_space<vmem>>, vector<8x128xf32>
    tpu.vector_store %arg9[%c0_30, %c640], %604 {strides = array<i32>} : memref<8x2176xf32, #tpu.memory_space<vmem>>, vector<8x128xf32>,
    %cst_31 = arith.constant 0.000000e+00 : f32
    %606 = vector.broadcast %cst_31 : f32 to vector<8x224xf32>
    %cst_32 = arith.constant 0.000000e+00 : f32
    %607 = vector.broadcast %cst_32 : f32 to vector<8x224xf32>
    %608 = vector.extract_strided_slice %6 {offsets = [10, 0], sizes = [1, 224], strides = [1, 1]} : vector<30x224xf32> to vector<1x224xf32>
    %609 = vector.broadcast %11 : vector<8x1xf32> to vector<8x224xf32>
    %610 = vector.broadcast %608 : vector<1x224xf32> to vector<8x224xf32>
    %611 = arith.mulf %609, %610 : vector<8x224xf32>
    %612 = arith.addf %606, %611 : vector<8x224xf32>
    %613 = vector.extract_strided_slice %6 {offsets = [11, 0], sizes = [1, 224], strides = [1, 1]} : vector<30x224xf32> to vector<1x224xf32>
    %614 = vector.broadcast %11 : vector<8x1xf32> to vector<8x224xf32>
    %615 = vector.broadcast %613 : vector<1x224xf32> to vector<8x224xf32>
    %616 = arith.mulf %614, %615 : vector<8x224xf32>
    %617 = arith.addf %607, %616 : vector<8x224xf32>
    %618 = vector.extract_strided_slice %7 {offsets = [10, 0], sizes = [1, 224], strides = [1, 1]} : vector<30x224xf32> to vector<1x224xf32>
    %619 = vector.broadcast %12 : vector<8x1xf32> to vector<8x224xf32>
    %620 = vector.broadcast %618 : vector<1x224xf32> to vector<8x224xf32>
    %621 = arith.mulf %619, %620 : vector<8x224xf32>
    %622 = arith.addf %612, %621 : vector<8x224xf32>
    %623 = vector.extract_strided_slice %7 {offsets = [11, 0], sizes = [1, 224], strides = [1, 1]} : vector<30x224xf32> to vector<1x224xf32>
    %624 = vector.broadcast %12 : vector<8x1xf32> to vector<8x224xf32>
    %625 = vector.broadcast %623 : vector<1x224xf32> to vector<8x224xf32>
    %626 = arith.mulf %624, %625 : vector<8x224xf32>
    %627 = arith.addf %617, %626 : vector<8x224xf32>
    %628 = vector.extract_strided_slice %8 {offsets = [10, 0], sizes = [1, 224], strides = [1, 1]} : vector<30x224xf32> to vector<1x224xf32>
    %629 = vector.broadcast %13 : vector<8x1xf32> to vector<8x224xf32>
    %630 = vector.broadcast %628 : vector<1x224xf32> to vector<8x224xf32>
    %631 = arith.mulf %629, %630 : vector<8x224xf32>
    %632 = arith.addf %622, %631 : vector<8x224xf32>
    %633 = vector.extract_strided_slice %8 {offsets = [11, 0], sizes = [1, 224], strides = [1, 1]} : vector<30x224xf32> to vector<1x224xf32>
    %634 = vector.broadcast %13 : vector<8x1xf32> to vector<8x224xf32>
    %635 = vector.broadcast %633 : vector<1x224xf32> to vector<8x224xf32>
    %636 = arith.mulf %634, %635 : vector<8x224xf32>
    %637 = arith.addf %627, %636 : vector<8x224xf32>
    %638 = vector.extract_strided_slice %6 {offsets = [11, 0], sizes = [1, 224], strides = [1, 1]} : vector<30x224xf32> to vector<1x224xf32>
    %639 = vector.broadcast %14 : vector<8x1xf32> to vector<8x224xf32>
    %640 = vector.broadcast %638 : vector<1x224xf32> to vector<8x224xf32>
    %641 = arith.mulf %639, %640 : vector<8x224xf32>
    %642 = arith.addf %632, %641 : vector<8x224xf32>
    %643 = vector.extract_strided_slice %6 {offsets = [12, 0], sizes = [1, 224], strides = [1, 1]} : vector<30x224xf32> to vector<1x224xf32>
    %644 = vector.broadcast %14 : vector<8x1xf32> to vector<8x224xf32>
    %645 = vector.broadcast %643 : vector<1x224xf32> to vector<8x224xf32>
    %646 = arith.mulf %644, %645 : vector<8x224xf32>
    %647 = arith.addf %637, %646 : vector<8x224xf32>
    %648 = vector.extract_strided_slice %7 {offsets = [11, 0], sizes = [1, 224], strides = [1, 1]} : vector<30x224xf32> to vector<1x224xf32>
    %649 = vector.broadcast %15 : vector<8x1xf32> to vector<8x224xf32>
    %650 = vector.broadcast %648 : vector<1x224xf32> to vector<8x224xf32>
    %651 = arith.mulf %649, %650 : vector<8x224xf32>
    %652 = arith.addf %642, %651 : vector<8x224xf32>
    %653 = vector.extract_strided_slice %7 {offsets = [12, 0], sizes = [1, 224], strides = [1, 1]} : vector<30x224xf32> to vector<1x224xf32>
    %654 = vector.broadcast %15 : vector<8x1xf32> to vector<8x224xf32>
    %655 = vector.broadcast %653 : vector<1x224xf32> to vector<8x224xf32>
    %656 = arith.mulf %654, %655 : vector<8x224xf32>
    %657 = arith.addf %647, %656 : vector<8x224xf32>
    %658 = vector.extract_strided_slice %8 {offsets = [11, 0], sizes = [1, 224], strides = [1, 1]} : vector<30x224xf32> to vector<1x224xf32>
    %659 = vector.broadcast %16 : vector<8x1xf32> to vector<8x224xf32>
    %660 = vector.broadcast %658 : vector<1x224xf32> to vector<8x224xf32>
    %661 = arith.mulf %659, %660 : vector<8x224xf32>
    %662 = arith.addf %652, %661 : vector<8x224xf32>
    %663 = vector.extract_strided_slice %8 {offsets = [12, 0], sizes = [1, 224], strides = [1, 1]} : vector<30x224xf32> to vector<1x224xf32>
    %664 = vector.broadcast %16 : vector<8x1xf32> to vector<8x224xf32>
    %665 = vector.broadcast %663 : vector<1x224xf32> to vector<8x224xf32>
    %666 = arith.mulf %664, %665 : vector<8x224xf32>
    %667 = arith.addf %657, %666 : vector<8x224xf32>
    %668 = vector.extract_strided_slice %6 {offsets = [12, 0], sizes = [1, 224], strides = [1, 1]} : vector<30x224xf32> to vector<1x224xf32>
    %669 = vector.broadcast %17 : vector<8x1xf32> to vector<8x224xf32>
    %670 = vector.broadcast %668 : vector<1x224xf32> to vector<8x224xf32>
    %671 = arith.mulf %669, %670 : vector<8x224xf32>
    %672 = arith.addf %662, %671 : vector<8x224xf32>
    %673 = vector.extract_strided_slice %6 {offsets = [13, 0], sizes = [1, 224], strides = [1, 1]} : vector<30x224xf32> to vector<1x224xf32>
    %674 = vector.broadcast %17 : vector<8x1xf32> to vector<8x224xf32>
    %675 = vector.broadcast %673 : vector<1x224xf32> to vector<8x224xf32>
    %676 = arith.mulf %674, %675 : vector<8x224xf32>
    %677 = arith.addf %667, %676 : vector<8x224xf32>
    %678 = vector.extract_strided_slice %7 {offsets = [12, 0], sizes = [1, 224], strides = [1, 1]} : vector<30x224xf32> to vector<1x224xf32>
    %679 = vector.broadcast %18 : vector<8x1xf32> to vector<8x224xf32>
    %680 = vector.broadcast %678 : vector<1x224xf32> to vector<8x224xf32>
    %681 = arith.mulf %679, %680 : vector<8x224xf32>
    %682 = arith.addf %672, %681 : vector<8x224xf32>
    %683 = vector.extract_strided_slice %7 {offsets = [13, 0], sizes = [1, 224], strides = [1, 1]} : vector<30x224xf32> to vector<1x224xf32>
    %684 = vector.broadcast %18 : vector<8x1xf32> to vector<8x224xf32>
    %685 = vector.broadcast %683 : vector<1x224xf32> to vector<8x224xf32>
    %686 = arith.mulf %684, %685 : vector<8x224xf32>
    %687 = arith.addf %677, %686 : vector<8x224xf32>
    %688 = vector.extract_strided_slice %8 {offsets = [12, 0], sizes = [1, 224], strides = [1, 1]} : vector<30x224xf32> to vector<1x224xf32>
    %689 = vector.broadcast %19 : vector<8x1xf32> to vector<8x224xf32>
    %690 = vector.broadcast %688 : vector<1x224xf32> to vector<8x224xf32>
    %691 = arith.mulf %689, %690 : vector<8x224xf32>
    %692 = arith.addf %682, %691 : vector<8x224xf32>
    %693 = vector.extract_strided_slice %8 {offsets = [13, 0], sizes = [1, 224], strides = [1, 1]} : vector<30x224xf32> to vector<1x224xf32>
    %694 = vector.broadcast %19 : vector<8x1xf32> to vector<8x224xf32>
    %695 = vector.broadcast %693 : vector<1x224xf32> to vector<8x224xf32>
    %696 = arith.mulf %694, %695 : vector<8x224xf32>
    %697 = arith.addf %687, %696 : vector<8x224xf32>
    %698 = arith.maximumf %692, %697 : vector<8x224xf32>
    %699 = vector.extract_strided_slice %698 {offsets = [0, 0], sizes = [8, 216], strides = [1, 1]} : vector<8x224xf32> to vector<8x216xf32>
    %700 = vector.extract_strided_slice %698 {offsets = [0, 8], sizes = [8, 216], strides = [1, 1]} : vector<8x224xf32> to vector<8x216xf32>
    %701 = arith.maximumf %699, %700 : vector<8x216xf32>
    %702 = vector.extract_strided_slice %701 {offsets = [0, 0], sizes = [8, 8], strides = [1, 1]} : vector<8x216xf32> to vector<8x8xf32>
    %703 = vector.extract_strided_slice %701 {offsets = [0, 16], sizes = [8, 8], strides = [1, 1]} : vector<8x216xf32> to vector<8x8xf32>
    %704 = vector.extract_strided_slice %701 {offsets = [0, 32], sizes = [8, 8], strides = [1, 1]} : vector<8x216xf32> to vector<8x8xf32>
    %705 = vector.extract_strided_slice %701 {offsets = [0, 48], sizes = [8, 8], strides = [1, 1]} : vector<8x216xf32> to vector<8x8xf32>
    %706 = vector.extract_strided_slice %701 {offsets = [0, 64], sizes = [8, 8], strides = [1, 1]} : vector<8x216xf32> to vector<8x8xf32>
    %707 = vector.extract_strided_slice %701 {offsets = [0, 80], sizes = [8, 8], strides = [1, 1]} : vector<8x216xf32> to vector<8x8xf32>
    %708 = vector.extract_strided_slice %701 {offsets = [0, 96], sizes = [8, 8], strides = [1, 1]} : vector<8x216xf32> to vector<8x8xf32>
    %709 = vector.extract_strided_slice %701 {offsets = [0, 112], sizes = [8, 8], strides = [1, 1]} : vector<8x216xf32> to vector<8x8xf32>
    %710 = vector.extract_strided_slice %701 {offsets = [0, 128], sizes = [8, 8], strides = [1, 1]} : vector<8x216xf32> to vector<8x8xf32>
    %711 = vector.extract_strided_slice %701 {offsets = [0, 144], sizes = [8, 8], strides = [1, 1]} : vector<8x216xf32> to vector<8x8xf32>
    %712 = vector.extract_strided_slice %701 {offsets = [0, 160], sizes = [8, 8], strides = [1, 1]} : vector<8x216xf32> to vector<8x8xf32>
    %713 = vector.extract_strided_slice %701 {offsets = [0, 176], sizes = [8, 8], strides = [1, 1]} : vector<8x216xf32> to vector<8x8xf32>
    %714 = vector.extract_strided_slice %701 {offsets = [0, 192], sizes = [8, 8], strides = [1, 1]} : vector<8x216xf32> to vector<8x8xf32>
    %715 = vector.extract_strided_slice %701 {offsets = [0, 208], sizes = [8, 8], strides = [1, 1]} : vector<8x216xf32> to vector<8x8xf32>
    %716 = tpu.concatenate %702, %703, %704, %705, %706, %707, %708, %709, %710, %711, %712, %713, %714, %715 in 1 : vector<8x8xf32>, vector<8x8xf32>, vector<8x8xf32>, vector<8x8xf32>, vector<8x8xf32>, vector<8x8xf32>, vector<8x8xf32>, vector<8x8xf32>, vector<8x8xf32>, vector<8x8xf32>, vector<8x8xf32>, vector<8x8xf32>, vector<8x8xf32>, vector<8x8xf32> -> vector<8x112xf32>
    %717 = vector.broadcast %10 : vector<8x1xf32> to vector<8x112xf32>
    %718 = arith.addf %716, %717 : vector<8x112xf32>
    %cst_33 = arith.constant 0.000000e+00 : f32
    %719 = vector.broadcast %cst_33 : f32 to vector<8x112xf32>
    %720 = arith.maximumf %718, %719 : vector<8x112xf32>
    %721 = tpu.concatenate %20, %720, %20 in 1 : vector<8x8xf32>, vector<8x112xf32>, vector<8x8xf32> -> vector<8x128xf32>
    %c0_34 = arith.constant 0 : index
    %c768 = arith.constant 768 : index
    %722 = vector.load %arg9[%c0_34, %c768] : memref<8x2176xf32, #tpu.memory_space<vmem>>, vector<8x128xf32>
    tpu.vector_store %arg9[%c0_34, %c768], %721 {strides = array<i32>} : memref<8x2176xf32, #tpu.memory_space<vmem>>, vector<8x128xf32>,
    %cst_35 = arith.constant 0.000000e+00 : f32
    %723 = vector.broadcast %cst_35 : f32 to vector<8x224xf32>
    %cst_36 = arith.constant 0.000000e+00 : f32
    %724 = vector.broadcast %cst_36 : f32 to vector<8x224xf32>
    %725 = vector.extract_strided_slice %6 {offsets = [12, 0], sizes = [1, 224], strides = [1, 1]} : vector<30x224xf32> to vector<1x224xf32>
    %726 = vector.broadcast %11 : vector<8x1xf32> to vector<8x224xf32>
    %727 = vector.broadcast %725 : vector<1x224xf32> to vector<8x224xf32>
    %728 = arith.mulf %726, %727 : vector<8x224xf32>
    %729 = arith.addf %723, %728 : vector<8x224xf32>
    %730 = vector.extract_strided_slice %6 {offsets = [13, 0], sizes = [1, 224], strides = [1, 1]} : vector<30x224xf32> to vector<1x224xf32>
    %731 = vector.broadcast %11 : vector<8x1xf32> to vector<8x224xf32>
    %732 = vector.broadcast %730 : vector<1x224xf32> to vector<8x224xf32>
    %733 = arith.mulf %731, %732 : vector<8x224xf32>
    %734 = arith.addf %724, %733 : vector<8x224xf32>
    %735 = vector.extract_strided_slice %7 {offsets = [12, 0], sizes = [1, 224], strides = [1, 1]} : vector<30x224xf32> to vector<1x224xf32>
    %736 = vector.broadcast %12 : vector<8x1xf32> to vector<8x224xf32>
    %737 = vector.broadcast %735 : vector<1x224xf32> to vector<8x224xf32>
    %738 = arith.mulf %736, %737 : vector<8x224xf32>
    %739 = arith.addf %729, %738 : vector<8x224xf32>
    %740 = vector.extract_strided_slice %7 {offsets = [13, 0], sizes = [1, 224], strides = [1, 1]} : vector<30x224xf32> to vector<1x224xf32>
    %741 = vector.broadcast %12 : vector<8x1xf32> to vector<8x224xf32>
    %742 = vector.broadcast %740 : vector<1x224xf32> to vector<8x224xf32>
    %743 = arith.mulf %741, %742 : vector<8x224xf32>
    %744 = arith.addf %734, %743 : vector<8x224xf32>
    %745 = vector.extract_strided_slice %8 {offsets = [12, 0], sizes = [1, 224], strides = [1, 1]} : vector<30x224xf32> to vector<1x224xf32>
    %746 = vector.broadcast %13 : vector<8x1xf32> to vector<8x224xf32>
    %747 = vector.broadcast %745 : vector<1x224xf32> to vector<8x224xf32>
    %748 = arith.mulf %746, %747 : vector<8x224xf32>
    %749 = arith.addf %739, %748 : vector<8x224xf32>
    %750 = vector.extract_strided_slice %8 {offsets = [13, 0], sizes = [1, 224], strides = [1, 1]} : vector<30x224xf32> to vector<1x224xf32>
    %751 = vector.broadcast %13 : vector<8x1xf32> to vector<8x224xf32>
    %752 = vector.broadcast %750 : vector<1x224xf32> to vector<8x224xf32>
    %753 = arith.mulf %751, %752 : vector<8x224xf32>
    %754 = arith.addf %744, %753 : vector<8x224xf32>
    %755 = vector.extract_strided_slice %6 {offsets = [13, 0], sizes = [1, 224], strides = [1, 1]} : vector<30x224xf32> to vector<1x224xf32>
    %756 = vector.broadcast %14 : vector<8x1xf32> to vector<8x224xf32>
    %757 = vector.broadcast %755 : vector<1x224xf32> to vector<8x224xf32>
    %758 = arith.mulf %756, %757 : vector<8x224xf32>
    %759 = arith.addf %749, %758 : vector<8x224xf32>
    %760 = vector.extract_strided_slice %6 {offsets = [14, 0], sizes = [1, 224], strides = [1, 1]} : vector<30x224xf32> to vector<1x224xf32>
    %761 = vector.broadcast %14 : vector<8x1xf32> to vector<8x224xf32>
    %762 = vector.broadcast %760 : vector<1x224xf32> to vector<8x224xf32>
    %763 = arith.mulf %761, %762 : vector<8x224xf32>
    %764 = arith.addf %754, %763 : vector<8x224xf32>
    %765 = vector.extract_strided_slice %7 {offsets = [13, 0], sizes = [1, 224], strides = [1, 1]} : vector<30x224xf32> to vector<1x224xf32>
    %766 = vector.broadcast %15 : vector<8x1xf32> to vector<8x224xf32>
    %767 = vector.broadcast %765 : vector<1x224xf32> to vector<8x224xf32>
    %768 = arith.mulf %766, %767 : vector<8x224xf32>
    %769 = arith.addf %759, %768 : vector<8x224xf32>
    %770 = vector.extract_strided_slice %7 {offsets = [14, 0], sizes = [1, 224], strides = [1, 1]} : vector<30x224xf32> to vector<1x224xf32>
    %771 = vector.broadcast %15 : vector<8x1xf32> to vector<8x224xf32>
    %772 = vector.broadcast %770 : vector<1x224xf32> to vector<8x224xf32>
    %773 = arith.mulf %771, %772 : vector<8x224xf32>
    %774 = arith.addf %764, %773 : vector<8x224xf32>
    %775 = vector.extract_strided_slice %8 {offsets = [13, 0], sizes = [1, 224], strides = [1, 1]} : vector<30x224xf32> to vector<1x224xf32>
    %776 = vector.broadcast %16 : vector<8x1xf32> to vector<8x224xf32>
    %777 = vector.broadcast %775 : vector<1x224xf32> to vector<8x224xf32>
    %778 = arith.mulf %776, %777 : vector<8x224xf32>
    %779 = arith.addf %769, %778 : vector<8x224xf32>
    %780 = vector.extract_strided_slice %8 {offsets = [14, 0], sizes = [1, 224], strides = [1, 1]} : vector<30x224xf32> to vector<1x224xf32>
    %781 = vector.broadcast %16 : vector<8x1xf32> to vector<8x224xf32>
    %782 = vector.broadcast %780 : vector<1x224xf32> to vector<8x224xf32>
    %783 = arith.mulf %781, %782 : vector<8x224xf32>
    %784 = arith.addf %774, %783 : vector<8x224xf32>
    %785 = vector.extract_strided_slice %6 {offsets = [14, 0], sizes = [1, 224], strides = [1, 1]} : vector<30x224xf32> to vector<1x224xf32>
    %786 = vector.broadcast %17 : vector<8x1xf32> to vector<8x224xf32>
    %787 = vector.broadcast %785 : vector<1x224xf32> to vector<8x224xf32>
    %788 = arith.mulf %786, %787 : vector<8x224xf32>
    %789 = arith.addf %779, %788 : vector<8x224xf32>
    %790 = vector.extract_strided_slice %6 {offsets = [15, 0], sizes = [1, 224], strides = [1, 1]} : vector<30x224xf32> to vector<1x224xf32>
    %791 = vector.broadcast %17 : vector<8x1xf32> to vector<8x224xf32>
    %792 = vector.broadcast %790 : vector<1x224xf32> to vector<8x224xf32>
    %793 = arith.mulf %791, %792 : vector<8x224xf32>
    %794 = arith.addf %784, %793 : vector<8x224xf32>
    %795 = vector.extract_strided_slice %7 {offsets = [14, 0], sizes = [1, 224], strides = [1, 1]} : vector<30x224xf32> to vector<1x224xf32>
    %796 = vector.broadcast %18 : vector<8x1xf32> to vector<8x224xf32>
    %797 = vector.broadcast %795 : vector<1x224xf32> to vector<8x224xf32>
    %798 = arith.mulf %796, %797 : vector<8x224xf32>
    %799 = arith.addf %789, %798 : vector<8x224xf32>
    %800 = vector.extract_strided_slice %7 {offsets = [15, 0], sizes = [1, 224], strides = [1, 1]} : vector<30x224xf32> to vector<1x224xf32>
    %801 = vector.broadcast %18 : vector<8x1xf32> to vector<8x224xf32>
    %802 = vector.broadcast %800 : vector<1x224xf32> to vector<8x224xf32>
    %803 = arith.mulf %801, %802 : vector<8x224xf32>
    %804 = arith.addf %794, %803 : vector<8x224xf32>
    %805 = vector.extract_strided_slice %8 {offsets = [14, 0], sizes = [1, 224], strides = [1, 1]} : vector<30x224xf32> to vector<1x224xf32>
    %806 = vector.broadcast %19 : vector<8x1xf32> to vector<8x224xf32>
    %807 = vector.broadcast %805 : vector<1x224xf32> to vector<8x224xf32>
    %808 = arith.mulf %806, %807 : vector<8x224xf32>
    %809 = arith.addf %799, %808 : vector<8x224xf32>
    %810 = vector.extract_strided_slice %8 {offsets = [15, 0], sizes = [1, 224], strides = [1, 1]} : vector<30x224xf32> to vector<1x224xf32>
    %811 = vector.broadcast %19 : vector<8x1xf32> to vector<8x224xf32>
    %812 = vector.broadcast %810 : vector<1x224xf32> to vector<8x224xf32>
    %813 = arith.mulf %811, %812 : vector<8x224xf32>
    %814 = arith.addf %804, %813 : vector<8x224xf32>
    %815 = arith.maximumf %809, %814 : vector<8x224xf32>
    %816 = vector.extract_strided_slice %815 {offsets = [0, 0], sizes = [8, 216], strides = [1, 1]} : vector<8x224xf32> to vector<8x216xf32>
    %817 = vector.extract_strided_slice %815 {offsets = [0, 8], sizes = [8, 216], strides = [1, 1]} : vector<8x224xf32> to vector<8x216xf32>
    %818 = arith.maximumf %816, %817 : vector<8x216xf32>
    %819 = vector.extract_strided_slice %818 {offsets = [0, 0], sizes = [8, 8], strides = [1, 1]} : vector<8x216xf32> to vector<8x8xf32>
    %820 = vector.extract_strided_slice %818 {offsets = [0, 16], sizes = [8, 8], strides = [1, 1]} : vector<8x216xf32> to vector<8x8xf32>
    %821 = vector.extract_strided_slice %818 {offsets = [0, 32], sizes = [8, 8], strides = [1, 1]} : vector<8x216xf32> to vector<8x8xf32>
    %822 = vector.extract_strided_slice %818 {offsets = [0, 48], sizes = [8, 8], strides = [1, 1]} : vector<8x216xf32> to vector<8x8xf32>
    %823 = vector.extract_strided_slice %818 {offsets = [0, 64], sizes = [8, 8], strides = [1, 1]} : vector<8x216xf32> to vector<8x8xf32>
    %824 = vector.extract_strided_slice %818 {offsets = [0, 80], sizes = [8, 8], strides = [1, 1]} : vector<8x216xf32> to vector<8x8xf32>
    %825 = vector.extract_strided_slice %818 {offsets = [0, 96], sizes = [8, 8], strides = [1, 1]} : vector<8x216xf32> to vector<8x8xf32>
    %826 = vector.extract_strided_slice %818 {offsets = [0, 112], sizes = [8, 8], strides = [1, 1]} : vector<8x216xf32> to vector<8x8xf32>
    %827 = vector.extract_strided_slice %818 {offsets = [0, 128], sizes = [8, 8], strides = [1, 1]} : vector<8x216xf32> to vector<8x8xf32>
    %828 = vector.extract_strided_slice %818 {offsets = [0, 144], sizes = [8, 8], strides = [1, 1]} : vector<8x216xf32> to vector<8x8xf32>
    %829 = vector.extract_strided_slice %818 {offsets = [0, 160], sizes = [8, 8], strides = [1, 1]} : vector<8x216xf32> to vector<8x8xf32>
    %830 = vector.extract_strided_slice %818 {offsets = [0, 176], sizes = [8, 8], strides = [1, 1]} : vector<8x216xf32> to vector<8x8xf32>
    %831 = vector.extract_strided_slice %818 {offsets = [0, 192], sizes = [8, 8], strides = [1, 1]} : vector<8x216xf32> to vector<8x8xf32>
    %832 = vector.extract_strided_slice %818 {offsets = [0, 208], sizes = [8, 8], strides = [1, 1]} : vector<8x216xf32> to vector<8x8xf32>
    %833 = tpu.concatenate %819, %820, %821, %822, %823, %824, %825, %826, %827, %828, %829, %830, %831, %832 in 1 : vector<8x8xf32>, vector<8x8xf32>, vector<8x8xf32>, vector<8x8xf32>, vector<8x8xf32>, vector<8x8xf32>, vector<8x8xf32>, vector<8x8xf32>, vector<8x8xf32>, vector<8x8xf32>, vector<8x8xf32>, vector<8x8xf32>, vector<8x8xf32>, vector<8x8xf32> -> vector<8x112xf32>
    %834 = vector.broadcast %10 : vector<8x1xf32> to vector<8x112xf32>
    %835 = arith.addf %833, %834 : vector<8x112xf32>
    %cst_37 = arith.constant 0.000000e+00 : f32
    %836 = vector.broadcast %cst_37 : f32 to vector<8x112xf32>
    %837 = arith.maximumf %835, %836 : vector<8x112xf32>
    %838 = tpu.concatenate %20, %837, %20 in 1 : vector<8x8xf32>, vector<8x112xf32>, vector<8x8xf32> -> vector<8x128xf32>
    %c0_38 = arith.constant 0 : index
    %c896 = arith.constant 896 : index
    %839 = vector.load %arg9[%c0_38, %c896] : memref<8x2176xf32, #tpu.memory_space<vmem>>, vector<8x128xf32>
    tpu.vector_store %arg9[%c0_38, %c896], %838 {strides = array<i32>} : memref<8x2176xf32, #tpu.memory_space<vmem>>, vector<8x128xf32>,
    %cst_39 = arith.constant 0.000000e+00 : f32
    %840 = vector.broadcast %cst_39 : f32 to vector<8x224xf32>
    %cst_40 = arith.constant 0.000000e+00 : f32
    %841 = vector.broadcast %cst_40 : f32 to vector<8x224xf32>
    %842 = vector.extract_strided_slice %6 {offsets = [14, 0], sizes = [1, 224], strides = [1, 1]} : vector<30x224xf32> to vector<1x224xf32>
    %843 = vector.broadcast %11 : vector<8x1xf32> to vector<8x224xf32>
    %844 = vector.broadcast %842 : vector<1x224xf32> to vector<8x224xf32>
    %845 = arith.mulf %843, %844 : vector<8x224xf32>
    %846 = arith.addf %840, %845 : vector<8x224xf32>
    %847 = vector.extract_strided_slice %6 {offsets = [15, 0], sizes = [1, 224], strides = [1, 1]} : vector<30x224xf32> to vector<1x224xf32>
    %848 = vector.broadcast %11 : vector<8x1xf32> to vector<8x224xf32>
    %849 = vector.broadcast %847 : vector<1x224xf32> to vector<8x224xf32>
    %850 = arith.mulf %848, %849 : vector<8x224xf32>
    %851 = arith.addf %841, %850 : vector<8x224xf32>
    %852 = vector.extract_strided_slice %7 {offsets = [14, 0], sizes = [1, 224], strides = [1, 1]} : vector<30x224xf32> to vector<1x224xf32>
    %853 = vector.broadcast %12 : vector<8x1xf32> to vector<8x224xf32>
    %854 = vector.broadcast %852 : vector<1x224xf32> to vector<8x224xf32>
    %855 = arith.mulf %853, %854 : vector<8x224xf32>
    %856 = arith.addf %846, %855 : vector<8x224xf32>
    %857 = vector.extract_strided_slice %7 {offsets = [15, 0], sizes = [1, 224], strides = [1, 1]} : vector<30x224xf32> to vector<1x224xf32>
    %858 = vector.broadcast %12 : vector<8x1xf32> to vector<8x224xf32>
    %859 = vector.broadcast %857 : vector<1x224xf32> to vector<8x224xf32>
    %860 = arith.mulf %858, %859 : vector<8x224xf32>
    %861 = arith.addf %851, %860 : vector<8x224xf32>
    %862 = vector.extract_strided_slice %8 {offsets = [14, 0], sizes = [1, 224], strides = [1, 1]} : vector<30x224xf32> to vector<1x224xf32>
    %863 = vector.broadcast %13 : vector<8x1xf32> to vector<8x224xf32>
    %864 = vector.broadcast %862 : vector<1x224xf32> to vector<8x224xf32>
    %865 = arith.mulf %863, %864 : vector<8x224xf32>
    %866 = arith.addf %856, %865 : vector<8x224xf32>
    %867 = vector.extract_strided_slice %8 {offsets = [15, 0], sizes = [1, 224], strides = [1, 1]} : vector<30x224xf32> to vector<1x224xf32>
    %868 = vector.broadcast %13 : vector<8x1xf32> to vector<8x224xf32>
    %869 = vector.broadcast %867 : vector<1x224xf32> to vector<8x224xf32>
    %870 = arith.mulf %868, %869 : vector<8x224xf32>
    %871 = arith.addf %861, %870 : vector<8x224xf32>
    %872 = vector.extract_strided_slice %6 {offsets = [15, 0], sizes = [1, 224], strides = [1, 1]} : vector<30x224xf32> to vector<1x224xf32>
    %873 = vector.broadcast %14 : vector<8x1xf32> to vector<8x224xf32>
    %874 = vector.broadcast %872 : vector<1x224xf32> to vector<8x224xf32>
    %875 = arith.mulf %873, %874 : vector<8x224xf32>
    %876 = arith.addf %866, %875 : vector<8x224xf32>
    %877 = vector.extract_strided_slice %6 {offsets = [16, 0], sizes = [1, 224], strides = [1, 1]} : vector<30x224xf32> to vector<1x224xf32>
    %878 = vector.broadcast %14 : vector<8x1xf32> to vector<8x224xf32>
    %879 = vector.broadcast %877 : vector<1x224xf32> to vector<8x224xf32>
    %880 = arith.mulf %878, %879 : vector<8x224xf32>
    %881 = arith.addf %871, %880 : vector<8x224xf32>
    %882 = vector.extract_strided_slice %7 {offsets = [15, 0], sizes = [1, 224], strides = [1, 1]} : vector<30x224xf32> to vector<1x224xf32>
    %883 = vector.broadcast %15 : vector<8x1xf32> to vector<8x224xf32>
    %884 = vector.broadcast %882 : vector<1x224xf32> to vector<8x224xf32>
    %885 = arith.mulf %883, %884 : vector<8x224xf32>
    %886 = arith.addf %876, %885 : vector<8x224xf32>
    %887 = vector.extract_strided_slice %7 {offsets = [16, 0], sizes = [1, 224], strides = [1, 1]} : vector<30x224xf32> to vector<1x224xf32>
    %888 = vector.broadcast %15 : vector<8x1xf32> to vector<8x224xf32>
    %889 = vector.broadcast %887 : vector<1x224xf32> to vector<8x224xf32>
    %890 = arith.mulf %888, %889 : vector<8x224xf32>
    %891 = arith.addf %881, %890 : vector<8x224xf32>
    %892 = vector.extract_strided_slice %8 {offsets = [15, 0], sizes = [1, 224], strides = [1, 1]} : vector<30x224xf32> to vector<1x224xf32>
    %893 = vector.broadcast %16 : vector<8x1xf32> to vector<8x224xf32>
    %894 = vector.broadcast %892 : vector<1x224xf32> to vector<8x224xf32>
    %895 = arith.mulf %893, %894 : vector<8x224xf32>
    %896 = arith.addf %886, %895 : vector<8x224xf32>
    %897 = vector.extract_strided_slice %8 {offsets = [16, 0], sizes = [1, 224], strides = [1, 1]} : vector<30x224xf32> to vector<1x224xf32>
    %898 = vector.broadcast %16 : vector<8x1xf32> to vector<8x224xf32>
    %899 = vector.broadcast %897 : vector<1x224xf32> to vector<8x224xf32>
    %900 = arith.mulf %898, %899 : vector<8x224xf32>
    %901 = arith.addf %891, %900 : vector<8x224xf32>
    %902 = vector.extract_strided_slice %6 {offsets = [16, 0], sizes = [1, 224], strides = [1, 1]} : vector<30x224xf32> to vector<1x224xf32>
    %903 = vector.broadcast %17 : vector<8x1xf32> to vector<8x224xf32>
    %904 = vector.broadcast %902 : vector<1x224xf32> to vector<8x224xf32>
    %905 = arith.mulf %903, %904 : vector<8x224xf32>
    %906 = arith.addf %896, %905 : vector<8x224xf32>
    %907 = vector.extract_strided_slice %6 {offsets = [17, 0], sizes = [1, 224], strides = [1, 1]} : vector<30x224xf32> to vector<1x224xf32>
    %908 = vector.broadcast %17 : vector<8x1xf32> to vector<8x224xf32>
    %909 = vector.broadcast %907 : vector<1x224xf32> to vector<8x224xf32>
    %910 = arith.mulf %908, %909 : vector<8x224xf32>
    %911 = arith.addf %901, %910 : vector<8x224xf32>
    %912 = vector.extract_strided_slice %7 {offsets = [16, 0], sizes = [1, 224], strides = [1, 1]} : vector<30x224xf32> to vector<1x224xf32>
    %913 = vector.broadcast %18 : vector<8x1xf32> to vector<8x224xf32>
    %914 = vector.broadcast %912 : vector<1x224xf32> to vector<8x224xf32>
    %915 = arith.mulf %913, %914 : vector<8x224xf32>
    %916 = arith.addf %906, %915 : vector<8x224xf32>
    %917 = vector.extract_strided_slice %7 {offsets = [17, 0], sizes = [1, 224], strides = [1, 1]} : vector<30x224xf32> to vector<1x224xf32>
    %918 = vector.broadcast %18 : vector<8x1xf32> to vector<8x224xf32>
    %919 = vector.broadcast %917 : vector<1x224xf32> to vector<8x224xf32>
    %920 = arith.mulf %918, %919 : vector<8x224xf32>
    %921 = arith.addf %911, %920 : vector<8x224xf32>
    %922 = vector.extract_strided_slice %8 {offsets = [16, 0], sizes = [1, 224], strides = [1, 1]} : vector<30x224xf32> to vector<1x224xf32>
    %923 = vector.broadcast %19 : vector<8x1xf32> to vector<8x224xf32>
    %924 = vector.broadcast %922 : vector<1x224xf32> to vector<8x224xf32>
    %925 = arith.mulf %923, %924 : vector<8x224xf32>
    %926 = arith.addf %916, %925 : vector<8x224xf32>
    %927 = vector.extract_strided_slice %8 {offsets = [17, 0], sizes = [1, 224], strides = [1, 1]} : vector<30x224xf32> to vector<1x224xf32>
    %928 = vector.broadcast %19 : vector<8x1xf32> to vector<8x224xf32>
    %929 = vector.broadcast %927 : vector<1x224xf32> to vector<8x224xf32>
    %930 = arith.mulf %928, %929 : vector<8x224xf32>
    %931 = arith.addf %921, %930 : vector<8x224xf32>
    %932 = arith.maximumf %926, %931 : vector<8x224xf32>
    %933 = vector.extract_strided_slice %932 {offsets = [0, 0], sizes = [8, 216], strides = [1, 1]} : vector<8x224xf32> to vector<8x216xf32>
    %934 = vector.extract_strided_slice %932 {offsets = [0, 8], sizes = [8, 216], strides = [1, 1]} : vector<8x224xf32> to vector<8x216xf32>
    %935 = arith.maximumf %933, %934 : vector<8x216xf32>
    %936 = vector.extract_strided_slice %935 {offsets = [0, 0], sizes = [8, 8], strides = [1, 1]} : vector<8x216xf32> to vector<8x8xf32>
    %937 = vector.extract_strided_slice %935 {offsets = [0, 16], sizes = [8, 8], strides = [1, 1]} : vector<8x216xf32> to vector<8x8xf32>
    %938 = vector.extract_strided_slice %935 {offsets = [0, 32], sizes = [8, 8], strides = [1, 1]} : vector<8x216xf32> to vector<8x8xf32>
    %939 = vector.extract_strided_slice %935 {offsets = [0, 48], sizes = [8, 8], strides = [1, 1]} : vector<8x216xf32> to vector<8x8xf32>
    %940 = vector.extract_strided_slice %935 {offsets = [0, 64], sizes = [8, 8], strides = [1, 1]} : vector<8x216xf32> to vector<8x8xf32>
    %941 = vector.extract_strided_slice %935 {offsets = [0, 80], sizes = [8, 8], strides = [1, 1]} : vector<8x216xf32> to vector<8x8xf32>
    %942 = vector.extract_strided_slice %935 {offsets = [0, 96], sizes = [8, 8], strides = [1, 1]} : vector<8x216xf32> to vector<8x8xf32>
    %943 = vector.extract_strided_slice %935 {offsets = [0, 112], sizes = [8, 8], strides = [1, 1]} : vector<8x216xf32> to vector<8x8xf32>
    %944 = vector.extract_strided_slice %935 {offsets = [0, 128], sizes = [8, 8], strides = [1, 1]} : vector<8x216xf32> to vector<8x8xf32>
    %945 = vector.extract_strided_slice %935 {offsets = [0, 144], sizes = [8, 8], strides = [1, 1]} : vector<8x216xf32> to vector<8x8xf32>
    %946 = vector.extract_strided_slice %935 {offsets = [0, 160], sizes = [8, 8], strides = [1, 1]} : vector<8x216xf32> to vector<8x8xf32>
    %947 = vector.extract_strided_slice %935 {offsets = [0, 176], sizes = [8, 8], strides = [1, 1]} : vector<8x216xf32> to vector<8x8xf32>
    %948 = vector.extract_strided_slice %935 {offsets = [0, 192], sizes = [8, 8], strides = [1, 1]} : vector<8x216xf32> to vector<8x8xf32>
    %949 = vector.extract_strided_slice %935 {offsets = [0, 208], sizes = [8, 8], strides = [1, 1]} : vector<8x216xf32> to vector<8x8xf32>
    %950 = tpu.concatenate %936, %937, %938, %939, %940, %941, %942, %943, %944, %945, %946, %947, %948, %949 in 1 : vector<8x8xf32>, vector<8x8xf32>, vector<8x8xf32>, vector<8x8xf32>, vector<8x8xf32>, vector<8x8xf32>, vector<8x8xf32>, vector<8x8xf32>, vector<8x8xf32>, vector<8x8xf32>, vector<8x8xf32>, vector<8x8xf32>, vector<8x8xf32>, vector<8x8xf32> -> vector<8x112xf32>
    %951 = vector.broadcast %10 : vector<8x1xf32> to vector<8x112xf32>
    %952 = arith.addf %950, %951 : vector<8x112xf32>
    %cst_41 = arith.constant 0.000000e+00 : f32
    %953 = vector.broadcast %cst_41 : f32 to vector<8x112xf32>
    %954 = arith.maximumf %952, %953 : vector<8x112xf32>
    %955 = tpu.concatenate %20, %954, %20 in 1 : vector<8x8xf32>, vector<8x112xf32>, vector<8x8xf32> -> vector<8x128xf32>
    %c0_42 = arith.constant 0 : index
    %c1024 = arith.constant 1024 : index
    %956 = vector.load %arg9[%c0_42, %c1024] : memref<8x2176xf32, #tpu.memory_space<vmem>>, vector<8x128xf32>
    tpu.vector_store %arg9[%c0_42, %c1024], %955 {strides = array<i32>} : memref<8x2176xf32, #tpu.memory_space<vmem>>, vector<8x128xf32>,
    %cst_43 = arith.constant 0.000000e+00 : f32
    %957 = vector.broadcast %cst_43 : f32 to vector<8x224xf32>
    %cst_44 = arith.constant 0.000000e+00 : f32
    %958 = vector.broadcast %cst_44 : f32 to vector<8x224xf32>
    %959 = vector.extract_strided_slice %6 {offsets = [16, 0], sizes = [1, 224], strides = [1, 1]} : vector<30x224xf32> to vector<1x224xf32>
    %960 = vector.broadcast %11 : vector<8x1xf32> to vector<8x224xf32>
    %961 = vector.broadcast %959 : vector<1x224xf32> to vector<8x224xf32>
    %962 = arith.mulf %960, %961 : vector<8x224xf32>
    %963 = arith.addf %957, %962 : vector<8x224xf32>
    %964 = vector.extract_strided_slice %6 {offsets = [17, 0], sizes = [1, 224], strides = [1, 1]} : vector<30x224xf32> to vector<1x224xf32>
    %965 = vector.broadcast %11 : vector<8x1xf32> to vector<8x224xf32>
    %966 = vector.broadcast %964 : vector<1x224xf32> to vector<8x224xf32>
    %967 = arith.mulf %965, %966 : vector<8x224xf32>
    %968 = arith.addf %958, %967 : vector<8x224xf32>
    %969 = vector.extract_strided_slice %7 {offsets = [16, 0], sizes = [1, 224], strides = [1, 1]} : vector<30x224xf32> to vector<1x224xf32>
    %970 = vector.broadcast %12 : vector<8x1xf32> to vector<8x224xf32>
    %971 = vector.broadcast %969 : vector<1x224xf32> to vector<8x224xf32>
    %972 = arith.mulf %970, %971 : vector<8x224xf32>
    %973 = arith.addf %963, %972 : vector<8x224xf32>
    %974 = vector.extract_strided_slice %7 {offsets = [17, 0], sizes = [1, 224], strides = [1, 1]} : vector<30x224xf32> to vector<1x224xf32>
    %975 = vector.broadcast %12 : vector<8x1xf32> to vector<8x224xf32>
    %976 = vector.broadcast %974 : vector<1x224xf32> to vector<8x224xf32>
    %977 = arith.mulf %975, %976 : vector<8x224xf32>
    %978 = arith.addf %968, %977 : vector<8x224xf32>
    %979 = vector.extract_strided_slice %8 {offsets = [16, 0], sizes = [1, 224], strides = [1, 1]} : vector<30x224xf32> to vector<1x224xf32>
    %980 = vector.broadcast %13 : vector<8x1xf32> to vector<8x224xf32>
    %981 = vector.broadcast %979 : vector<1x224xf32> to vector<8x224xf32>
    %982 = arith.mulf %980, %981 : vector<8x224xf32>
    %983 = arith.addf %973, %982 : vector<8x224xf32>
    %984 = vector.extract_strided_slice %8 {offsets = [17, 0], sizes = [1, 224], strides = [1, 1]} : vector<30x224xf32> to vector<1x224xf32>
    %985 = vector.broadcast %13 : vector<8x1xf32> to vector<8x224xf32>
    %986 = vector.broadcast %984 : vector<1x224xf32> to vector<8x224xf32>
    %987 = arith.mulf %985, %986 : vector<8x224xf32>
    %988 = arith.addf %978, %987 : vector<8x224xf32>
    %989 = vector.extract_strided_slice %6 {offsets = [17, 0], sizes = [1, 224], strides = [1, 1]} : vector<30x224xf32> to vector<1x224xf32>
    %990 = vector.broadcast %14 : vector<8x1xf32> to vector<8x224xf32>
    %991 = vector.broadcast %989 : vector<1x224xf32> to vector<8x224xf32>
    %992 = arith.mulf %990, %991 : vector<8x224xf32>
    %993 = arith.addf %983, %992 : vector<8x224xf32>
    %994 = vector.extract_strided_slice %6 {offsets = [18, 0], sizes = [1, 224], strides = [1, 1]} : vector<30x224xf32> to vector<1x224xf32>
    %995 = vector.broadcast %14 : vector<8x1xf32> to vector<8x224xf32>
    %996 = vector.broadcast %994 : vector<1x224xf32> to vector<8x224xf32>
    %997 = arith.mulf %995, %996 : vector<8x224xf32>
    %998 = arith.addf %988, %997 : vector<8x224xf32>
    %999 = vector.extract_strided_slice %7 {offsets = [17, 0], sizes = [1, 224], strides = [1, 1]} : vector<30x224xf32> to vector<1x224xf32>
    %1000 = vector.broadcast %15 : vector<8x1xf32> to vector<8x224xf32>
    %1001 = vector.broadcast %999 : vector<1x224xf32> to vector<8x224xf32>
    %1002 = arith.mulf %1000, %1001 : vector<8x224xf32>
    %1003 = arith.addf %993, %1002 : vector<8x224xf32>
    %1004 = vector.extract_strided_slice %7 {offsets = [18, 0], sizes = [1, 224], strides = [1, 1]} : vector<30x224xf32> to vector<1x224xf32>
    %1005 = vector.broadcast %15 : vector<8x1xf32> to vector<8x224xf32>
    %1006 = vector.broadcast %1004 : vector<1x224xf32> to vector<8x224xf32>
    %1007 = arith.mulf %1005, %1006 : vector<8x224xf32>
    %1008 = arith.addf %998, %1007 : vector<8x224xf32>
    %1009 = vector.extract_strided_slice %8 {offsets = [17, 0], sizes = [1, 224], strides = [1, 1]} : vector<30x224xf32> to vector<1x224xf32>
    %1010 = vector.broadcast %16 : vector<8x1xf32> to vector<8x224xf32>
    %1011 = vector.broadcast %1009 : vector<1x224xf32> to vector<8x224xf32>
    %1012 = arith.mulf %1010, %1011 : vector<8x224xf32>
    %1013 = arith.addf %1003, %1012 : vector<8x224xf32>
    %1014 = vector.extract_strided_slice %8 {offsets = [18, 0], sizes = [1, 224], strides = [1, 1]} : vector<30x224xf32> to vector<1x224xf32>
    %1015 = vector.broadcast %16 : vector<8x1xf32> to vector<8x224xf32>
    %1016 = vector.broadcast %1014 : vector<1x224xf32> to vector<8x224xf32>
    %1017 = arith.mulf %1015, %1016 : vector<8x224xf32>
    %1018 = arith.addf %1008, %1017 : vector<8x224xf32>
    %1019 = vector.extract_strided_slice %6 {offsets = [18, 0], sizes = [1, 224], strides = [1, 1]} : vector<30x224xf32> to vector<1x224xf32>
    %1020 = vector.broadcast %17 : vector<8x1xf32> to vector<8x224xf32>
    %1021 = vector.broadcast %1019 : vector<1x224xf32> to vector<8x224xf32>
    %1022 = arith.mulf %1020, %1021 : vector<8x224xf32>
    %1023 = arith.addf %1013, %1022 : vector<8x224xf32>
    %1024 = vector.extract_strided_slice %6 {offsets = [19, 0], sizes = [1, 224], strides = [1, 1]} : vector<30x224xf32> to vector<1x224xf32>
    %1025 = vector.broadcast %17 : vector<8x1xf32> to vector<8x224xf32>
    %1026 = vector.broadcast %1024 : vector<1x224xf32> to vector<8x224xf32>
    %1027 = arith.mulf %1025, %1026 : vector<8x224xf32>
    %1028 = arith.addf %1018, %1027 : vector<8x224xf32>
    %1029 = vector.extract_strided_slice %7 {offsets = [18, 0], sizes = [1, 224], strides = [1, 1]} : vector<30x224xf32> to vector<1x224xf32>
    %1030 = vector.broadcast %18 : vector<8x1xf32> to vector<8x224xf32>
    %1031 = vector.broadcast %1029 : vector<1x224xf32> to vector<8x224xf32>
    %1032 = arith.mulf %1030, %1031 : vector<8x224xf32>
    %1033 = arith.addf %1023, %1032 : vector<8x224xf32>
    %1034 = vector.extract_strided_slice %7 {offsets = [19, 0], sizes = [1, 224], strides = [1, 1]} : vector<30x224xf32> to vector<1x224xf32>
    %1035 = vector.broadcast %18 : vector<8x1xf32> to vector<8x224xf32>
    %1036 = vector.broadcast %1034 : vector<1x224xf32> to vector<8x224xf32>
    %1037 = arith.mulf %1035, %1036 : vector<8x224xf32>
    %1038 = arith.addf %1028, %1037 : vector<8x224xf32>
    %1039 = vector.extract_strided_slice %8 {offsets = [18, 0], sizes = [1, 224], strides = [1, 1]} : vector<30x224xf32> to vector<1x224xf32>
    %1040 = vector.broadcast %19 : vector<8x1xf32> to vector<8x224xf32>
    %1041 = vector.broadcast %1039 : vector<1x224xf32> to vector<8x224xf32>
    %1042 = arith.mulf %1040, %1041 : vector<8x224xf32>
    %1043 = arith.addf %1033, %1042 : vector<8x224xf32>
    %1044 = vector.extract_strided_slice %8 {offsets = [19, 0], sizes = [1, 224], strides = [1, 1]} : vector<30x224xf32> to vector<1x224xf32>
    %1045 = vector.broadcast %19 : vector<8x1xf32> to vector<8x224xf32>
    %1046 = vector.broadcast %1044 : vector<1x224xf32> to vector<8x224xf32>
    %1047 = arith.mulf %1045, %1046 : vector<8x224xf32>
    %1048 = arith.addf %1038, %1047 : vector<8x224xf32>
    %1049 = arith.maximumf %1043, %1048 : vector<8x224xf32>
    %1050 = vector.extract_strided_slice %1049 {offsets = [0, 0], sizes = [8, 216], strides = [1, 1]} : vector<8x224xf32> to vector<8x216xf32>
    %1051 = vector.extract_strided_slice %1049 {offsets = [0, 8], sizes = [8, 216], strides = [1, 1]} : vector<8x224xf32> to vector<8x216xf32>
    %1052 = arith.maximumf %1050, %1051 : vector<8x216xf32>
    %1053 = vector.extract_strided_slice %1052 {offsets = [0, 0], sizes = [8, 8], strides = [1, 1]} : vector<8x216xf32> to vector<8x8xf32>
    %1054 = vector.extract_strided_slice %1052 {offsets = [0, 16], sizes = [8, 8], strides = [1, 1]} : vector<8x216xf32> to vector<8x8xf32>
    %1055 = vector.extract_strided_slice %1052 {offsets = [0, 32], sizes = [8, 8], strides = [1, 1]} : vector<8x216xf32> to vector<8x8xf32>
    %1056 = vector.extract_strided_slice %1052 {offsets = [0, 48], sizes = [8, 8], strides = [1, 1]} : vector<8x216xf32> to vector<8x8xf32>
    %1057 = vector.extract_strided_slice %1052 {offsets = [0, 64], sizes = [8, 8], strides = [1, 1]} : vector<8x216xf32> to vector<8x8xf32>
    %1058 = vector.extract_strided_slice %1052 {offsets = [0, 80], sizes = [8, 8], strides = [1, 1]} : vector<8x216xf32> to vector<8x8xf32>
    %1059 = vector.extract_strided_slice %1052 {offsets = [0, 96], sizes = [8, 8], strides = [1, 1]} : vector<8x216xf32> to vector<8x8xf32>
    %1060 = vector.extract_strided_slice %1052 {offsets = [0, 112], sizes = [8, 8], strides = [1, 1]} : vector<8x216xf32> to vector<8x8xf32>
    %1061 = vector.extract_strided_slice %1052 {offsets = [0, 128], sizes = [8, 8], strides = [1, 1]} : vector<8x216xf32> to vector<8x8xf32>
    %1062 = vector.extract_strided_slice %1052 {offsets = [0, 144], sizes = [8, 8], strides = [1, 1]} : vector<8x216xf32> to vector<8x8xf32>
    %1063 = vector.extract_strided_slice %1052 {offsets = [0, 160], sizes = [8, 8], strides = [1, 1]} : vector<8x216xf32> to vector<8x8xf32>
    %1064 = vector.extract_strided_slice %1052 {offsets = [0, 176], sizes = [8, 8], strides = [1, 1]} : vector<8x216xf32> to vector<8x8xf32>
    %1065 = vector.extract_strided_slice %1052 {offsets = [0, 192], sizes = [8, 8], strides = [1, 1]} : vector<8x216xf32> to vector<8x8xf32>
    %1066 = vector.extract_strided_slice %1052 {offsets = [0, 208], sizes = [8, 8], strides = [1, 1]} : vector<8x216xf32> to vector<8x8xf32>
    %1067 = tpu.concatenate %1053, %1054, %1055, %1056, %1057, %1058, %1059, %1060, %1061, %1062, %1063, %1064, %1065, %1066 in 1 : vector<8x8xf32>, vector<8x8xf32>, vector<8x8xf32>, vector<8x8xf32>, vector<8x8xf32>, vector<8x8xf32>, vector<8x8xf32>, vector<8x8xf32>, vector<8x8xf32>, vector<8x8xf32>, vector<8x8xf32>, vector<8x8xf32>, vector<8x8xf32>, vector<8x8xf32> -> vector<8x112xf32>
    %1068 = vector.broadcast %10 : vector<8x1xf32> to vector<8x112xf32>
    %1069 = arith.addf %1067, %1068 : vector<8x112xf32>
    %cst_45 = arith.constant 0.000000e+00 : f32
    %1070 = vector.broadcast %cst_45 : f32 to vector<8x112xf32>
    %1071 = arith.maximumf %1069, %1070 : vector<8x112xf32>
    %1072 = tpu.concatenate %20, %1071, %20 in 1 : vector<8x8xf32>, vector<8x112xf32>, vector<8x8xf32> -> vector<8x128xf32>
    %c0_46 = arith.constant 0 : index
    %c1152 = arith.constant 1152 : index
    %1073 = vector.load %arg9[%c0_46, %c1152] : memref<8x2176xf32, #tpu.memory_space<vmem>>, vector<8x128xf32>
    tpu.vector_store %arg9[%c0_46, %c1152], %1072 {strides = array<i32>} : memref<8x2176xf32, #tpu.memory_space<vmem>>, vector<8x128xf32>,
    %cst_47 = arith.constant 0.000000e+00 : f32
    %1074 = vector.broadcast %cst_47 : f32 to vector<8x224xf32>
    %cst_48 = arith.constant 0.000000e+00 : f32
    %1075 = vector.broadcast %cst_48 : f32 to vector<8x224xf32>
    %1076 = vector.extract_strided_slice %6 {offsets = [18, 0], sizes = [1, 224], strides = [1, 1]} : vector<30x224xf32> to vector<1x224xf32>
    %1077 = vector.broadcast %11 : vector<8x1xf32> to vector<8x224xf32>
    %1078 = vector.broadcast %1076 : vector<1x224xf32> to vector<8x224xf32>
    %1079 = arith.mulf %1077, %1078 : vector<8x224xf32>
    %1080 = arith.addf %1074, %1079 : vector<8x224xf32>
    %1081 = vector.extract_strided_slice %6 {offsets = [19, 0], sizes = [1, 224], strides = [1, 1]} : vector<30x224xf32> to vector<1x224xf32>
    %1082 = vector.broadcast %11 : vector<8x1xf32> to vector<8x224xf32>
    %1083 = vector.broadcast %1081 : vector<1x224xf32> to vector<8x224xf32>
    %1084 = arith.mulf %1082, %1083 : vector<8x224xf32>
    %1085 = arith.addf %1075, %1084 : vector<8x224xf32>
    %1086 = vector.extract_strided_slice %7 {offsets = [18, 0], sizes = [1, 224], strides = [1, 1]} : vector<30x224xf32> to vector<1x224xf32>
    %1087 = vector.broadcast %12 : vector<8x1xf32> to vector<8x224xf32>
    %1088 = vector.broadcast %1086 : vector<1x224xf32> to vector<8x224xf32>
    %1089 = arith.mulf %1087, %1088 : vector<8x224xf32>
    %1090 = arith.addf %1080, %1089 : vector<8x224xf32>
    %1091 = vector.extract_strided_slice %7 {offsets = [19, 0], sizes = [1, 224], strides = [1, 1]} : vector<30x224xf32> to vector<1x224xf32>
    %1092 = vector.broadcast %12 : vector<8x1xf32> to vector<8x224xf32>
    %1093 = vector.broadcast %1091 : vector<1x224xf32> to vector<8x224xf32>
    %1094 = arith.mulf %1092, %1093 : vector<8x224xf32>
    %1095 = arith.addf %1085, %1094 : vector<8x224xf32>
    %1096 = vector.extract_strided_slice %8 {offsets = [18, 0], sizes = [1, 224], strides = [1, 1]} : vector<30x224xf32> to vector<1x224xf32>
    %1097 = vector.broadcast %13 : vector<8x1xf32> to vector<8x224xf32>
    %1098 = vector.broadcast %1096 : vector<1x224xf32> to vector<8x224xf32>
    %1099 = arith.mulf %1097, %1098 : vector<8x224xf32>
    %1100 = arith.addf %1090, %1099 : vector<8x224xf32>
    %1101 = vector.extract_strided_slice %8 {offsets = [19, 0], sizes = [1, 224], strides = [1, 1]} : vector<30x224xf32> to vector<1x224xf32>
    %1102 = vector.broadcast %13 : vector<8x1xf32> to vector<8x224xf32>
    %1103 = vector.broadcast %1101 : vector<1x224xf32> to vector<8x224xf32>
    %1104 = arith.mulf %1102, %1103 : vector<8x224xf32>
    %1105 = arith.addf %1095, %1104 : vector<8x224xf32>
    %1106 = vector.extract_strided_slice %6 {offsets = [19, 0], sizes = [1, 224], strides = [1, 1]} : vector<30x224xf32> to vector<1x224xf32>
    %1107 = vector.broadcast %14 : vector<8x1xf32> to vector<8x224xf32>
    %1108 = vector.broadcast %1106 : vector<1x224xf32> to vector<8x224xf32>
    %1109 = arith.mulf %1107, %1108 : vector<8x224xf32>
    %1110 = arith.addf %1100, %1109 : vector<8x224xf32>
    %1111 = vector.extract_strided_slice %6 {offsets = [20, 0], sizes = [1, 224], strides = [1, 1]} : vector<30x224xf32> to vector<1x224xf32>
    %1112 = vector.broadcast %14 : vector<8x1xf32> to vector<8x224xf32>
    %1113 = vector.broadcast %1111 : vector<1x224xf32> to vector<8x224xf32>
    %1114 = arith.mulf %1112, %1113 : vector<8x224xf32>
    %1115 = arith.addf %1105, %1114 : vector<8x224xf32>
    %1116 = vector.extract_strided_slice %7 {offsets = [19, 0], sizes = [1, 224], strides = [1, 1]} : vector<30x224xf32> to vector<1x224xf32>
    %1117 = vector.broadcast %15 : vector<8x1xf32> to vector<8x224xf32>
    %1118 = vector.broadcast %1116 : vector<1x224xf32> to vector<8x224xf32>
    %1119 = arith.mulf %1117, %1118 : vector<8x224xf32>
    %1120 = arith.addf %1110, %1119 : vector<8x224xf32>
    %1121 = vector.extract_strided_slice %7 {offsets = [20, 0], sizes = [1, 224], strides = [1, 1]} : vector<30x224xf32> to vector<1x224xf32>
    %1122 = vector.broadcast %15 : vector<8x1xf32> to vector<8x224xf32>
    %1123 = vector.broadcast %1121 : vector<1x224xf32> to vector<8x224xf32>
    %1124 = arith.mulf %1122, %1123 : vector<8x224xf32>
    %1125 = arith.addf %1115, %1124 : vector<8x224xf32>
    %1126 = vector.extract_strided_slice %8 {offsets = [19, 0], sizes = [1, 224], strides = [1, 1]} : vector<30x224xf32> to vector<1x224xf32>
    %1127 = vector.broadcast %16 : vector<8x1xf32> to vector<8x224xf32>
    %1128 = vector.broadcast %1126 : vector<1x224xf32> to vector<8x224xf32>
    %1129 = arith.mulf %1127, %1128 : vector<8x224xf32>
    %1130 = arith.addf %1120, %1129 : vector<8x224xf32>
    %1131 = vector.extract_strided_slice %8 {offsets = [20, 0], sizes = [1, 224], strides = [1, 1]} : vector<30x224xf32> to vector<1x224xf32>
    %1132 = vector.broadcast %16 : vector<8x1xf32> to vector<8x224xf32>
    %1133 = vector.broadcast %1131 : vector<1x224xf32> to vector<8x224xf32>
    %1134 = arith.mulf %1132, %1133 : vector<8x224xf32>
    %1135 = arith.addf %1125, %1134 : vector<8x224xf32>
    %1136 = vector.extract_strided_slice %6 {offsets = [20, 0], sizes = [1, 224], strides = [1, 1]} : vector<30x224xf32> to vector<1x224xf32>
    %1137 = vector.broadcast %17 : vector<8x1xf32> to vector<8x224xf32>
    %1138 = vector.broadcast %1136 : vector<1x224xf32> to vector<8x224xf32>
    %1139 = arith.mulf %1137, %1138 : vector<8x224xf32>
    %1140 = arith.addf %1130, %1139 : vector<8x224xf32>
    %1141 = vector.extract_strided_slice %6 {offsets = [21, 0], sizes = [1, 224], strides = [1, 1]} : vector<30x224xf32> to vector<1x224xf32>
    %1142 = vector.broadcast %17 : vector<8x1xf32> to vector<8x224xf32>
    %1143 = vector.broadcast %1141 : vector<1x224xf32> to vector<8x224xf32>
    %1144 = arith.mulf %1142, %1143 : vector<8x224xf32>
    %1145 = arith.addf %1135, %1144 : vector<8x224xf32>
    %1146 = vector.extract_strided_slice %7 {offsets = [20, 0], sizes = [1, 224], strides = [1, 1]} : vector<30x224xf32> to vector<1x224xf32>
    %1147 = vector.broadcast %18 : vector<8x1xf32> to vector<8x224xf32>
    %1148 = vector.broadcast %1146 : vector<1x224xf32> to vector<8x224xf32>
    %1149 = arith.mulf %1147, %1148 : vector<8x224xf32>
    %1150 = arith.addf %1140, %1149 : vector<8x224xf32>
    %1151 = vector.extract_strided_slice %7 {offsets = [21, 0], sizes = [1, 224], strides = [1, 1]} : vector<30x224xf32> to vector<1x224xf32>
    %1152 = vector.broadcast %18 : vector<8x1xf32> to vector<8x224xf32>
    %1153 = vector.broadcast %1151 : vector<1x224xf32> to vector<8x224xf32>
    %1154 = arith.mulf %1152, %1153 : vector<8x224xf32>
    %1155 = arith.addf %1145, %1154 : vector<8x224xf32>
    %1156 = vector.extract_strided_slice %8 {offsets = [20, 0], sizes = [1, 224], strides = [1, 1]} : vector<30x224xf32> to vector<1x224xf32>
    %1157 = vector.broadcast %19 : vector<8x1xf32> to vector<8x224xf32>
    %1158 = vector.broadcast %1156 : vector<1x224xf32> to vector<8x224xf32>
    %1159 = arith.mulf %1157, %1158 : vector<8x224xf32>
    %1160 = arith.addf %1150, %1159 : vector<8x224xf32>
    %1161 = vector.extract_strided_slice %8 {offsets = [21, 0], sizes = [1, 224], strides = [1, 1]} : vector<30x224xf32> to vector<1x224xf32>
    %1162 = vector.broadcast %19 : vector<8x1xf32> to vector<8x224xf32>
    %1163 = vector.broadcast %1161 : vector<1x224xf32> to vector<8x224xf32>
    %1164 = arith.mulf %1162, %1163 : vector<8x224xf32>
    %1165 = arith.addf %1155, %1164 : vector<8x224xf32>
    %1166 = arith.maximumf %1160, %1165 : vector<8x224xf32>
    %1167 = vector.extract_strided_slice %1166 {offsets = [0, 0], sizes = [8, 216], strides = [1, 1]} : vector<8x224xf32> to vector<8x216xf32>
    %1168 = vector.extract_strided_slice %1166 {offsets = [0, 8], sizes = [8, 216], strides = [1, 1]} : vector<8x224xf32> to vector<8x216xf32>
    %1169 = arith.maximumf %1167, %1168 : vector<8x216xf32>
    %1170 = vector.extract_strided_slice %1169 {offsets = [0, 0], sizes = [8, 8], strides = [1, 1]} : vector<8x216xf32> to vector<8x8xf32>
    %1171 = vector.extract_strided_slice %1169 {offsets = [0, 16], sizes = [8, 8], strides = [1, 1]} : vector<8x216xf32> to vector<8x8xf32>
    %1172 = vector.extract_strided_slice %1169 {offsets = [0, 32], sizes = [8, 8], strides = [1, 1]} : vector<8x216xf32> to vector<8x8xf32>
    %1173 = vector.extract_strided_slice %1169 {offsets = [0, 48], sizes = [8, 8], strides = [1, 1]} : vector<8x216xf32> to vector<8x8xf32>
    %1174 = vector.extract_strided_slice %1169 {offsets = [0, 64], sizes = [8, 8], strides = [1, 1]} : vector<8x216xf32> to vector<8x8xf32>
    %1175 = vector.extract_strided_slice %1169 {offsets = [0, 80], sizes = [8, 8], strides = [1, 1]} : vector<8x216xf32> to vector<8x8xf32>
    %1176 = vector.extract_strided_slice %1169 {offsets = [0, 96], sizes = [8, 8], strides = [1, 1]} : vector<8x216xf32> to vector<8x8xf32>
    %1177 = vector.extract_strided_slice %1169 {offsets = [0, 112], sizes = [8, 8], strides = [1, 1]} : vector<8x216xf32> to vector<8x8xf32>
    %1178 = vector.extract_strided_slice %1169 {offsets = [0, 128], sizes = [8, 8], strides = [1, 1]} : vector<8x216xf32> to vector<8x8xf32>
    %1179 = vector.extract_strided_slice %1169 {offsets = [0, 144], sizes = [8, 8], strides = [1, 1]} : vector<8x216xf32> to vector<8x8xf32>
    %1180 = vector.extract_strided_slice %1169 {offsets = [0, 160], sizes = [8, 8], strides = [1, 1]} : vector<8x216xf32> to vector<8x8xf32>
    %1181 = vector.extract_strided_slice %1169 {offsets = [0, 176], sizes = [8, 8], strides = [1, 1]} : vector<8x216xf32> to vector<8x8xf32>
    %1182 = vector.extract_strided_slice %1169 {offsets = [0, 192], sizes = [8, 8], strides = [1, 1]} : vector<8x216xf32> to vector<8x8xf32>
    %1183 = vector.extract_strided_slice %1169 {offsets = [0, 208], sizes = [8, 8], strides = [1, 1]} : vector<8x216xf32> to vector<8x8xf32>
    %1184 = tpu.concatenate %1170, %1171, %1172, %1173, %1174, %1175, %1176, %1177, %1178, %1179, %1180, %1181, %1182, %1183 in 1 : vector<8x8xf32>, vector<8x8xf32>, vector<8x8xf32>, vector<8x8xf32>, vector<8x8xf32>, vector<8x8xf32>, vector<8x8xf32>, vector<8x8xf32>, vector<8x8xf32>, vector<8x8xf32>, vector<8x8xf32>, vector<8x8xf32>, vector<8x8xf32>, vector<8x8xf32> -> vector<8x112xf32>
    %1185 = vector.broadcast %10 : vector<8x1xf32> to vector<8x112xf32>
    %1186 = arith.addf %1184, %1185 : vector<8x112xf32>
    %cst_49 = arith.constant 0.000000e+00 : f32
    %1187 = vector.broadcast %cst_49 : f32 to vector<8x112xf32>
    %1188 = arith.maximumf %1186, %1187 : vector<8x112xf32>
    %1189 = tpu.concatenate %20, %1188, %20 in 1 : vector<8x8xf32>, vector<8x112xf32>, vector<8x8xf32> -> vector<8x128xf32>
    %c0_50 = arith.constant 0 : index
    %c1280 = arith.constant 1280 : index
    %1190 = vector.load %arg9[%c0_50, %c1280] : memref<8x2176xf32, #tpu.memory_space<vmem>>, vector<8x128xf32>
    tpu.vector_store %arg9[%c0_50, %c1280], %1189 {strides = array<i32>} : memref<8x2176xf32, #tpu.memory_space<vmem>>, vector<8x128xf32>,
    %cst_51 = arith.constant 0.000000e+00 : f32
    %1191 = vector.broadcast %cst_51 : f32 to vector<8x224xf32>
    %cst_52 = arith.constant 0.000000e+00 : f32
    %1192 = vector.broadcast %cst_52 : f32 to vector<8x224xf32>
    %1193 = vector.extract_strided_slice %6 {offsets = [20, 0], sizes = [1, 224], strides = [1, 1]} : vector<30x224xf32> to vector<1x224xf32>
    %1194 = vector.broadcast %11 : vector<8x1xf32> to vector<8x224xf32>
    %1195 = vector.broadcast %1193 : vector<1x224xf32> to vector<8x224xf32>
    %1196 = arith.mulf %1194, %1195 : vector<8x224xf32>
    %1197 = arith.addf %1191, %1196 : vector<8x224xf32>
    %1198 = vector.extract_strided_slice %6 {offsets = [21, 0], sizes = [1, 224], strides = [1, 1]} : vector<30x224xf32> to vector<1x224xf32>
    %1199 = vector.broadcast %11 : vector<8x1xf32> to vector<8x224xf32>
    %1200 = vector.broadcast %1198 : vector<1x224xf32> to vector<8x224xf32>
    %1201 = arith.mulf %1199, %1200 : vector<8x224xf32>
    %1202 = arith.addf %1192, %1201 : vector<8x224xf32>
    %1203 = vector.extract_strided_slice %7 {offsets = [20, 0], sizes = [1, 224], strides = [1, 1]} : vector<30x224xf32> to vector<1x224xf32>
    %1204 = vector.broadcast %12 : vector<8x1xf32> to vector<8x224xf32>
    %1205 = vector.broadcast %1203 : vector<1x224xf32> to vector<8x224xf32>
    %1206 = arith.mulf %1204, %1205 : vector<8x224xf32>
    %1207 = arith.addf %1197, %1206 : vector<8x224xf32>
    %1208 = vector.extract_strided_slice %7 {offsets = [21, 0], sizes = [1, 224], strides = [1, 1]} : vector<30x224xf32> to vector<1x224xf32>
    %1209 = vector.broadcast %12 : vector<8x1xf32> to vector<8x224xf32>
    %1210 = vector.broadcast %1208 : vector<1x224xf32> to vector<8x224xf32>
    %1211 = arith.mulf %1209, %1210 : vector<8x224xf32>
    %1212 = arith.addf %1202, %1211 : vector<8x224xf32>
    %1213 = vector.extract_strided_slice %8 {offsets = [20, 0], sizes = [1, 224], strides = [1, 1]} : vector<30x224xf32> to vector<1x224xf32>
    %1214 = vector.broadcast %13 : vector<8x1xf32> to vector<8x224xf32>
    %1215 = vector.broadcast %1213 : vector<1x224xf32> to vector<8x224xf32>
    %1216 = arith.mulf %1214, %1215 : vector<8x224xf32>
    %1217 = arith.addf %1207, %1216 : vector<8x224xf32>
    %1218 = vector.extract_strided_slice %8 {offsets = [21, 0], sizes = [1, 224], strides = [1, 1]} : vector<30x224xf32> to vector<1x224xf32>
    %1219 = vector.broadcast %13 : vector<8x1xf32> to vector<8x224xf32>
    %1220 = vector.broadcast %1218 : vector<1x224xf32> to vector<8x224xf32>
    %1221 = arith.mulf %1219, %1220 : vector<8x224xf32>
    %1222 = arith.addf %1212, %1221 : vector<8x224xf32>
    %1223 = vector.extract_strided_slice %6 {offsets = [21, 0], sizes = [1, 224], strides = [1, 1]} : vector<30x224xf32> to vector<1x224xf32>
    %1224 = vector.broadcast %14 : vector<8x1xf32> to vector<8x224xf32>
    %1225 = vector.broadcast %1223 : vector<1x224xf32> to vector<8x224xf32>
    %1226 = arith.mulf %1224, %1225 : vector<8x224xf32>
    %1227 = arith.addf %1217, %1226 : vector<8x224xf32>
    %1228 = vector.extract_strided_slice %6 {offsets = [22, 0], sizes = [1, 224], strides = [1, 1]} : vector<30x224xf32> to vector<1x224xf32>
    %1229 = vector.broadcast %14 : vector<8x1xf32> to vector<8x224xf32>
    %1230 = vector.broadcast %1228 : vector<1x224xf32> to vector<8x224xf32>
    %1231 = arith.mulf %1229, %1230 : vector<8x224xf32>
    %1232 = arith.addf %1222, %1231 : vector<8x224xf32>
    %1233 = vector.extract_strided_slice %7 {offsets = [21, 0], sizes = [1, 224], strides = [1, 1]} : vector<30x224xf32> to vector<1x224xf32>
    %1234 = vector.broadcast %15 : vector<8x1xf32> to vector<8x224xf32>
    %1235 = vector.broadcast %1233 : vector<1x224xf32> to vector<8x224xf32>
    %1236 = arith.mulf %1234, %1235 : vector<8x224xf32>
    %1237 = arith.addf %1227, %1236 : vector<8x224xf32>
    %1238 = vector.extract_strided_slice %7 {offsets = [22, 0], sizes = [1, 224], strides = [1, 1]} : vector<30x224xf32> to vector<1x224xf32>
    %1239 = vector.broadcast %15 : vector<8x1xf32> to vector<8x224xf32>
    %1240 = vector.broadcast %1238 : vector<1x224xf32> to vector<8x224xf32>
    %1241 = arith.mulf %1239, %1240 : vector<8x224xf32>
    %1242 = arith.addf %1232, %1241 : vector<8x224xf32>
    %1243 = vector.extract_strided_slice %8 {offsets = [21, 0], sizes = [1, 224], strides = [1, 1]} : vector<30x224xf32> to vector<1x224xf32>
    %1244 = vector.broadcast %16 : vector<8x1xf32> to vector<8x224xf32>
    %1245 = vector.broadcast %1243 : vector<1x224xf32> to vector<8x224xf32>
    %1246 = arith.mulf %1244, %1245 : vector<8x224xf32>
    %1247 = arith.addf %1237, %1246 : vector<8x224xf32>
    %1248 = vector.extract_strided_slice %8 {offsets = [22, 0], sizes = [1, 224], strides = [1, 1]} : vector<30x224xf32> to vector<1x224xf32>
    %1249 = vector.broadcast %16 : vector<8x1xf32> to vector<8x224xf32>
    %1250 = vector.broadcast %1248 : vector<1x224xf32> to vector<8x224xf32>
    %1251 = arith.mulf %1249, %1250 : vector<8x224xf32>
    %1252 = arith.addf %1242, %1251 : vector<8x224xf32>
    %1253 = vector.extract_strided_slice %6 {offsets = [22, 0], sizes = [1, 224], strides = [1, 1]} : vector<30x224xf32> to vector<1x224xf32>
    %1254 = vector.broadcast %17 : vector<8x1xf32> to vector<8x224xf32>
    %1255 = vector.broadcast %1253 : vector<1x224xf32> to vector<8x224xf32>
    %1256 = arith.mulf %1254, %1255 : vector<8x224xf32>
    %1257 = arith.addf %1247, %1256 : vector<8x224xf32>
    %1258 = vector.extract_strided_slice %6 {offsets = [23, 0], sizes = [1, 224], strides = [1, 1]} : vector<30x224xf32> to vector<1x224xf32>
    %1259 = vector.broadcast %17 : vector<8x1xf32> to vector<8x224xf32>
    %1260 = vector.broadcast %1258 : vector<1x224xf32> to vector<8x224xf32>
    %1261 = arith.mulf %1259, %1260 : vector<8x224xf32>
    %1262 = arith.addf %1252, %1261 : vector<8x224xf32>
    %1263 = vector.extract_strided_slice %7 {offsets = [22, 0], sizes = [1, 224], strides = [1, 1]} : vector<30x224xf32> to vector<1x224xf32>
    %1264 = vector.broadcast %18 : vector<8x1xf32> to vector<8x224xf32>
    %1265 = vector.broadcast %1263 : vector<1x224xf32> to vector<8x224xf32>
    %1266 = arith.mulf %1264, %1265 : vector<8x224xf32>
    %1267 = arith.addf %1257, %1266 : vector<8x224xf32>
    %1268 = vector.extract_strided_slice %7 {offsets = [23, 0], sizes = [1, 224], strides = [1, 1]} : vector<30x224xf32> to vector<1x224xf32>
    %1269 = vector.broadcast %18 : vector<8x1xf32> to vector<8x224xf32>
    %1270 = vector.broadcast %1268 : vector<1x224xf32> to vector<8x224xf32>
    %1271 = arith.mulf %1269, %1270 : vector<8x224xf32>
    %1272 = arith.addf %1262, %1271 : vector<8x224xf32>
    %1273 = vector.extract_strided_slice %8 {offsets = [22, 0], sizes = [1, 224], strides = [1, 1]} : vector<30x224xf32> to vector<1x224xf32>
    %1274 = vector.broadcast %19 : vector<8x1xf32> to vector<8x224xf32>
    %1275 = vector.broadcast %1273 : vector<1x224xf32> to vector<8x224xf32>
    %1276 = arith.mulf %1274, %1275 : vector<8x224xf32>
    %1277 = arith.addf %1267, %1276 : vector<8x224xf32>
    %1278 = vector.extract_strided_slice %8 {offsets = [23, 0], sizes = [1, 224], strides = [1, 1]} : vector<30x224xf32> to vector<1x224xf32>
    %1279 = vector.broadcast %19 : vector<8x1xf32> to vector<8x224xf32>
    %1280 = vector.broadcast %1278 : vector<1x224xf32> to vector<8x224xf32>
    %1281 = arith.mulf %1279, %1280 : vector<8x224xf32>
    %1282 = arith.addf %1272, %1281 : vector<8x224xf32>
    %1283 = arith.maximumf %1277, %1282 : vector<8x224xf32>
    %1284 = vector.extract_strided_slice %1283 {offsets = [0, 0], sizes = [8, 216], strides = [1, 1]} : vector<8x224xf32> to vector<8x216xf32>
    %1285 = vector.extract_strided_slice %1283 {offsets = [0, 8], sizes = [8, 216], strides = [1, 1]} : vector<8x224xf32> to vector<8x216xf32>
    %1286 = arith.maximumf %1284, %1285 : vector<8x216xf32>
    %1287 = vector.extract_strided_slice %1286 {offsets = [0, 0], sizes = [8, 8], strides = [1, 1]} : vector<8x216xf32> to vector<8x8xf32>
    %1288 = vector.extract_strided_slice %1286 {offsets = [0, 16], sizes = [8, 8], strides = [1, 1]} : vector<8x216xf32> to vector<8x8xf32>
    %1289 = vector.extract_strided_slice %1286 {offsets = [0, 32], sizes = [8, 8], strides = [1, 1]} : vector<8x216xf32> to vector<8x8xf32>
    %1290 = vector.extract_strided_slice %1286 {offsets = [0, 48], sizes = [8, 8], strides = [1, 1]} : vector<8x216xf32> to vector<8x8xf32>
    %1291 = vector.extract_strided_slice %1286 {offsets = [0, 64], sizes = [8, 8], strides = [1, 1]} : vector<8x216xf32> to vector<8x8xf32>
    %1292 = vector.extract_strided_slice %1286 {offsets = [0, 80], sizes = [8, 8], strides = [1, 1]} : vector<8x216xf32> to vector<8x8xf32>
    %1293 = vector.extract_strided_slice %1286 {offsets = [0, 96], sizes = [8, 8], strides = [1, 1]} : vector<8x216xf32> to vector<8x8xf32>
    %1294 = vector.extract_strided_slice %1286 {offsets = [0, 112], sizes = [8, 8], strides = [1, 1]} : vector<8x216xf32> to vector<8x8xf32>
    %1295 = vector.extract_strided_slice %1286 {offsets = [0, 128], sizes = [8, 8], strides = [1, 1]} : vector<8x216xf32> to vector<8x8xf32>
    %1296 = vector.extract_strided_slice %1286 {offsets = [0, 144], sizes = [8, 8], strides = [1, 1]} : vector<8x216xf32> to vector<8x8xf32>
    %1297 = vector.extract_strided_slice %1286 {offsets = [0, 160], sizes = [8, 8], strides = [1, 1]} : vector<8x216xf32> to vector<8x8xf32>
    %1298 = vector.extract_strided_slice %1286 {offsets = [0, 176], sizes = [8, 8], strides = [1, 1]} : vector<8x216xf32> to vector<8x8xf32>
    %1299 = vector.extract_strided_slice %1286 {offsets = [0, 192], sizes = [8, 8], strides = [1, 1]} : vector<8x216xf32> to vector<8x8xf32>
    %1300 = vector.extract_strided_slice %1286 {offsets = [0, 208], sizes = [8, 8], strides = [1, 1]} : vector<8x216xf32> to vector<8x8xf32>
    %1301 = tpu.concatenate %1287, %1288, %1289, %1290, %1291, %1292, %1293, %1294, %1295, %1296, %1297, %1298, %1299, %1300 in 1 : vector<8x8xf32>, vector<8x8xf32>, vector<8x8xf32>, vector<8x8xf32>, vector<8x8xf32>, vector<8x8xf32>, vector<8x8xf32>, vector<8x8xf32>, vector<8x8xf32>, vector<8x8xf32>, vector<8x8xf32>, vector<8x8xf32>, vector<8x8xf32>, vector<8x8xf32> -> vector<8x112xf32>
    %1302 = vector.broadcast %10 : vector<8x1xf32> to vector<8x112xf32>
    %1303 = arith.addf %1301, %1302 : vector<8x112xf32>
    %cst_53 = arith.constant 0.000000e+00 : f32
    %1304 = vector.broadcast %cst_53 : f32 to vector<8x112xf32>
    %1305 = arith.maximumf %1303, %1304 : vector<8x112xf32>
    %1306 = tpu.concatenate %20, %1305, %20 in 1 : vector<8x8xf32>, vector<8x112xf32>, vector<8x8xf32> -> vector<8x128xf32>
    %c0_54 = arith.constant 0 : index
    %c1408 = arith.constant 1408 : index
    %1307 = vector.load %arg9[%c0_54, %c1408] : memref<8x2176xf32, #tpu.memory_space<vmem>>, vector<8x128xf32>
    tpu.vector_store %arg9[%c0_54, %c1408], %1306 {strides = array<i32>} : memref<8x2176xf32, #tpu.memory_space<vmem>>, vector<8x128xf32>,
    %cst_55 = arith.constant 0.000000e+00 : f32
    %1308 = vector.broadcast %cst_55 : f32 to vector<8x224xf32>
    %cst_56 = arith.constant 0.000000e+00 : f32
    %1309 = vector.broadcast %cst_56 : f32 to vector<8x224xf32>
    %1310 = vector.extract_strided_slice %6 {offsets = [22, 0], sizes = [1, 224], strides = [1, 1]} : vector<30x224xf32> to vector<1x224xf32>
    %1311 = vector.broadcast %11 : vector<8x1xf32> to vector<8x224xf32>
    %1312 = vector.broadcast %1310 : vector<1x224xf32> to vector<8x224xf32>
    %1313 = arith.mulf %1311, %1312 : vector<8x224xf32>
    %1314 = arith.addf %1308, %1313 : vector<8x224xf32>
    %1315 = vector.extract_strided_slice %6 {offsets = [23, 0], sizes = [1, 224], strides = [1, 1]} : vector<30x224xf32> to vector<1x224xf32>
    %1316 = vector.broadcast %11 : vector<8x1xf32> to vector<8x224xf32>
    %1317 = vector.broadcast %1315 : vector<1x224xf32> to vector<8x224xf32>
    %1318 = arith.mulf %1316, %1317 : vector<8x224xf32>
    %1319 = arith.addf %1309, %1318 : vector<8x224xf32>
    %1320 = vector.extract_strided_slice %7 {offsets = [22, 0], sizes = [1, 224], strides = [1, 1]} : vector<30x224xf32> to vector<1x224xf32>
    %1321 = vector.broadcast %12 : vector<8x1xf32> to vector<8x224xf32>
    %1322 = vector.broadcast %1320 : vector<1x224xf32> to vector<8x224xf32>
    %1323 = arith.mulf %1321, %1322 : vector<8x224xf32>
    %1324 = arith.addf %1314, %1323 : vector<8x224xf32>
    %1325 = vector.extract_strided_slice %7 {offsets = [23, 0], sizes = [1, 224], strides = [1, 1]} : vector<30x224xf32> to vector<1x224xf32>
    %1326 = vector.broadcast %12 : vector<8x1xf32> to vector<8x224xf32>
    %1327 = vector.broadcast %1325 : vector<1x224xf32> to vector<8x224xf32>
    %1328 = arith.mulf %1326, %1327 : vector<8x224xf32>
    %1329 = arith.addf %1319, %1328 : vector<8x224xf32>
    %1330 = vector.extract_strided_slice %8 {offsets = [22, 0], sizes = [1, 224], strides = [1, 1]} : vector<30x224xf32> to vector<1x224xf32>
    %1331 = vector.broadcast %13 : vector<8x1xf32> to vector<8x224xf32>
    %1332 = vector.broadcast %1330 : vector<1x224xf32> to vector<8x224xf32>
    %1333 = arith.mulf %1331, %1332 : vector<8x224xf32>
    %1334 = arith.addf %1324, %1333 : vector<8x224xf32>
    %1335 = vector.extract_strided_slice %8 {offsets = [23, 0], sizes = [1, 224], strides = [1, 1]} : vector<30x224xf32> to vector<1x224xf32>
    %1336 = vector.broadcast %13 : vector<8x1xf32> to vector<8x224xf32>
    %1337 = vector.broadcast %1335 : vector<1x224xf32> to vector<8x224xf32>
    %1338 = arith.mulf %1336, %1337 : vector<8x224xf32>
    %1339 = arith.addf %1329, %1338 : vector<8x224xf32>
    %1340 = vector.extract_strided_slice %6 {offsets = [23, 0], sizes = [1, 224], strides = [1, 1]} : vector<30x224xf32> to vector<1x224xf32>
    %1341 = vector.broadcast %14 : vector<8x1xf32> to vector<8x224xf32>
    %1342 = vector.broadcast %1340 : vector<1x224xf32> to vector<8x224xf32>
    %1343 = arith.mulf %1341, %1342 : vector<8x224xf32>
    %1344 = arith.addf %1334, %1343 : vector<8x224xf32>
    %1345 = vector.extract_strided_slice %6 {offsets = [24, 0], sizes = [1, 224], strides = [1, 1]} : vector<30x224xf32> to vector<1x224xf32>
    %1346 = vector.broadcast %14 : vector<8x1xf32> to vector<8x224xf32>
    %1347 = vector.broadcast %1345 : vector<1x224xf32> to vector<8x224xf32>
    %1348 = arith.mulf %1346, %1347 : vector<8x224xf32>
    %1349 = arith.addf %1339, %1348 : vector<8x224xf32>
    %1350 = vector.extract_strided_slice %7 {offsets = [23, 0], sizes = [1, 224], strides = [1, 1]} : vector<30x224xf32> to vector<1x224xf32>
    %1351 = vector.broadcast %15 : vector<8x1xf32> to vector<8x224xf32>
    %1352 = vector.broadcast %1350 : vector<1x224xf32> to vector<8x224xf32>
    %1353 = arith.mulf %1351, %1352 : vector<8x224xf32>
    %1354 = arith.addf %1344, %1353 : vector<8x224xf32>
    %1355 = vector.extract_strided_slice %7 {offsets = [24, 0], sizes = [1, 224], strides = [1, 1]} : vector<30x224xf32> to vector<1x224xf32>
    %1356 = vector.broadcast %15 : vector<8x1xf32> to vector<8x224xf32>
    %1357 = vector.broadcast %1355 : vector<1x224xf32> to vector<8x224xf32>
    %1358 = arith.mulf %1356, %1357 : vector<8x224xf32>
    %1359 = arith.addf %1349, %1358 : vector<8x224xf32>
    %1360 = vector.extract_strided_slice %8 {offsets = [23, 0], sizes = [1, 224], strides = [1, 1]} : vector<30x224xf32> to vector<1x224xf32>
    %1361 = vector.broadcast %16 : vector<8x1xf32> to vector<8x224xf32>
    %1362 = vector.broadcast %1360 : vector<1x224xf32> to vector<8x224xf32>
    %1363 = arith.mulf %1361, %1362 : vector<8x224xf32>
    %1364 = arith.addf %1354, %1363 : vector<8x224xf32>
    %1365 = vector.extract_strided_slice %8 {offsets = [24, 0], sizes = [1, 224], strides = [1, 1]} : vector<30x224xf32> to vector<1x224xf32>
    %1366 = vector.broadcast %16 : vector<8x1xf32> to vector<8x224xf32>
    %1367 = vector.broadcast %1365 : vector<1x224xf32> to vector<8x224xf32>
    %1368 = arith.mulf %1366, %1367 : vector<8x224xf32>
    %1369 = arith.addf %1359, %1368 : vector<8x224xf32>
    %1370 = vector.extract_strided_slice %6 {offsets = [24, 0], sizes = [1, 224], strides = [1, 1]} : vector<30x224xf32> to vector<1x224xf32>
    %1371 = vector.broadcast %17 : vector<8x1xf32> to vector<8x224xf32>
    %1372 = vector.broadcast %1370 : vector<1x224xf32> to vector<8x224xf32>
    %1373 = arith.mulf %1371, %1372 : vector<8x224xf32>
    %1374 = arith.addf %1364, %1373 : vector<8x224xf32>
    %1375 = vector.extract_strided_slice %6 {offsets = [25, 0], sizes = [1, 224], strides = [1, 1]} : vector<30x224xf32> to vector<1x224xf32>
    %1376 = vector.broadcast %17 : vector<8x1xf32> to vector<8x224xf32>
    %1377 = vector.broadcast %1375 : vector<1x224xf32> to vector<8x224xf32>
    %1378 = arith.mulf %1376, %1377 : vector<8x224xf32>
    %1379 = arith.addf %1369, %1378 : vector<8x224xf32>
    %1380 = vector.extract_strided_slice %7 {offsets = [24, 0], sizes = [1, 224], strides = [1, 1]} : vector<30x224xf32> to vector<1x224xf32>
    %1381 = vector.broadcast %18 : vector<8x1xf32> to vector<8x224xf32>
    %1382 = vector.broadcast %1380 : vector<1x224xf32> to vector<8x224xf32>
    %1383 = arith.mulf %1381, %1382 : vector<8x224xf32>
    %1384 = arith.addf %1374, %1383 : vector<8x224xf32>
    %1385 = vector.extract_strided_slice %7 {offsets = [25, 0], sizes = [1, 224], strides = [1, 1]} : vector<30x224xf32> to vector<1x224xf32>
    %1386 = vector.broadcast %18 : vector<8x1xf32> to vector<8x224xf32>
    %1387 = vector.broadcast %1385 : vector<1x224xf32> to vector<8x224xf32>
    %1388 = arith.mulf %1386, %1387 : vector<8x224xf32>
    %1389 = arith.addf %1379, %1388 : vector<8x224xf32>
    %1390 = vector.extract_strided_slice %8 {offsets = [24, 0], sizes = [1, 224], strides = [1, 1]} : vector<30x224xf32> to vector<1x224xf32>
    %1391 = vector.broadcast %19 : vector<8x1xf32> to vector<8x224xf32>
    %1392 = vector.broadcast %1390 : vector<1x224xf32> to vector<8x224xf32>
    %1393 = arith.mulf %1391, %1392 : vector<8x224xf32>
    %1394 = arith.addf %1384, %1393 : vector<8x224xf32>
    %1395 = vector.extract_strided_slice %8 {offsets = [25, 0], sizes = [1, 224], strides = [1, 1]} : vector<30x224xf32> to vector<1x224xf32>
    %1396 = vector.broadcast %19 : vector<8x1xf32> to vector<8x224xf32>
    %1397 = vector.broadcast %1395 : vector<1x224xf32> to vector<8x224xf32>
    %1398 = arith.mulf %1396, %1397 : vector<8x224xf32>
    %1399 = arith.addf %1389, %1398 : vector<8x224xf32>
    %1400 = arith.maximumf %1394, %1399 : vector<8x224xf32>
    %1401 = vector.extract_strided_slice %1400 {offsets = [0, 0], sizes = [8, 216], strides = [1, 1]} : vector<8x224xf32> to vector<8x216xf32>
    %1402 = vector.extract_strided_slice %1400 {offsets = [0, 8], sizes = [8, 216], strides = [1, 1]} : vector<8x224xf32> to vector<8x216xf32>
    %1403 = arith.maximumf %1401, %1402 : vector<8x216xf32>
    %1404 = vector.extract_strided_slice %1403 {offsets = [0, 0], sizes = [8, 8], strides = [1, 1]} : vector<8x216xf32> to vector<8x8xf32>
    %1405 = vector.extract_strided_slice %1403 {offsets = [0, 16], sizes = [8, 8], strides = [1, 1]} : vector<8x216xf32> to vector<8x8xf32>
    %1406 = vector.extract_strided_slice %1403 {offsets = [0, 32], sizes = [8, 8], strides = [1, 1]} : vector<8x216xf32> to vector<8x8xf32>
    %1407 = vector.extract_strided_slice %1403 {offsets = [0, 48], sizes = [8, 8], strides = [1, 1]} : vector<8x216xf32> to vector<8x8xf32>
    %1408 = vector.extract_strided_slice %1403 {offsets = [0, 64], sizes = [8, 8], strides = [1, 1]} : vector<8x216xf32> to vector<8x8xf32>
    %1409 = vector.extract_strided_slice %1403 {offsets = [0, 80], sizes = [8, 8], strides = [1, 1]} : vector<8x216xf32> to vector<8x8xf32>
    %1410 = vector.extract_strided_slice %1403 {offsets = [0, 96], sizes = [8, 8], strides = [1, 1]} : vector<8x216xf32> to vector<8x8xf32>
    %1411 = vector.extract_strided_slice %1403 {offsets = [0, 112], sizes = [8, 8], strides = [1, 1]} : vector<8x216xf32> to vector<8x8xf32>
    %1412 = vector.extract_strided_slice %1403 {offsets = [0, 128], sizes = [8, 8], strides = [1, 1]} : vector<8x216xf32> to vector<8x8xf32>
    %1413 = vector.extract_strided_slice %1403 {offsets = [0, 144], sizes = [8, 8], strides = [1, 1]} : vector<8x216xf32> to vector<8x8xf32>
    %1414 = vector.extract_strided_slice %1403 {offsets = [0, 160], sizes = [8, 8], strides = [1, 1]} : vector<8x216xf32> to vector<8x8xf32>
    %1415 = vector.extract_strided_slice %1403 {offsets = [0, 176], sizes = [8, 8], strides = [1, 1]} : vector<8x216xf32> to vector<8x8xf32>
    %1416 = vector.extract_strided_slice %1403 {offsets = [0, 192], sizes = [8, 8], strides = [1, 1]} : vector<8x216xf32> to vector<8x8xf32>
    %1417 = vector.extract_strided_slice %1403 {offsets = [0, 208], sizes = [8, 8], strides = [1, 1]} : vector<8x216xf32> to vector<8x8xf32>
    %1418 = tpu.concatenate %1404, %1405, %1406, %1407, %1408, %1409, %1410, %1411, %1412, %1413, %1414, %1415, %1416, %1417 in 1 : vector<8x8xf32>, vector<8x8xf32>, vector<8x8xf32>, vector<8x8xf32>, vector<8x8xf32>, vector<8x8xf32>, vector<8x8xf32>, vector<8x8xf32>, vector<8x8xf32>, vector<8x8xf32>, vector<8x8xf32>, vector<8x8xf32>, vector<8x8xf32>, vector<8x8xf32> -> vector<8x112xf32>
    %1419 = vector.broadcast %10 : vector<8x1xf32> to vector<8x112xf32>
    %1420 = arith.addf %1418, %1419 : vector<8x112xf32>
    %cst_57 = arith.constant 0.000000e+00 : f32
    %1421 = vector.broadcast %cst_57 : f32 to vector<8x112xf32>
    %1422 = arith.maximumf %1420, %1421 : vector<8x112xf32>
    %1423 = tpu.concatenate %20, %1422, %20 in 1 : vector<8x8xf32>, vector<8x112xf32>, vector<8x8xf32> -> vector<8x128xf32>
    %c0_58 = arith.constant 0 : index
    %c1536 = arith.constant 1536 : index
    %1424 = vector.load %arg9[%c0_58, %c1536] : memref<8x2176xf32, #tpu.memory_space<vmem>>, vector<8x128xf32>
    tpu.vector_store %arg9[%c0_58, %c1536], %1423 {strides = array<i32>} : memref<8x2176xf32, #tpu.memory_space<vmem>>, vector<8x128xf32>,
    %cst_59 = arith.constant 0.000000e+00 : f32
    %1425 = vector.broadcast %cst_59 : f32 to vector<8x224xf32>
    %cst_60 = arith.constant 0.000000e+00 : f32
    %1426 = vector.broadcast %cst_60 : f32 to vector<8x224xf32>
    %1427 = vector.extract_strided_slice %6 {offsets = [24, 0], sizes = [1, 224], strides = [1, 1]} : vector<30x224xf32> to vector<1x224xf32>
    %1428 = vector.broadcast %11 : vector<8x1xf32> to vector<8x224xf32>
    %1429 = vector.broadcast %1427 : vector<1x224xf32> to vector<8x224xf32>
    %1430 = arith.mulf %1428, %1429 : vector<8x224xf32>
    %1431 = arith.addf %1425, %1430 : vector<8x224xf32>
    %1432 = vector.extract_strided_slice %6 {offsets = [25, 0], sizes = [1, 224], strides = [1, 1]} : vector<30x224xf32> to vector<1x224xf32>
    %1433 = vector.broadcast %11 : vector<8x1xf32> to vector<8x224xf32>
    %1434 = vector.broadcast %1432 : vector<1x224xf32> to vector<8x224xf32>
    %1435 = arith.mulf %1433, %1434 : vector<8x224xf32>
    %1436 = arith.addf %1426, %1435 : vector<8x224xf32>
    %1437 = vector.extract_strided_slice %7 {offsets = [24, 0], sizes = [1, 224], strides = [1, 1]} : vector<30x224xf32> to vector<1x224xf32>
    %1438 = vector.broadcast %12 : vector<8x1xf32> to vector<8x224xf32>
    %1439 = vector.broadcast %1437 : vector<1x224xf32> to vector<8x224xf32>
    %1440 = arith.mulf %1438, %1439 : vector<8x224xf32>
    %1441 = arith.addf %1431, %1440 : vector<8x224xf32>
    %1442 = vector.extract_strided_slice %7 {offsets = [25, 0], sizes = [1, 224], strides = [1, 1]} : vector<30x224xf32> to vector<1x224xf32>
    %1443 = vector.broadcast %12 : vector<8x1xf32> to vector<8x224xf32>
    %1444 = vector.broadcast %1442 : vector<1x224xf32> to vector<8x224xf32>
    %1445 = arith.mulf %1443, %1444 : vector<8x224xf32>
    %1446 = arith.addf %1436, %1445 : vector<8x224xf32>
    %1447 = vector.extract_strided_slice %8 {offsets = [24, 0], sizes = [1, 224], strides = [1, 1]} : vector<30x224xf32> to vector<1x224xf32>
    %1448 = vector.broadcast %13 : vector<8x1xf32> to vector<8x224xf32>
    %1449 = vector.broadcast %1447 : vector<1x224xf32> to vector<8x224xf32>
    %1450 = arith.mulf %1448, %1449 : vector<8x224xf32>
    %1451 = arith.addf %1441, %1450 : vector<8x224xf32>
    %1452 = vector.extract_strided_slice %8 {offsets = [25, 0], sizes = [1, 224], strides = [1, 1]} : vector<30x224xf32> to vector<1x224xf32>
    %1453 = vector.broadcast %13 : vector<8x1xf32> to vector<8x224xf32>
    %1454 = vector.broadcast %1452 : vector<1x224xf32> to vector<8x224xf32>
    %1455 = arith.mulf %1453, %1454 : vector<8x224xf32>
    %1456 = arith.addf %1446, %1455 : vector<8x224xf32>
    %1457 = vector.extract_strided_slice %6 {offsets = [25, 0], sizes = [1, 224], strides = [1, 1]} : vector<30x224xf32> to vector<1x224xf32>
    %1458 = vector.broadcast %14 : vector<8x1xf32> to vector<8x224xf32>
    %1459 = vector.broadcast %1457 : vector<1x224xf32> to vector<8x224xf32>
    %1460 = arith.mulf %1458, %1459 : vector<8x224xf32>
    %1461 = arith.addf %1451, %1460 : vector<8x224xf32>
    %1462 = vector.extract_strided_slice %6 {offsets = [26, 0], sizes = [1, 224], strides = [1, 1]} : vector<30x224xf32> to vector<1x224xf32>
    %1463 = vector.broadcast %14 : vector<8x1xf32> to vector<8x224xf32>
    %1464 = vector.broadcast %1462 : vector<1x224xf32> to vector<8x224xf32>
    %1465 = arith.mulf %1463, %1464 : vector<8x224xf32>
    %1466 = arith.addf %1456, %1465 : vector<8x224xf32>
    %1467 = vector.extract_strided_slice %7 {offsets = [25, 0], sizes = [1, 224], strides = [1, 1]} : vector<30x224xf32> to vector<1x224xf32>
    %1468 = vector.broadcast %15 : vector<8x1xf32> to vector<8x224xf32>
    %1469 = vector.broadcast %1467 : vector<1x224xf32> to vector<8x224xf32>
    %1470 = arith.mulf %1468, %1469 : vector<8x224xf32>
    %1471 = arith.addf %1461, %1470 : vector<8x224xf32>
    %1472 = vector.extract_strided_slice %7 {offsets = [26, 0], sizes = [1, 224], strides = [1, 1]} : vector<30x224xf32> to vector<1x224xf32>
    %1473 = vector.broadcast %15 : vector<8x1xf32> to vector<8x224xf32>
    %1474 = vector.broadcast %1472 : vector<1x224xf32> to vector<8x224xf32>
    %1475 = arith.mulf %1473, %1474 : vector<8x224xf32>
    %1476 = arith.addf %1466, %1475 : vector<8x224xf32>
    %1477 = vector.extract_strided_slice %8 {offsets = [25, 0], sizes = [1, 224], strides = [1, 1]} : vector<30x224xf32> to vector<1x224xf32>
    %1478 = vector.broadcast %16 : vector<8x1xf32> to vector<8x224xf32>
    %1479 = vector.broadcast %1477 : vector<1x224xf32> to vector<8x224xf32>
    %1480 = arith.mulf %1478, %1479 : vector<8x224xf32>
    %1481 = arith.addf %1471, %1480 : vector<8x224xf32>
    %1482 = vector.extract_strided_slice %8 {offsets = [26, 0], sizes = [1, 224], strides = [1, 1]} : vector<30x224xf32> to vector<1x224xf32>
    %1483 = vector.broadcast %16 : vector<8x1xf32> to vector<8x224xf32>
    %1484 = vector.broadcast %1482 : vector<1x224xf32> to vector<8x224xf32>
    %1485 = arith.mulf %1483, %1484 : vector<8x224xf32>
    %1486 = arith.addf %1476, %1485 : vector<8x224xf32>
    %1487 = vector.extract_strided_slice %6 {offsets = [26, 0], sizes = [1, 224], strides = [1, 1]} : vector<30x224xf32> to vector<1x224xf32>
    %1488 = vector.broadcast %17 : vector<8x1xf32> to vector<8x224xf32>
    %1489 = vector.broadcast %1487 : vector<1x224xf32> to vector<8x224xf32>
    %1490 = arith.mulf %1488, %1489 : vector<8x224xf32>
    %1491 = arith.addf %1481, %1490 : vector<8x224xf32>
    %1492 = vector.extract_strided_slice %6 {offsets = [27, 0], sizes = [1, 224], strides = [1, 1]} : vector<30x224xf32> to vector<1x224xf32>
    %1493 = vector.broadcast %17 : vector<8x1xf32> to vector<8x224xf32>
    %1494 = vector.broadcast %1492 : vector<1x224xf32> to vector<8x224xf32>
    %1495 = arith.mulf %1493, %1494 : vector<8x224xf32>
    %1496 = arith.addf %1486, %1495 : vector<8x224xf32>
    %1497 = vector.extract_strided_slice %7 {offsets = [26, 0], sizes = [1, 224], strides = [1, 1]} : vector<30x224xf32> to vector<1x224xf32>
    %1498 = vector.broadcast %18 : vector<8x1xf32> to vector<8x224xf32>
    %1499 = vector.broadcast %1497 : vector<1x224xf32> to vector<8x224xf32>
    %1500 = arith.mulf %1498, %1499 : vector<8x224xf32>
    %1501 = arith.addf %1491, %1500 : vector<8x224xf32>
    %1502 = vector.extract_strided_slice %7 {offsets = [27, 0], sizes = [1, 224], strides = [1, 1]} : vector<30x224xf32> to vector<1x224xf32>
    %1503 = vector.broadcast %18 : vector<8x1xf32> to vector<8x224xf32>
    %1504 = vector.broadcast %1502 : vector<1x224xf32> to vector<8x224xf32>
    %1505 = arith.mulf %1503, %1504 : vector<8x224xf32>
    %1506 = arith.addf %1496, %1505 : vector<8x224xf32>
    %1507 = vector.extract_strided_slice %8 {offsets = [26, 0], sizes = [1, 224], strides = [1, 1]} : vector<30x224xf32> to vector<1x224xf32>
    %1508 = vector.broadcast %19 : vector<8x1xf32> to vector<8x224xf32>
    %1509 = vector.broadcast %1507 : vector<1x224xf32> to vector<8x224xf32>
    %1510 = arith.mulf %1508, %1509 : vector<8x224xf32>
    %1511 = arith.addf %1501, %1510 : vector<8x224xf32>
    %1512 = vector.extract_strided_slice %8 {offsets = [27, 0], sizes = [1, 224], strides = [1, 1]} : vector<30x224xf32> to vector<1x224xf32>
    %1513 = vector.broadcast %19 : vector<8x1xf32> to vector<8x224xf32>
    %1514 = vector.broadcast %1512 : vector<1x224xf32> to vector<8x224xf32>
    %1515 = arith.mulf %1513, %1514 : vector<8x224xf32>
    %1516 = arith.addf %1506, %1515 : vector<8x224xf32>
    %1517 = arith.maximumf %1511, %1516 : vector<8x224xf32>
    %1518 = vector.extract_strided_slice %1517 {offsets = [0, 0], sizes = [8, 216], strides = [1, 1]} : vector<8x224xf32> to vector<8x216xf32>
    %1519 = vector.extract_strided_slice %1517 {offsets = [0, 8], sizes = [8, 216], strides = [1, 1]} : vector<8x224xf32> to vector<8x216xf32>
    %1520 = arith.maximumf %1518, %1519 : vector<8x216xf32>
    %1521 = vector.extract_strided_slice %1520 {offsets = [0, 0], sizes = [8, 8], strides = [1, 1]} : vector<8x216xf32> to vector<8x8xf32>
    %1522 = vector.extract_strided_slice %1520 {offsets = [0, 16], sizes = [8, 8], strides = [1, 1]} : vector<8x216xf32> to vector<8x8xf32>
    %1523 = vector.extract_strided_slice %1520 {offsets = [0, 32], sizes = [8, 8], strides = [1, 1]} : vector<8x216xf32> to vector<8x8xf32>
    %1524 = vector.extract_strided_slice %1520 {offsets = [0, 48], sizes = [8, 8], strides = [1, 1]} : vector<8x216xf32> to vector<8x8xf32>
    %1525 = vector.extract_strided_slice %1520 {offsets = [0, 64], sizes = [8, 8], strides = [1, 1]} : vector<8x216xf32> to vector<8x8xf32>
    %1526 = vector.extract_strided_slice %1520 {offsets = [0, 80], sizes = [8, 8], strides = [1, 1]} : vector<8x216xf32> to vector<8x8xf32>
    %1527 = vector.extract_strided_slice %1520 {offsets = [0, 96], sizes = [8, 8], strides = [1, 1]} : vector<8x216xf32> to vector<8x8xf32>
    %1528 = vector.extract_strided_slice %1520 {offsets = [0, 112], sizes = [8, 8], strides = [1, 1]} : vector<8x216xf32> to vector<8x8xf32>
    %1529 = vector.extract_strided_slice %1520 {offsets = [0, 128], sizes = [8, 8], strides = [1, 1]} : vector<8x216xf32> to vector<8x8xf32>
    %1530 = vector.extract_strided_slice %1520 {offsets = [0, 144], sizes = [8, 8], strides = [1, 1]} : vector<8x216xf32> to vector<8x8xf32>
    %1531 = vector.extract_strided_slice %1520 {offsets = [0, 160], sizes = [8, 8], strides = [1, 1]} : vector<8x216xf32> to vector<8x8xf32>
    %1532 = vector.extract_strided_slice %1520 {offsets = [0, 176], sizes = [8, 8], strides = [1, 1]} : vector<8x216xf32> to vector<8x8xf32>
    %1533 = vector.extract_strided_slice %1520 {offsets = [0, 192], sizes = [8, 8], strides = [1, 1]} : vector<8x216xf32> to vector<8x8xf32>
    %1534 = vector.extract_strided_slice %1520 {offsets = [0, 208], sizes = [8, 8], strides = [1, 1]} : vector<8x216xf32> to vector<8x8xf32>
    %1535 = tpu.concatenate %1521, %1522, %1523, %1524, %1525, %1526, %1527, %1528, %1529, %1530, %1531, %1532, %1533, %1534 in 1 : vector<8x8xf32>, vector<8x8xf32>, vector<8x8xf32>, vector<8x8xf32>, vector<8x8xf32>, vector<8x8xf32>, vector<8x8xf32>, vector<8x8xf32>, vector<8x8xf32>, vector<8x8xf32>, vector<8x8xf32>, vector<8x8xf32>, vector<8x8xf32>, vector<8x8xf32> -> vector<8x112xf32>
    %1536 = vector.broadcast %10 : vector<8x1xf32> to vector<8x112xf32>
    %1537 = arith.addf %1535, %1536 : vector<8x112xf32>
    %cst_61 = arith.constant 0.000000e+00 : f32
    %1538 = vector.broadcast %cst_61 : f32 to vector<8x112xf32>
    %1539 = arith.maximumf %1537, %1538 : vector<8x112xf32>
    %1540 = tpu.concatenate %20, %1539, %20 in 1 : vector<8x8xf32>, vector<8x112xf32>, vector<8x8xf32> -> vector<8x128xf32>
    %c0_62 = arith.constant 0 : index
    %c1664 = arith.constant 1664 : index
    %1541 = vector.load %arg9[%c0_62, %c1664] : memref<8x2176xf32, #tpu.memory_space<vmem>>, vector<8x128xf32>
    tpu.vector_store %arg9[%c0_62, %c1664], %1540 {strides = array<i32>} : memref<8x2176xf32, #tpu.memory_space<vmem>>, vector<8x128xf32>,
    %cst_63 = arith.constant 0.000000e+00 : f32
    %1542 = vector.broadcast %cst_63 : f32 to vector<8x224xf32>
    %cst_64 = arith.constant 0.000000e+00 : f32
    %1543 = vector.broadcast %cst_64 : f32 to vector<8x224xf32>
    %1544 = vector.extract_strided_slice %6 {offsets = [26, 0], sizes = [1, 224], strides = [1, 1]} : vector<30x224xf32> to vector<1x224xf32>
    %1545 = vector.broadcast %11 : vector<8x1xf32> to vector<8x224xf32>
    %1546 = vector.broadcast %1544 : vector<1x224xf32> to vector<8x224xf32>
    %1547 = arith.mulf %1545, %1546 : vector<8x224xf32>
    %1548 = arith.addf %1542, %1547 : vector<8x224xf32>
    %1549 = vector.extract_strided_slice %6 {offsets = [27, 0], sizes = [1, 224], strides = [1, 1]} : vector<30x224xf32> to vector<1x224xf32>
    %1550 = vector.broadcast %11 : vector<8x1xf32> to vector<8x224xf32>
    %1551 = vector.broadcast %1549 : vector<1x224xf32> to vector<8x224xf32>
    %1552 = arith.mulf %1550, %1551 : vector<8x224xf32>
    %1553 = arith.addf %1543, %1552 : vector<8x224xf32>
    %1554 = vector.extract_strided_slice %7 {offsets = [26, 0], sizes = [1, 224], strides = [1, 1]} : vector<30x224xf32> to vector<1x224xf32>
    %1555 = vector.broadcast %12 : vector<8x1xf32> to vector<8x224xf32>
    %1556 = vector.broadcast %1554 : vector<1x224xf32> to vector<8x224xf32>
    %1557 = arith.mulf %1555, %1556 : vector<8x224xf32>
    %1558 = arith.addf %1548, %1557 : vector<8x224xf32>
    %1559 = vector.extract_strided_slice %7 {offsets = [27, 0], sizes = [1, 224], strides = [1, 1]} : vector<30x224xf32> to vector<1x224xf32>
    %1560 = vector.broadcast %12 : vector<8x1xf32> to vector<8x224xf32>
    %1561 = vector.broadcast %1559 : vector<1x224xf32> to vector<8x224xf32>
    %1562 = arith.mulf %1560, %1561 : vector<8x224xf32>
    %1563 = arith.addf %1553, %1562 : vector<8x224xf32>
    %1564 = vector.extract_strided_slice %8 {offsets = [26, 0], sizes = [1, 224], strides = [1, 1]} : vector<30x224xf32> to vector<1x224xf32>
    %1565 = vector.broadcast %13 : vector<8x1xf32> to vector<8x224xf32>
    %1566 = vector.broadcast %1564 : vector<1x224xf32> to vector<8x224xf32>
    %1567 = arith.mulf %1565, %1566 : vector<8x224xf32>
    %1568 = arith.addf %1558, %1567 : vector<8x224xf32>
    %1569 = vector.extract_strided_slice %8 {offsets = [27, 0], sizes = [1, 224], strides = [1, 1]} : vector<30x224xf32> to vector<1x224xf32>
    %1570 = vector.broadcast %13 : vector<8x1xf32> to vector<8x224xf32>
    %1571 = vector.broadcast %1569 : vector<1x224xf32> to vector<8x224xf32>
    %1572 = arith.mulf %1570, %1571 : vector<8x224xf32>
    %1573 = arith.addf %1563, %1572 : vector<8x224xf32>
    %1574 = vector.extract_strided_slice %6 {offsets = [27, 0], sizes = [1, 224], strides = [1, 1]} : vector<30x224xf32> to vector<1x224xf32>
    %1575 = vector.broadcast %14 : vector<8x1xf32> to vector<8x224xf32>
    %1576 = vector.broadcast %1574 : vector<1x224xf32> to vector<8x224xf32>
    %1577 = arith.mulf %1575, %1576 : vector<8x224xf32>
    %1578 = arith.addf %1568, %1577 : vector<8x224xf32>
    %1579 = vector.extract_strided_slice %6 {offsets = [28, 0], sizes = [1, 224], strides = [1, 1]} : vector<30x224xf32> to vector<1x224xf32>
    %1580 = vector.broadcast %14 : vector<8x1xf32> to vector<8x224xf32>
    %1581 = vector.broadcast %1579 : vector<1x224xf32> to vector<8x224xf32>
    %1582 = arith.mulf %1580, %1581 : vector<8x224xf32>
    %1583 = arith.addf %1573, %1582 : vector<8x224xf32>
    %1584 = vector.extract_strided_slice %7 {offsets = [27, 0], sizes = [1, 224], strides = [1, 1]} : vector<30x224xf32> to vector<1x224xf32>
    %1585 = vector.broadcast %15 : vector<8x1xf32> to vector<8x224xf32>
    %1586 = vector.broadcast %1584 : vector<1x224xf32> to vector<8x224xf32>
    %1587 = arith.mulf %1585, %1586 : vector<8x224xf32>
    %1588 = arith.addf %1578, %1587 : vector<8x224xf32>
    %1589 = vector.extract_strided_slice %7 {offsets = [28, 0], sizes = [1, 224], strides = [1, 1]} : vector<30x224xf32> to vector<1x224xf32>
    %1590 = vector.broadcast %15 : vector<8x1xf32> to vector<8x224xf32>
    %1591 = vector.broadcast %1589 : vector<1x224xf32> to vector<8x224xf32>
    %1592 = arith.mulf %1590, %1591 : vector<8x224xf32>
    %1593 = arith.addf %1583, %1592 : vector<8x224xf32>
    %1594 = vector.extract_strided_slice %8 {offsets = [27, 0], sizes = [1, 224], strides = [1, 1]} : vector<30x224xf32> to vector<1x224xf32>
    %1595 = vector.broadcast %16 : vector<8x1xf32> to vector<8x224xf32>
    %1596 = vector.broadcast %1594 : vector<1x224xf32> to vector<8x224xf32>
    %1597 = arith.mulf %1595, %1596 : vector<8x224xf32>
    %1598 = arith.addf %1588, %1597 : vector<8x224xf32>
    %1599 = vector.extract_strided_slice %8 {offsets = [28, 0], sizes = [1, 224], strides = [1, 1]} : vector<30x224xf32> to vector<1x224xf32>
    %1600 = vector.broadcast %16 : vector<8x1xf32> to vector<8x224xf32>
    %1601 = vector.broadcast %1599 : vector<1x224xf32> to vector<8x224xf32>
    %1602 = arith.mulf %1600, %1601 : vector<8x224xf32>
    %1603 = arith.addf %1593, %1602 : vector<8x224xf32>
    %1604 = vector.extract_strided_slice %6 {offsets = [28, 0], sizes = [1, 224], strides = [1, 1]} : vector<30x224xf32> to vector<1x224xf32>
    %1605 = vector.broadcast %17 : vector<8x1xf32> to vector<8x224xf32>
    %1606 = vector.broadcast %1604 : vector<1x224xf32> to vector<8x224xf32>
    %1607 = arith.mulf %1605, %1606 : vector<8x224xf32>
    %1608 = arith.addf %1598, %1607 : vector<8x224xf32>
    %1609 = vector.extract_strided_slice %6 {offsets = [29, 0], sizes = [1, 224], strides = [1, 1]} : vector<30x224xf32> to vector<1x224xf32>
    %1610 = vector.broadcast %17 : vector<8x1xf32> to vector<8x224xf32>
    %1611 = vector.broadcast %1609 : vector<1x224xf32> to vector<8x224xf32>
    %1612 = arith.mulf %1610, %1611 : vector<8x224xf32>
    %1613 = arith.addf %1603, %1612 : vector<8x224xf32>
    %1614 = vector.extract_strided_slice %7 {offsets = [28, 0], sizes = [1, 224], strides = [1, 1]} : vector<30x224xf32> to vector<1x224xf32>
    %1615 = vector.broadcast %18 : vector<8x1xf32> to vector<8x224xf32>
    %1616 = vector.broadcast %1614 : vector<1x224xf32> to vector<8x224xf32>
    %1617 = arith.mulf %1615, %1616 : vector<8x224xf32>
    %1618 = arith.addf %1608, %1617 : vector<8x224xf32>
    %1619 = vector.extract_strided_slice %7 {offsets = [29, 0], sizes = [1, 224], strides = [1, 1]} : vector<30x224xf32> to vector<1x224xf32>
    %1620 = vector.broadcast %18 : vector<8x1xf32> to vector<8x224xf32>
    %1621 = vector.broadcast %1619 : vector<1x224xf32> to vector<8x224xf32>
    %1622 = arith.mulf %1620, %1621 : vector<8x224xf32>
    %1623 = arith.addf %1613, %1622 : vector<8x224xf32>
    %1624 = vector.extract_strided_slice %8 {offsets = [28, 0], sizes = [1, 224], strides = [1, 1]} : vector<30x224xf32> to vector<1x224xf32>
    %1625 = vector.broadcast %19 : vector<8x1xf32> to vector<8x224xf32>
    %1626 = vector.broadcast %1624 : vector<1x224xf32> to vector<8x224xf32>
    %1627 = arith.mulf %1625, %1626 : vector<8x224xf32>
    %1628 = arith.addf %1618, %1627 : vector<8x224xf32>
    %1629 = vector.extract_strided_slice %8 {offsets = [29, 0], sizes = [1, 224], strides = [1, 1]} : vector<30x224xf32> to vector<1x224xf32>
    %1630 = vector.broadcast %19 : vector<8x1xf32> to vector<8x224xf32>
    %1631 = vector.broadcast %1629 : vector<1x224xf32> to vector<8x224xf32>
    %1632 = arith.mulf %1630, %1631 : vector<8x224xf32>
    %1633 = arith.addf %1623, %1632 : vector<8x224xf32>
    %1634 = arith.maximumf %1628, %1633 : vector<8x224xf32>
    %1635 = vector.extract_strided_slice %1634 {offsets = [0, 0], sizes = [8, 216], strides = [1, 1]} : vector<8x224xf32> to vector<8x216xf32>
    %1636 = vector.extract_strided_slice %1634 {offsets = [0, 8], sizes = [8, 216], strides = [1, 1]} : vector<8x224xf32> to vector<8x216xf32>
    %1637 = arith.maximumf %1635, %1636 : vector<8x216xf32>
    %1638 = vector.extract_strided_slice %1637 {offsets = [0, 0], sizes = [8, 8], strides = [1, 1]} : vector<8x216xf32> to vector<8x8xf32>
    %1639 = vector.extract_strided_slice %1637 {offsets = [0, 16], sizes = [8, 8], strides = [1, 1]} : vector<8x216xf32> to vector<8x8xf32>
    %1640 = vector.extract_strided_slice %1637 {offsets = [0, 32], sizes = [8, 8], strides = [1, 1]} : vector<8x216xf32> to vector<8x8xf32>
    %1641 = vector.extract_strided_slice %1637 {offsets = [0, 48], sizes = [8, 8], strides = [1, 1]} : vector<8x216xf32> to vector<8x8xf32>
    %1642 = vector.extract_strided_slice %1637 {offsets = [0, 64], sizes = [8, 8], strides = [1, 1]} : vector<8x216xf32> to vector<8x8xf32>
    %1643 = vector.extract_strided_slice %1637 {offsets = [0, 80], sizes = [8, 8], strides = [1, 1]} : vector<8x216xf32> to vector<8x8xf32>
    %1644 = vector.extract_strided_slice %1637 {offsets = [0, 96], sizes = [8, 8], strides = [1, 1]} : vector<8x216xf32> to vector<8x8xf32>
    %1645 = vector.extract_strided_slice %1637 {offsets = [0, 112], sizes = [8, 8], strides = [1, 1]} : vector<8x216xf32> to vector<8x8xf32>
    %1646 = vector.extract_strided_slice %1637 {offsets = [0, 128], sizes = [8, 8], strides = [1, 1]} : vector<8x216xf32> to vector<8x8xf32>
    %1647 = vector.extract_strided_slice %1637 {offsets = [0, 144], sizes = [8, 8], strides = [1, 1]} : vector<8x216xf32> to vector<8x8xf32>
    %1648 = vector.extract_strided_slice %1637 {offsets = [0, 160], sizes = [8, 8], strides = [1, 1]} : vector<8x216xf32> to vector<8x8xf32>
    %1649 = vector.extract_strided_slice %1637 {offsets = [0, 176], sizes = [8, 8], strides = [1, 1]} : vector<8x216xf32> to vector<8x8xf32>
    %1650 = vector.extract_strided_slice %1637 {offsets = [0, 192], sizes = [8, 8], strides = [1, 1]} : vector<8x216xf32> to vector<8x8xf32>
    %1651 = vector.extract_strided_slice %1637 {offsets = [0, 208], sizes = [8, 8], strides = [1, 1]} : vector<8x216xf32> to vector<8x8xf32>
    %1652 = tpu.concatenate %1638, %1639, %1640, %1641, %1642, %1643, %1644, %1645, %1646, %1647, %1648, %1649, %1650, %1651 in 1 : vector<8x8xf32>, vector<8x8xf32>, vector<8x8xf32>, vector<8x8xf32>, vector<8x8xf32>, vector<8x8xf32>, vector<8x8xf32>, vector<8x8xf32>, vector<8x8xf32>, vector<8x8xf32>, vector<8x8xf32>, vector<8x8xf32>, vector<8x8xf32>, vector<8x8xf32> -> vector<8x112xf32>
    %1653 = vector.broadcast %10 : vector<8x1xf32> to vector<8x112xf32>
    %1654 = arith.addf %1652, %1653 : vector<8x112xf32>
    %cst_65 = arith.constant 0.000000e+00 : f32
    %1655 = vector.broadcast %cst_65 : f32 to vector<8x112xf32>
    %1656 = arith.maximumf %1654, %1655 : vector<8x112xf32>
    %1657 = tpu.concatenate %20, %1656, %20 in 1 : vector<8x8xf32>, vector<8x112xf32>, vector<8x8xf32> -> vector<8x128xf32>
    %c0_66 = arith.constant 0 : index
    %c1792 = arith.constant 1792 : index
    %1658 = vector.load %arg9[%c0_66, %c1792] : memref<8x2176xf32, #tpu.memory_space<vmem>>, vector<8x128xf32>
    tpu.vector_store %arg9[%c0_66, %c1792], %1657 {strides = array<i32>} : memref<8x2176xf32, #tpu.memory_space<vmem>>, vector<8x128xf32>,
    %c0_67 = arith.constant 0 : index
    %c0_68 = arith.constant 0 : index
    %1659 = vector.load %arg9[%c0_67, %c0_68] : memref<8x2176xf32, #tpu.memory_space<vmem>>, vector<8x2176xf32>
    %1660 = vector.extract_strided_slice %1659 {offsets = [0, 0], sizes = [8, 1792], strides = [1, 1]} : vector<8x2176xf32> to vector<8x1792xf32>
    %1661 = vector.extract_strided_slice %1659 {offsets = [0, 8], sizes = [8, 1792], strides = [1, 1]} : vector<8x2176xf32> to vector<8x1792xf32>
    %1662 = vector.extract_strided_slice %1659 {offsets = [0, 16], sizes = [8, 1792], strides = [1, 1]} : vector<8x2176xf32> to vector<8x1792xf32>
    %1663 = vector.extract_strided_slice %1659 {offsets = [0, 128], sizes = [8, 1792], strides = [1, 1]} : vector<8x2176xf32> to vector<8x1792xf32>
    %1664 = vector.extract_strided_slice %1659 {offsets = [0, 136], sizes = [8, 1792], strides = [1, 1]} : vector<8x2176xf32> to vector<8x1792xf32>
    %1665 = vector.extract_strided_slice %1659 {offsets = [0, 144], sizes = [8, 1792], strides = [1, 1]} : vector<8x2176xf32> to vector<8x1792xf32>
    %1666 = vector.extract_strided_slice %1659 {offsets = [0, 256], sizes = [8, 1792], strides = [1, 1]} : vector<8x2176xf32> to vector<8x1792xf32>
    %1667 = vector.extract_strided_slice %1659 {offsets = [0, 264], sizes = [8, 1792], strides = [1, 1]} : vector<8x2176xf32> to vector<8x1792xf32>
    %1668 = vector.extract_strided_slice %1659 {offsets = [0, 272], sizes = [8, 1792], strides = [1, 1]} : vector<8x2176xf32> to vector<8x1792xf32>
    %1669 = tpu.concatenate %1660, %1661, %1662, %1663, %1664, %1665, %1666, %1667, %1668 in 0 : vector<8x1792xf32>, vector<8x1792xf32>, vector<8x1792xf32>, vector<8x1792xf32>, vector<8x1792xf32>, vector<8x1792xf32>, vector<8x1792xf32>, vector<8x1792xf32>, vector<8x1792xf32> -> vector<72x1792xf32>
    %c0_69 = arith.constant 0 : index
    %c0_70 = arith.constant 0 : index
    %1670 = vector.load %arg4[%c0_69, %c0_70] : memref<16x72xf32, #tpu.memory_space<vmem>>, vector<16x72xf32>
    %cst_71 = arith.constant dense<0.000000e+00> : vector<16x1792xf32>
    %1671 = tpu.matmul %1670, %1669, %cst_71 {dimension_numbers = #tpu.dot_dimension_numbers<[1], [0], [0], [1], [0, 0, 1, 1], [], []>} : vector<16x72xf32>, vector<72x1792xf32>, vector<16x1792xf32> -> vector<16x1792xf32>
    %c0_72 = arith.constant 0 : index
    %c0_73 = arith.constant 0 : index
    %1672 = vector.load %arg5[%c0_72, %c0_73] : memref<16x1xf32, #tpu.memory_space<vmem>>, vector<16x1xf32>
    %1673 = vector.broadcast %1672 : vector<16x1xf32> to vector<16x1792xf32>
    %1674 = arith.addf %1671, %1673 : vector<16x1792xf32>
    %cst_74 = arith.constant 0.000000e+00 : f32
    %1675 = vector.broadcast %cst_74 : f32 to vector<16x1792xf32>
    %1676 = arith.maximumf %1674, %1675 : vector<16x1792xf32>
    %1677 = vector.extract_strided_slice %1676 {offsets = [0, 0], sizes = [16, 112], strides = [1, 1]} : vector<16x1792xf32> to vector<16x112xf32>
    %1678 = vector.extract_strided_slice %1676 {offsets = [0, 128], sizes = [16, 112], strides = [1, 1]} : vector<16x1792xf32> to vector<16x112xf32>
    %1679 = arith.maximumf %1677, %1678 : vector<16x112xf32>
    %1680 = vector.extract_strided_slice %1679 {offsets = [0, 0], sizes = [16, 104], strides = [1, 1]} : vector<16x112xf32> to vector<16x104xf32>
    %1681 = vector.extract_strided_slice %1679 {offsets = [0, 8], sizes = [16, 104], strides = [1, 1]} : vector<16x112xf32> to vector<16x104xf32>
    %1682 = arith.maximumf %1680, %1681 : vector<16x104xf32>
    %1683 = vector.extract_strided_slice %1682 {offsets = [0, 0], sizes = [16, 8], strides = [1, 1]} : vector<16x104xf32> to vector<16x8xf32>
    %1684 = vector.extract_strided_slice %1682 {offsets = [0, 16], sizes = [16, 8], strides = [1, 1]} : vector<16x104xf32> to vector<16x8xf32>
    %1685 = vector.extract_strided_slice %1682 {offsets = [0, 32], sizes = [16, 8], strides = [1, 1]} : vector<16x104xf32> to vector<16x8xf32>
    %1686 = vector.extract_strided_slice %1682 {offsets = [0, 48], sizes = [16, 8], strides = [1, 1]} : vector<16x104xf32> to vector<16x8xf32>
    %1687 = vector.extract_strided_slice %1682 {offsets = [0, 64], sizes = [16, 8], strides = [1, 1]} : vector<16x104xf32> to vector<16x8xf32>
    %1688 = vector.extract_strided_slice %1682 {offsets = [0, 80], sizes = [16, 8], strides = [1, 1]} : vector<16x104xf32> to vector<16x8xf32>
    %1689 = vector.extract_strided_slice %1682 {offsets = [0, 96], sizes = [16, 8], strides = [1, 1]} : vector<16x104xf32> to vector<16x8xf32>
    %1690 = vector.extract_strided_slice %1676 {offsets = [0, 256], sizes = [16, 112], strides = [1, 1]} : vector<16x1792xf32> to vector<16x112xf32>
    %1691 = vector.extract_strided_slice %1676 {offsets = [0, 384], sizes = [16, 112], strides = [1, 1]} : vector<16x1792xf32> to vector<16x112xf32>
    %1692 = arith.maximumf %1690, %1691 : vector<16x112xf32>
    %1693 = vector.extract_strided_slice %1692 {offsets = [0, 0], sizes = [16, 104], strides = [1, 1]} : vector<16x112xf32> to vector<16x104xf32>
    %1694 = vector.extract_strided_slice %1692 {offsets = [0, 8], sizes = [16, 104], strides = [1, 1]} : vector<16x112xf32> to vector<16x104xf32>
    %1695 = arith.maximumf %1693, %1694 : vector<16x104xf32>
    %1696 = vector.extract_strided_slice %1695 {offsets = [0, 0], sizes = [16, 8], strides = [1, 1]} : vector<16x104xf32> to vector<16x8xf32>
    %1697 = vector.extract_strided_slice %1695 {offsets = [0, 16], sizes = [16, 8], strides = [1, 1]} : vector<16x104xf32> to vector<16x8xf32>
    %1698 = vector.extract_strided_slice %1695 {offsets = [0, 32], sizes = [16, 8], strides = [1, 1]} : vector<16x104xf32> to vector<16x8xf32>
    %1699 = vector.extract_strided_slice %1695 {offsets = [0, 48], sizes = [16, 8], strides = [1, 1]} : vector<16x104xf32> to vector<16x8xf32>
    %1700 = vector.extract_strided_slice %1695 {offsets = [0, 64], sizes = [16, 8], strides = [1, 1]} : vector<16x104xf32> to vector<16x8xf32>
    %1701 = vector.extract_strided_slice %1695 {offsets = [0, 80], sizes = [16, 8], strides = [1, 1]} : vector<16x104xf32> to vector<16x8xf32>
    %1702 = vector.extract_strided_slice %1695 {offsets = [0, 96], sizes = [16, 8], strides = [1, 1]} : vector<16x104xf32> to vector<16x8xf32>
    %1703 = vector.extract_strided_slice %1676 {offsets = [0, 512], sizes = [16, 112], strides = [1, 1]} : vector<16x1792xf32> to vector<16x112xf32>
    %1704 = vector.extract_strided_slice %1676 {offsets = [0, 640], sizes = [16, 112], strides = [1, 1]} : vector<16x1792xf32> to vector<16x112xf32>
    %1705 = arith.maximumf %1703, %1704 : vector<16x112xf32>
    %1706 = vector.extract_strided_slice %1705 {offsets = [0, 0], sizes = [16, 104], strides = [1, 1]} : vector<16x112xf32> to vector<16x104xf32>
    %1707 = vector.extract_strided_slice %1705 {offsets = [0, 8], sizes = [16, 104], strides = [1, 1]} : vector<16x112xf32> to vector<16x104xf32>
    %1708 = arith.maximumf %1706, %1707 : vector<16x104xf32>
    %1709 = vector.extract_strided_slice %1708 {offsets = [0, 0], sizes = [16, 8], strides = [1, 1]} : vector<16x104xf32> to vector<16x8xf32>
    %1710 = vector.extract_strided_slice %1708 {offsets = [0, 16], sizes = [16, 8], strides = [1, 1]} : vector<16x104xf32> to vector<16x8xf32>
    %1711 = vector.extract_strided_slice %1708 {offsets = [0, 32], sizes = [16, 8], strides = [1, 1]} : vector<16x104xf32> to vector<16x8xf32>
    %1712 = vector.extract_strided_slice %1708 {offsets = [0, 48], sizes = [16, 8], strides = [1, 1]} : vector<16x104xf32> to vector<16x8xf32>
    %1713 = vector.extract_strided_slice %1708 {offsets = [0, 64], sizes = [16, 8], strides = [1, 1]} : vector<16x104xf32> to vector<16x8xf32>
    %1714 = vector.extract_strided_slice %1708 {offsets = [0, 80], sizes = [16, 8], strides = [1, 1]} : vector<16x104xf32> to vector<16x8xf32>
    %1715 = vector.extract_strided_slice %1708 {offsets = [0, 96], sizes = [16, 8], strides = [1, 1]} : vector<16x104xf32> to vector<16x8xf32>
    %1716 = vector.extract_strided_slice %1676 {offsets = [0, 768], sizes = [16, 112], strides = [1, 1]} : vector<16x1792xf32> to vector<16x112xf32>
    %1717 = vector.extract_strided_slice %1676 {offsets = [0, 896], sizes = [16, 112], strides = [1, 1]} : vector<16x1792xf32> to vector<16x112xf32>
    %1718 = arith.maximumf %1716, %1717 : vector<16x112xf32>
    %1719 = vector.extract_strided_slice %1718 {offsets = [0, 0], sizes = [16, 104], strides = [1, 1]} : vector<16x112xf32> to vector<16x104xf32>
    %1720 = vector.extract_strided_slice %1718 {offsets = [0, 8], sizes = [16, 104], strides = [1, 1]} : vector<16x112xf32> to vector<16x104xf32>
    %1721 = arith.maximumf %1719, %1720 : vector<16x104xf32>
    %1722 = vector.extract_strided_slice %1721 {offsets = [0, 0], sizes = [16, 8], strides = [1, 1]} : vector<16x104xf32> to vector<16x8xf32>
    %1723 = vector.extract_strided_slice %1721 {offsets = [0, 16], sizes = [16, 8], strides = [1, 1]} : vector<16x104xf32> to vector<16x8xf32>
    %1724 = vector.extract_strided_slice %1721 {offsets = [0, 32], sizes = [16, 8], strides = [1, 1]} : vector<16x104xf32> to vector<16x8xf32>
    %1725 = vector.extract_strided_slice %1721 {offsets = [0, 48], sizes = [16, 8], strides = [1, 1]} : vector<16x104xf32> to vector<16x8xf32>
    %1726 = vector.extract_strided_slice %1721 {offsets = [0, 64], sizes = [16, 8], strides = [1, 1]} : vector<16x104xf32> to vector<16x8xf32>
    %1727 = vector.extract_strided_slice %1721 {offsets = [0, 80], sizes = [16, 8], strides = [1, 1]} : vector<16x104xf32> to vector<16x8xf32>
    %1728 = vector.extract_strided_slice %1721 {offsets = [0, 96], sizes = [16, 8], strides = [1, 1]} : vector<16x104xf32> to vector<16x8xf32>
    %1729 = vector.extract_strided_slice %1676 {offsets = [0, 1024], sizes = [16, 112], strides = [1, 1]} : vector<16x1792xf32> to vector<16x112xf32>
    %1730 = vector.extract_strided_slice %1676 {offsets = [0, 1152], sizes = [16, 112], strides = [1, 1]} : vector<16x1792xf32> to vector<16x112xf32>
    %1731 = arith.maximumf %1729, %1730 : vector<16x112xf32>
    %1732 = vector.extract_strided_slice %1731 {offsets = [0, 0], sizes = [16, 104], strides = [1, 1]} : vector<16x112xf32> to vector<16x104xf32>
    %1733 = vector.extract_strided_slice %1731 {offsets = [0, 8], sizes = [16, 104], strides = [1, 1]} : vector<16x112xf32> to vector<16x104xf32>
    %1734 = arith.maximumf %1732, %1733 : vector<16x104xf32>
    %1735 = vector.extract_strided_slice %1734 {offsets = [0, 0], sizes = [16, 8], strides = [1, 1]} : vector<16x104xf32> to vector<16x8xf32>
    %1736 = vector.extract_strided_slice %1734 {offsets = [0, 16], sizes = [16, 8], strides = [1, 1]} : vector<16x104xf32> to vector<16x8xf32>
    %1737 = vector.extract_strided_slice %1734 {offsets = [0, 32], sizes = [16, 8], strides = [1, 1]} : vector<16x104xf32> to vector<16x8xf32>
    %1738 = vector.extract_strided_slice %1734 {offsets = [0, 48], sizes = [16, 8], strides = [1, 1]} : vector<16x104xf32> to vector<16x8xf32>
    %1739 = vector.extract_strided_slice %1734 {offsets = [0, 64], sizes = [16, 8], strides = [1, 1]} : vector<16x104xf32> to vector<16x8xf32>
    %1740 = vector.extract_strided_slice %1734 {offsets = [0, 80], sizes = [16, 8], strides = [1, 1]} : vector<16x104xf32> to vector<16x8xf32>
    %1741 = vector.extract_strided_slice %1734 {offsets = [0, 96], sizes = [16, 8], strides = [1, 1]} : vector<16x104xf32> to vector<16x8xf32>
    %1742 = vector.extract_strided_slice %1676 {offsets = [0, 1280], sizes = [16, 112], strides = [1, 1]} : vector<16x1792xf32> to vector<16x112xf32>
    %1743 = vector.extract_strided_slice %1676 {offsets = [0, 1408], sizes = [16, 112], strides = [1, 1]} : vector<16x1792xf32> to vector<16x112xf32>
    %1744 = arith.maximumf %1742, %1743 : vector<16x112xf32>
    %1745 = vector.extract_strided_slice %1744 {offsets = [0, 0], sizes = [16, 104], strides = [1, 1]} : vector<16x112xf32> to vector<16x104xf32>
    %1746 = vector.extract_strided_slice %1744 {offsets = [0, 8], sizes = [16, 104], strides = [1, 1]} : vector<16x112xf32> to vector<16x104xf32>
    %1747 = arith.maximumf %1745, %1746 : vector<16x104xf32>
    %1748 = vector.extract_strided_slice %1747 {offsets = [0, 0], sizes = [16, 8], strides = [1, 1]} : vector<16x104xf32> to vector<16x8xf32>
    %1749 = vector.extract_strided_slice %1747 {offsets = [0, 16], sizes = [16, 8], strides = [1, 1]} : vector<16x104xf32> to vector<16x8xf32>
    %1750 = vector.extract_strided_slice %1747 {offsets = [0, 32], sizes = [16, 8], strides = [1, 1]} : vector<16x104xf32> to vector<16x8xf32>
    %1751 = vector.extract_strided_slice %1747 {offsets = [0, 48], sizes = [16, 8], strides = [1, 1]} : vector<16x104xf32> to vector<16x8xf32>
    %1752 = vector.extract_strided_slice %1747 {offsets = [0, 64], sizes = [16, 8], strides = [1, 1]} : vector<16x104xf32> to vector<16x8xf32>
    %1753 = vector.extract_strided_slice %1747 {offsets = [0, 80], sizes = [16, 8], strides = [1, 1]} : vector<16x104xf32> to vector<16x8xf32>
    %1754 = vector.extract_strided_slice %1747 {offsets = [0, 96], sizes = [16, 8], strides = [1, 1]} : vector<16x104xf32> to vector<16x8xf32>
    %1755 = vector.extract_strided_slice %1676 {offsets = [0, 1536], sizes = [16, 112], strides = [1, 1]} : vector<16x1792xf32> to vector<16x112xf32>
    %1756 = vector.extract_strided_slice %1676 {offsets = [0, 1664], sizes = [16, 112], strides = [1, 1]} : vector<16x1792xf32> to vector<16x112xf32>
    %1757 = arith.maximumf %1755, %1756 : vector<16x112xf32>
    %1758 = vector.extract_strided_slice %1757 {offsets = [0, 0], sizes = [16, 104], strides = [1, 1]} : vector<16x112xf32> to vector<16x104xf32>
    %1759 = vector.extract_strided_slice %1757 {offsets = [0, 8], sizes = [16, 104], strides = [1, 1]} : vector<16x112xf32> to vector<16x104xf32>
    %1760 = arith.maximumf %1758, %1759 : vector<16x104xf32>
    %1761 = vector.extract_strided_slice %1760 {offsets = [0, 0], sizes = [16, 8], strides = [1, 1]} : vector<16x104xf32> to vector<16x8xf32>
    %1762 = vector.extract_strided_slice %1760 {offsets = [0, 16], sizes = [16, 8], strides = [1, 1]} : vector<16x104xf32> to vector<16x8xf32>
    %1763 = vector.extract_strided_slice %1760 {offsets = [0, 32], sizes = [16, 8], strides = [1, 1]} : vector<16x104xf32> to vector<16x8xf32>
    %1764 = vector.extract_strided_slice %1760 {offsets = [0, 48], sizes = [16, 8], strides = [1, 1]} : vector<16x104xf32> to vector<16x8xf32>
    %1765 = vector.extract_strided_slice %1760 {offsets = [0, 64], sizes = [16, 8], strides = [1, 1]} : vector<16x104xf32> to vector<16x8xf32>
    %1766 = vector.extract_strided_slice %1760 {offsets = [0, 80], sizes = [16, 8], strides = [1, 1]} : vector<16x104xf32> to vector<16x8xf32>
    %1767 = vector.extract_strided_slice %1760 {offsets = [0, 96], sizes = [16, 8], strides = [1, 1]} : vector<16x104xf32> to vector<16x8xf32>
    %1768 = tpu.concatenate %1683, %1684, %1685, %1686, %1687, %1688, %1689, %1696, %1697, %1698, %1699, %1700, %1701, %1702, %1709, %1710 in 0 : vector<16x8xf32>, vector<16x8xf32>, vector<16x8xf32>, vector<16x8xf32>, vector<16x8xf32>, vector<16x8xf32>, vector<16x8xf32>, vector<16x8xf32>, vector<16x8xf32>, vector<16x8xf32>, vector<16x8xf32>, vector<16x8xf32>, vector<16x8xf32>, vector<16x8xf32>, vector<16x8xf32>, vector<16x8xf32> -> vector<256x8xf32>
    %1769 = tpu.concatenate %1711, %1712, %1713, %1714, %1715, %1722, %1723, %1724, %1725, %1726, %1727, %1728, %1735, %1736, %1737, %1738 in 0 : vector<16x8xf32>, vector<16x8xf32>, vector<16x8xf32>, vector<16x8xf32>, vector<16x8xf32>, vector<16x8xf32>, vector<16x8xf32>, vector<16x8xf32>, vector<16x8xf32>, vector<16x8xf32>, vector<16x8xf32>, vector<16x8xf32>, vector<16x8xf32>, vector<16x8xf32>, vector<16x8xf32>, vector<16x8xf32> -> vector<256x8xf32>
    %1770 = tpu.concatenate %1739, %1740, %1741, %1748, %1749, %1750, %1751, %1752, %1753, %1754, %1761, %1762, %1763, %1764, %1765, %1766 in 0 : vector<16x8xf32>, vector<16x8xf32>, vector<16x8xf32>, vector<16x8xf32>, vector<16x8xf32>, vector<16x8xf32>, vector<16x8xf32>, vector<16x8xf32>, vector<16x8xf32>, vector<16x8xf32>, vector<16x8xf32>, vector<16x8xf32>, vector<16x8xf32>, vector<16x8xf32>, vector<16x8xf32>, vector<16x8xf32> -> vector<256x8xf32>
    %1771 = tpu.concatenate %1768, %1769, %1770, %1767 in 0 : vector<256x8xf32>, vector<256x8xf32>, vector<256x8xf32>, vector<16x8xf32> -> vector<784x8xf32>
    %c0_75 = arith.constant 0 : index
    %c0_76 = arith.constant 0 : index
    %1772 = vector.load %arg6[%c0_75, %c0_76] : memref<10x784xf32, #tpu.memory_space<vmem>>, vector<10x784xf32>
    %cst_77 = arith.constant dense<0.000000e+00> : vector<10x8xf32>
    %1773 = tpu.matmul %1772, %1771, %cst_77 {dimension_numbers = #tpu.dot_dimension_numbers<[1], [0], [0], [1], [0, 0, 1, 1], [], []>} : vector<10x784xf32>, vector<784x8xf32>, vector<10x8xf32> -> vector<10x8xf32>
    %c0_78 = arith.constant 0 : index
    %c0_79 = arith.constant 0 : index
    %1774 = vector.load %arg7[%c0_78, %c0_79] : memref<10x1xf32, #tpu.memory_space<vmem>>, vector<10x1xf32>
    %1775 = vector.broadcast %1774 : vector<10x1xf32> to vector<10x8xf32>
    %1776 = arith.addf %1773, %1775 : vector<10x8xf32>
    %c0_80 = arith.constant 0 : index
    %c0_81 = arith.constant 0 : index
    %c0_82 = arith.constant 0 : index
    %1777 = vector.load %arg8[%c0_80, %c0_81, %c0_82] : memref<1x10x8xf32, #tpu.memory_space<vmem>>, vector<1x10x8xf32>
    %1778 = vector.shape_cast %1777 : vector<1x10x8xf32> to vector<10x8xf32>
    %1779 = vector.shape_cast %1776 : vector<10x8xf32> to vector<1x10x8xf32>
    tpu.vector_store %arg8[%c0_80, %c0_81, %c0_82], %1779 {strides = array<i32>} : memref<1x10x8xf32, #tpu.memory_space<vmem>>, vector<1x10x8xf32>,
    return
  }
  func.func @transform_0(%arg0: i32) -> (i32, i32, i32) {
    %c0_i32 = arith.constant 0 : i32
    %c0_i32_0 = arith.constant 0 : i32
    %c0_i32_1 = arith.constant 0 : i32
    return %arg0, %c0_i32, %c0_i32_0 : i32, i32, i32
  }
  func.func @transform_1(%arg0: i32) -> (i32, i32) {
    %c0_i32 = arith.constant 0 : i32
    %c0_i32_0 = arith.constant 0 : i32
    %c0_i32_1 = arith.constant 0 : i32
    return %c0_i32, %c0_i32_0 : i32, i32
  }
  func.func @transform_2(%arg0: i32) -> (i32, i32) {
    %c0_i32 = arith.constant 0 : i32
    %c0_i32_0 = arith.constant 0 : i32
    %c0_i32_1 = arith.constant 0 : i32
    return %c0_i32, %c0_i32_0 : i32, i32
  }
  func.func @transform_3(%arg0: i32) -> (i32, i32) {
    %c0_i32 = arith.constant 0 : i32
    %c0_i32_0 = arith.constant 0 : i32
    %c0_i32_1 = arith.constant 0 : i32
    return %c0_i32, %c0_i32_0 : i32, i32
  }
  func.func @transform_4(%arg0: i32) -> (i32, i32) {
    %c0_i32 = arith.constant 0 : i32
    %c0_i32_0 = arith.constant 0 : i32
    %c0_i32_1 = arith.constant 0 : i32
    return %c0_i32, %c0_i32_0 : i32, i32
  }
  func.func @transform_5(%arg0: i32) -> (i32, i32) {
    %c0_i32 = arith.constant 0 : i32
    %c0_i32_0 = arith.constant 0 : i32
    %c0_i32_1 = arith.constant 0 : i32
    return %c0_i32, %c0_i32_0 : i32, i32
  }
  func.func @transform_6(%arg0: i32) -> (i32, i32) {
    %c0_i32 = arith.constant 0 : i32
    %c0_i32_0 = arith.constant 0 : i32
    %c0_i32_1 = arith.constant 0 : i32
    return %c0_i32, %c0_i32_0 : i32, i32
  }
  func.func @transform_7(%arg0: i32) -> (i32, i32, i32) {
    %c0_i32 = arith.constant 0 : i32
    %c0_i32_0 = arith.constant 0 : i32
    %c0_i32_1 = arith.constant 0 : i32
    return %arg0, %c0_i32, %c0_i32_0 : i32, i32, i32
  }
}

</mosaic_0001>

<llo_original>
// kernel: cnn_forward.1
$region0: #{cnn_forward.1}
  #allocation0 [shape = 'u32[]', space=smem, size = 0x4, offset = 0x4, fixed_abs, tag = 'smem constant byte address 0x4 - core index']
  #allocation1 [shape = 'u32[144,128]{1,0:T(1,128)}', space=vmem, size = 0x12000, scoped, tag = 'internal scratch']
  #allocation2 [shape = 'f32[8,2176]{1,0:T(8,128)}', space=vmem, size = 0x11000, scoped, tag = 'scratch operand']
  %s0 = inlined_call_operand.vmem [shape: f32[2,30,240], index: 0, kind: input, shape index: {}]
  %s1 = inlined_call_operand.vmem [shape: f32[8,9], index: 1, kind: input, shape index: {}]
  %s2 = inlined_call_operand.vmem [shape: f32[8,1], index: 2, kind: input, shape index: {}]
  %s3 = inlined_call_operand.vmem [shape: f32[16,72], index: 3, kind: input, shape index: {}]
  %s4 = inlined_call_operand.vmem [shape: f32[16,1], index: 4, kind: input, shape index: {}]
  %s5 = inlined_call_operand.vmem [shape: f32[10,784], index: 5, kind: input, shape index: {}]
  %s6 = inlined_call_operand.vmem [shape: f32[10,1], index: 6, kind: input, shape index: {}]
  %s7 = inlined_call_operand.vmem [shape: f32[2,10,8], index: 7, kind: output, shape index: {}]
  %s8 = sld [smem:[#allocation0]]
  $region61: #{cnn_forward.1} parent=0
    _
  %s10 = ssub.s32 1, %s8
  %s11 = scalar_select 0, %s10, %s8
  loop: start=0, step=1, limit=4
  $region2: #{cnn_forward.1} parent=0 // loop_pre_header
    _
  $region3: #{cnn_forward.1} parent=0 // loop_header
    %s13 = sphi 0, %s17
    %p14 = scmp.ge.s32.totalorder %s13, 4
    %s23 = sphi 0, %s25
    %s26 = sphi 0, %s23
    %s27 = sphi 0, %s26
    %s43 = sphi 0, %s27
    %s47 = sphi 0, %s47
    %s49 = sphi 0, %s47
    %s50 = sphi 0, %s49
    %s64 = sphi 0, %s50
    %s68 = sphi 0, %s68
    %s70 = sphi 0, %s68
    %s71 = sphi 0, %s70
    %s85 = sphi 0, %s71
    %s89 = sphi 0, %s89
    %s91 = sphi 0, %s89
    %s92 = sphi 0, %s91
    %s106 = sphi 0, %s92
    %s110 = sphi 0, %s110
    %s112 = sphi 0, %s110
    %s113 = sphi 0, %s112
    %s127 = sphi 0, %s113
    %s131 = sphi 0, %s131
    %s133 = sphi 0, %s131
    %s134 = sphi 0, %s133
    %s148 = sphi 0, %s134
    %s152 = sphi 0, %s152
    %s154 = sphi 0, %s152
    %s155 = sphi 0, %s154
    %s169 = sphi 0, %s155
    %s175 = sphi 0, %s177
    %s178 = sphi 0, %s175
    %s179 = sphi 0, %s178
    %s195 = sphi 0, %s179
  $region4: #{cnn_forward.1} parent=0 // loop_header_branch
    %16 = sbr.rel (%p14) target = $region8
  $region5: #{cnn_forward.1} parent=0 // loop_body
    %s18 = ssub.s32 %s13, 1
    %s19 = ssub.s32 %s13, 2
    %s20 = sadd.s32 %s13, 1
    %s21 = ssub.s32 %s13, %s20
    %p22 = scmp.eq.s32.totalorder %s21, 0
    %s24 = sadd.s32 %s23, 1
    %s25 = scalar_select %p22, %s23, %s24
    %p28 = pneg %p22
    %p29 = scmp.eq.s32.totalorder %s13, 1
    %p30 = por %p28, %p29
    %p31 = scmp.ne.s32.totalorder %s23, %s26
    %p32 = scmp.eq.s32.totalorder %s13, 0
    %p33 = por %p31, %p32
    %p34 = scmp.ne.s32.totalorder %s23, %s26
    %p35 = scmp.eq.s32.totalorder %s18, 1
    %p36 = por %p34, %p35
    %p37 = scmp.ne.s32.totalorder %s26, %s27
    %p38 = scmp.eq.s32.totalorder %s18, 0
    %p39 = por %p37, %p38
    %p40 = scmp.ne.s32.totalorder %s26, %s27
    %p41 = scmp.eq.s32.totalorder %s19, 1
    %p42 = por %p40, %p41
    %p44 = scmp.ne.s32.totalorder %s27, %s43
    %p45 = scmp.eq.s32.totalorder %s19, 0
    %p46 = por %p44, %p45
    %s48 = sadd.s32 %s47, 1
    %p51 = scmp.eq.s32.totalorder %s13, 1
    %p52 = scmp.ne.s32.totalorder %s47, %s49
    %p53 = scmp.eq.s32.totalorder %s13, 0
    %p54 = por %p52, %p53
    %p55 = scmp.ne.s32.totalorder %s47, %s49
    %p56 = scmp.eq.s32.totalorder %s18, 1
    %p57 = por %p55, %p56
    %p58 = scmp.ne.s32.totalorder %s49, %s50
    %p59 = scmp.eq.s32.totalorder %s18, 0
    %p60 = por %p58, %p59
    %p61 = scmp.ne.s32.totalorder %s49, %s50
    %p62 = scmp.eq.s32.totalorder %s19, 1
    %p63 = por %p61, %p62
    %p65 = scmp.ne.s32.totalorder %s50, %s64
    %p66 = scmp.eq.s32.totalorder %s19, 0
    %p67 = por %p65, %p66
    %s69 = sadd.s32 %s68, 1
    %p72 = scmp.eq.s32.totalorder %s13, 1
    %p73 = scmp.ne.s32.totalorder %s68, %s70
    %p74 = scmp.eq.s32.totalorder %s13, 0
    %p75 = por %p73, %p74
    %p76 = scmp.ne.s32.totalorder %s68, %s70
    %p77 = scmp.eq.s32.totalorder %s18, 1
    %p78 = por %p76, %p77
    %p79 = scmp.ne.s32.totalorder %s70, %s71
    %p80 = scmp.eq.s32.totalorder %s18, 0
    %p81 = por %p79, %p80
    %p82 = scmp.ne.s32.totalorder %s70, %s71
    %p83 = scmp.eq.s32.totalorder %s19, 1
    %p84 = por %p82, %p83
    %p86 = scmp.ne.s32.totalorder %s71, %s85
    %p87 = scmp.eq.s32.totalorder %s19, 0
    %p88 = por %p86, %p87
    %s90 = sadd.s32 %s89, 1
    %p93 = scmp.eq.s32.totalorder %s13, 1
    %p94 = scmp.ne.s32.totalorder %s89, %s91
    %p95 = scmp.eq.s32.totalorder %s13, 0
    %p96 = por %p94, %p95
    %p97 = scmp.ne.s32.totalorder %s89, %s91
    %p98 = scmp.eq.s32.totalorder %s18, 1
    %p99 = por %p97, %p98
    %p100 = scmp.ne.s32.totalorder %s91, %s92
    %p101 = scmp.eq.s32.totalorder %s18, 0
    %p102 = por %p100, %p101
    %p103 = scmp.ne.s32.totalorder %s91, %s92
    %p104 = scmp.eq.s32.totalorder %s19, 1
    %p105 = por %p103, %p104
    %p107 = scmp.ne.s32.totalorder %s92, %s106
    %p108 = scmp.eq.s32.totalorder %s19, 0
    %p109 = por %p107, %p108
    %s111 = sadd.s32 %s110, 1
    %p114 = scmp.eq.s32.totalorder %s13, 1
    %p115 = scmp.ne.s32.totalorder %s110, %s112
    %p116 = scmp.eq.s32.totalorder %s13, 0
    %p117 = por %p115, %p116
    %p118 = scmp.ne.s32.totalorder %s110, %s112
    %p119 = scmp.eq.s32.totalorder %s18, 1
    %p120 = por %p118, %p119
    %p121 = scmp.ne.s32.totalorder %s112, %s113
    %p122 = scmp.eq.s32.totalorder %s18, 0
    %p123 = por %p121, %p122
    %p124 = scmp.ne.s32.totalorder %s112, %s113
    %p125 = scmp.eq.s32.totalorder %s19, 1
    %p126 = por %p124, %p125
    %p128 = scmp.ne.s32.totalorder %s113, %s127
    %p129 = scmp.eq.s32.totalorder %s19, 0
    %p130 = por %p128, %p129
    %s132 = sadd.s32 %s131, 1
    %p135 = scmp.eq.s32.totalorder %s13, 1
    %p136 = scmp.ne.s32.totalorder %s131, %s133
    %p137 = scmp.eq.s32.totalorder %s13, 0
    %p138 = por %p136, %p137
    %p139 = scmp.ne.s32.totalorder %s131, %s133
    %p140 = scmp.eq.s32.totalorder %s18, 1
    %p141 = por %p139, %p140
    %p142 = scmp.ne.s32.totalorder %s133, %s134
    %p143 = scmp.eq.s32.totalorder %s18, 0
    %p144 = por %p142, %p143
    %p145 = scmp.ne.s32.totalorder %s133, %s134
    %p146 = scmp.eq.s32.totalorder %s19, 1
    %p147 = por %p145, %p146
    %p149 = scmp.ne.s32.totalorder %s134, %s148
    %p150 = scmp.eq.s32.totalorder %s19, 0
    %p151 = por %p149, %p150
    %s153 = sadd.s32 %s152, 1
    %p156 = scmp.eq.s32.totalorder %s13, 1
    %p157 = scmp.ne.s32.totalorder %s152, %s154
    %p158 = scmp.eq.s32.totalorder %s13, 0
    %p159 = por %p157, %p158
    %p160 = scmp.ne.s32.totalorder %s152, %s154
    %p161 = scmp.eq.s32.totalorder %s18, 1
    %p162 = por %p160, %p161
    %p163 = scmp.ne.s32.totalorder %s154, %s155
    %p164 = scmp.eq.s32.totalorder %s18, 0
    %p165 = por %p163, %p164
    %p166 = scmp.ne.s32.totalorder %s154, %s155
    %p167 = scmp.eq.s32.totalorder %s19, 1
    %p168 = por %p166, %p167
    %p170 = scmp.ne.s32.totalorder %s155, %s169
    %p171 = scmp.eq.s32.totalorder %s19, 0
    %p172 = por %p170, %p171
    %s173 = ssub.s32 %s13, %s20
    %p174 = scmp.eq.s32.totalorder %s173, 0
    %s176 = sadd.s32 %s175, 1
    %s177 = scalar_select %p174, %s175, %s176
    %p180 = pneg %p174
    %p181 = scmp.eq.s32.totalorder %s13, 1
    %p182 = por %p180, %p181
    %p183 = scmp.ne.s32.totalorder %s175, %s178
    %p184 = scmp.eq.s32.totalorder %s13, 0
    %p185 = por %p183, %p184
    %p186 = scmp.ne.s32.totalorder %s175, %s178
    %p187 = scmp.eq.s32.totalorder %s18, 1
    %p188 = por %p186, %p187
    %p189 = scmp.ne.s32.totalorder %s178, %s179
    %p190 = scmp.eq.s32.totalorder %s18, 0
    %p191 = por %p189, %p190
    %p192 = scmp.ne.s32.totalorder %s178, %s179
    %p193 = scmp.eq.s32.totalorder %s19, 1
    %p194 = por %p192, %p193
    %p196 = scmp.ne.s32.totalorder %s179, %s195
    %p197 = scmp.eq.s32.totalorder %s19, 0
    %p198 = por %p196, %p197
    %p199 = scmp.le.s32.totalorder 1, %s13
    %p200 = scmp.lt.s32.totalorder %s13, 3
    %p201 = pnand %p199, %p200
    %p202 = pneg %p201
    // Predicated region
    $region9: #{cnn_forward.1} parent=5 // pred_check
      _
    $region10: #{cnn_forward.1} parent=5 // pred_check_branch
      %204 = sbr.rel (%p201) target = $region12
    $region11: #{cnn_forward.1} parent=5 // pred_region
      %s205 = ssub.s32 %s13, 1
      // Predicated region
      $region13: #{cnn_forward.1} parent=11 // pred_check
        %p206 = pneg %p60
      $region14: #{cnn_forward.1} parent=11 // pred_check_branch
        %208 = sbr.rel (%p206) target = $region16
      $region15: #{cnn_forward.1} parent=11 // pred_region
        _
      $region16: #{cnn_forward.1} parent=11 // pred_fallthru
        _
      // Predicated region
      $region17: #{cnn_forward.1} parent=11 // pred_check
        %p209 = pneg %p81
      $region18: #{cnn_forward.1} parent=11 // pred_check_branch
        %211 = sbr.rel (%p209) target = $region20
      $region19: #{cnn_forward.1} parent=11 // pred_region
        _
      $region20: #{cnn_forward.1} parent=11 // pred_fallthru
        _
      // Predicated region
      $region21: #{cnn_forward.1} parent=11 // pred_check
        %p212 = pneg %p102
      $region22: #{cnn_forward.1} parent=11 // pred_check_branch
        %214 = sbr.rel (%p212) target = $region24
      $region23: #{cnn_forward.1} parent=11 // pred_region
        _
      $region24: #{cnn_forward.1} parent=11 // pred_fallthru
        _
      // Predicated region
      $region25: #{cnn_forward.1} parent=11 // pred_check
        %p215 = pneg %p123
      $region26: #{cnn_forward.1} parent=11 // pred_check_branch
        %217 = sbr.rel (%p215) target = $region28
      $region27: #{cnn_forward.1} parent=11 // pred_region
        _
      $region28: #{cnn_forward.1} parent=11 // pred_fallthru
        _
      // Predicated region
      $region29: #{cnn_forward.1} parent=11 // pred_check
        %p218 = pneg %p144
      $region30: #{cnn_forward.1} parent=11 // pred_check_branch
        %220 = sbr.rel (%p218) target = $region32
      $region31: #{cnn_forward.1} parent=11 // pred_region
        _
      $region32: #{cnn_forward.1} parent=11 // pred_fallthru
        _
      // Predicated region
      $region33: #{cnn_forward.1} parent=11 // pred_check
        %p221 = pneg %p165
      $region34: #{cnn_forward.1} parent=11 // pred_check_branch
        %223 = sbr.rel (%p221) target = $region36
      $region35: #{cnn_forward.1} parent=11 // pred_region
        _
      $region36: #{cnn_forward.1} parent=11 // pred_fallthru
        _
    $region12: #{cnn_forward.1} parent=5 // pred_fallthru
      _
    %p224 = scmp.lt.s32.totalorder %s13, 2
    // Predicated region
    $region37: #{cnn_forward.1} parent=5 // pred_check
      %p225 = pneg %p224
    $region38: #{cnn_forward.1} parent=5 // pred_check_branch
      %227 = sbr.rel (%p225) target = $region40
    $region39: #{cnn_forward.1} parent=5 // pred_region
      // Predicated region
      $region41: #{cnn_forward.1} parent=39 // pred_check
        %p228 = pneg %p33
      $region42: #{cnn_forward.1} parent=39 // pred_check_branch
        %230 = sbr.rel (%p228) target = $region44
      $region43: #{cnn_forward.1} parent=39 // pred_region
        %p231 = scmp.lt.s32.totalorder %s13, 1
        %s232 = scalar_select %p231, %s13, 1
        %s233 = smul.addr %s232, 8
        %s234 = smul.addr %s233, 8
        %s235 = scalar_lea.vmem %s0, %s234
      $region44: #{cnn_forward.1} parent=39 // pred_fallthru
        _
    $region40: #{cnn_forward.1} parent=5 // pred_fallthru
      _
    %p236 = scmp.le.s32.totalorder 1, %s13
    %p237 = scmp.lt.s32.totalorder %s13, 3
    %p238 = pnand %p236, %p237
    %p239 = pneg %p238
    // Predicated region
    $region45: #{cnn_forward.1} parent=5 // pred_check
      _
    $region46: #{cnn_forward.1} parent=5 // pred_check_branch
      %241 = sbr.rel (%p238) target = $region48
    $region47: #{cnn_forward.1} parent=5 // pred_region
      %s242 = ssub.s32 %s13, 1
      %p243 = scmp.lt.s32.totalorder %s18, 1
      %s244 = scalar_select %p243, %s18, 1
      %s245 = smul.addr %s244, 8
      %s246 = smul.addr %s245, 8
      %s247 = scalar_lea.vmem %s0, %s246
      %p248 = pneg %p39
      %p249 = pneg %p36
      %p250 = pneg %p60
      %p251 = pneg %p57
      %p252 = pneg %p81
      %p253 = pneg %p78
      %p254 = pneg %p102
      %p255 = pneg %p99
      %p256 = pneg %p123
      %p257 = pneg %p120
      %p258 = pneg %p144
      %p259 = pneg %p141
      %p260 = pneg %p165
      %p261 = pneg %p162
      %p262 = pneg %p191
      %p263 = pneg %p188
      %p264 = scmp.lt.s32.totalorder %s18, 1
      %s265 = scalar_select %p264, %s18, 1
      %s266 = smul.addr %s265, 2
      %s267 = smul.addr %s266, 8
      %s268 = scalar_lea.vmem %s7, %s267
      %p269 = scmp.lt.s32.totalorder %s18, 1
      %s270 = scalar_select %p269, %s18, 1
      %s271 = smul.addr %s270, 8
      %s272 = smul.addr %s271, 8
      %s273 = scalar_lea.vmem %s0, %s272
      %p274 = scmp.lt.s32.totalorder %s18, 1
      %s275 = scalar_select %p274, %s18, 1
      %s276 = smul.addr %s275, 2
      %s277 = smul.addr %s276, 8
      %s278 = scalar_lea.vmem %s7, %s277
      %279 = vst [vmem:[#allocation2] sm:$0xff] 0.0
      %280 = vst [vmem:[#allocation2 + $0x78] sm:$0xff] 0.0
      %281 = vst [vmem:[#allocation2 + $0x80] sm:$0xff] 0.0
      %v282 = vld [vmem:[%s273] sm:$0xff]
      %v283 = vld [vmem:[%s273 + $0x8] sm:$0xff]
      %v284 = vld [vmem:[%s273 + $0x10] sm:$0xff]
      %v285 = vld [vmem:[%s273 + $0x18] sm:$0xff]
      %v286 = vld [vmem:[%s273 + $0x20] sm:$0xff]
      %v287 = vld [vmem:[%s273 + $0x28] sm:$0xff]
      %v288 = vld [vmem:[%s273 + $0x30] sm:$0x3f]
      %v289 = vld [vmem:[%s273 + $0x38] sm:$0x3f]
      %v290 = vld [vmem:[%s1] sm:$0xff]
      %v291 = vld [vmem:[%s2] sm:$0xff]
      %293 = vset.pattern.permute.xlu0 0
      %294 = vperm.xlu0 %293, %v290
      %v295 = vpop.permute.xlu0 %294
      %v297 = vlaneseq
      %v298 = vshrl.u32 %v297, 7
      %v299 = vsub.s32 0, %v298
      %v300 = vrot.slane %v282, %v299
      %v301 = vlaneseq
      %v302 = vshrl.u32 %v301, 7
      %v303 = vsub.s32 0, %v302
      %v304 = vrot.slane %v283, %v303
      %v305 = vmul.f32 %v295, %v300
      %v306 = vmul.f32 %v295, %v304
      %v307 = vadd.f32 %v305, 0.0
      %v308 = vadd.f32 %v306, 0.0
      %v309 = vlaneseq
      %v310 = vshrl.u32 %v309, 7
      %v311 = vsub.s32 1, %v310
      %v312 = vrot.slane %v282, %v311
      %v313 = vlaneseq
      %v314 = vshrl.u32 %v313, 7
      %v315 = vsub.s32 1, %v314
      %v316 = vrot.slane %v283, %v315
      %v317 = vmul.f32 %v295, %v312
      %v318 = vmul.f32 %v295, %v316
      %v319 = vadd.f32 %v317, 0.0
      %v320 = vadd.f32 %v318, 0.0
      %321 = vset.pattern.permute.xlu0 1
      %322 = vperm.xlu0 %321, %v290
      %v323 = vpop.permute.xlu0 %322
      %v325 = vmul.f32 %v323, %v300
      %v326 = vmul.f32 %v323, %v304
      %329 = vrot.lane.b32.xlu0 %v325, 120
      %v330 = vpop.permute.xlu0 %329
      %331 = vrot.lane.b32.xlu0 %v326, 120
      %v332 = vpop.permute.xlu0 %331
      %vm333 = vcmask 982016
      %v334 = vsel %vm333, %v330, %v332
      %v337 = vadd.f32 %v307, %v334
      %v338 = vadd.f32 %v308, %v332
      %v339 = vmul.f32 %v323, %v312
      %v340 = vmul.f32 %v323, %v316
      %343 = vrot.lane.b32.xlu0 %v339, 120
      %v344 = vpop.permute.xlu0 %343
      %345 = vrot.lane.b32.xlu0 %v340, 120
      %v346 = vpop.permute.xlu0 %345
      %v347 = vsel %vm333, %v344, %v346
      %v350 = vadd.f32 %v319, %v347
      %v351 = vadd.f32 %v320, %v346
      %352 = vset.pattern.permute.xlu0 2
      %353 = vperm.xlu0 %352, %v290
      %v354 = vpop.permute.xlu0 %353
      %v356 = vmul.f32 %v354, %v300
      %v357 = vmul.f32 %v354, %v304
      %360 = vrot.lane.b32.xlu0 %v356, 112
      %v361 = vpop.permute.xlu0 %360
      %362 = vrot.lane.b32.xlu0 %v357, 112
      %v363 = vpop.permute.xlu0 %362
      %vm364 = vcmask 916480
      %v365 = vsel %vm364, %v361, %v363
      %v368 = vadd.f32 %v337, %v365
      %v369 = vadd.f32 %v338, %v363
      %v370 = vmul.f32 %v354, %v312
      %v371 = vmul.f32 %v354, %v316
      %374 = vrot.lane.b32.xlu0 %v370, 112
      %v375 = vpop.permute.xlu0 %374
      %376 = vrot.lane.b32.xlu0 %v371, 112
      %v377 = vpop.permute.xlu0 %376
      %v378 = vsel %vm364, %v375, %v377
      %v381 = vadd.f32 %v350, %v378
      %v382 = vadd.f32 %v351, %v377
      %383 = vset.pattern.permute.xlu0 3
      %384 = vperm.xlu0 %383, %v290
      %v385 = vpop.permute.xlu0 %384
      %v387 = vmul.f32 %v385, %v312
      %v388 = vmul.f32 %v385, %v316
      %v389 = vadd.f32 %v368, %v387
      %v390 = vadd.f32 %v369, %v388
      %v391 = vlaneseq
      %v392 = vshrl.u32 %v391, 7
      %v393 = vsub.s32 2, %v392
      %v394 = vrot.slane %v282, %v393
      %v395 = vlaneseq
      %v396 = vshrl.u32 %v395, 7
      %v397 = vsub.s32 2, %v396
      %v398 = vrot.slane %v283, %v397
      %v399 = vmul.f32 %v385, %v394
      %v400 = vmul.f32 %v385, %v398
      %v401 = vadd.f32 %v381, %v399
      %v402 = vadd.f32 %v382, %v400
      %403 = vset.pattern.permute.xlu0 4
      %404 = vperm.xlu0 %403, %v290
      %v405 = vpop.permute.xlu0 %404
      %v407 = vmul.f32 %v405, %v312
      %v408 = vmul.f32 %v405, %v316
      %411 = vrot.lane.b32.xlu0 %v407, 120
      %v412 = vpop.permute.xlu0 %411
      %413 = vrot.lane.b32.xlu0 %v408, 120
      %v414 = vpop.permute.xlu0 %413
      %v415 = vsel %vm333, %v412, %v414
      %v418 = vadd.f32 %v389, %v415
      %v419 = vadd.f32 %v390, %v414
      %v420 = vmul.f32 %v405, %v394
      %v421 = vmul.f32 %v405, %v398
      %424 = vrot.lane.b32.xlu0 %v420, 120
      %v425 = vpop.permute.xlu0 %424
      %426 = vrot.lane.b32.xlu0 %v421, 120
      %v427 = vpop.permute.xlu0 %426
      %v428 = vsel %vm333, %v425, %v427
      %v431 = vadd.f32 %v401, %v428
      %v432 = vadd.f32 %v402, %v427
      %433 = vset.pattern.permute.xlu0 5
      %434 = vperm.xlu0 %433, %v290
      %v435 = vpop.permute.xlu0 %434
      %v437 = vmul.f32 %v435, %v312
      %v438 = vmul.f32 %v435, %v316
      %441 = vrot.lane.b32.xlu0 %v437, 112
      %v442 = vpop.permute.xlu0 %441
      %443 = vrot.lane.b32.xlu0 %v438, 112
      %v444 = vpop.permute.xlu0 %443
      %v445 = vsel %vm364, %v442, %v444
      %v448 = vadd.f32 %v418, %v445
      %v449 = vadd.f32 %v419, %v444
      %v450 = vmul.f32 %v435, %v394
      %v451 = vmul.f32 %v435, %v398
      %454 = vrot.lane.b32.xlu0 %v450, 112
      %v455 = vpop.permute.xlu0 %454
      %456 = vrot.lane.b32.xlu0 %v451, 112
      %v457 = vpop.permute.xlu0 %456
      %v458 = vsel %vm364, %v455, %v457
      %v461 = vadd.f32 %v431, %v458
      %v462 = vadd.f32 %v432, %v457
      %463 = vset.pattern.permute.xlu0 6
      %464 = vperm.xlu0 %463, %v290
      %v465 = vpop.permute.xlu0 %464
      %v467 = vmul.f32 %v465, %v394
      %v468 = vmul.f32 %v465, %v398
      %v469 = vadd.f32 %v448, %v467
      %v470 = vadd.f32 %v449, %v468
      %v471 = vlaneseq
      %v472 = vshrl.u32 %v471, 7
      %v473 = vsub.s32 3, %v472
      %v474 = vrot.slane %v282, %v473
      %v475 = vlaneseq
      %v476 = vshrl.u32 %v475, 7
      %v477 = vsub.s32 3, %v476
      %v478 = vrot.slane %v283, %v477
      %v479 = vmul.f32 %v465, %v474
      %v480 = vmul.f32 %v465, %v478
      %v481 = vadd.f32 %v461, %v479
      %v482 = vadd.f32 %v462, %v480
      %483 = vset.pattern.permute.xlu0 7
      %484 = vperm.xlu0 %483, %v290
      %v485 = vpop.permute.xlu0 %484
      %v487 = vmul.f32 %v485, %v394
      %v488 = vmul.f32 %v485, %v398
      %491 = vrot.lane.b32.xlu0 %v487, 120
      %v492 = vpop.permute.xlu0 %491
      %493 = vrot.lane.b32.xlu0 %v488, 120
      %v494 = vpop.permute.xlu0 %493
      %v495 = vsel %vm333, %v492, %v494
      %v498 = vadd.f32 %v469, %v495
      %v499 = vadd.f32 %v470, %v494
      %v500 = vmul.f32 %v485, %v474
      %v501 = vmul.f32 %v485, %v478
      %504 = vrot.lane.b32.xlu0 %v500, 120
      %v505 = vpop.permute.xlu0 %504
      %506 = vrot.lane.b32.xlu0 %v501, 120
      %v507 = vpop.permute.xlu0 %506
      %v508 = vsel %vm333, %v505, %v507
      %v511 = vadd.f32 %v481, %v508
      %v512 = vadd.f32 %v482, %v507
      %513 = vset.pattern.permute.xlu0 8
      %514 = vperm.xlu0 %513, %v290
      %v515 = vpop.permute.xlu0 %514
      %v517 = vmul.f32 %v515, %v394
      %v518 = vmul.f32 %v515, %v398
      %521 = vrot.lane.b32.xlu0 %v517, 112
      %v522 = vpop.permute.xlu0 %521
      %523 = vrot.lane.b32.xlu0 %v518, 112
      %v524 = vpop.permute.xlu0 %523
      %v525 = vsel %vm364, %v522, %v524
      %v528 = vadd.f32 %v498, %v525
      %v529 = vadd.f32 %v499, %v524
      %v530 = vmul.f32 %v515, %v474
      %v531 = vmul.f32 %v515, %v478
      %534 = vrot.lane.b32.xlu0 %v530, 112
      %v535 = vpop.permute.xlu0 %534
      %536 = vrot.lane.b32.xlu0 %v531, 112
      %v537 = vpop.permute.xlu0 %536
      %v538 = vsel %vm364, %v535, %v537
      %v541 = vadd.f32 %v511, %v538
      %v542 = vadd.f32 %v512, %v537
      %v543 = vmax.f32 %v528, %v541
      %v544 = vmax.f32 %v529, %v542
      %547 = vrot.lane.b32.xlu0 %v543, 120
      %v548 = vpop.permute.xlu0 %547
      %549 = vrot.lane.b32.xlu0 %v544, 120
      %v550 = vpop.permute.xlu0 %549
      %v551 = vsel %vm333, %v548, %v550
      %v554 = vmax.f32 %v543, %v551
      %v555 = vmax.f32 %v544, %v550
      %557 = vrot.lane.b32.xlu0 %v554, 120
      %v558 = vpop.permute.xlu0 %557
      %560 = vrot.lane.b32.xlu0 %v554, 112
      %v561 = vpop.permute.xlu0 %560
      %563 = vrot.lane.b32.xlu0 %v554, 104
      %v564 = vpop.permute.xlu0 %563
      %566 = vrot.lane.b32.xlu0 %v554, 96
      %v567 = vpop.permute.xlu0 %566
      %569 = vrot.lane.b32.xlu0 %v554, 88
      %v570 = vpop.permute.xlu0 %569
      %572 = vrot.lane.b32.xlu0 %v554, 80
      %v573 = vpop.permute.xlu0 %572
      %575 = vrot.lane.b32.xlu0 %v554, 72
      %v576 = vpop.permute.xlu0 %575
      %579 = vrot.lane.b32.xlu0 %v555, 64
      %v580 = vpop.permute.xlu0 %579
      %582 = vrot.lane.b32.xlu0 %v555, 56
      %v583 = vpop.permute.xlu0 %582
      %585 = vrot.lane.b32.xlu0 %v555, 48
      %v586 = vpop.permute.xlu0 %585
      %588 = vrot.lane.b32.xlu0 %v555, 40
      %v589 = vpop.permute.xlu0 %588
      %591 = vrot.lane.b32.xlu0 %v555, 32
      %v592 = vpop.permute.xlu0 %591
      %594 = vrot.lane.b32.xlu0 %v555, 24
      %v595 = vpop.permute.xlu0 %594
      %vm597 = vcmask 64512
      %v598 = vsel %vm597, %v554, %v558
      %vm599 = vcmask 130048
      %v600 = vsel %vm599, %v598, %v561
      %vm601 = vcmask 195584
      %v602 = vsel %vm601, %v600, %v564
      %vm603 = vcmask 261120
      %v604 = vsel %vm603, %v602, %v567
      %vm605 = vcmask 326656
      %v606 = vsel %vm605, %v604, %v570
      %vm607 = vcmask 392192
      %v608 = vsel %vm607, %v606, %v573
      %vm609 = vcmask 457728
      %v610 = vsel %vm609, %v608, %v576
      %vm611 = vcmask 523264
      %v612 = vsel %vm611, %v610, %v580
      %vm613 = vcmask 588800
      %v614 = vsel %vm613, %v612, %v583
      %vm615 = vcmask 654336
      %v616 = vsel %vm615, %v614, %v586
      %vm617 = vcmask 719872
      %v618 = vsel %vm617, %v616, %v589
      %vm619 = vcmask 785408
      %v620 = vsel %vm619, %v618, %v592
      %vm621 = vcmask 850944
      %v622 = vsel %vm621, %v620, %v595
      %624 = vset.pattern.permute.xlu0 0
      %625 = vperm.xlu0 %624, %v291
      %v626 = vpop.permute.xlu0 %625
      %v628 = vadd.f32 %v622, %v626
      %v629 = vmax.f32 %v628, 0.0
      %631 = vrot.lane.b32.xlu0 %v629, 8
      %v632 = vpop.permute.xlu0 %631
      %v634 = vsel %vm597, 0.0, %v632
      %v635 = vsel %vm333, %v634, 0.0
      %636 = vst [vmem:[#allocation2 + $0x8] sm:$0xff] %v635
      %v637 = vmul.f32 %v295, %v394
      %v638 = vmul.f32 %v295, %v398
      %v639 = vadd.f32 %v637, 0.0
      %v640 = vadd.f32 %v638, 0.0
      %v641 = vmul.f32 %v295, %v474
      %v642 = vmul.f32 %v295, %v478
      %v643 = vadd.f32 %v641, 0.0
      %v644 = vadd.f32 %v642, 0.0
      %v645 = vmul.f32 %v323, %v394
      %v646 = vmul.f32 %v323, %v398
      %649 = vrot.lane.b32.xlu0 %v645, 120
      %v650 = vpop.permute.xlu0 %649
      %651 = vrot.lane.b32.xlu0 %v646, 120
      %v652 = vpop.permute.xlu0 %651
      %v653 = vsel %vm333, %v650, %v652
      %v656 = vadd.f32 %v639, %v653
      %v657 = vadd.f32 %v640, %v652
      %v658 = vmul.f32 %v323, %v474
      %v659 = vmul.f32 %v323, %v478
      %662 = vrot.lane.b32.xlu0 %v658, 120
      %v663 = vpop.permute.xlu0 %662
      %664 = vrot.lane.b32.xlu0 %v659, 120
      %v665 = vpop.permute.xlu0 %664
      %v666 = vsel %vm333, %v663, %v665
      %v669 = vadd.f32 %v643, %v666
      %v670 = vadd.f32 %v644, %v665
      %v671 = vmul.f32 %v354, %v394
      %v672 = vmul.f32 %v354, %v398
      %675 = vrot.lane.b32.xlu0 %v671, 112
      %v676 = vpop.permute.xlu0 %675
      %677 = vrot.lane.b32.xlu0 %v672, 112
      %v678 = vpop.permute.xlu0 %677
      %v679 = vsel %vm364, %v676, %v678
      %v682 = vadd.f32 %v656, %v679
      %v683 = vadd.f32 %v657, %v678
      %v684 = vmul.f32 %v354, %v474
      %v685 = vmul.f32 %v354, %v478
      %688 = vrot.lane.b32.xlu0 %v684, 112
      %v689 = vpop.permute.xlu0 %688
      %690 = vrot.lane.b32.xlu0 %v685, 112
      %v691 = vpop.permute.xlu0 %690
      %v692 = vsel %vm364, %v689, %v691
      %v695 = vadd.f32 %v669, %v692
      %v696 = vadd.f32 %v670, %v691
      %v697 = vmul.f32 %v385, %v474
      %v698 = vmul.f32 %v385, %v478
      %v699 = vadd.f32 %v682, %v697
      %v700 = vadd.f32 %v683, %v698
      %v701 = vlaneseq
      %v702 = vshrl.u32 %v701, 7
      %v703 = vsub.s32 4, %v702
      %v704 = vrot.slane %v282, %v703
      %v705 = vlaneseq
      %v706 = vshrl.u32 %v705, 7
      %v707 = vsub.s32 4, %v706
      %v708 = vrot.slane %v283, %v707
      %v709 = vmul.f32 %v385, %v704
      %v710 = vmul.f32 %v385, %v708
      %v711 = vadd.f32 %v695, %v709
      %v712 = vadd.f32 %v696, %v710
      %v713 = vmul.f32 %v405, %v474
      %v714 = vmul.f32 %v405, %v478
      %717 = vrot.lane.b32.xlu0 %v713, 120
      %v718 = vpop.permute.xlu0 %717
      %719 = vrot.lane.b32.xlu0 %v714, 120
      %v720 = vpop.permute.xlu0 %719
      %v721 = vsel %vm333, %v718, %v720
      %v724 = vadd.f32 %v699, %v721
      %v725 = vadd.f32 %v700, %v720
      %v726 = vmul.f32 %v405, %v704
      %v727 = vmul.f32 %v405, %v708
      %730 = vrot.lane.b32.xlu0 %v726, 120
      %v731 = vpop.permute.xlu0 %730
      %732 = vrot.lane.b32.xlu0 %v727, 120
      %v733 = vpop.permute.xlu0 %732
      %v734 = vsel %vm333, %v731, %v733
      %v737 = vadd.f32 %v711, %v734
      %v738 = vadd.f32 %v712, %v733
      %v739 = vmul.f32 %v435, %v474
      %v740 = vmul.f32 %v435, %v478
      %743 = vrot.lane.b32.xlu0 %v739, 112
      %v744 = vpop.permute.xlu0 %743
      %745 = vrot.lane.b32.xlu0 %v740, 112
      %v746 = vpop.permute.xlu0 %745
      %v747 = vsel %vm364, %v744, %v746
      %v750 = vadd.f32 %v724, %v747
      %v751 = vadd.f32 %v725, %v746
      %v752 = vmul.f32 %v435, %v704
      %v753 = vmul.f32 %v435, %v708
      %756 = vrot.lane.b32.xlu0 %v752, 112
      %v757 = vpop.permute.xlu0 %756
      %758 = vrot.lane.b32.xlu0 %v753, 112
      %v759 = vpop.permute.xlu0 %758
      %v760 = vsel %vm364, %v757, %v759
      %v763 = vadd.f32 %v737, %v760
      %v764 = vadd.f32 %v738, %v759
      %v765 = vmul.f32 %v465, %v704
      %v766 = vmul.f32 %v465, %v708
      %v767 = vadd.f32 %v750, %v765
      %v768 = vadd.f32 %v751, %v766
      %v769 = vlaneseq
      %v770 = vshrl.u32 %v769, 7
      %v771 = vsub.s32 5, %v770
      %v772 = vrot.slane %v282, %v771
      %v773 = vlaneseq
      %v774 = vshrl.u32 %v773, 7
      %v775 = vsub.s32 5, %v774
      %v776 = vrot.slane %v283, %v775
      %v777 = vmul.f32 %v465, %v772
      %v778 = vmul.f32 %v465, %v776
      %v779 = vadd.f32 %v763, %v777
      %v780 = vadd.f32 %v764, %v778
      %v781 = vmul.f32 %v485, %v704
      %v782 = vmul.f32 %v485, %v708
      %785 = vrot.lane.b32.xlu0 %v781, 120
      %v786 = vpop.permute.xlu0 %785
      %787 = vrot.lane.b32.xlu0 %v782, 120
      %v788 = vpop.permute.xlu0 %787
      %v789 = vsel %vm333, %v786, %v788
      %v792 = vadd.f32 %v767, %v789
      %v793 = vadd.f32 %v768, %v788
      %v794 = vmul.f32 %v485, %v772
      %v795 = vmul.f32 %v485, %v776
      %798 = vrot.lane.b32.xlu0 %v794, 120
      %v799 = vpop.permute.xlu0 %798
      %800 = vrot.lane.b32.xlu0 %v795, 120
      %v801 = vpop.permute.xlu0 %800
      %v802 = vsel %vm333, %v799, %v801
      %v805 = vadd.f32 %v779, %v802
      %v806 = vadd.f32 %v780, %v801
      %v807 = vmul.f32 %v515, %v704
      %v808 = vmul.f32 %v515, %v708
      %811 = vrot.lane.b32.xlu0 %v807, 112
      %v812 = vpop.permute.xlu0 %811
      %813 = vrot.lane.b32.xlu0 %v808, 112
      %v814 = vpop.permute.xlu0 %813
      %v815 = vsel %vm364, %v812, %v814
      %v818 = vadd.f32 %v792, %v815
      %v819 = vadd.f32 %v793, %v814
      %v820 = vmul.f32 %v515, %v772
      %v821 = vmul.f32 %v515, %v776
      %824 = vrot.lane.b32.xlu0 %v820, 112
      %v825 = vpop.permute.xlu0 %824
      %826 = vrot.lane.b32.xlu0 %v821, 112
      %v827 = vpop.permute.xlu0 %826
      %v828 = vsel %vm364, %v825, %v827
      %v831 = vadd.f32 %v805, %v828
      %v832 = vadd.f32 %v806, %v827
      %v833 = vmax.f32 %v818, %v831
      %v834 = vmax.f32 %v819, %v832
      %837 = vrot.lane.b32.xlu0 %v833, 120
      %v838 = vpop.permute.xlu0 %837
      %839 = vrot.lane.b32.xlu0 %v834, 120
      %v840 = vpop.permute.xlu0 %839
      %v841 = vsel %vm333, %v838, %v840
      %v844 = vmax.f32 %v833, %v841
      %v845 = vmax.f32 %v834, %v840
      %847 = vrot.lane.b32.xlu0 %v844, 120
      %v848 = vpop.permute.xlu0 %847
      %850 = vrot.lane.b32.xlu0 %v844, 112
      %v851 = vpop.permute.xlu0 %850
      %853 = vrot.lane.b32.xlu0 %v844, 104
      %v854 = vpop.permute.xlu0 %853
      %856 = vrot.lane.b32.xlu0 %v844, 96
      %v857 = vpop.permute.xlu0 %856
      %859 = vrot.lane.b32.xlu0 %v844, 88
      %v860 = vpop.permute.xlu0 %859
      %862 = vrot.lane.b32.xlu0 %v844, 80
      %v863 = vpop.permute.xlu0 %862
      %865 = vrot.lane.b32.xlu0 %v844, 72
      %v866 = vpop.permute.xlu0 %865
      %869 = vrot.lane.b32.xlu0 %v845, 64
      %v870 = vpop.permute.xlu0 %869
      %872 = vrot.lane.b32.xlu0 %v845, 56
      %v873 = vpop.permute.xlu0 %872
      %875 = vrot.lane.b32.xlu0 %v845, 48
      %v876 = vpop.permute.xlu0 %875
      %878 = vrot.lane.b32.xlu0 %v845, 40
      %v879 = vpop.permute.xlu0 %878
      %881 = vrot.lane.b32.xlu0 %v845, 32
      %v882 = vpop.permute.xlu0 %881
      %884 = vrot.lane.b32.xlu0 %v845, 24
      %v885 = vpop.permute.xlu0 %884
      %v887 = vsel %vm597, %v844, %v848
      %v888 = vsel %vm599, %v887, %v851
      %v889 = vsel %vm601, %v888, %v854
      %v890 = vsel %vm603, %v889, %v857
      %v891 = vsel %vm605, %v890, %v860
      %v892 = vsel %vm607, %v891, %v863
      %v893 = vsel %vm609, %v892, %v866
      %v894 = vsel %vm611, %v893, %v870
      %v895 = vsel %vm613, %v894, %v873
      %v896 = vsel %vm615, %v895, %v876
      %v897 = vsel %vm617, %v896, %v879
      %v898 = vsel %vm619, %v897, %v882
      %v899 = vsel %vm621, %v898, %v885
      %v900 = vadd.f32 %v899, %v626
      %v901 = vmax.f32 %v900, 0.0
      %903 = vrot.lane.b32.xlu0 %v901, 8
      %v904 = vpop.permute.xlu0 %903
      %v906 = vsel %vm597, 0.0, %v904
      %v907 = vsel %vm333, %v906, 0.0
      %908 = vst [vmem:[#allocation2 + $0x10] sm:$0xff] %v907
      %v909 = vmul.f32 %v295, %v704
      %v910 = vmul.f32 %v295, %v708
      %v911 = vadd.f32 %v909, 0.0
      %v912 = vadd.f32 %v910, 0.0
      %v913 = vmul.f32 %v295, %v772
      %v914 = vmul.f32 %v295, %v776
      %v915 = vadd.f32 %v913, 0.0
      %v916 = vadd.f32 %v914, 0.0
      %v917 = vmul.f32 %v323, %v704
      %v918 = vmul.f32 %v323, %v708
      %921 = vrot.lane.b32.xlu0 %v917, 120
      %v922 = vpop.permute.xlu0 %921
      %923 = vrot.lane.b32.xlu0 %v918, 120
      %v924 = vpop.permute.xlu0 %923
      %v925 = vsel %vm333, %v922, %v924
      %v928 = vadd.f32 %v911, %v925
      %v929 = vadd.f32 %v912, %v924
      %v930 = vmul.f32 %v323, %v772
      %v931 = vmul.f32 %v323, %v776
      %934 = vrot.lane.b32.xlu0 %v930, 120
      %v935 = vpop.permute.xlu0 %934
      %936 = vrot.lane.b32.xlu0 %v931, 120
      %v937 = vpop.permute.xlu0 %936
      %v938 = vsel %vm333, %v935, %v937
      %v941 = vadd.f32 %v915, %v938
      %v942 = vadd.f32 %v916, %v937
      %v943 = vmul.f32 %v354, %v704
      %v944 = vmul.f32 %v354, %v708
      %947 = vrot.lane.b32.xlu0 %v943, 112
      %v948 = vpop.permute.xlu0 %947
      %949 = vrot.lane.b32.xlu0 %v944, 112
      %v950 = vpop.permute.xlu0 %949
      %v951 = vsel %vm364, %v948, %v950
      %v954 = vadd.f32 %v928, %v951
      %v955 = vadd.f32 %v929, %v950
      %v956 = vmul.f32 %v354, %v772
      %v957 = vmul.f32 %v354, %v776
      %960 = vrot.lane.b32.xlu0 %v956, 112
      %v961 = vpop.permute.xlu0 %960
      %962 = vrot.lane.b32.xlu0 %v957, 112
      %v963 = vpop.permute.xlu0 %962
      %v964 = vsel %vm364, %v961, %v963
      %v967 = vadd.f32 %v941, %v964
      %v968 = vadd.f32 %v942, %v963
      %v969 = vmul.f32 %v385, %v772
      %v970 = vmul.f32 %v385, %v776
      %v971 = vadd.f32 %v954, %v969
      %v972 = vadd.f32 %v955, %v970
      %v973 = vlaneseq
      %v974 = vshrl.u32 %v973, 7
      %v975 = vsub.s32 6, %v974
      %v976 = vrot.slane %v282, %v975
      %v977 = vlaneseq
      %v978 = vshrl.u32 %v977, 7
      %v979 = vsub.s32 6, %v978
      %v980 = vrot.slane %v283, %v979
      %v981 = vmul.f32 %v385, %v976
      %v982 = vmul.f32 %v385, %v980
      %v983 = vadd.f32 %v967, %v981
      %v984 = vadd.f32 %v968, %v982
      %v985 = vmul.f32 %v405, %v772
      %v986 = vmul.f32 %v405, %v776
      %989 = vrot.lane.b32.xlu0 %v985, 120
      %v990 = vpop.permute.xlu0 %989
      %991 = vrot.lane.b32.xlu0 %v986, 120
      %v992 = vpop.permute.xlu0 %991
      %v993 = vsel %vm333, %v990, %v992
      %v996 = vadd.f32 %v971, %v993
      %v997 = vadd.f32 %v972, %v992
      %v998 = vmul.f32 %v405, %v976
      %v999 = vmul.f32 %v405, %v980
      %1002 = vrot.lane.b32.xlu0 %v998, 120
      %v1003 = vpop.permute.xlu0 %1002
      %1004 = vrot.lane.b32.xlu0 %v999, 120
      %v1005 = vpop.permute.xlu0 %1004
      %v1006 = vsel %vm333, %v1003, %v1005
      %v1009 = vadd.f32 %v983, %v1006
      %v1010 = vadd.f32 %v984, %v1005
      %v1011 = vmul.f32 %v435, %v772
      %v1012 = vmul.f32 %v435, %v776
      %1015 = vrot.lane.b32.xlu0 %v1011, 112
      %v1016 = vpop.permute.xlu0 %1015
      %1017 = vrot.lane.b32.xlu0 %v1012, 112
      %v1018 = vpop.permute.xlu0 %1017
      %v1019 = vsel %vm364, %v1016, %v1018
      %v1022 = vadd.f32 %v996, %v1019
      %v1023 = vadd.f32 %v997, %v1018
      %v1024 = vmul.f32 %v435, %v976
      %v1025 = vmul.f32 %v435, %v980
      %1028 = vrot.lane.b32.xlu0 %v1024, 112
      %v1029 = vpop.permute.xlu0 %1028
      %1030 = vrot.lane.b32.xlu0 %v1025, 112
      %v1031 = vpop.permute.xlu0 %1030
      %v1032 = vsel %vm364, %v1029, %v1031
      %v1035 = vadd.f32 %v1009, %v1032
      %v1036 = vadd.f32 %v1010, %v1031
      %v1037 = vmul.f32 %v465, %v976
      %v1038 = vmul.f32 %v465, %v980
      %v1039 = vadd.f32 %v1022, %v1037
      %v1040 = vadd.f32 %v1023, %v1038
      %v1041 = vlaneseq
      %v1042 = vshrl.u32 %v1041, 7
      %v1043 = vsub.s32 7, %v1042
      %v1044 = vrot.slane %v282, %v1043
      %v1045 = vlaneseq
      %v1046 = vshrl.u32 %v1045, 7
      %v1047 = vsub.s32 7, %v1046
      %v1048 = vrot.slane %v283, %v1047
      %v1049 = vmul.f32 %v465, %v1044
      %v1050 = vmul.f32 %v465, %v1048
      %v1051 = vadd.f32 %v1035, %v1049
      %v1052 = vadd.f32 %v1036, %v1050
      %v1053 = vmul.f32 %v485, %v976
      %v1054 = vmul.f32 %v485, %v980
      %1057 = vrot.lane.b32.xlu0 %v1053, 120
      %v1058 = vpop.permute.xlu0 %1057
      %1059 = vrot.lane.b32.xlu0 %v1054, 120
      %v1060 = vpop.permute.xlu0 %1059
      %v1061 = vsel %vm333, %v1058, %v1060
      %v1064 = vadd.f32 %v1039, %v1061
      %v1065 = vadd.f32 %v1040, %v1060
      %v1066 = vmul.f32 %v485, %v1044
      %v1067 = vmul.f32 %v485, %v1048
      %1070 = vrot.lane.b32.xlu0 %v1066, 120
      %v1071 = vpop.permute.xlu0 %1070
      %1072 = vrot.lane.b32.xlu0 %v1067, 120
      %v1073 = vpop.permute.xlu0 %1072
      %v1074 = vsel %vm333, %v1071, %v1073
      %v1077 = vadd.f32 %v1051, %v1074
      %v1078 = vadd.f32 %v1052, %v1073
      %v1079 = vmul.f32 %v515, %v976
      %v1080 = vmul.f32 %v515, %v980
      %1083 = vrot.lane.b32.xlu0 %v1079, 112
      %v1084 = vpop.permute.xlu0 %1083
      %1085 = vrot.lane.b32.xlu0 %v1080, 112
      %v1086 = vpop.permute.xlu0 %1085
      %v1087 = vsel %vm364, %v1084, %v1086
      %v1090 = vadd.f32 %v1064, %v1087
      %v1091 = vadd.f32 %v1065, %v1086
      %v1092 = vmul.f32 %v515, %v1044
      %v1093 = vmul.f32 %v515, %v1048
      %1096 = vrot.lane.b32.xlu0 %v1092, 112
      %v1097 = vpop.permute.xlu0 %1096
      %1098 = vrot.lane.b32.xlu0 %v1093, 112
      %v1099 = vpop.permute.xlu0 %1098
      %v1100 = vsel %vm364, %v1097, %v1099
      %v1103 = vadd.f32 %v1077, %v1100
      %v1104 = vadd.f32 %v1078, %v1099
      %v1105 = vmax.f32 %v1090, %v1103
      %v1106 = vmax.f32 %v1091, %v1104
      %1109 = vrot.lane.b32.xlu0 %v1105, 120
      %v1110 = vpop.permute.xlu0 %1109
      %1111 = vrot.lane.b32.xlu0 %v1106, 120
      %v1112 = vpop.permute.xlu0 %1111
      %v1113 = vsel %vm333, %v1110, %v1112
      %v1116 = vmax.f32 %v1105, %v1113
      %v1117 = vmax.f32 %v1106, %v1112
      %1119 = vrot.lane.b32.xlu0 %v1116, 120
      %v1120 = vpop.permute.xlu0 %1119
      %1122 = vrot.lane.b32.xlu0 %v1116, 112
      %v1123 = vpop.permute.xlu0 %1122
      %1125 = vrot.lane.b32.xlu0 %v1116, 104
      %v1126 = vpop.permute.xlu0 %1125
      %1128 = vrot.lane.b32.xlu0 %v1116, 96
      %v1129 = vpop.permute.xlu0 %1128
      %1131 = vrot.lane.b32.xlu0 %v1116, 88
      %v1132 = vpop.permute.xlu0 %1131
      %1134 = vrot.lane.b32.xlu0 %v1116, 80
      %v1135 = vpop.permute.xlu0 %1134
      %1137 = vrot.lane.b32.xlu0 %v1116, 72
      %v1138 = vpop.permute.xlu0 %1137
      %1141 = vrot.lane.b32.xlu0 %v1117, 64
      %v1142 = vpop.permute.xlu0 %1141
      %1144 = vrot.lane.b32.xlu0 %v1117, 56
      %v1145 = vpop.permute.xlu0 %1144
      %1147 = vrot.lane.b32.xlu0 %v1117, 48
      %v1148 = vpop.permute.xlu0 %1147
      %1150 = vrot.lane.b32.xlu0 %v1117, 40
      %v1151 = vpop.permute.xlu0 %1150
      %1153 = vrot.lane.b32.xlu0 %v1117, 32
      %v1154 = vpop.permute.xlu0 %1153
      %1156 = vrot.lane.b32.xlu0 %v1117, 24
      %v1157 = vpop.permute.xlu0 %1156
      %v1159 = vsel %vm597, %v1116, %v1120
      %v1160 = vsel %vm599, %v1159, %v1123
      %v1161 = vsel %vm601, %v1160, %v1126
      %v1162 = vsel %vm603, %v1161, %v1129
      %v1163 = vsel %vm605, %v1162, %v1132
      %v1164 = vsel %vm607, %v1163, %v1135
      %v1165 = vsel %vm609, %v1164, %v1138
      %v1166 = vsel %vm611, %v1165, %v1142
      %v1167 = vsel %vm613, %v1166, %v1145
      %v1168 = vsel %vm615, %v1167, %v1148
      %v1169 = vsel %vm617, %v1168, %v1151
      %v1170 = vsel %vm619, %v1169, %v1154
      %v1171 = vsel %vm621, %v1170, %v1157
      %v1172 = vadd.f32 %v1171, %v626
      %v1173 = vmax.f32 %v1172, 0.0
      %1175 = vrot.lane.b32.xlu0 %v1173, 8
      %v1176 = vpop.permute.xlu0 %1175
      %v1178 = vsel %vm597, 0.0, %v1176
      %v1179 = vsel %vm333, %v1178, 0.0
      %1180 = vst [vmem:[#allocation2 + $0x18] sm:$0xff] %v1179
      %v1181 = vmul.f32 %v295, %v976
      %v1182 = vmul.f32 %v295, %v980
      %v1183 = vadd.f32 %v1181, 0.0
      %v1184 = vadd.f32 %v1182, 0.0
      %v1185 = vmul.f32 %v295, %v1044
      %v1186 = vmul.f32 %v295, %v1048
      %v1187 = vadd.f32 %v1185, 0.0
      %v1188 = vadd.f32 %v1186, 0.0
      %v1189 = vmul.f32 %v323, %v976
      %v1190 = vmul.f32 %v323, %v980
      %1193 = vrot.lane.b32.xlu0 %v1189, 120
      %v1194 = vpop.permute.xlu0 %1193
      %1195 = vrot.lane.b32.xlu0 %v1190, 120
      %v1196 = vpop.permute.xlu0 %1195
      %v1197 = vsel %vm333, %v1194, %v1196
      %v1200 = vadd.f32 %v1183, %v1197
      %v1201 = vadd.f32 %v1184, %v1196
      %v1202 = vmul.f32 %v323, %v1044
      %v1203 = vmul.f32 %v323, %v1048
      %1206 = vrot.lane.b32.xlu0 %v1202, 120
      %v1207 = vpop.permute.xlu0 %1206
      %1208 = vrot.lane.b32.xlu0 %v1203, 120
      %v1209 = vpop.permute.xlu0 %1208
      %v1210 = vsel %vm333, %v1207, %v1209
      %v1213 = vadd.f32 %v1187, %v1210
      %v1214 = vadd.f32 %v1188, %v1209
      %v1215 = vmul.f32 %v354, %v976
      %v1216 = vmul.f32 %v354, %v980
      %1219 = vrot.lane.b32.xlu0 %v1215, 112
      %v1220 = vpop.permute.xlu0 %1219
      %1221 = vrot.lane.b32.xlu0 %v1216, 112
      %v1222 = vpop.permute.xlu0 %1221
      %v1223 = vsel %vm364, %v1220, %v1222
      %v1226 = vadd.f32 %v1200, %v1223
      %v1227 = vadd.f32 %v1201, %v1222
      %v1228 = vmul.f32 %v354, %v1044
      %v1229 = vmul.f32 %v354, %v1048
      %1232 = vrot.lane.b32.xlu0 %v1228, 112
      %v1233 = vpop.permute.xlu0 %1232
      %1234 = vrot.lane.b32.xlu0 %v1229, 112
      %v1235 = vpop.permute.xlu0 %1234
      %v1236 = vsel %vm364, %v1233, %v1235
      %v1239 = vadd.f32 %v1213, %v1236
      %v1240 = vadd.f32 %v1214, %v1235
      %v1241 = vmul.f32 %v385, %v1044
      %v1242 = vmul.f32 %v385, %v1048
      %v1243 = vadd.f32 %v1226, %v1241
      %v1244 = vadd.f32 %v1227, %v1242
      %v1245 = vlaneseq
      %v1246 = vshrl.u32 %v1245, 7
      %v1247 = vsub.s32 0, %v1246
      %v1248 = vrot.slane %v284, %v1247
      %v1249 = vlaneseq
      %v1250 = vshrl.u32 %v1249, 7
      %v1251 = vsub.s32 0, %v1250
      %v1252 = vrot.slane %v285, %v1251
      %v1253 = vmul.f32 %v385, %v1248
      %v1254 = vmul.f32 %v385, %v1252
      %v1255 = vadd.f32 %v1239, %v1253
      %v1256 = vadd.f32 %v1240, %v1254
      %v1257 = vmul.f32 %v405, %v1044
      %v1258 = vmul.f32 %v405, %v1048
      %1261 = vrot.lane.b32.xlu0 %v1257, 120
      %v1262 = vpop.permute.xlu0 %1261
      %1263 = vrot.lane.b32.xlu0 %v1258, 120
      %v1264 = vpop.permute.xlu0 %1263
      %v1265 = vsel %vm333, %v1262, %v1264
      %v1268 = vadd.f32 %v1243, %v1265
      %v1269 = vadd.f32 %v1244, %v1264
      %v1270 = vmul.f32 %v405, %v1248
      %v1271 = vmul.f32 %v405, %v1252
      %1274 = vrot.lane.b32.xlu0 %v1270, 120
      %v1275 = vpop.permute.xlu0 %1274
      %1276 = vrot.lane.b32.xlu0 %v1271, 120
      %v1277 = vpop.permute.xlu0 %1276
      %v1278 = vsel %vm333, %v1275, %v1277
      %v1281 = vadd.f32 %v1255, %v1278
      %v1282 = vadd.f32 %v1256, %v1277
      %v1283 = vmul.f32 %v435, %v1044
      %v1284 = vmul.f32 %v435, %v1048
      %1287 = vrot.lane.b32.xlu0 %v1283, 112
      %v1288 = vpop.permute.xlu0 %1287
      %1289 = vrot.lane.b32.xlu0 %v1284, 112
      %v1290 = vpop.permute.xlu0 %1289
      %v1291 = vsel %vm364, %v1288, %v1290
      %v1294 = vadd.f32 %v1268, %v1291
      %v1295 = vadd.f32 %v1269, %v1290
      %v1296 = vmul.f32 %v435, %v1248
      %v1297 = vmul.f32 %v435, %v1252
      %1300 = vrot.lane.b32.xlu0 %v1296, 112
      %v1301 = vpop.permute.xlu0 %1300
      %1302 = vrot.lane.b32.xlu0 %v1297, 112
      %v1303 = vpop.permute.xlu0 %1302
      %v1304 = vsel %vm364, %v1301, %v1303
      %v1307 = vadd.f32 %v1281, %v1304
      %v1308 = vadd.f32 %v1282, %v1303
      %v1309 = vmul.f32 %v465, %v1248
      %v1310 = vmul.f32 %v465, %v1252
      %v1311 = vadd.f32 %v1294, %v1309
      %v1312 = vadd.f32 %v1295, %v1310
      %v1313 = vlaneseq
      %v1314 = vshrl.u32 %v1313, 7
      %v1315 = vsub.s32 1, %v1314
      %v1316 = vrot.slane %v284, %v1315
      %v1317 = vlaneseq
      %v1318 = vshrl.u32 %v1317, 7
      %v1319 = vsub.s32 1, %v1318
      %v1320 = vrot.slane %v285, %v1319
      %v1321 = vmul.f32 %v465, %v1316
      %v1322 = vmul.f32 %v465, %v1320
      %v1323 = vadd.f32 %v1307, %v1321
      %v1324 = vadd.f32 %v1308, %v1322
      %v1325 = vmul.f32 %v485, %v1248
      %v1326 = vmul.f32 %v485, %v1252
      %1329 = vrot.lane.b32.xlu0 %v1325, 120
      %v1330 = vpop.permute.xlu0 %1329
      %1331 = vrot.lane.b32.xlu0 %v1326, 120
      %v1332 = vpop.permute.xlu0 %1331
      %v1333 = vsel %vm333, %v1330, %v1332
      %v1336 = vadd.f32 %v1311, %v1333
      %v1337 = vadd.f32 %v1312, %v1332
      %v1338 = vmul.f32 %v485, %v1316
      %v1339 = vmul.f32 %v485, %v1320
      %1342 = vrot.lane.b32.xlu0 %v1338, 120
      %v1343 = vpop.permute.xlu0 %1342
      %1344 = vrot.lane.b32.xlu0 %v1339, 120
      %v1345 = vpop.permute.xlu0 %1344
      %v1346 = vsel %vm333, %v1343, %v1345
      %v1349 = vadd.f32 %v1323, %v1346
      %v1350 = vadd.f32 %v1324, %v1345
      %v1351 = vmul.f32 %v515, %v1248
      %v1352 = vmul.f32 %v515, %v1252
      %1355 = vrot.lane.b32.xlu0 %v1351, 112
      %v1356 = vpop.permute.xlu0 %1355
      %1357 = vrot.lane.b32.xlu0 %v1352, 112
      %v1358 = vpop.permute.xlu0 %1357
      %v1359 = vsel %vm364, %v1356, %v1358
      %v1362 = vadd.f32 %v1336, %v1359
      %v1363 = vadd.f32 %v1337, %v1358
      %v1364 = vmul.f32 %v515, %v1316
      %v1365 = vmul.f32 %v515, %v1320
      %1368 = vrot.lane.b32.xlu0 %v1364, 112
      %v1369 = vpop.permute.xlu0 %1368
      %1370 = vrot.lane.b32.xlu0 %v1365, 112
      %v1371 = vpop.permute.xlu0 %1370
      %v1372 = vsel %vm364, %v1369, %v1371
      %v1375 = vadd.f32 %v1349, %v1372
      %v1376 = vadd.f32 %v1350, %v1371
      %v1377 = vmax.f32 %v1362, %v1375
      %v1378 = vmax.f32 %v1363, %v1376
      %1381 = vrot.lane.b32.xlu0 %v1377, 120
      %v1382 = vpop.permute.xlu0 %1381
      %1383 = vrot.lane.b32.xlu0 %v1378, 120
      %v1384 = vpop.permute.xlu0 %1383
      %v1385 = vsel %vm333, %v1382, %v1384
      %v1388 = vmax.f32 %v1377, %v1385
      %v1389 = vmax.f32 %v1378, %v1384
      %1391 = vrot.lane.b32.xlu0 %v1388, 120
      %v1392 = vpop.permute.xlu0 %1391
      %1394 = vrot.lane.b32.xlu0 %v1388, 112
      %v1395 = vpop.permute.xlu0 %1394
      %1397 = vrot.lane.b32.xlu0 %v1388, 104
      %v1398 = vpop.permute.xlu0 %1397
      %1400 = vrot.lane.b32.xlu0 %v1388, 96
      %v1401 = vpop.permute.xlu0 %1400
      %1403 = vrot.lane.b32.xlu0 %v1388, 88
      %v1404 = vpop.permute.xlu0 %1403
      %1406 = vrot.lane.b32.xlu0 %v1388, 80
      %v1407 = vpop.permute.xlu0 %1406
      %1409 = vrot.lane.b32.xlu0 %v1388, 72
      %v1410 = vpop.permute.xlu0 %1409
      %1413 = vrot.lane.b32.xlu0 %v1389, 64
      %v1414 = vpop.permute.xlu0 %1413
      %1416 = vrot.lane.b32.xlu0 %v1389, 56
      %v1417 = vpop.permute.xlu0 %1416
      %1419 = vrot.lane.b32.xlu0 %v1389, 48
      %v1420 = vpop.permute.xlu0 %1419
      %1422 = vrot.lane.b32.xlu0 %v1389, 40
      %v1423 = vpop.permute.xlu0 %1422
      %1425 = vrot.lane.b32.xlu0 %v1389, 32
      %v1426 = vpop.permute.xlu0 %1425
      %1428 = vrot.lane.b32.xlu0 %v1389, 24
      %v1429 = vpop.permute.xlu0 %1428
      %v1431 = vsel %vm597, %v1388, %v1392
      %v1432 = vsel %vm599, %v1431, %v1395
      %v1433 = vsel %vm601, %v1432, %v1398
      %v1434 = vsel %vm603, %v1433, %v1401
      %v1435 = vsel %vm605, %v1434, %v1404
      %v1436 = vsel %vm607, %v1435, %v1407
      %v1437 = vsel %vm609, %v1436, %v1410
      %v1438 = vsel %vm611, %v1437, %v1414
      %v1439 = vsel %vm613, %v1438, %v1417
      %v1440 = vsel %vm615, %v1439, %v1420
      %v1441 = vsel %vm617, %v1440, %v1423
      %v1442 = vsel %vm619, %v1441, %v1426
      %v1443 = vsel %vm621, %v1442, %v1429
      %v1444 = vadd.f32 %v1443, %v626
      %v1445 = vmax.f32 %v1444, 0.0
      %1447 = vrot.lane.b32.xlu0 %v1445, 8
      %v1448 = vpop.permute.xlu0 %1447
      %v1450 = vsel %vm597, 0.0, %v1448
      %v1451 = vsel %vm333, %v1450, 0.0
      %1452 = vst [vmem:[#allocation2 + $0x20] sm:$0xff] %v1451
      %v1453 = vmul.f32 %v295, %v1248
      %v1454 = vmul.f32 %v295, %v1252
      %v1455 = vadd.f32 %v1453, 0.0
      %v1456 = vadd.f32 %v1454, 0.0
      %v1457 = vmul.f32 %v295, %v1316
      %v1458 = vmul.f32 %v295, %v1320
      %v1459 = vadd.f32 %v1457, 0.0
      %v1460 = vadd.f32 %v1458, 0.0
      %v1461 = vmul.f32 %v323, %v1248
      %v1462 = vmul.f32 %v323, %v1252
      %1465 = vrot.lane.b32.xlu0 %v1461, 120
      %v1466 = vpop.permute.xlu0 %1465
      %1467 = vrot.lane.b32.xlu0 %v1462, 120
      %v1468 = vpop.permute.xlu0 %1467
      %v1469 = vsel %vm333, %v1466, %v1468
      %v1472 = vadd.f32 %v1455, %v1469
      %v1473 = vadd.f32 %v1456, %v1468
      %v1474 = vmul.f32 %v323, %v1316
      %v1475 = vmul.f32 %v323, %v1320
      %1478 = vrot.lane.b32.xlu0 %v1474, 120
      %v1479 = vpop.permute.xlu0 %1478
      %1480 = vrot.lane.b32.xlu0 %v1475, 120
      %v1481 = vpop.permute.xlu0 %1480
      %v1482 = vsel %vm333, %v1479, %v1481
      %v1485 = vadd.f32 %v1459, %v1482
      %v1486 = vadd.f32 %v1460, %v1481
      %v1487 = vmul.f32 %v354, %v1248
      %v1488 = vmul.f32 %v354, %v1252
      %1491 = vrot.lane.b32.xlu0 %v1487, 112
      %v1492 = vpop.permute.xlu0 %1491
      %1493 = vrot.lane.b32.xlu0 %v1488, 112
      %v1494 = vpop.permute.xlu0 %1493
      %v1495 = vsel %vm364, %v1492, %v1494
      %v1498 = vadd.f32 %v1472, %v1495
      %v1499 = vadd.f32 %v1473, %v1494
      %v1500 = vmul.f32 %v354, %v1316
      %v1501 = vmul.f32 %v354, %v1320
      %1504 = vrot.lane.b32.xlu0 %v1500, 112
      %v1505 = vpop.permute.xlu0 %1504
      %1506 = vrot.lane.b32.xlu0 %v1501, 112
      %v1507 = vpop.permute.xlu0 %1506
      %v1508 = vsel %vm364, %v1505, %v1507
      %v1511 = vadd.f32 %v1485, %v1508
      %v1512 = vadd.f32 %v1486, %v1507
      %v1513 = vmul.f32 %v385, %v1316
      %v1514 = vmul.f32 %v385, %v1320
      %v1515 = vadd.f32 %v1498, %v1513
      %v1516 = vadd.f32 %v1499, %v1514
      %v1517 = vlaneseq
      %v1518 = vshrl.u32 %v1517, 7
      %v1519 = vsub.s32 2, %v1518
      %v1520 = vrot.slane %v284, %v1519
      %v1521 = vlaneseq
      %v1522 = vshrl.u32 %v1521, 7
      %v1523 = vsub.s32 2, %v1522
      %v1524 = vrot.slane %v285, %v1523
      %v1525 = vmul.f32 %v385, %v1520
      %v1526 = vmul.f32 %v385, %v1524
      %v1527 = vadd.f32 %v1511, %v1525
      %v1528 = vadd.f32 %v1512, %v1526
      %v1529 = vmul.f32 %v405, %v1316
      %v1530 = vmul.f32 %v405, %v1320
      %1533 = vrot.lane.b32.xlu0 %v1529, 120
      %v1534 = vpop.permute.xlu0 %1533
      %1535 = vrot.lane.b32.xlu0 %v1530, 120
      %v1536 = vpop.permute.xlu0 %1535
      %v1537 = vsel %vm333, %v1534, %v1536
      %v1540 = vadd.f32 %v1515, %v1537
      %v1541 = vadd.f32 %v1516, %v1536
      %v1542 = vmul.f32 %v405, %v1520
      %v1543 = vmul.f32 %v405, %v1524
      %1546 = vrot.lane.b32.xlu0 %v1542, 120
      %v1547 = vpop.permute.xlu0 %1546
      %1548 = vrot.lane.b32.xlu0 %v1543, 120
      %v1549 = vpop.permute.xlu0 %1548
      %v1550 = vsel %vm333, %v1547, %v1549
      %v1553 = vadd.f32 %v1527, %v1550
      %v1554 = vadd.f32 %v1528, %v1549
      %v1555 = vmul.f32 %v435, %v1316
      %v1556 = vmul.f32 %v435, %v1320
      %1559 = vrot.lane.b32.xlu0 %v1555, 112
      %v1560 = vpop.permute.xlu0 %1559
      %1561 = vrot.lane.b32.xlu0 %v1556, 112
      %v1562 = vpop.permute.xlu0 %1561
      %v1563 = vsel %vm364, %v1560, %v1562
      %v1566 = vadd.f32 %v1540, %v1563
      %v1567 = vadd.f32 %v1541, %v1562
      %v1568 = vmul.f32 %v435, %v1520
      %v1569 = vmul.f32 %v435, %v1524
      %1572 = vrot.lane.b32.xlu0 %v1568, 112
      %v1573 = vpop.permute.xlu0 %1572
      %1574 = vrot.lane.b32.xlu0 %v1569, 112
      %v1575 = vpop.permute.xlu0 %1574
      %v1576 = vsel %vm364, %v1573, %v1575
      %v1579 = vadd.f32 %v1553, %v1576
      %v1580 = vadd.f32 %v1554, %v1575
      %v1581 = vmul.f32 %v465, %v1520
      %v1582 = vmul.f32 %v465, %v1524
      %v1583 = vadd.f32 %v1566, %v1581
      %v1584 = vadd.f32 %v1567, %v1582
      %v1585 = vlaneseq
      %v1586 = vshrl.u32 %v1585, 7
      %v1587 = vsub.s32 3, %v1586
      %v1588 = vrot.slane %v284, %v1587
      %v1589 = vlaneseq
      %v1590 = vshrl.u32 %v1589, 7
      %v1591 = vsub.s32 3, %v1590
      %v1592 = vrot.slane %v285, %v1591
      %v1593 = vmul.f32 %v465, %v1588
      %v1594 = vmul.f32 %v465, %v1592
      %v1595 = vadd.f32 %v1579, %v1593
      %v1596 = vadd.f32 %v1580, %v1594
      %v1597 = vmul.f32 %v485, %v1520
      %v1598 = vmul.f32 %v485, %v1524
      %1601 = vrot.lane.b32.xlu0 %v1597, 120
      %v1602 = vpop.permute.xlu0 %1601
      %1603 = vrot.lane.b32.xlu0 %v1598, 120
      %v1604 = vpop.permute.xlu0 %1603
      %v1605 = vsel %vm333, %v1602, %v1604
      %v1608 = vadd.f32 %v1583, %v1605
      %v1609 = vadd.f32 %v1584, %v1604
      %v1610 = vmul.f32 %v485, %v1588
      %v1611 = vmul.f32 %v485, %v1592
      %1614 = vrot.lane.b32.xlu0 %v1610, 120
      %v1615 = vpop.permute.xlu0 %1614
      %1616 = vrot.lane.b32.xlu0 %v1611, 120
      %v1617 = vpop.permute.xlu0 %1616
      %v1618 = vsel %vm333, %v1615, %v1617
      %v1621 = vadd.f32 %v1595, %v1618
      %v1622 = vadd.f32 %v1596, %v1617
      %v1623 = vmul.f32 %v515, %v1520
      %v1624 = vmul.f32 %v515, %v1524
      %1627 = vrot.lane.b32.xlu0 %v1623, 112
      %v1628 = vpop.permute.xlu0 %1627
      %1629 = vrot.lane.b32.xlu0 %v1624, 112
      %v1630 = vpop.permute.xlu0 %1629
      %v1631 = vsel %vm364, %v1628, %v1630
      %v1634 = vadd.f32 %v1608, %v1631
      %v1635 = vadd.f32 %v1609, %v1630
      %v1636 = vmul.f32 %v515, %v1588
      %v1637 = vmul.f32 %v515, %v1592
      %1640 = vrot.lane.b32.xlu0 %v1636, 112
      %v1641 = vpop.permute.xlu0 %1640
      %1642 = vrot.lane.b32.xlu0 %v1637, 112
      %v1643 = vpop.permute.xlu0 %1642
      %v1644 = vsel %vm364, %v1641, %v1643
      %v1647 = vadd.f32 %v1621, %v1644
      %v1648 = vadd.f32 %v1622, %v1643
      %v1649 = vmax.f32 %v1634, %v1647
      %v1650 = vmax.f32 %v1635, %v1648
      %1653 = vrot.lane.b32.xlu0 %v1649, 120
      %v1654 = vpop.permute.xlu0 %1653
      %1655 = vrot.lane.b32.xlu0 %v1650, 120
      %v1656 = vpop.permute.xlu0 %1655
      %v1657 = vsel %vm333, %v1654, %v1656
      %v1660 = vmax.f32 %v1649, %v1657
      %v1661 = vmax.f32 %v1650, %v1656
      %1663 = vrot.lane.b32.xlu0 %v1660, 120
      %v1664 = vpop.permute.xlu0 %1663
      %1666 = vrot.lane.b32.xlu0 %v1660, 112
      %v1667 = vpop.permute.xlu0 %1666
      %1669 = vrot.lane.b32.xlu0 %v1660, 104
      %v1670 = vpop.permute.xlu0 %1669
      %1672 = vrot.lane.b32.xlu0 %v1660, 96
      %v1673 = vpop.permute.xlu0 %1672
      %1675 = vrot.lane.b32.xlu0 %v1660, 88
      %v1676 = vpop.permute.xlu0 %1675
      %1678 = vrot.lane.b32.xlu0 %v1660, 80
      %v1679 = vpop.permute.xlu0 %1678
      %1681 = vrot.lane.b32.xlu0 %v1660, 72
      %v1682 = vpop.permute.xlu0 %1681
      %1685 = vrot.lane.b32.xlu0 %v1661, 64
      %v1686 = vpop.permute.xlu0 %1685
      %1688 = vrot.lane.b32.xlu0 %v1661, 56
      %v1689 = vpop.permute.xlu0 %1688
      %1691 = vrot.lane.b32.xlu0 %v1661, 48
      %v1692 = vpop.permute.xlu0 %1691
      %1694 = vrot.lane.b32.xlu0 %v1661, 40
      %v1695 = vpop.permute.xlu0 %1694
      %1697 = vrot.lane.b32.xlu0 %v1661, 32
      %v1698 = vpop.permute.xlu0 %1697
      %1700 = vrot.lane.b32.xlu0 %v1661, 24
      %v1701 = vpop.permute.xlu0 %1700
      %v1703 = vsel %vm597, %v1660, %v1664
      %v1704 = vsel %vm599, %v1703, %v1667
      %v1705 = vsel %vm601, %v1704, %v1670
      %v1706 = vsel %vm603, %v1705, %v1673
      %v1707 = vsel %vm605, %v1706, %v1676
      %v1708 = vsel %vm607, %v1707, %v1679
      %v1709 = vsel %vm609, %v1708, %v1682
      %v1710 = vsel %vm611, %v1709, %v1686
      %v1711 = vsel %vm613, %v1710, %v1689
      %v1712 = vsel %vm615, %v1711, %v1692
      %v1713 = vsel %vm617, %v1712, %v1695
      %v1714 = vsel %vm619, %v1713, %v1698
      %v1715 = vsel %vm621, %v1714, %v1701
      %v1716 = vadd.f32 %v1715, %v626
      %v1717 = vmax.f32 %v1716, 0.0
      %1719 = vrot.lane.b32.xlu0 %v1717, 8
      %v1720 = vpop.permute.xlu0 %1719
      %v1722 = vsel %vm597, 0.0, %v1720
      %v1723 = vsel %vm333, %v1722, 0.0
      %1724 = vst [vmem:[#allocation2 + $0x28] sm:$0xff] %v1723
      %v1725 = vmul.f32 %v295, %v1520
      %v1726 = vmul.f32 %v295, %v1524
      %v1727 = vadd.f32 %v1725, 0.0
      %v1728 = vadd.f32 %v1726, 0.0
      %v1729 = vmul.f32 %v295, %v1588
      %v1730 = vmul.f32 %v295, %v1592
      %v1731 = vadd.f32 %v1729, 0.0
      %v1732 = vadd.f32 %v1730, 0.0
      %v1733 = vmul.f32 %v323, %v1520
      %v1734 = vmul.f32 %v323, %v1524
      %1737 = vrot.lane.b32.xlu0 %v1733, 120
      %v1738 = vpop.permute.xlu0 %1737
      %1739 = vrot.lane.b32.xlu0 %v1734, 120
      %v1740 = vpop.permute.xlu0 %1739
      %v1741 = vsel %vm333, %v1738, %v1740
      %v1744 = vadd.f32 %v1727, %v1741
      %v1745 = vadd.f32 %v1728, %v1740
      %v1746 = vmul.f32 %v323, %v1588
      %v1747 = vmul.f32 %v323, %v1592
      %1750 = vrot.lane.b32.xlu0 %v1746, 120
      %v1751 = vpop.permute.xlu0 %1750
      %1752 = vrot.lane.b32.xlu0 %v1747, 120
      %v1753 = vpop.permute.xlu0 %1752
      %v1754 = vsel %vm333, %v1751, %v1753
      %v1757 = vadd.f32 %v1731, %v1754
      %v1758 = vadd.f32 %v1732, %v1753
      %v1759 = vmul.f32 %v354, %v1520
      %v1760 = vmul.f32 %v354, %v1524
      %1763 = vrot.lane.b32.xlu0 %v1759, 112
      %v1764 = vpop.permute.xlu0 %1763
      %1765 = vrot.lane.b32.xlu0 %v1760, 112
      %v1766 = vpop.permute.xlu0 %1765
      %v1767 = vsel %vm364, %v1764, %v1766
      %v1770 = vadd.f32 %v1744, %v1767
      %v1771 = vadd.f32 %v1745, %v1766
      %v1772 = vmul.f32 %v354, %v1588
      %v1773 = vmul.f32 %v354, %v1592
      %1776 = vrot.lane.b32.xlu0 %v1772, 112
      %v1777 = vpop.permute.xlu0 %1776
      %1778 = vrot.lane.b32.xlu0 %v1773, 112
      %v1779 = vpop.permute.xlu0 %1778
      %v1780 = vsel %vm364, %v1777, %v1779
      %v1783 = vadd.f32 %v1757, %v1780
      %v1784 = vadd.f32 %v1758, %v1779
      %v1785 = vmul.f32 %v385, %v1588
      %v1786 = vmul.f32 %v385, %v1592
      %v1787 = vadd.f32 %v1770, %v1785
      %v1788 = vadd.f32 %v1771, %v1786
      %v1789 = vlaneseq
      %v1790 = vshrl.u32 %v1789, 7
      %v1791 = vsub.s32 4, %v1790
      %v1792 = vrot.slane %v284, %v1791
      %v1793 = vlaneseq
      %v1794 = vshrl.u32 %v1793, 7
      %v1795 = vsub.s32 4, %v1794
      %v1796 = vrot.slane %v285, %v1795
      %v1797 = vmul.f32 %v385, %v1792
      %v1798 = vmul.f32 %v385, %v1796
      %v1799 = vadd.f32 %v1783, %v1797
      %v1800 = vadd.f32 %v1784, %v1798
      %v1801 = vmul.f32 %v405, %v1588
      %v1802 = vmul.f32 %v405, %v1592
      %1805 = vrot.lane.b32.xlu0 %v1801, 120
      %v1806 = vpop.permute.xlu0 %1805
      %1807 = vrot.lane.b32.xlu0 %v1802, 120
      %v1808 = vpop.permute.xlu0 %1807
      %v1809 = vsel %vm333, %v1806, %v1808
      %v1812 = vadd.f32 %v1787, %v1809
      %v1813 = vadd.f32 %v1788, %v1808
      %v1814 = vmul.f32 %v405, %v1792
      %v1815 = vmul.f32 %v405, %v1796
      %1818 = vrot.lane.b32.xlu0 %v1814, 120
      %v1819 = vpop.permute.xlu0 %1818
      %1820 = vrot.lane.b32.xlu0 %v1815, 120
      %v1821 = vpop.permute.xlu0 %1820
      %v1822 = vsel %vm333, %v1819, %v1821
      %v1825 = vadd.f32 %v1799, %v1822
      %v1826 = vadd.f32 %v1800, %v1821
      %v1827 = vmul.f32 %v435, %v1588
      %v1828 = vmul.f32 %v435, %v1592
      %1831 = vrot.lane.b32.xlu0 %v1827, 112
      %v1832 = vpop.permute.xlu0 %1831
      %1833 = vrot.lane.b32.xlu0 %v1828, 112
      %v1834 = vpop.permute.xlu0 %1833
      %v1835 = vsel %vm364, %v1832, %v1834
      %v1838 = vadd.f32 %v1812, %v1835
      %v1839 = vadd.f32 %v1813, %v1834
      %v1840 = vmul.f32 %v435, %v1792
      %v1841 = vmul.f32 %v435, %v1796
      %1844 = vrot.lane.b32.xlu0 %v1840, 112
      %v1845 = vpop.permute.xlu0 %1844
      %1846 = vrot.lane.b32.xlu0 %v1841, 112
      %v1847 = vpop.permute.xlu0 %1846
      %v1848 = vsel %vm364, %v1845, %v1847
      %v1851 = vadd.f32 %v1825, %v1848
      %v1852 = vadd.f32 %v1826, %v1847
      %v1853 = vmul.f32 %v465, %v1792
      %v1854 = vmul.f32 %v465, %v1796
      %v1855 = vadd.f32 %v1838, %v1853
      %v1856 = vadd.f32 %v1839, %v1854
      %v1857 = vlaneseq
      %v1858 = vshrl.u32 %v1857, 7
      %v1859 = vsub.s32 5, %v1858
      %v1860 = vrot.slane %v284, %v1859
      %v1861 = vlaneseq
      %v1862 = vshrl.u32 %v1861, 7
      %v1863 = vsub.s32 5, %v1862
      %v1864 = vrot.slane %v285, %v1863
      %v1865 = vmul.f32 %v465, %v1860
      %v1866 = vmul.f32 %v465, %v1864
      %v1867 = vadd.f32 %v1851, %v1865
      %v1868 = vadd.f32 %v1852, %v1866
      %v1869 = vmul.f32 %v485, %v1792
      %v1870 = vmul.f32 %v485, %v1796
      %1873 = vrot.lane.b32.xlu0 %v1869, 120
      %v1874 = vpop.permute.xlu0 %1873
      %1875 = vrot.lane.b32.xlu0 %v1870, 120
      %v1876 = vpop.permute.xlu0 %1875
      %v1877 = vsel %vm333, %v1874, %v1876
      %v1880 = vadd.f32 %v1855, %v1877
      %v1881 = vadd.f32 %v1856, %v1876
      %v1882 = vmul.f32 %v485, %v1860
      %v1883 = vmul.f32 %v485, %v1864
      %1886 = vrot.lane.b32.xlu0 %v1882, 120
      %v1887 = vpop.permute.xlu0 %1886
      %1888 = vrot.lane.b32.xlu0 %v1883, 120
      %v1889 = vpop.permute.xlu0 %1888
      %v1890 = vsel %vm333, %v1887, %v1889
      %v1893 = vadd.f32 %v1867, %v1890
      %v1894 = vadd.f32 %v1868, %v1889
      %v1895 = vmul.f32 %v515, %v1792
      %v1896 = vmul.f32 %v515, %v1796
      %1899 = vrot.lane.b32.xlu0 %v1895, 112
      %v1900 = vpop.permute.xlu0 %1899
      %1901 = vrot.lane.b32.xlu0 %v1896, 112
      %v1902 = vpop.permute.xlu0 %1901
      %v1903 = vsel %vm364, %v1900, %v1902
      %v1906 = vadd.f32 %v1880, %v1903
      %v1907 = vadd.f32 %v1881, %v1902
      %v1908 = vmul.f32 %v515, %v1860
      %v1909 = vmul.f32 %v515, %v1864
      %1912 = vrot.lane.b32.xlu0 %v1908, 112
      %v1913 = vpop.permute.xlu0 %1912
      %1914 = vrot.lane.b32.xlu0 %v1909, 112
      %v1915 = vpop.permute.xlu0 %1914
      %v1916 = vsel %vm364, %v1913, %v1915
      %v1919 = vadd.f32 %v1893, %v1916
      %v1920 = vadd.f32 %v1894, %v1915
      %v1921 = vmax.f32 %v1906, %v1919
      %v1922 = vmax.f32 %v1907, %v1920
      %1925 = vrot.lane.b32.xlu0 %v1921, 120
      %v1926 = vpop.permute.xlu0 %1925
      %1927 = vrot.lane.b32.xlu0 %v1922, 120
      %v1928 = vpop.permute.xlu0 %1927
      %v1929 = vsel %vm333, %v1926, %v1928
      %v1932 = vmax.f32 %v1921, %v1929
      %v1933 = vmax.f32 %v1922, %v1928
      %1935 = vrot.lane.b32.xlu0 %v1932, 120
      %v1936 = vpop.permute.xlu0 %1935
      %1938 = vrot.lane.b32.xlu0 %v1932, 112
      %v1939 = vpop.permute.xlu0 %1938
      %1941 = vrot.lane.b32.xlu0 %v1932, 104
      %v1942 = vpop.permute.xlu0 %1941
      %1944 = vrot.lane.b32.xlu0 %v1932, 96
      %v1945 = vpop.permute.xlu0 %1944
      %1947 = vrot.lane.b32.xlu0 %v1932, 88
      %v1948 = vpop.permute.xlu0 %1947
      %1950 = vrot.lane.b32.xlu0 %v1932, 80
      %v1951 = vpop.permute.xlu0 %1950
      %1953 = vrot.lane.b32.xlu0 %v1932, 72
      %v1954 = vpop.permute.xlu0 %1953
      %1957 = vrot.lane.b32.xlu0 %v1933, 64
      %v1958 = vpop.permute.xlu0 %1957
      %1960 = vrot.lane.b32.xlu0 %v1933, 56
      %v1961 = vpop.permute.xlu0 %1960
      %1963 = vrot.lane.b32.xlu0 %v1933, 48
      %v1964 = vpop.permute.xlu0 %1963
      %1966 = vrot.lane.b32.xlu0 %v1933, 40
      %v1967 = vpop.permute.xlu0 %1966
      %1969 = vrot.lane.b32.xlu0 %v1933, 32
      %v1970 = vpop.permute.xlu0 %1969
      %1972 = vrot.lane.b32.xlu0 %v1933, 24
      %v1973 = vpop.permute.xlu0 %1972
      %v1975 = vsel %vm597, %v1932, %v1936
      %v1976 = vsel %vm599, %v1975, %v1939
      %v1977 = vsel %vm601, %v1976, %v1942
      %v1978 = vsel %vm603, %v1977, %v1945
      %v1979 = vsel %vm605, %v1978, %v1948
      %v1980 = vsel %vm607, %v1979, %v1951
      %v1981 = vsel %vm609, %v1980, %v1954
      %v1982 = vsel %vm611, %v1981, %v1958
      %v1983 = vsel %vm613, %v1982, %v1961
      %v1984 = vsel %vm615, %v1983, %v1964
      %v1985 = vsel %vm617, %v1984, %v1967
      %v1986 = vsel %vm619, %v1985, %v1970
      %v1987 = vsel %vm621, %v1986, %v1973
      %v1988 = vadd.f32 %v1987, %v626
      %v1989 = vmax.f32 %v1988, 0.0
      %1991 = vrot.lane.b32.xlu0 %v1989, 8
      %v1992 = vpop.permute.xlu0 %1991
      %v1994 = vsel %vm597, 0.0, %v1992
      %v1995 = vsel %vm333, %v1994, 0.0
      %1996 = vst [vmem:[#allocation2 + $0x30] sm:$0xff] %v1995
      %v1997 = vmul.f32 %v295, %v1792
      %v1998 = vmul.f32 %v295, %v1796
      %v1999 = vadd.f32 %v1997, 0.0
      %v2000 = vadd.f32 %v1998, 0.0
      %v2001 = vmul.f32 %v295, %v1860
      %v2002 = vmul.f32 %v295, %v1864
      %v2003 = vadd.f32 %v2001, 0.0
      %v2004 = vadd.f32 %v2002, 0.0
      %v2005 = vmul.f32 %v323, %v1792
      %v2006 = vmul.f32 %v323, %v1796
      %2009 = vrot.lane.b32.xlu0 %v2005, 120
      %v2010 = vpop.permute.xlu0 %2009
      %2011 = vrot.lane.b32.xlu0 %v2006, 120
      %v2012 = vpop.permute.xlu0 %2011
      %v2013 = vsel %vm333, %v2010, %v2012
      %v2016 = vadd.f32 %v1999, %v2013
      %v2017 = vadd.f32 %v2000, %v2012
      %v2018 = vmul.f32 %v323, %v1860
      %v2019 = vmul.f32 %v323, %v1864
      %2022 = vrot.lane.b32.xlu0 %v2018, 120
      %v2023 = vpop.permute.xlu0 %2022
      %2024 = vrot.lane.b32.xlu0 %v2019, 120
      %v2025 = vpop.permute.xlu0 %2024
      %v2026 = vsel %vm333, %v2023, %v2025
      %v2029 = vadd.f32 %v2003, %v2026
      %v2030 = vadd.f32 %v2004, %v2025
      %v2031 = vmul.f32 %v354, %v1792
      %v2032 = vmul.f32 %v354, %v1796
      %2035 = vrot.lane.b32.xlu0 %v2031, 112
      %v2036 = vpop.permute.xlu0 %2035
      %2037 = vrot.lane.b32.xlu0 %v2032, 112
      %v2038 = vpop.permute.xlu0 %2037
      %v2039 = vsel %vm364, %v2036, %v2038
      %v2042 = vadd.f32 %v2016, %v2039
      %v2043 = vadd.f32 %v2017, %v2038
      %v2044 = vmul.f32 %v354, %v1860
      %v2045 = vmul.f32 %v354, %v1864
      %2048 = vrot.lane.b32.xlu0 %v2044, 112
      %v2049 = vpop.permute.xlu0 %2048
      %2050 = vrot.lane.b32.xlu0 %v2045, 112
      %v2051 = vpop.permute.xlu0 %2050
      %v2052 = vsel %vm364, %v2049, %v2051
      %v2055 = vadd.f32 %v2029, %v2052
      %v2056 = vadd.f32 %v2030, %v2051
      %v2057 = vmul.f32 %v385, %v1860
      %v2058 = vmul.f32 %v385, %v1864
      %v2059 = vadd.f32 %v2042, %v2057
      %v2060 = vadd.f32 %v2043, %v2058
      %v2061 = vlaneseq
      %v2062 = vshrl.u32 %v2061, 7
      %v2063 = vsub.s32 6, %v2062
      %v2064 = vrot.slane %v284, %v2063
      %v2065 = vlaneseq
      %v2066 = vshrl.u32 %v2065, 7
      %v2067 = vsub.s32 6, %v2066
      %v2068 = vrot.slane %v285, %v2067
      %v2069 = vmul.f32 %v385, %v2064
      %v2070 = vmul.f32 %v385, %v2068
      %v2071 = vadd.f32 %v2055, %v2069
      %v2072 = vadd.f32 %v2056, %v2070
      %v2073 = vmul.f32 %v405, %v1860
      %v2074 = vmul.f32 %v405, %v1864
      %2077 = vrot.lane.b32.xlu0 %v2073, 120
      %v2078 = vpop.permute.xlu0 %2077
      %2079 = vrot.lane.b32.xlu0 %v2074, 120
      %v2080 = vpop.permute.xlu0 %2079
      %v2081 = vsel %vm333, %v2078, %v2080
      %v2084 = vadd.f32 %v2059, %v2081
      %v2085 = vadd.f32 %v2060, %v2080
      %v2086 = vmul.f32 %v405, %v2064
      %v2087 = vmul.f32 %v405, %v2068
      %2090 = vrot.lane.b32.xlu0 %v2086, 120
      %v2091 = vpop.permute.xlu0 %2090
      %2092 = vrot.lane.b32.xlu0 %v2087, 120
      %v2093 = vpop.permute.xlu0 %2092
      %v2094 = vsel %vm333, %v2091, %v2093
      %v2097 = vadd.f32 %v2071, %v2094
      %v2098 = vadd.f32 %v2072, %v2093
      %v2099 = vmul.f32 %v435, %v1860
      %v2100 = vmul.f32 %v435, %v1864
      %2103 = vrot.lane.b32.xlu0 %v2099, 112
      %v2104 = vpop.permute.xlu0 %2103
      %2105 = vrot.lane.b32.xlu0 %v2100, 112
      %v2106 = vpop.permute.xlu0 %2105
      %v2107 = vsel %vm364, %v2104, %v2106
      %v2110 = vadd.f32 %v2084, %v2107
      %v2111 = vadd.f32 %v2085, %v2106
      %v2112 = vmul.f32 %v435, %v2064
      %v2113 = vmul.f32 %v435, %v2068
      %2116 = vrot.lane.b32.xlu0 %v2112, 112
      %v2117 = vpop.permute.xlu0 %2116
      %2118 = vrot.lane.b32.xlu0 %v2113, 112
      %v2119 = vpop.permute.xlu0 %2118
      %v2120 = vsel %vm364, %v2117, %v2119
      %v2123 = vadd.f32 %v2097, %v2120
      %v2124 = vadd.f32 %v2098, %v2119
      %v2125 = vmul.f32 %v465, %v2064
      %v2126 = vmul.f32 %v465, %v2068
      %v2127 = vadd.f32 %v2110, %v2125
      %v2128 = vadd.f32 %v2111, %v2126
      %v2129 = vlaneseq
      %v2130 = vshrl.u32 %v2129, 7
      %v2131 = vsub.s32 7, %v2130
      %v2132 = vrot.slane %v284, %v2131
      %v2133 = vlaneseq
      %v2134 = vshrl.u32 %v2133, 7
      %v2135 = vsub.s32 7, %v2134
      %v2136 = vrot.slane %v285, %v2135
      %v2137 = vmul.f32 %v465, %v2132
      %v2138 = vmul.f32 %v465, %v2136
      %v2139 = vadd.f32 %v2123, %v2137
      %v2140 = vadd.f32 %v2124, %v2138
      %v2141 = vmul.f32 %v485, %v2064
      %v2142 = vmul.f32 %v485, %v2068
      %2145 = vrot.lane.b32.xlu0 %v2141, 120
      %v2146 = vpop.permute.xlu0 %2145
      %2147 = vrot.lane.b32.xlu0 %v2142, 120
      %v2148 = vpop.permute.xlu0 %2147
      %v2149 = vsel %vm333, %v2146, %v2148
      %v2152 = vadd.f32 %v2127, %v2149
      %v2153 = vadd.f32 %v2128, %v2148
      %v2154 = vmul.f32 %v485, %v2132
      %v2155 = vmul.f32 %v485, %v2136
      %2158 = vrot.lane.b32.xlu0 %v2154, 120
      %v2159 = vpop.permute.xlu0 %2158
      %2160 = vrot.lane.b32.xlu0 %v2155, 120
      %v2161 = vpop.permute.xlu0 %2160
      %v2162 = vsel %vm333, %v2159, %v2161
      %v2165 = vadd.f32 %v2139, %v2162
      %v2166 = vadd.f32 %v2140, %v2161
      %v2167 = vmul.f32 %v515, %v2064
      %v2168 = vmul.f32 %v515, %v2068
      %2171 = vrot.lane.b32.xlu0 %v2167, 112
      %v2172 = vpop.permute.xlu0 %2171
      %2173 = vrot.lane.b32.xlu0 %v2168, 112
      %v2174 = vpop.permute.xlu0 %2173
      %v2175 = vsel %vm364, %v2172, %v2174
      %v2178 = vadd.f32 %v2152, %v2175
      %v2179 = vadd.f32 %v2153, %v2174
      %v2180 = vmul.f32 %v515, %v2132
      %v2181 = vmul.f32 %v515, %v2136
      %2184 = vrot.lane.b32.xlu0 %v2180, 112
      %v2185 = vpop.permute.xlu0 %2184
      %2186 = vrot.lane.b32.xlu0 %v2181, 112
      %v2187 = vpop.permute.xlu0 %2186
      %v2188 = vsel %vm364, %v2185, %v2187
      %v2191 = vadd.f32 %v2165, %v2188
      %v2192 = vadd.f32 %v2166, %v2187
      %v2193 = vmax.f32 %v2178, %v2191
      %v2194 = vmax.f32 %v2179, %v2192
      %2197 = vrot.lane.b32.xlu0 %v2193, 120
      %v2198 = vpop.permute.xlu0 %2197
      %2199 = vrot.lane.b32.xlu0 %v2194, 120
      %v2200 = vpop.permute.xlu0 %2199
      %v2201 = vsel %vm333, %v2198, %v2200
      %v2204 = vmax.f32 %v2193, %v2201
      %v2205 = vmax.f32 %v2194, %v2200
      %2207 = vrot.lane.b32.xlu0 %v2204, 120
      %v2208 = vpop.permute.xlu0 %2207
      %2210 = vrot.lane.b32.xlu0 %v2204, 112
      %v2211 = vpop.permute.xlu0 %2210
      %2213 = vrot.lane.b32.xlu0 %v2204, 104
      %v2214 = vpop.permute.xlu0 %2213
      %2216 = vrot.lane.b32.xlu0 %v2204, 96
      %v2217 = vpop.permute.xlu0 %2216
      %2219 = vrot.lane.b32.xlu0 %v2204, 88
      %v2220 = vpop.permute.xlu0 %2219
      %2222 = vrot.lane.b32.xlu0 %v2204, 80
      %v2223 = vpop.permute.xlu0 %2222
      %2225 = vrot.lane.b32.xlu0 %v2204, 72
      %v2226 = vpop.permute.xlu0 %2225
      %2229 = vrot.lane.b32.xlu0 %v2205, 64
      %v2230 = vpop.permute.xlu0 %2229
      %2232 = vrot.lane.b32.xlu0 %v2205, 56
      %v2233 = vpop.permute.xlu0 %2232
      %2235 = vrot.lane.b32.xlu0 %v2205, 48
      %v2236 = vpop.permute.xlu0 %2235
      %2238 = vrot.lane.b32.xlu0 %v2205, 40
      %v2239 = vpop.permute.xlu0 %2238
      %2241 = vrot.lane.b32.xlu0 %v2205, 32
      %v2242 = vpop.permute.xlu0 %2241
      %2244 = vrot.lane.b32.xlu0 %v2205, 24
      %v2245 = vpop.permute.xlu0 %2244
      %v2247 = vsel %vm597, %v2204, %v2208
      %v2248 = vsel %vm599, %v2247, %v2211
      %v2249 = vsel %vm601, %v2248, %v2214
      %v2250 = vsel %vm603, %v2249, %v2217
      %v2251 = vsel %vm605, %v2250, %v2220
      %v2252 = vsel %vm607, %v2251, %v2223
      %v2253 = vsel %vm609, %v2252, %v2226
      %v2254 = vsel %vm611, %v2253, %v2230
      %v2255 = vsel %vm613, %v2254, %v2233
      %v2256 = vsel %vm615, %v2255, %v2236
      %v2257 = vsel %vm617, %v2256, %v2239
      %v2258 = vsel %vm619, %v2257, %v2242
      %v2259 = vsel %vm621, %v2258, %v2245
      %v2260 = vadd.f32 %v2259, %v626
      %v2261 = vmax.f32 %v2260, 0.0
      %2263 = vrot.lane.b32.xlu0 %v2261, 8
      %v2264 = vpop.permute.xlu0 %2263
      %v2266 = vsel %vm597, 0.0, %v2264
      %v2267 = vsel %vm333, %v2266, 0.0
      %2268 = vst [vmem:[#allocation2 + $0x38] sm:$0xff] %v2267
      %v2269 = vmul.f32 %v295, %v2064
      %v2270 = vmul.f32 %v295, %v2068
      %v2271 = vadd.f32 %v2269, 0.0
      %v2272 = vadd.f32 %v2270, 0.0
      %v2273 = vmul.f32 %v295, %v2132
      %v2274 = vmul.f32 %v295, %v2136
      %v2275 = vadd.f32 %v2273, 0.0
      %v2276 = vadd.f32 %v2274, 0.0
      %v2277 = vmul.f32 %v323, %v2064
      %v2278 = vmul.f32 %v323, %v2068
      %2281 = vrot.lane.b32.xlu0 %v2277, 120
      %v2282 = vpop.permute.xlu0 %2281
      %2283 = vrot.lane.b32.xlu0 %v2278, 120
      %v2284 = vpop.permute.xlu0 %2283
      %v2285 = vsel %vm333, %v2282, %v2284
      %v2288 = vadd.f32 %v2271, %v2285
      %v2289 = vadd.f32 %v2272, %v2284
      %v2290 = vmul.f32 %v323, %v2132
      %v2291 = vmul.f32 %v323, %v2136
      %2294 = vrot.lane.b32.xlu0 %v2290, 120
      %v2295 = vpop.permute.xlu0 %2294
      %2296 = vrot.lane.b32.xlu0 %v2291, 120
      %v2297 = vpop.permute.xlu0 %2296
      %v2298 = vsel %vm333, %v2295, %v2297
      %v2301 = vadd.f32 %v2275, %v2298
      %v2302 = vadd.f32 %v2276, %v2297
      %v2303 = vmul.f32 %v354, %v2064
      %v2304 = vmul.f32 %v354, %v2068
      %2307 = vrot.lane.b32.xlu0 %v2303, 112
      %v2308 = vpop.permute.xlu0 %2307
      %2309 = vrot.lane.b32.xlu0 %v2304, 112
      %v2310 = vpop.permute.xlu0 %2309
      %v2311 = vsel %vm364, %v2308, %v2310
      %v2314 = vadd.f32 %v2288, %v2311
      %v2315 = vadd.f32 %v2289, %v2310
      %v2316 = vmul.f32 %v354, %v2132
      %v2317 = vmul.f32 %v354, %v2136
      %2320 = vrot.lane.b32.xlu0 %v2316, 112
      %v2321 = vpop.permute.xlu0 %2320
      %2322 = vrot.lane.b32.xlu0 %v2317, 112
      %v2323 = vpop.permute.xlu0 %2322
      %v2324 = vsel %vm364, %v2321, %v2323
      %v2327 = vadd.f32 %v2301, %v2324
      %v2328 = vadd.f32 %v2302, %v2323
      %v2329 = vmul.f32 %v385, %v2132
      %v2330 = vmul.f32 %v385, %v2136
      %v2331 = vadd.f32 %v2314, %v2329
      %v2332 = vadd.f32 %v2315, %v2330
      %v2333 = vlaneseq
      %v2334 = vshrl.u32 %v2333, 7
      %v2335 = vsub.s32 0, %v2334
      %v2336 = vrot.slane %v286, %v2335
      %v2337 = vlaneseq
      %v2338 = vshrl.u32 %v2337, 7
      %v2339 = vsub.s32 0, %v2338
      %v2340 = vrot.slane %v287, %v2339
      %v2341 = vmul.f32 %v385, %v2336
      %v2342 = vmul.f32 %v385, %v2340
      %v2343 = vadd.f32 %v2327, %v2341
      %v2344 = vadd.f32 %v2328, %v2342
      %v2345 = vmul.f32 %v405, %v2132
      %v2346 = vmul.f32 %v405, %v2136
      %2349 = vrot.lane.b32.xlu0 %v2345, 120
      %v2350 = vpop.permute.xlu0 %2349
      %2351 = vrot.lane.b32.xlu0 %v2346, 120
      %v2352 = vpop.permute.xlu0 %2351
      %v2353 = vsel %vm333, %v2350, %v2352
      %v2356 = vadd.f32 %v2331, %v2353
      %v2357 = vadd.f32 %v2332, %v2352
      %v2358 = vmul.f32 %v405, %v2336
      %v2359 = vmul.f32 %v405, %v2340
      %2362 = vrot.lane.b32.xlu0 %v2358, 120
      %v2363 = vpop.permute.xlu0 %2362
      %2364 = vrot.lane.b32.xlu0 %v2359, 120
      %v2365 = vpop.permute.xlu0 %2364
      %v2366 = vsel %vm333, %v2363, %v2365
      %v2369 = vadd.f32 %v2343, %v2366
      %v2370 = vadd.f32 %v2344, %v2365
      %v2371 = vmul.f32 %v435, %v2132
      %v2372 = vmul.f32 %v435, %v2136
      %2375 = vrot.lane.b32.xlu0 %v2371, 112
      %v2376 = vpop.permute.xlu0 %2375
      %2377 = vrot.lane.b32.xlu0 %v2372, 112
      %v2378 = vpop.permute.xlu0 %2377
      %v2379 = vsel %vm364, %v2376, %v2378
      %v2382 = vadd.f32 %v2356, %v2379
      %v2383 = vadd.f32 %v2357, %v2378
      %v2384 = vmul.f32 %v435, %v2336
      %v2385 = vmul.f32 %v435, %v2340
      %2388 = vrot.lane.b32.xlu0 %v2384, 112
      %v2389 = vpop.permute.xlu0 %2388
      %2390 = vrot.lane.b32.xlu0 %v2385, 112
      %v2391 = vpop.permute.xlu0 %2390
      %v2392 = vsel %vm364, %v2389, %v2391
      %v2395 = vadd.f32 %v2369, %v2392
      %v2396 = vadd.f32 %v2370, %v2391
      %v2397 = vmul.f32 %v465, %v2336
      %v2398 = vmul.f32 %v465, %v2340
      %v2399 = vadd.f32 %v2382, %v2397
      %v2400 = vadd.f32 %v2383, %v2398
      %v2401 = vlaneseq
      %v2402 = vshrl.u32 %v2401, 7
      %v2403 = vsub.s32 1, %v2402
      %v2404 = vrot.slane %v286, %v2403
      %v2405 = vlaneseq
      %v2406 = vshrl.u32 %v2405, 7
      %v2407 = vsub.s32 1, %v2406
      %v2408 = vrot.slane %v287, %v2407
      %v2409 = vmul.f32 %v465, %v2404
      %v2410 = vmul.f32 %v465, %v2408
      %v2411 = vadd.f32 %v2395, %v2409
      %v2412 = vadd.f32 %v2396, %v2410
      %v2413 = vmul.f32 %v485, %v2336
      %v2414 = vmul.f32 %v485, %v2340
      %2417 = vrot.lane.b32.xlu0 %v2413, 120
      %v2418 = vpop.permute.xlu0 %2417
      %2419 = vrot.lane.b32.xlu0 %v2414, 120
      %v2420 = vpop.permute.xlu0 %2419
      %v2421 = vsel %vm333, %v2418, %v2420
      %v2424 = vadd.f32 %v2399, %v2421
      %v2425 = vadd.f32 %v2400, %v2420
      %v2426 = vmul.f32 %v485, %v2404
      %v2427 = vmul.f32 %v485, %v2408
      %2430 = vrot.lane.b32.xlu0 %v2426, 120
      %v2431 = vpop.permute.xlu0 %2430
      %2432 = vrot.lane.b32.xlu0 %v2427, 120
      %v2433 = vpop.permute.xlu0 %2432
      %v2434 = vsel %vm333, %v2431, %v2433
      %v2437 = vadd.f32 %v2411, %v2434
      %v2438 = vadd.f32 %v2412, %v2433
      %v2439 = vmul.f32 %v515, %v2336
      %v2440 = vmul.f32 %v515, %v2340
      %2443 = vrot.lane.b32.xlu0 %v2439, 112
      %v2444 = vpop.permute.xlu0 %2443
      %2445 = vrot.lane.b32.xlu0 %v2440, 112
      %v2446 = vpop.permute.xlu0 %2445
      %v2447 = vsel %vm364, %v2444, %v2446
      %v2450 = vadd.f32 %v2424, %v2447
      %v2451 = vadd.f32 %v2425, %v2446
      %v2452 = vmul.f32 %v515, %v2404
      %v2453 = vmul.f32 %v515, %v2408
      %2456 = vrot.lane.b32.xlu0 %v2452, 112
      %v2457 = vpop.permute.xlu0 %2456
      %2458 = vrot.lane.b32.xlu0 %v2453, 112
      %v2459 = vpop.permute.xlu0 %2458
      %v2460 = vsel %vm364, %v2457, %v2459
      %v2463 = vadd.f32 %v2437, %v2460
      %v2464 = vadd.f32 %v2438, %v2459
      %v2465 = vmax.f32 %v2450, %v2463
      %v2466 = vmax.f32 %v2451, %v2464
      %2469 = vrot.lane.b32.xlu0 %v2465, 120
      %v2470 = vpop.permute.xlu0 %2469
      %2471 = vrot.lane.b32.xlu0 %v2466, 120
      %v2472 = vpop.permute.xlu0 %2471
      %v2473 = vsel %vm333, %v2470, %v2472
      %v2476 = vmax.f32 %v2465, %v2473
      %v2477 = vmax.f32 %v2466, %v2472
      %2479 = vrot.lane.b32.xlu0 %v2476, 120
      %v2480 = vpop.permute.xlu0 %2479
      %2482 = vrot.lane.b32.xlu0 %v2476, 112
      %v2483 = vpop.permute.xlu0 %2482
      %2485 = vrot.lane.b32.xlu0 %v2476, 104
      %v2486 = vpop.permute.xlu0 %2485
      %2488 = vrot.lane.b32.xlu0 %v2476, 96
      %v2489 = vpop.permute.xlu0 %2488
      %2491 = vrot.lane.b32.xlu0 %v2476, 88
      %v2492 = vpop.permute.xlu0 %2491
      %2494 = vrot.lane.b32.xlu0 %v2476, 80
      %v2495 = vpop.permute.xlu0 %2494
      %2497 = vrot.lane.b32.xlu0 %v2476, 72
      %v2498 = vpop.permute.xlu0 %2497
      %2501 = vrot.lane.b32.xlu0 %v2477, 64
      %v2502 = vpop.permute.xlu0 %2501
      %2504 = vrot.lane.b32.xlu0 %v2477, 56
      %v2505 = vpop.permute.xlu0 %2504
      %2507 = vrot.lane.b32.xlu0 %v2477, 48
      %v2508 = vpop.permute.xlu0 %2507
      %2510 = vrot.lane.b32.xlu0 %v2477, 40
      %v2511 = vpop.permute.xlu0 %2510
      %2513 = vrot.lane.b32.xlu0 %v2477, 32
      %v2514 = vpop.permute.xlu0 %2513
      %2516 = vrot.lane.b32.xlu0 %v2477, 24
      %v2517 = vpop.permute.xlu0 %2516
      %v2519 = vsel %vm597, %v2476, %v2480
      %v2520 = vsel %vm599, %v2519, %v2483
      %v2521 = vsel %vm601, %v2520, %v2486
      %v2522 = vsel %vm603, %v2521, %v2489
      %v2523 = vsel %vm605, %v2522, %v2492
      %v2524 = vsel %vm607, %v2523, %v2495
      %v2525 = vsel %vm609, %v2524, %v2498
      %v2526 = vsel %vm611, %v2525, %v2502
      %v2527 = vsel %vm613, %v2526, %v2505
      %v2528 = vsel %vm615, %v2527, %v2508
      %v2529 = vsel %vm617, %v2528, %v2511
      %v2530 = vsel %vm619, %v2529, %v2514
      %v2531 = vsel %vm621, %v2530, %v2517
      %v2532 = vadd.f32 %v2531, %v626
      %v2533 = vmax.f32 %v2532, 0.0
      %2535 = vrot.lane.b32.xlu0 %v2533, 8
      %v2536 = vpop.permute.xlu0 %2535
      %v2538 = vsel %vm597, 0.0, %v2536
      %v2539 = vsel %vm333, %v2538, 0.0
      %2540 = vst [vmem:[#allocation2 + $0x40] sm:$0xff] %v2539
      %v2541 = vmul.f32 %v295, %v2336
      %v2542 = vmul.f32 %v295, %v2340
      %v2543 = vadd.f32 %v2541, 0.0
      %v2544 = vadd.f32 %v2542, 0.0
      %v2545 = vmul.f32 %v295, %v2404
      %v2546 = vmul.f32 %v295, %v2408
      %v2547 = vadd.f32 %v2545, 0.0
      %v2548 = vadd.f32 %v2546, 0.0
      %v2549 = vmul.f32 %v323, %v2336
      %v2550 = vmul.f32 %v323, %v2340
      %2553 = vrot.lane.b32.xlu0 %v2549, 120
      %v2554 = vpop.permute.xlu0 %2553
      %2555 = vrot.lane.b32.xlu0 %v2550, 120
      %v2556 = vpop.permute.xlu0 %2555
      %v2557 = vsel %vm333, %v2554, %v2556
      %v2560 = vadd.f32 %v2543, %v2557
      %v2561 = vadd.f32 %v2544, %v2556
      %v2562 = vmul.f32 %v323, %v2404
      %v2563 = vmul.f32 %v323, %v2408
      %2566 = vrot.lane.b32.xlu0 %v2562, 120
      %v2567 = vpop.permute.xlu0 %2566
      %2568 = vrot.lane.b32.xlu0 %v2563, 120
      %v2569 = vpop.permute.xlu0 %2568
      %v2570 = vsel %vm333, %v2567, %v2569
      %v2573 = vadd.f32 %v2547, %v2570
      %v2574 = vadd.f32 %v2548, %v2569
      %v2575 = vmul.f32 %v354, %v2336
      %v2576 = vmul.f32 %v354, %v2340
      %2579 = vrot.lane.b32.xlu0 %v2575, 112
      %v2580 = vpop.permute.xlu0 %2579
      %2581 = vrot.lane.b32.xlu0 %v2576, 112
      %v2582 = vpop.permute.xlu0 %2581
      %v2583 = vsel %vm364, %v2580, %v2582
      %v2586 = vadd.f32 %v2560, %v2583
      %v2587 = vadd.f32 %v2561, %v2582
      %v2588 = vmul.f32 %v354, %v2404
      %v2589 = vmul.f32 %v354, %v2408
      %2592 = vrot.lane.b32.xlu0 %v2588, 112
      %v2593 = vpop.permute.xlu0 %2592
      %2594 = vrot.lane.b32.xlu0 %v2589, 112
      %v2595 = vpop.permute.xlu0 %2594
      %v2596 = vsel %vm364, %v2593, %v2595
      %v2599 = vadd.f32 %v2573, %v2596
      %v2600 = vadd.f32 %v2574, %v2595
      %v2601 = vmul.f32 %v385, %v2404
      %v2602 = vmul.f32 %v385, %v2408
      %v2603 = vadd.f32 %v2586, %v2601
      %v2604 = vadd.f32 %v2587, %v2602
      %v2605 = vlaneseq
      %v2606 = vshrl.u32 %v2605, 7
      %v2607 = vsub.s32 2, %v2606
      %v2608 = vrot.slane %v286, %v2607
      %v2609 = vlaneseq
      %v2610 = vshrl.u32 %v2609, 7
      %v2611 = vsub.s32 2, %v2610
      %v2612 = vrot.slane %v287, %v2611
      %v2613 = vmul.f32 %v385, %v2608
      %v2614 = vmul.f32 %v385, %v2612
      %v2615 = vadd.f32 %v2599, %v2613
      %v2616 = vadd.f32 %v2600, %v2614
      %v2617 = vmul.f32 %v405, %v2404
      %v2618 = vmul.f32 %v405, %v2408
      %2621 = vrot.lane.b32.xlu0 %v2617, 120
      %v2622 = vpop.permute.xlu0 %2621
      %2623 = vrot.lane.b32.xlu0 %v2618, 120
      %v2624 = vpop.permute.xlu0 %2623
      %v2625 = vsel %vm333, %v2622, %v2624
      %v2628 = vadd.f32 %v2603, %v2625
      %v2629 = vadd.f32 %v2604, %v2624
      %v2630 = vmul.f32 %v405, %v2608
      %v2631 = vmul.f32 %v405, %v2612
      %2634 = vrot.lane.b32.xlu0 %v2630, 120
      %v2635 = vpop.permute.xlu0 %2634
      %2636 = vrot.lane.b32.xlu0 %v2631, 120
      %v2637 = vpop.permute.xlu0 %2636
      %v2638 = vsel %vm333, %v2635, %v2637
      %v2641 = vadd.f32 %v2615, %v2638
      %v2642 = vadd.f32 %v2616, %v2637
      %v2643 = vmul.f32 %v435, %v2404
      %v2644 = vmul.f32 %v435, %v2408
      %2647 = vrot.lane.b32.xlu0 %v2643, 112
      %v2648 = vpop.permute.xlu0 %2647
      %2649 = vrot.lane.b32.xlu0 %v2644, 112
      %v2650 = vpop.permute.xlu0 %2649
      %v2651 = vsel %vm364, %v2648, %v2650
      %v2654 = vadd.f32 %v2628, %v2651
      %v2655 = vadd.f32 %v2629, %v2650
      %v2656 = vmul.f32 %v435, %v2608
      %v2657 = vmul.f32 %v435, %v2612
      %2660 = vrot.lane.b32.xlu0 %v2656, 112
      %v2661 = vpop.permute.xlu0 %2660
      %2662 = vrot.lane.b32.xlu0 %v2657, 112
      %v2663 = vpop.permute.xlu0 %2662
      %v2664 = vsel %vm364, %v2661, %v2663
      %v2667 = vadd.f32 %v2641, %v2664
      %v2668 = vadd.f32 %v2642, %v2663
      %v2669 = vmul.f32 %v465, %v2608
      %v2670 = vmul.f32 %v465, %v2612
      %v2671 = vadd.f32 %v2654, %v2669
      %v2672 = vadd.f32 %v2655, %v2670
      %v2673 = vlaneseq
      %v2674 = vshrl.u32 %v2673, 7
      %v2675 = vsub.s32 3, %v2674
      %v2676 = vrot.slane %v286, %v2675
      %v2677 = vlaneseq
      %v2678 = vshrl.u32 %v2677, 7
      %v2679 = vsub.s32 3, %v2678
      %v2680 = vrot.slane %v287, %v2679
      %v2681 = vmul.f32 %v465, %v2676
      %v2682 = vmul.f32 %v465, %v2680
      %v2683 = vadd.f32 %v2667, %v2681
      %v2684 = vadd.f32 %v2668, %v2682
      %v2685 = vmul.f32 %v485, %v2608
      %v2686 = vmul.f32 %v485, %v2612
      %2689 = vrot.lane.b32.xlu0 %v2685, 120
      %v2690 = vpop.permute.xlu0 %2689
      %2691 = vrot.lane.b32.xlu0 %v2686, 120
      %v2692 = vpop.permute.xlu0 %2691
      %v2693 = vsel %vm333, %v2690, %v2692
      %v2696 = vadd.f32 %v2671, %v2693
      %v2697 = vadd.f32 %v2672, %v2692
      %v2698 = vmul.f32 %v485, %v2676
      %v2699 = vmul.f32 %v485, %v2680
      %2702 = vrot.lane.b32.xlu0 %v2698, 120
      %v2703 = vpop.permute.xlu0 %2702
      %2704 = vrot.lane.b32.xlu0 %v2699, 120
      %v2705 = vpop.permute.xlu0 %2704
      %v2706 = vsel %vm333, %v2703, %v2705
      %v2709 = vadd.f32 %v2683, %v2706
      %v2710 = vadd.f32 %v2684, %v2705
      %v2711 = vmul.f32 %v515, %v2608
      %v2712 = vmul.f32 %v515, %v2612
      %2715 = vrot.lane.b32.xlu0 %v2711, 112
      %v2716 = vpop.permute.xlu0 %2715
      %2717 = vrot.lane.b32.xlu0 %v2712, 112
      %v2718 = vpop.permute.xlu0 %2717
      %v2719 = vsel %vm364, %v2716, %v2718
      %v2722 = vadd.f32 %v2696, %v2719
      %v2723 = vadd.f32 %v2697, %v2718
      %v2724 = vmul.f32 %v515, %v2676
      %v2725 = vmul.f32 %v515, %v2680
      %2728 = vrot.lane.b32.xlu0 %v2724, 112
      %v2729 = vpop.permute.xlu0 %2728
      %2730 = vrot.lane.b32.xlu0 %v2725, 112
      %v2731 = vpop.permute.xlu0 %2730
      %v2732 = vsel %vm364, %v2729, %v2731
      %v2735 = vadd.f32 %v2709, %v2732
      %v2736 = vadd.f32 %v2710, %v2731
      %v2737 = vmax.f32 %v2722, %v2735
      %v2738 = vmax.f32 %v2723, %v2736
      %2741 = vrot.lane.b32.xlu0 %v2737, 120
      %v2742 = vpop.permute.xlu0 %2741
      %2743 = vrot.lane.b32.xlu0 %v2738, 120
      %v2744 = vpop.permute.xlu0 %2743
      %v2745 = vsel %vm333, %v2742, %v2744
      %v2748 = vmax.f32 %v2737, %v2745
      %v2749 = vmax.f32 %v2738, %v2744
      %2751 = vrot.lane.b32.xlu0 %v2748, 120
      %v2752 = vpop.permute.xlu0 %2751
      %2754 = vrot.lane.b32.xlu0 %v2748, 112
      %v2755 = vpop.permute.xlu0 %2754
      %2757 = vrot.lane.b32.xlu0 %v2748, 104
      %v2758 = vpop.permute.xlu0 %2757
      %2760 = vrot.lane.b32.xlu0 %v2748, 96
      %v2761 = vpop.permute.xlu0 %2760
      %2763 = vrot.lane.b32.xlu0 %v2748, 88
      %v2764 = vpop.permute.xlu0 %2763
      %2766 = vrot.lane.b32.xlu0 %v2748, 80
      %v2767 = vpop.permute.xlu0 %2766
      %2769 = vrot.lane.b32.xlu0 %v2748, 72
      %v2770 = vpop.permute.xlu0 %2769
      %2773 = vrot.lane.b32.xlu0 %v2749, 64
      %v2774 = vpop.permute.xlu0 %2773
      %2776 = vrot.lane.b32.xlu0 %v2749, 56
      %v2777 = vpop.permute.xlu0 %2776
      %2779 = vrot.lane.b32.xlu0 %v2749, 48
      %v2780 = vpop.permute.xlu0 %2779
      %2782 = vrot.lane.b32.xlu0 %v2749, 40
      %v2783 = vpop.permute.xlu0 %2782
      %2785 = vrot.lane.b32.xlu0 %v2749, 32
      %v2786 = vpop.permute.xlu0 %2785
      %2788 = vrot.lane.b32.xlu0 %v2749, 24
      %v2789 = vpop.permute.xlu0 %2788
      %v2791 = vsel %vm597, %v2748, %v2752
      %v2792 = vsel %vm599, %v2791, %v2755
      %v2793 = vsel %vm601, %v2792, %v2758
      %v2794 = vsel %vm603, %v2793, %v2761
      %v2795 = vsel %vm605, %v2794, %v2764
      %v2796 = vsel %vm607, %v2795, %v2767
      %v2797 = vsel %vm609, %v2796, %v2770
      %v2798 = vsel %vm611, %v2797, %v2774
      %v2799 = vsel %vm613, %v2798, %v2777
      %v2800 = vsel %vm615, %v2799, %v2780
      %v2801 = vsel %vm617, %v2800, %v2783
      %v2802 = vsel %vm619, %v2801, %v2786
      %v2803 = vsel %vm621, %v2802, %v2789
      %v2804 = vadd.f32 %v2803, %v626
      %v2805 = vmax.f32 %v2804, 0.0
      %2807 = vrot.lane.b32.xlu0 %v2805, 8
      %v2808 = vpop.permute.xlu0 %2807
      %v2810 = vsel %vm597, 0.0, %v2808
      %v2811 = vsel %vm333, %v2810, 0.0
      %2812 = vst [vmem:[#allocation2 + $0x48] sm:$0xff] %v2811
      %v2813 = vmul.f32 %v295, %v2608
      %v2814 = vmul.f32 %v295, %v2612
      %v2815 = vadd.f32 %v2813, 0.0
      %v2816 = vadd.f32 %v2814, 0.0
      %v2817 = vmul.f32 %v295, %v2676
      %v2818 = vmul.f32 %v295, %v2680
      %v2819 = vadd.f32 %v2817, 0.0
      %v2820 = vadd.f32 %v2818, 0.0
      %v2821 = vmul.f32 %v323, %v2608
      %v2822 = vmul.f32 %v323, %v2612
      %2825 = vrot.lane.b32.xlu0 %v2821, 120
      %v2826 = vpop.permute.xlu0 %2825
      %2827 = vrot.lane.b32.xlu0 %v2822, 120
      %v2828 = vpop.permute.xlu0 %2827
      %v2829 = vsel %vm333, %v2826, %v2828
      %v2832 = vadd.f32 %v2815, %v2829
      %v2833 = vadd.f32 %v2816, %v2828
      %v2834 = vmul.f32 %v323, %v2676
      %v2835 = vmul.f32 %v323, %v2680
      %2838 = vrot.lane.b32.xlu0 %v2834, 120
      %v2839 = vpop.permute.xlu0 %2838
      %2840 = vrot.lane.b32.xlu0 %v2835, 120
      %v2841 = vpop.permute.xlu0 %2840
      %v2842 = vsel %vm333, %v2839, %v2841
      %v2845 = vadd.f32 %v2819, %v2842
      %v2846 = vadd.f32 %v2820, %v2841
      %v2847 = vmul.f32 %v354, %v2608
      %v2848 = vmul.f32 %v354, %v2612
      %2851 = vrot.lane.b32.xlu0 %v2847, 112
      %v2852 = vpop.permute.xlu0 %2851
      %2853 = vrot.lane.b32.xlu0 %v2848, 112
      %v2854 = vpop.permute.xlu0 %2853
      %v2855 = vsel %vm364, %v2852, %v2854
      %v2858 = vadd.f32 %v2832, %v2855
      %v2859 = vadd.f32 %v2833, %v2854
      %v2860 = vmul.f32 %v354, %v2676
      %v2861 = vmul.f32 %v354, %v2680
      %2864 = vrot.lane.b32.xlu0 %v2860, 112
      %v2865 = vpop.permute.xlu0 %2864
      %2866 = vrot.lane.b32.xlu0 %v2861, 112
      %v2867 = vpop.permute.xlu0 %2866
      %v2868 = vsel %vm364, %v2865, %v2867
      %v2871 = vadd.f32 %v2845, %v2868
      %v2872 = vadd.f32 %v2846, %v2867
      %v2873 = vmul.f32 %v385, %v2676
      %v2874 = vmul.f32 %v385, %v2680
      %v2875 = vadd.f32 %v2858, %v2873
      %v2876 = vadd.f32 %v2859, %v2874
      %v2877 = vlaneseq
      %v2878 = vshrl.u32 %v2877, 7
      %v2879 = vsub.s32 4, %v2878
      %v2880 = vrot.slane %v286, %v2879
      %v2881 = vlaneseq
      %v2882 = vshrl.u32 %v2881, 7
      %v2883 = vsub.s32 4, %v2882
      %v2884 = vrot.slane %v287, %v2883
      %v2885 = vmul.f32 %v385, %v2880
      %v2886 = vmul.f32 %v385, %v2884
      %v2887 = vadd.f32 %v2871, %v2885
      %v2888 = vadd.f32 %v2872, %v2886
      %v2889 = vmul.f32 %v405, %v2676
      %v2890 = vmul.f32 %v405, %v2680
      %2893 = vrot.lane.b32.xlu0 %v2889, 120
      %v2894 = vpop.permute.xlu0 %2893
      %2895 = vrot.lane.b32.xlu0 %v2890, 120
      %v2896 = vpop.permute.xlu0 %2895
      %v2897 = vsel %vm333, %v2894, %v2896
      %v2900 = vadd.f32 %v2875, %v2897
      %v2901 = vadd.f32 %v2876, %v2896
      %v2902 = vmul.f32 %v405, %v2880
      %v2903 = vmul.f32 %v405, %v2884
      %2906 = vrot.lane.b32.xlu0 %v2902, 120
      %v2907 = vpop.permute.xlu0 %2906
      %2908 = vrot.lane.b32.xlu0 %v2903, 120
      %v2909 = vpop.permute.xlu0 %2908
      %v2910 = vsel %vm333, %v2907, %v2909
      %v2913 = vadd.f32 %v2887, %v2910
      %v2914 = vadd.f32 %v2888, %v2909
      %v2915 = vmul.f32 %v435, %v2676
      %v2916 = vmul.f32 %v435, %v2680
      %2919 = vrot.lane.b32.xlu0 %v2915, 112
      %v2920 = vpop.permute.xlu0 %2919
      %2921 = vrot.lane.b32.xlu0 %v2916, 112
      %v2922 = vpop.permute.xlu0 %2921
      %v2923 = vsel %vm364, %v2920, %v2922
      %v2926 = vadd.f32 %v2900, %v2923
      %v2927 = vadd.f32 %v2901, %v2922
      %v2928 = vmul.f32 %v435, %v2880
      %v2929 = vmul.f32 %v435, %v2884
      %2932 = vrot.lane.b32.xlu0 %v2928, 112
      %v2933 = vpop.permute.xlu0 %2932
      %2934 = vrot.lane.b32.xlu0 %v2929, 112
      %v2935 = vpop.permute.xlu0 %2934
      %v2936 = vsel %vm364, %v2933, %v2935
      %v2939 = vadd.f32 %v2913, %v2936
      %v2940 = vadd.f32 %v2914, %v2935
      %v2941 = vmul.f32 %v465, %v2880
      %v2942 = vmul.f32 %v465, %v2884
      %v2943 = vadd.f32 %v2926, %v2941
      %v2944 = vadd.f32 %v2927, %v2942
      %v2945 = vlaneseq
      %v2946 = vshrl.u32 %v2945, 7
      %v2947 = vsub.s32 5, %v2946
      %v2948 = vrot.slane %v286, %v2947
      %v2949 = vlaneseq
      %v2950 = vshrl.u32 %v2949, 7
      %v2951 = vsub.s32 5, %v2950
      %v2952 = vrot.slane %v287, %v2951
      %v2953 = vmul.f32 %v465, %v2948
      %v2954 = vmul.f32 %v465, %v2952
      %v2955 = vadd.f32 %v2939, %v2953
      %v2956 = vadd.f32 %v2940, %v2954
      %v2957 = vmul.f32 %v485, %v2880
      %v2958 = vmul.f32 %v485, %v2884
      %2961 = vrot.lane.b32.xlu0 %v2957, 120
      %v2962 = vpop.permute.xlu0 %2961
      %2963 = vrot.lane.b32.xlu0 %v2958, 120
      %v2964 = vpop.permute.xlu0 %2963
      %v2965 = vsel %vm333, %v2962, %v2964
      %v2968 = vadd.f32 %v2943, %v2965
      %v2969 = vadd.f32 %v2944, %v2964
      %v2970 = vmul.f32 %v485, %v2948
      %v2971 = vmul.f32 %v485, %v2952
      %2974 = vrot.lane.b32.xlu0 %v2970, 120
      %v2975 = vpop.permute.xlu0 %2974
      %2976 = vrot.lane.b32.xlu0 %v2971, 120
      %v2977 = vpop.permute.xlu0 %2976
      %v2978 = vsel %vm333, %v2975, %v2977
      %v2981 = vadd.f32 %v2955, %v2978
      %v2982 = vadd.f32 %v2956, %v2977
      %v2983 = vmul.f32 %v515, %v2880
      %v2984 = vmul.f32 %v515, %v2884
      %2987 = vrot.lane.b32.xlu0 %v2983, 112
      %v2988 = vpop.permute.xlu0 %2987
      %2989 = vrot.lane.b32.xlu0 %v2984, 112
      %v2990 = vpop.permute.xlu0 %2989
      %v2991 = vsel %vm364, %v2988, %v2990
      %v2994 = vadd.f32 %v2968, %v2991
      %v2995 = vadd.f32 %v2969, %v2990
      %v2996 = vmul.f32 %v515, %v2948
      %v2997 = vmul.f32 %v515, %v2952
      %3000 = vrot.lane.b32.xlu0 %v2996, 112
      %v3001 = vpop.permute.xlu0 %3000
      %3002 = vrot.lane.b32.xlu0 %v2997, 112
      %v3003 = vpop.permute.xlu0 %3002
      %v3004 = vsel %vm364, %v3001, %v3003
      %v3007 = vadd.f32 %v2981, %v3004
      %v3008 = vadd.f32 %v2982, %v3003
      %v3009 = vmax.f32 %v2994, %v3007
      %v3010 = vmax.f32 %v2995, %v3008
      %3013 = vrot.lane.b32.xlu0 %v3009, 120
      %v3014 = vpop.permute.xlu0 %3013
      %3015 = vrot.lane.b32.xlu0 %v3010, 120
      %v3016 = vpop.permute.xlu0 %3015
      %v3017 = vsel %vm333, %v3014, %v3016
      %v3020 = vmax.f32 %v3009, %v3017
      %v3021 = vmax.f32 %v3010, %v3016
      %3023 = vrot.lane.b32.xlu0 %v3020, 120
      %v3024 = vpop.permute.xlu0 %3023
      %3026 = vrot.lane.b32.xlu0 %v3020, 112
      %v3027 = vpop.permute.xlu0 %3026
      %3029 = vrot.lane.b32.xlu0 %v3020, 104
      %v3030 = vpop.permute.xlu0 %3029
      %3032 = vrot.lane.b32.xlu0 %v3020, 96
      %v3033 = vpop.permute.xlu0 %3032
      %3035 = vrot.lane.b32.xlu0 %v3020, 88
      %v3036 = vpop.permute.xlu0 %3035
      %3038 = vrot.lane.b32.xlu0 %v3020, 80
      %v3039 = vpop.permute.xlu0 %3038
      %3041 = vrot.lane.b32.xlu0 %v3020, 72
      %v3042 = vpop.permute.xlu0 %3041
      %3045 = vrot.lane.b32.xlu0 %v3021, 64
      %v3046 = vpop.permute.xlu0 %3045
      %3048 = vrot.lane.b32.xlu0 %v3021, 56
      %v3049 = vpop.permute.xlu0 %3048
      %3051 = vrot.lane.b32.xlu0 %v3021, 48
      %v3052 = vpop.permute.xlu0 %3051
      %3054 = vrot.lane.b32.xlu0 %v3021, 40
      %v3055 = vpop.permute.xlu0 %3054
      %3057 = vrot.lane.b32.xlu0 %v3021, 32
      %v3058 = vpop.permute.xlu0 %3057
      %3060 = vrot.lane.b32.xlu0 %v3021, 24
      %v3061 = vpop.permute.xlu0 %3060
      %v3063 = vsel %vm597, %v3020, %v3024
      %v3064 = vsel %vm599, %v3063, %v3027
      %v3065 = vsel %vm601, %v3064, %v3030
      %v3066 = vsel %vm603, %v3065, %v3033
      %v3067 = vsel %vm605, %v3066, %v3036
      %v3068 = vsel %vm607, %v3067, %v3039
      %v3069 = vsel %vm609, %v3068, %v3042
      %v3070 = vsel %vm611, %v3069, %v3046
      %v3071 = vsel %vm613, %v3070, %v3049
      %v3072 = vsel %vm615, %v3071, %v3052
      %v3073 = vsel %vm617, %v3072, %v3055
      %v3074 = vsel %vm619, %v3073, %v3058
      %v3075 = vsel %vm621, %v3074, %v3061
      %v3076 = vadd.f32 %v3075, %v626
      %v3077 = vmax.f32 %v3076, 0.0
      %3079 = vrot.lane.b32.xlu0 %v3077, 8
      %v3080 = vpop.permute.xlu0 %3079
      %v3082 = vsel %vm597, 0.0, %v3080
      %v3083 = vsel %vm333, %v3082, 0.0
      %3084 = vst [vmem:[#allocation2 + $0x50] sm:$0xff] %v3083
      %v3085 = vmul.f32 %v295, %v2880
      %v3086 = vmul.f32 %v295, %v2884
      %v3087 = vadd.f32 %v3085, 0.0
      %v3088 = vadd.f32 %v3086, 0.0
      %v3089 = vmul.f32 %v295, %v2948
      %v3090 = vmul.f32 %v295, %v2952
      %v3091 = vadd.f32 %v3089, 0.0
      %v3092 = vadd.f32 %v3090, 0.0
      %v3093 = vmul.f32 %v323, %v2880
      %v3094 = vmul.f32 %v323, %v2884
      %3097 = vrot.lane.b32.xlu0 %v3093, 120
      %v3098 = vpop.permute.xlu0 %3097
      %3099 = vrot.lane.b32.xlu0 %v3094, 120
      %v3100 = vpop.permute.xlu0 %3099
      %v3101 = vsel %vm333, %v3098, %v3100
      %v3104 = vadd.f32 %v3087, %v3101
      %v3105 = vadd.f32 %v3088, %v3100
      %v3106 = vmul.f32 %v323, %v2948
      %v3107 = vmul.f32 %v323, %v2952
      %3110 = vrot.lane.b32.xlu0 %v3106, 120
      %v3111 = vpop.permute.xlu0 %3110
      %3112 = vrot.lane.b32.xlu0 %v3107, 120
      %v3113 = vpop.permute.xlu0 %3112
      %v3114 = vsel %vm333, %v3111, %v3113
      %v3117 = vadd.f32 %v3091, %v3114
      %v3118 = vadd.f32 %v3092, %v3113
      %v3119 = vmul.f32 %v354, %v2880
      %v3120 = vmul.f32 %v354, %v2884
      %3123 = vrot.lane.b32.xlu0 %v3119, 112
      %v3124 = vpop.permute.xlu0 %3123
      %3125 = vrot.lane.b32.xlu0 %v3120, 112
      %v3126 = vpop.permute.xlu0 %3125
      %v3127 = vsel %vm364, %v3124, %v3126
      %v3130 = vadd.f32 %v3104, %v3127
      %v3131 = vadd.f32 %v3105, %v3126
      %v3132 = vmul.f32 %v354, %v2948
      %v3133 = vmul.f32 %v354, %v2952
      %3136 = vrot.lane.b32.xlu0 %v3132, 112
      %v3137 = vpop.permute.xlu0 %3136
      %3138 = vrot.lane.b32.xlu0 %v3133, 112
      %v3139 = vpop.permute.xlu0 %3138
      %v3140 = vsel %vm364, %v3137, %v3139
      %v3143 = vadd.f32 %v3117, %v3140
      %v3144 = vadd.f32 %v3118, %v3139
      %v3145 = vmul.f32 %v385, %v2948
      %v3146 = vmul.f32 %v385, %v2952
      %v3147 = vadd.f32 %v3130, %v3145
      %v3148 = vadd.f32 %v3131, %v3146
      %v3149 = vlaneseq
      %v3150 = vshrl.u32 %v3149, 7
      %v3151 = vsub.s32 6, %v3150
      %v3152 = vrot.slane %v286, %v3151
      %v3153 = vlaneseq
      %v3154 = vshrl.u32 %v3153, 7
      %v3155 = vsub.s32 6, %v3154
      %v3156 = vrot.slane %v287, %v3155
      %v3157 = vmul.f32 %v385, %v3152
      %v3158 = vmul.f32 %v385, %v3156
      %v3159 = vadd.f32 %v3143, %v3157
      %v3160 = vadd.f32 %v3144, %v3158
      %v3161 = vmul.f32 %v405, %v2948
      %v3162 = vmul.f32 %v405, %v2952
      %3165 = vrot.lane.b32.xlu0 %v3161, 120
      %v3166 = vpop.permute.xlu0 %3165
      %3167 = vrot.lane.b32.xlu0 %v3162, 120
      %v3168 = vpop.permute.xlu0 %3167
      %v3169 = vsel %vm333, %v3166, %v3168
      %v3172 = vadd.f32 %v3147, %v3169
      %v3173 = vadd.f32 %v3148, %v3168
      %v3174 = vmul.f32 %v405, %v3152
      %v3175 = vmul.f32 %v405, %v3156
      %3178 = vrot.lane.b32.xlu0 %v3174, 120
      %v3179 = vpop.permute.xlu0 %3178
      %3180 = vrot.lane.b32.xlu0 %v3175, 120
      %v3181 = vpop.permute.xlu0 %3180
      %v3182 = vsel %vm333, %v3179, %v3181
      %v3185 = vadd.f32 %v3159, %v3182
      %v3186 = vadd.f32 %v3160, %v3181
      %v3187 = vmul.f32 %v435, %v2948
      %v3188 = vmul.f32 %v435, %v2952
      %3191 = vrot.lane.b32.xlu0 %v3187, 112
      %v3192 = vpop.permute.xlu0 %3191
      %3193 = vrot.lane.b32.xlu0 %v3188, 112
      %v3194 = vpop.permute.xlu0 %3193
      %v3195 = vsel %vm364, %v3192, %v3194
      %v3198 = vadd.f32 %v3172, %v3195
      %v3199 = vadd.f32 %v3173, %v3194
      %v3200 = vmul.f32 %v435, %v3152
      %v3201 = vmul.f32 %v435, %v3156
      %3204 = vrot.lane.b32.xlu0 %v3200, 112
      %v3205 = vpop.permute.xlu0 %3204
      %3206 = vrot.lane.b32.xlu0 %v3201, 112
      %v3207 = vpop.permute.xlu0 %3206
      %v3208 = vsel %vm364, %v3205, %v3207
      %v3211 = vadd.f32 %v3185, %v3208
      %v3212 = vadd.f32 %v3186, %v3207
      %v3213 = vmul.f32 %v465, %v3152
      %v3214 = vmul.f32 %v465, %v3156
      %v3215 = vadd.f32 %v3198, %v3213
      %v3216 = vadd.f32 %v3199, %v3214
      %v3217 = vlaneseq
      %v3218 = vshrl.u32 %v3217, 7
      %v3219 = vsub.s32 7, %v3218
      %v3220 = vrot.slane %v286, %v3219
      %v3221 = vlaneseq
      %v3222 = vshrl.u32 %v3221, 7
      %v3223 = vsub.s32 7, %v3222
      %v3224 = vrot.slane %v287, %v3223
      %v3225 = vmul.f32 %v465, %v3220
      %v3226 = vmul.f32 %v465, %v3224
      %v3227 = vadd.f32 %v3211, %v3225
      %v3228 = vadd.f32 %v3212, %v3226
      %v3229 = vmul.f32 %v485, %v3152
      %v3230 = vmul.f32 %v485, %v3156
      %3233 = vrot.lane.b32.xlu0 %v3229, 120
      %v3234 = vpop.permute.xlu0 %3233
      %3235 = vrot.lane.b32.xlu0 %v3230, 120
      %v3236 = vpop.permute.xlu0 %3235
      %v3237 = vsel %vm333, %v3234, %v3236
      %v3240 = vadd.f32 %v3215, %v3237
      %v3241 = vadd.f32 %v3216, %v3236
      %v3242 = vmul.f32 %v485, %v3220
      %v3243 = vmul.f32 %v485, %v3224
      %3246 = vrot.lane.b32.xlu0 %v3242, 120
      %v3247 = vpop.permute.xlu0 %3246
      %3248 = vrot.lane.b32.xlu0 %v3243, 120
      %v3249 = vpop.permute.xlu0 %3248
      %v3250 = vsel %vm333, %v3247, %v3249
      %v3253 = vadd.f32 %v3227, %v3250
      %v3254 = vadd.f32 %v3228, %v3249
      %v3255 = vmul.f32 %v515, %v3152
      %v3256 = vmul.f32 %v515, %v3156
      %3259 = vrot.lane.b32.xlu0 %v3255, 112
      %v3260 = vpop.permute.xlu0 %3259
      %3261 = vrot.lane.b32.xlu0 %v3256, 112
      %v3262 = vpop.permute.xlu0 %3261
      %v3263 = vsel %vm364, %v3260, %v3262
      %v3266 = vadd.f32 %v3240, %v3263
      %v3267 = vadd.f32 %v3241, %v3262
      %v3268 = vmul.f32 %v515, %v3220
      %v3269 = vmul.f32 %v515, %v3224
      %3272 = vrot.lane.b32.xlu0 %v3268, 112
      %v3273 = vpop.permute.xlu0 %3272
      %3274 = vrot.lane.b32.xlu0 %v3269, 112
      %v3275 = vpop.permute.xlu0 %3274
      %v3276 = vsel %vm364, %v3273, %v3275
      %v3279 = vadd.f32 %v3253, %v3276
      %v3280 = vadd.f32 %v3254, %v3275
      %v3281 = vmax.f32 %v3266, %v3279
      %v3282 = vmax.f32 %v3267, %v3280
      %3285 = vrot.lane.b32.xlu0 %v3281, 120
      %v3286 = vpop.permute.xlu0 %3285
      %3287 = vrot.lane.b32.xlu0 %v3282, 120
      %v3288 = vpop.permute.xlu0 %3287
      %v3289 = vsel %vm333, %v3286, %v3288
      %v3292 = vmax.f32 %v3281, %v3289
      %v3293 = vmax.f32 %v3282, %v3288
      %3295 = vrot.lane.b32.xlu0 %v3292, 120
      %v3296 = vpop.permute.xlu0 %3295
      %3298 = vrot.lane.b32.xlu0 %v3292, 112
      %v3299 = vpop.permute.xlu0 %3298
      %3301 = vrot.lane.b32.xlu0 %v3292, 104
      %v3302 = vpop.permute.xlu0 %3301
      %3304 = vrot.lane.b32.xlu0 %v3292, 96
      %v3305 = vpop.permute.xlu0 %3304
      %3307 = vrot.lane.b32.xlu0 %v3292, 88
      %v3308 = vpop.permute.xlu0 %3307
      %3310 = vrot.lane.b32.xlu0 %v3292, 80
      %v3311 = vpop.permute.xlu0 %3310
      %3313 = vrot.lane.b32.xlu0 %v3292, 72
      %v3314 = vpop.permute.xlu0 %3313
      %3317 = vrot.lane.b32.xlu0 %v3293, 64
      %v3318 = vpop.permute.xlu0 %3317
      %3320 = vrot.lane.b32.xlu0 %v3293, 56
      %v3321 = vpop.permute.xlu0 %3320
      %3323 = vrot.lane.b32.xlu0 %v3293, 48
      %v3324 = vpop.permute.xlu0 %3323
      %3326 = vrot.lane.b32.xlu0 %v3293, 40
      %v3327 = vpop.permute.xlu0 %3326
      %3329 = vrot.lane.b32.xlu0 %v3293, 32
      %v3330 = vpop.permute.xlu0 %3329
      %3332 = vrot.lane.b32.xlu0 %v3293, 24
      %v3333 = vpop.permute.xlu0 %3332
      %v3335 = vsel %vm597, %v3292, %v3296
      %v3336 = vsel %vm599, %v3335, %v3299
      %v3337 = vsel %vm601, %v3336, %v3302
      %v3338 = vsel %vm603, %v3337, %v3305
      %v3339 = vsel %vm605, %v3338, %v3308
      %v3340 = vsel %vm607, %v3339, %v3311
      %v3341 = vsel %vm609, %v3340, %v3314
      %v3342 = vsel %vm611, %v3341, %v3318
      %v3343 = vsel %vm613, %v3342, %v3321
      %v3344 = vsel %vm615, %v3343, %v3324
      %v3345 = vsel %vm617, %v3344, %v3327
      %v3346 = vsel %vm619, %v3345, %v3330
      %v3347 = vsel %vm621, %v3346, %v3333
      %v3348 = vadd.f32 %v3347, %v626
      %v3349 = vmax.f32 %v3348, 0.0
      %3351 = vrot.lane.b32.xlu0 %v3349, 8
      %v3352 = vpop.permute.xlu0 %3351
      %v3354 = vsel %vm597, 0.0, %v3352
      %v3355 = vsel %vm333, %v3354, 0.0
      %3356 = vst [vmem:[#allocation2 + $0x58] sm:$0xff] %v3355
      %v3357 = vmul.f32 %v295, %v3152
      %v3358 = vmul.f32 %v295, %v3156
      %v3359 = vadd.f32 %v3357, 0.0
      %v3360 = vadd.f32 %v3358, 0.0
      %v3361 = vmul.f32 %v295, %v3220
      %v3362 = vmul.f32 %v295, %v3224
      %v3363 = vadd.f32 %v3361, 0.0
      %v3364 = vadd.f32 %v3362, 0.0
      %v3365 = vmul.f32 %v323, %v3152
      %v3366 = vmul.f32 %v323, %v3156
      %3369 = vrot.lane.b32.xlu0 %v3365, 120
      %v3370 = vpop.permute.xlu0 %3369
      %3371 = vrot.lane.b32.xlu0 %v3366, 120
      %v3372 = vpop.permute.xlu0 %3371
      %v3373 = vsel %vm333, %v3370, %v3372
      %v3376 = vadd.f32 %v3359, %v3373
      %v3377 = vadd.f32 %v3360, %v3372
      %v3378 = vmul.f32 %v323, %v3220
      %v3379 = vmul.f32 %v323, %v3224
      %3382 = vrot.lane.b32.xlu0 %v3378, 120
      %v3383 = vpop.permute.xlu0 %3382
      %3384 = vrot.lane.b32.xlu0 %v3379, 120
      %v3385 = vpop.permute.xlu0 %3384
      %v3386 = vsel %vm333, %v3383, %v3385
      %v3389 = vadd.f32 %v3363, %v3386
      %v3390 = vadd.f32 %v3364, %v3385
      %v3391 = vmul.f32 %v354, %v3152
      %v3392 = vmul.f32 %v354, %v3156
      %3395 = vrot.lane.b32.xlu0 %v3391, 112
      %v3396 = vpop.permute.xlu0 %3395
      %3397 = vrot.lane.b32.xlu0 %v3392, 112
      %v3398 = vpop.permute.xlu0 %3397
      %v3399 = vsel %vm364, %v3396, %v3398
      %v3402 = vadd.f32 %v3376, %v3399
      %v3403 = vadd.f32 %v3377, %v3398
      %v3404 = vmul.f32 %v354, %v3220
      %v3405 = vmul.f32 %v354, %v3224
      %3408 = vrot.lane.b32.xlu0 %v3404, 112
      %v3409 = vpop.permute.xlu0 %3408
      %3410 = vrot.lane.b32.xlu0 %v3405, 112
      %v3411 = vpop.permute.xlu0 %3410
      %v3412 = vsel %vm364, %v3409, %v3411
      %v3415 = vadd.f32 %v3389, %v3412
      %v3416 = vadd.f32 %v3390, %v3411
      %v3417 = vmul.f32 %v385, %v3220
      %v3418 = vmul.f32 %v385, %v3224
      %v3419 = vadd.f32 %v3402, %v3417
      %v3420 = vadd.f32 %v3403, %v3418
      %v3421 = vlaneseq
      %v3422 = vshrl.u32 %v3421, 7
      %v3423 = vsub.s32 0, %v3422
      %v3424 = vrot.slane %v288, %v3423
      %v3425 = vlaneseq
      %v3426 = vshrl.u32 %v3425, 7
      %v3427 = vsub.s32 0, %v3426
      %v3428 = vrot.slane %v289, %v3427
      %v3429 = vmul.f32 %v385, %v3424
      %v3430 = vmul.f32 %v385, %v3428
      %v3431 = vadd.f32 %v3415, %v3429
      %v3432 = vadd.f32 %v3416, %v3430
      %v3433 = vmul.f32 %v405, %v3220
      %v3434 = vmul.f32 %v405, %v3224
      %3437 = vrot.lane.b32.xlu0 %v3433, 120
      %v3438 = vpop.permute.xlu0 %3437
      %3439 = vrot.lane.b32.xlu0 %v3434, 120
      %v3440 = vpop.permute.xlu0 %3439
      %v3441 = vsel %vm333, %v3438, %v3440
      %v3444 = vadd.f32 %v3419, %v3441
      %v3445 = vadd.f32 %v3420, %v3440
      %v3446 = vmul.f32 %v405, %v3424
      %v3447 = vmul.f32 %v405, %v3428
      %3450 = vrot.lane.b32.xlu0 %v3446, 120
      %v3451 = vpop.permute.xlu0 %3450
      %3452 = vrot.lane.b32.xlu0 %v3447, 120
      %v3453 = vpop.permute.xlu0 %3452
      %v3454 = vsel %vm333, %v3451, %v3453
      %v3457 = vadd.f32 %v3431, %v3454
      %v3458 = vadd.f32 %v3432, %v3453
      %v3459 = vmul.f32 %v435, %v3220
      %v3460 = vmul.f32 %v435, %v3224
      %3463 = vrot.lane.b32.xlu0 %v3459, 112
      %v3464 = vpop.permute.xlu0 %3463
      %3465 = vrot.lane.b32.xlu0 %v3460, 112
      %v3466 = vpop.permute.xlu0 %3465
      %v3467 = vsel %vm364, %v3464, %v3466
      %v3470 = vadd.f32 %v3444, %v3467
      %v3471 = vadd.f32 %v3445, %v3466
      %v3472 = vmul.f32 %v435, %v3424
      %v3473 = vmul.f32 %v435, %v3428
      %3476 = vrot.lane.b32.xlu0 %v3472, 112
      %v3477 = vpop.permute.xlu0 %3476
      %3478 = vrot.lane.b32.xlu0 %v3473, 112
      %v3479 = vpop.permute.xlu0 %3478
      %v3480 = vsel %vm364, %v3477, %v3479
      %v3483 = vadd.f32 %v3457, %v3480
      %v3484 = vadd.f32 %v3458, %v3479
      %v3485 = vmul.f32 %v465, %v3424
      %v3486 = vmul.f32 %v465, %v3428
      %v3487 = vadd.f32 %v3470, %v3485
      %v3488 = vadd.f32 %v3471, %v3486
      %v3489 = vlaneseq
      %v3490 = vshrl.u32 %v3489, 7
      %v3491 = vsub.s32 1, %v3490
      %v3492 = vrot.slane %v288, %v3491
      %v3493 = vlaneseq
      %v3494 = vshrl.u32 %v3493, 7
      %v3495 = vsub.s32 1, %v3494
      %v3496 = vrot.slane %v289, %v3495
      %v3497 = vmul.f32 %v465, %v3492
      %v3498 = vmul.f32 %v465, %v3496
      %v3499 = vadd.f32 %v3483, %v3497
      %v3500 = vadd.f32 %v3484, %v3498
      %v3501 = vmul.f32 %v485, %v3424
      %v3502 = vmul.f32 %v485, %v3428
      %3505 = vrot.lane.b32.xlu0 %v3501, 120
      %v3506 = vpop.permute.xlu0 %3505
      %3507 = vrot.lane.b32.xlu0 %v3502, 120
      %v3508 = vpop.permute.xlu0 %3507
      %v3509 = vsel %vm333, %v3506, %v3508
      %v3512 = vadd.f32 %v3487, %v3509
      %v3513 = vadd.f32 %v3488, %v3508
      %v3514 = vmul.f32 %v485, %v3492
      %v3515 = vmul.f32 %v485, %v3496
      %3518 = vrot.lane.b32.xlu0 %v3514, 120
      %v3519 = vpop.permute.xlu0 %3518
      %3520 = vrot.lane.b32.xlu0 %v3515, 120
      %v3521 = vpop.permute.xlu0 %3520
      %v3522 = vsel %vm333, %v3519, %v3521
      %v3525 = vadd.f32 %v3499, %v3522
      %v3526 = vadd.f32 %v3500, %v3521
      %v3527 = vmul.f32 %v515, %v3424
      %v3528 = vmul.f32 %v515, %v3428
      %3531 = vrot.lane.b32.xlu0 %v3527, 112
      %v3532 = vpop.permute.xlu0 %3531
      %3533 = vrot.lane.b32.xlu0 %v3528, 112
      %v3534 = vpop.permute.xlu0 %3533
      %v3535 = vsel %vm364, %v3532, %v3534
      %v3538 = vadd.f32 %v3512, %v3535
      %v3539 = vadd.f32 %v3513, %v3534
      %v3540 = vmul.f32 %v515, %v3492
      %v3541 = vmul.f32 %v515, %v3496
      %3544 = vrot.lane.b32.xlu0 %v3540, 112
      %v3545 = vpop.permute.xlu0 %3544
      %3546 = vrot.lane.b32.xlu0 %v3541, 112
      %v3547 = vpop.permute.xlu0 %3546
      %v3548 = vsel %vm364, %v3545, %v3547
      %v3551 = vadd.f32 %v3525, %v3548
      %v3552 = vadd.f32 %v3526, %v3547
      %v3553 = vmax.f32 %v3538, %v3551
      %v3554 = vmax.f32 %v3539, %v3552
      %3557 = vrot.lane.b32.xlu0 %v3553, 120
      %v3558 = vpop.permute.xlu0 %3557
      %3559 = vrot.lane.b32.xlu0 %v3554, 120
      %v3560 = vpop.permute.xlu0 %3559
      %v3561 = vsel %vm333, %v3558, %v3560
      %v3564 = vmax.f32 %v3553, %v3561
      %v3565 = vmax.f32 %v3554, %v3560
      %3567 = vrot.lane.b32.xlu0 %v3564, 120
      %v3568 = vpop.permute.xlu0 %3567
      %3570 = vrot.lane.b32.xlu0 %v3564, 112
      %v3571 = vpop.permute.xlu0 %3570
      %3573 = vrot.lane.b32.xlu0 %v3564, 104
      %v3574 = vpop.permute.xlu0 %3573
      %3576 = vrot.lane.b32.xlu0 %v3564, 96
      %v3577 = vpop.permute.xlu0 %3576
      %3579 = vrot.lane.b32.xlu0 %v3564, 88
      %v3580 = vpop.permute.xlu0 %3579
      %3582 = vrot.lane.b32.xlu0 %v3564, 80
      %v3583 = vpop.permute.xlu0 %3582
      %3585 = vrot.lane.b32.xlu0 %v3564, 72
      %v3586 = vpop.permute.xlu0 %3585
      %3589 = vrot.lane.b32.xlu0 %v3565, 64
      %v3590 = vpop.permute.xlu0 %3589
      %3592 = vrot.lane.b32.xlu0 %v3565, 56
      %v3593 = vpop.permute.xlu0 %3592
      %3595 = vrot.lane.b32.xlu0 %v3565, 48
      %v3596 = vpop.permute.xlu0 %3595
      %3598 = vrot.lane.b32.xlu0 %v3565, 40
      %v3599 = vpop.permute.xlu0 %3598
      %3601 = vrot.lane.b32.xlu0 %v3565, 32
      %v3602 = vpop.permute.xlu0 %3601
      %3604 = vrot.lane.b32.xlu0 %v3565, 24
      %v3605 = vpop.permute.xlu0 %3604
      %v3607 = vsel %vm597, %v3564, %v3568
      %v3608 = vsel %vm599, %v3607, %v3571
      %v3609 = vsel %vm601, %v3608, %v3574
      %v3610 = vsel %vm603, %v3609, %v3577
      %v3611 = vsel %vm605, %v3610, %v3580
      %v3612 = vsel %vm607, %v3611, %v3583
      %v3613 = vsel %vm609, %v3612, %v3586
      %v3614 = vsel %vm611, %v3613, %v3590
      %v3615 = vsel %vm613, %v3614, %v3593
      %v3616 = vsel %vm615, %v3615, %v3596
      %v3617 = vsel %vm617, %v3616, %v3599
      %v3618 = vsel %vm619, %v3617, %v3602
      %v3619 = vsel %vm621, %v3618, %v3605
      %v3620 = vadd.f32 %v3619, %v626
      %v3621 = vmax.f32 %v3620, 0.0
      %3623 = vrot.lane.b32.xlu0 %v3621, 8
      %v3624 = vpop.permute.xlu0 %3623
      %v3626 = vsel %vm597, 0.0, %v3624
      %v3627 = vsel %vm333, %v3626, 0.0
      %3628 = vst [vmem:[#allocation2 + $0x60] sm:$0xff] %v3627
      %v3629 = vmul.f32 %v295, %v3424
      %v3630 = vmul.f32 %v295, %v3428
      %v3631 = vadd.f32 %v3629, 0.0
      %v3632 = vadd.f32 %v3630, 0.0
      %v3633 = vmul.f32 %v295, %v3492
      %v3634 = vmul.f32 %v295, %v3496
      %v3635 = vadd.f32 %v3633, 0.0
      %v3636 = vadd.f32 %v3634, 0.0
      %v3637 = vmul.f32 %v323, %v3424
      %v3638 = vmul.f32 %v323, %v3428
      %3641 = vrot.lane.b32.xlu0 %v3637, 120
      %v3642 = vpop.permute.xlu0 %3641
      %3643 = vrot.lane.b32.xlu0 %v3638, 120
      %v3644 = vpop.permute.xlu0 %3643
      %v3645 = vsel %vm333, %v3642, %v3644
      %v3648 = vadd.f32 %v3631, %v3645
      %v3649 = vadd.f32 %v3632, %v3644
      %v3650 = vmul.f32 %v323, %v3492
      %v3651 = vmul.f32 %v323, %v3496
      %3654 = vrot.lane.b32.xlu0 %v3650, 120
      %v3655 = vpop.permute.xlu0 %3654
      %3656 = vrot.lane.b32.xlu0 %v3651, 120
      %v3657 = vpop.permute.xlu0 %3656
      %v3658 = vsel %vm333, %v3655, %v3657
      %v3661 = vadd.f32 %v3635, %v3658
      %v3662 = vadd.f32 %v3636, %v3657
      %v3663 = vmul.f32 %v354, %v3424
      %v3664 = vmul.f32 %v354, %v3428
      %3667 = vrot.lane.b32.xlu0 %v3663, 112
      %v3668 = vpop.permute.xlu0 %3667
      %3669 = vrot.lane.b32.xlu0 %v3664, 112
      %v3670 = vpop.permute.xlu0 %3669
      %v3671 = vsel %vm364, %v3668, %v3670
      %v3674 = vadd.f32 %v3648, %v3671
      %v3675 = vadd.f32 %v3649, %v3670
      %v3676 = vmul.f32 %v354, %v3492
      %v3677 = vmul.f32 %v354, %v3496
      %3680 = vrot.lane.b32.xlu0 %v3676, 112
      %v3681 = vpop.permute.xlu0 %3680
      %3682 = vrot.lane.b32.xlu0 %v3677, 112
      %v3683 = vpop.permute.xlu0 %3682
      %v3684 = vsel %vm364, %v3681, %v3683
      %v3687 = vadd.f32 %v3661, %v3684
      %v3688 = vadd.f32 %v3662, %v3683
      %v3689 = vmul.f32 %v385, %v3492
      %v3690 = vmul.f32 %v385, %v3496
      %v3691 = vadd.f32 %v3674, %v3689
      %v3692 = vadd.f32 %v3675, %v3690
      %v3693 = vlaneseq
      %v3694 = vshrl.u32 %v3693, 7
      %v3695 = vsub.s32 2, %v3694
      %v3696 = vrot.slane %v288, %v3695
      %v3697 = vlaneseq
      %v3698 = vshrl.u32 %v3697, 7
      %v3699 = vsub.s32 2, %v3698
      %v3700 = vrot.slane %v289, %v3699
      %v3701 = vmul.f32 %v385, %v3696
      %v3702 = vmul.f32 %v385, %v3700
      %v3703 = vadd.f32 %v3687, %v3701
      %v3704 = vadd.f32 %v3688, %v3702
      %v3705 = vmul.f32 %v405, %v3492
      %v3706 = vmul.f32 %v405, %v3496
      %3709 = vrot.lane.b32.xlu0 %v3705, 120
      %v3710 = vpop.permute.xlu0 %3709
      %3711 = vrot.lane.b32.xlu0 %v3706, 120
      %v3712 = vpop.permute.xlu0 %3711
      %v3713 = vsel %vm333, %v3710, %v3712
      %v3716 = vadd.f32 %v3691, %v3713
      %v3717 = vadd.f32 %v3692, %v3712
      %v3718 = vmul.f32 %v405, %v3696
      %v3719 = vmul.f32 %v405, %v3700
      %3722 = vrot.lane.b32.xlu0 %v3718, 120
      %v3723 = vpop.permute.xlu0 %3722
      %3724 = vrot.lane.b32.xlu0 %v3719, 120
      %v3725 = vpop.permute.xlu0 %3724
      %v3726 = vsel %vm333, %v3723, %v3725
      %v3729 = vadd.f32 %v3703, %v3726
      %v3730 = vadd.f32 %v3704, %v3725
      %v3731 = vmul.f32 %v435, %v3492
      %v3732 = vmul.f32 %v435, %v3496
      %3735 = vrot.lane.b32.xlu0 %v3731, 112
      %v3736 = vpop.permute.xlu0 %3735
      %3737 = vrot.lane.b32.xlu0 %v3732, 112
      %v3738 = vpop.permute.xlu0 %3737
      %v3739 = vsel %vm364, %v3736, %v3738
      %v3742 = vadd.f32 %v3716, %v3739
      %v3743 = vadd.f32 %v3717, %v3738
      %v3744 = vmul.f32 %v435, %v3696
      %v3745 = vmul.f32 %v435, %v3700
      %3748 = vrot.lane.b32.xlu0 %v3744, 112
      %v3749 = vpop.permute.xlu0 %3748
      %3750 = vrot.lane.b32.xlu0 %v3745, 112
      %v3751 = vpop.permute.xlu0 %3750
      %v3752 = vsel %vm364, %v3749, %v3751
      %v3755 = vadd.f32 %v3729, %v3752
      %v3756 = vadd.f32 %v3730, %v3751
      %v3757 = vmul.f32 %v465, %v3696
      %v3758 = vmul.f32 %v465, %v3700
      %v3759 = vadd.f32 %v3742, %v3757
      %v3760 = vadd.f32 %v3743, %v3758
      %v3761 = vlaneseq
      %v3762 = vshrl.u32 %v3761, 7
      %v3763 = vsub.s32 3, %v3762
      %v3764 = vrot.slane %v288, %v3763
      %v3765 = vlaneseq
      %v3766 = vshrl.u32 %v3765, 7
      %v3767 = vsub.s32 3, %v3766
      %v3768 = vrot.slane %v289, %v3767
      %v3769 = vmul.f32 %v465, %v3764
      %v3770 = vmul.f32 %v465, %v3768
      %v3771 = vadd.f32 %v3755, %v3769
      %v3772 = vadd.f32 %v3756, %v3770
      %v3773 = vmul.f32 %v485, %v3696
      %v3774 = vmul.f32 %v485, %v3700
      %3777 = vrot.lane.b32.xlu0 %v3773, 120
      %v3778 = vpop.permute.xlu0 %3777
      %3779 = vrot.lane.b32.xlu0 %v3774, 120
      %v3780 = vpop.permute.xlu0 %3779
      %v3781 = vsel %vm333, %v3778, %v3780
      %v3784 = vadd.f32 %v3759, %v3781
      %v3785 = vadd.f32 %v3760, %v3780
      %v3786 = vmul.f32 %v485, %v3764
      %v3787 = vmul.f32 %v485, %v3768
      %3790 = vrot.lane.b32.xlu0 %v3786, 120
      %v3791 = vpop.permute.xlu0 %3790
      %3792 = vrot.lane.b32.xlu0 %v3787, 120
      %v3793 = vpop.permute.xlu0 %3792
      %v3794 = vsel %vm333, %v3791, %v3793
      %v3797 = vadd.f32 %v3771, %v3794
      %v3798 = vadd.f32 %v3772, %v3793
      %v3799 = vmul.f32 %v515, %v3696
      %v3800 = vmul.f32 %v515, %v3700
      %3803 = vrot.lane.b32.xlu0 %v3799, 112
      %v3804 = vpop.permute.xlu0 %3803
      %3805 = vrot.lane.b32.xlu0 %v3800, 112
      %v3806 = vpop.permute.xlu0 %3805
      %v3807 = vsel %vm364, %v3804, %v3806
      %v3810 = vadd.f32 %v3784, %v3807
      %v3811 = vadd.f32 %v3785, %v3806
      %v3812 = vmul.f32 %v515, %v3764
      %v3813 = vmul.f32 %v515, %v3768
      %3816 = vrot.lane.b32.xlu0 %v3812, 112
      %v3817 = vpop.permute.xlu0 %3816
      %3818 = vrot.lane.b32.xlu0 %v3813, 112
      %v3819 = vpop.permute.xlu0 %3818
      %v3820 = vsel %vm364, %v3817, %v3819
      %v3823 = vadd.f32 %v3797, %v3820
      %v3824 = vadd.f32 %v3798, %v3819
      %v3825 = vmax.f32 %v3810, %v3823
      %v3826 = vmax.f32 %v3811, %v3824
      %3829 = vrot.lane.b32.xlu0 %v3825, 120
      %v3830 = vpop.permute.xlu0 %3829
      %3831 = vrot.lane.b32.xlu0 %v3826, 120
      %v3832 = vpop.permute.xlu0 %3831
      %v3833 = vsel %vm333, %v3830, %v3832
      %v3836 = vmax.f32 %v3825, %v3833
      %v3837 = vmax.f32 %v3826, %v3832
      %3839 = vrot.lane.b32.xlu0 %v3836, 120
      %v3840 = vpop.permute.xlu0 %3839
      %3842 = vrot.lane.b32.xlu0 %v3836, 112
      %v3843 = vpop.permute.xlu0 %3842
      %3845 = vrot.lane.b32.xlu0 %v3836, 104
      %v3846 = vpop.permute.xlu0 %3845
      %3848 = vrot.lane.b32.xlu0 %v3836, 96
      %v3849 = vpop.permute.xlu0 %3848
      %3851 = vrot.lane.b32.xlu0 %v3836, 88
      %v3852 = vpop.permute.xlu0 %3851
      %3854 = vrot.lane.b32.xlu0 %v3836, 80
      %v3855 = vpop.permute.xlu0 %3854
      %3857 = vrot.lane.b32.xlu0 %v3836, 72
      %v3858 = vpop.permute.xlu0 %3857
      %3861 = vrot.lane.b32.xlu0 %v3837, 64
      %v3862 = vpop.permute.xlu0 %3861
      %3864 = vrot.lane.b32.xlu0 %v3837, 56
      %v3865 = vpop.permute.xlu0 %3864
      %3867 = vrot.lane.b32.xlu0 %v3837, 48
      %v3868 = vpop.permute.xlu0 %3867
      %3870 = vrot.lane.b32.xlu0 %v3837, 40
      %v3871 = vpop.permute.xlu0 %3870
      %3873 = vrot.lane.b32.xlu0 %v3837, 32
      %v3874 = vpop.permute.xlu0 %3873
      %3876 = vrot.lane.b32.xlu0 %v3837, 24
      %v3877 = vpop.permute.xlu0 %3876
      %v3879 = vsel %vm597, %v3836, %v3840
      %v3880 = vsel %vm599, %v3879, %v3843
      %v3881 = vsel %vm601, %v3880, %v3846
      %v3882 = vsel %vm603, %v3881, %v3849
      %v3883 = vsel %vm605, %v3882, %v3852
      %v3884 = vsel %vm607, %v3883, %v3855
      %v3885 = vsel %vm609, %v3884, %v3858
      %v3886 = vsel %vm611, %v3885, %v3862
      %v3887 = vsel %vm613, %v3886, %v3865
      %v3888 = vsel %vm615, %v3887, %v3868
      %v3889 = vsel %vm617, %v3888, %v3871
      %v3890 = vsel %vm619, %v3889, %v3874
      %v3891 = vsel %vm621, %v3890, %v3877
      %v3892 = vadd.f32 %v3891, %v626
      %v3893 = vmax.f32 %v3892, 0.0
      %3895 = vrot.lane.b32.xlu0 %v3893, 8
      %v3896 = vpop.permute.xlu0 %3895
      %v3898 = vsel %vm597, 0.0, %v3896
      %v3899 = vsel %vm333, %v3898, 0.0
      %3900 = vst [vmem:[#allocation2 + $0x68] sm:$0xff] %v3899
      %v3901 = vmul.f32 %v295, %v3696
      %v3902 = vmul.f32 %v295, %v3700
      %v3903 = vadd.f32 %v3901, 0.0
      %v3904 = vadd.f32 %v3902, 0.0
      %v3905 = vmul.f32 %v295, %v3764
      %v3906 = vmul.f32 %v295, %v3768
      %v3907 = vadd.f32 %v3905, 0.0
      %v3908 = vadd.f32 %v3906, 0.0
      %v3909 = vmul.f32 %v323, %v3696
      %v3910 = vmul.f32 %v323, %v3700
      %3913 = vrot.lane.b32.xlu0 %v3909, 120
      %v3914 = vpop.permute.xlu0 %3913
      %3915 = vrot.lane.b32.xlu0 %v3910, 120
      %v3916 = vpop.permute.xlu0 %3915
      %v3917 = vsel %vm333, %v3914, %v3916
      %v3920 = vadd.f32 %v3903, %v3917
      %v3921 = vadd.f32 %v3904, %v3916
      %v3922 = vmul.f32 %v323, %v3764
      %v3923 = vmul.f32 %v323, %v3768
      %3926 = vrot.lane.b32.xlu0 %v3922, 120
      %v3927 = vpop.permute.xlu0 %3926
      %3928 = vrot.lane.b32.xlu0 %v3923, 120
      %v3929 = vpop.permute.xlu0 %3928
      %v3930 = vsel %vm333, %v3927, %v3929
      %v3933 = vadd.f32 %v3907, %v3930
      %v3934 = vadd.f32 %v3908, %v3929
      %v3935 = vmul.f32 %v354, %v3696
      %v3936 = vmul.f32 %v354, %v3700
      %3939 = vrot.lane.b32.xlu0 %v3935, 112
      %v3940 = vpop.permute.xlu0 %3939
      %3941 = vrot.lane.b32.xlu0 %v3936, 112
      %v3942 = vpop.permute.xlu0 %3941
      %v3943 = vsel %vm364, %v3940, %v3942
      %v3946 = vadd.f32 %v3920, %v3943
      %v3947 = vadd.f32 %v3921, %v3942
      %v3948 = vmul.f32 %v354, %v3764
      %v3949 = vmul.f32 %v354, %v3768
      %3952 = vrot.lane.b32.xlu0 %v3948, 112
      %v3953 = vpop.permute.xlu0 %3952
      %3954 = vrot.lane.b32.xlu0 %v3949, 112
      %v3955 = vpop.permute.xlu0 %3954
      %v3956 = vsel %vm364, %v3953, %v3955
      %v3959 = vadd.f32 %v3933, %v3956
      %v3960 = vadd.f32 %v3934, %v3955
      %v3961 = vmul.f32 %v385, %v3764
      %v3962 = vmul.f32 %v385, %v3768
      %v3963 = vadd.f32 %v3946, %v3961
      %v3964 = vadd.f32 %v3947, %v3962
      %v3965 = vlaneseq
      %v3966 = vshrl.u32 %v3965, 7
      %v3967 = vsub.s32 4, %v3966
      %v3968 = vrot.slane %v288, %v3967
      %v3969 = vlaneseq
      %v3970 = vshrl.u32 %v3969, 7
      %v3971 = vsub.s32 4, %v3970
      %v3972 = vrot.slane %v289, %v3971
      %v3973 = vmul.f32 %v385, %v3968
      %v3974 = vmul.f32 %v385, %v3972
      %v3975 = vadd.f32 %v3959, %v3973
      %v3976 = vadd.f32 %v3960, %v3974
      %v3977 = vmul.f32 %v405, %v3764
      %v3978 = vmul.f32 %v405, %v3768
      %3981 = vrot.lane.b32.xlu0 %v3977, 120
      %v3982 = vpop.permute.xlu0 %3981
      %3983 = vrot.lane.b32.xlu0 %v3978, 120
      %v3984 = vpop.permute.xlu0 %3983
      %v3985 = vsel %vm333, %v3982, %v3984
      %v3988 = vadd.f32 %v3963, %v3985
      %v3989 = vadd.f32 %v3964, %v3984
      %v3990 = vmul.f32 %v405, %v3968
      %v3991 = vmul.f32 %v405, %v3972
      %3994 = vrot.lane.b32.xlu0 %v3990, 120
      %v3995 = vpop.permute.xlu0 %3994
      %3996 = vrot.lane.b32.xlu0 %v3991, 120
      %v3997 = vpop.permute.xlu0 %3996
      %v3998 = vsel %vm333, %v3995, %v3997
      %v4001 = vadd.f32 %v3975, %v3998
      %v4002 = vadd.f32 %v3976, %v3997
      %v4003 = vmul.f32 %v435, %v3764
      %v4004 = vmul.f32 %v435, %v3768
      %4007 = vrot.lane.b32.xlu0 %v4003, 112
      %v4008 = vpop.permute.xlu0 %4007
      %4009 = vrot.lane.b32.xlu0 %v4004, 112
      %v4010 = vpop.permute.xlu0 %4009
      %v4011 = vsel %vm364, %v4008, %v4010
      %v4014 = vadd.f32 %v3988, %v4011
      %v4015 = vadd.f32 %v3989, %v4010
      %v4016 = vmul.f32 %v435, %v3968
      %v4017 = vmul.f32 %v435, %v3972
      %4020 = vrot.lane.b32.xlu0 %v4016, 112
      %v4021 = vpop.permute.xlu0 %4020
      %4022 = vrot.lane.b32.xlu0 %v4017, 112
      %v4023 = vpop.permute.xlu0 %4022
      %v4024 = vsel %vm364, %v4021, %v4023
      %v4027 = vadd.f32 %v4001, %v4024
      %v4028 = vadd.f32 %v4002, %v4023
      %v4029 = vmul.f32 %v465, %v3968
      %v4030 = vmul.f32 %v465, %v3972
      %v4031 = vadd.f32 %v4014, %v4029
      %v4032 = vadd.f32 %v4015, %v4030
      %v4033 = vlaneseq
      %v4034 = vshrl.u32 %v4033, 7
      %v4035 = vsub.s32 5, %v4034
      %v4036 = vrot.slane %v288, %v4035
      %v4037 = vlaneseq
      %v4038 = vshrl.u32 %v4037, 7
      %v4039 = vsub.s32 5, %v4038
      %v4040 = vrot.slane %v289, %v4039
      %v4041 = vmul.f32 %v465, %v4036
      %v4042 = vmul.f32 %v465, %v4040
      %v4043 = vadd.f32 %v4027, %v4041
      %v4044 = vadd.f32 %v4028, %v4042
      %v4045 = vmul.f32 %v485, %v3968
      %v4046 = vmul.f32 %v485, %v3972
      %4049 = vrot.lane.b32.xlu0 %v4045, 120
      %v4050 = vpop.permute.xlu0 %4049
      %4051 = vrot.lane.b32.xlu0 %v4046, 120
      %v4052 = vpop.permute.xlu0 %4051
      %v4053 = vsel %vm333, %v4050, %v4052
      %v4056 = vadd.f32 %v4031, %v4053
      %v4057 = vadd.f32 %v4032, %v4052
      %v4058 = vmul.f32 %v485, %v4036
      %v4059 = vmul.f32 %v485, %v4040
      %4062 = vrot.lane.b32.xlu0 %v4058, 120
      %v4063 = vpop.permute.xlu0 %4062
      %4064 = vrot.lane.b32.xlu0 %v4059, 120
      %v4065 = vpop.permute.xlu0 %4064
      %v4066 = vsel %vm333, %v4063, %v4065
      %v4069 = vadd.f32 %v4043, %v4066
      %v4070 = vadd.f32 %v4044, %v4065
      %v4071 = vmul.f32 %v515, %v3968
      %v4072 = vmul.f32 %v515, %v3972
      %4075 = vrot.lane.b32.xlu0 %v4071, 112
      %v4076 = vpop.permute.xlu0 %4075
      %4077 = vrot.lane.b32.xlu0 %v4072, 112
      %v4078 = vpop.permute.xlu0 %4077
      %v4079 = vsel %vm364, %v4076, %v4078
      %v4082 = vadd.f32 %v4056, %v4079
      %v4083 = vadd.f32 %v4057, %v4078
      %v4084 = vmul.f32 %v515, %v4036
      %v4085 = vmul.f32 %v515, %v4040
      %4088 = vrot.lane.b32.xlu0 %v4084, 112
      %v4089 = vpop.permute.xlu0 %4088
      %4090 = vrot.lane.b32.xlu0 %v4085, 112
      %v4091 = vpop.permute.xlu0 %4090
      %v4092 = vsel %vm364, %v4089, %v4091
      %v4095 = vadd.f32 %v4069, %v4092
      %v4096 = vadd.f32 %v4070, %v4091
      %v4097 = vmax.f32 %v4082, %v4095
      %v4098 = vmax.f32 %v4083, %v4096
      %4101 = vrot.lane.b32.xlu0 %v4097, 120
      %v4102 = vpop.permute.xlu0 %4101
      %4103 = vrot.lane.b32.xlu0 %v4098, 120
      %v4104 = vpop.permute.xlu0 %4103
      %v4105 = vsel %vm333, %v4102, %v4104
      %v4108 = vmax.f32 %v4097, %v4105
      %v4109 = vmax.f32 %v4098, %v4104
      %4111 = vrot.lane.b32.xlu0 %v4108, 120
      %v4112 = vpop.permute.xlu0 %4111
      %4114 = vrot.lane.b32.xlu0 %v4108, 112
      %v4115 = vpop.permute.xlu0 %4114
      %4117 = vrot.lane.b32.xlu0 %v4108, 104
      %v4118 = vpop.permute.xlu0 %4117
      %4120 = vrot.lane.b32.xlu0 %v4108, 96
      %v4121 = vpop.permute.xlu0 %4120
      %4123 = vrot.lane.b32.xlu0 %v4108, 88
      %v4124 = vpop.permute.xlu0 %4123
      %4126 = vrot.lane.b32.xlu0 %v4108, 80
      %v4127 = vpop.permute.xlu0 %4126
      %4129 = vrot.lane.b32.xlu0 %v4108, 72
      %v4130 = vpop.permute.xlu0 %4129
      %4133 = vrot.lane.b32.xlu0 %v4109, 64
      %v4134 = vpop.permute.xlu0 %4133
      %4136 = vrot.lane.b32.xlu0 %v4109, 56
      %v4137 = vpop.permute.xlu0 %4136
      %4139 = vrot.lane.b32.xlu0 %v4109, 48
      %v4140 = vpop.permute.xlu0 %4139
      %4142 = vrot.lane.b32.xlu0 %v4109, 40
      %v4143 = vpop.permute.xlu0 %4142
      %4145 = vrot.lane.b32.xlu0 %v4109, 32
      %v4146 = vpop.permute.xlu0 %4145
      %4148 = vrot.lane.b32.xlu0 %v4109, 24
      %v4149 = vpop.permute.xlu0 %4148
      %v4151 = vsel %vm597, %v4108, %v4112
      %v4152 = vsel %vm599, %v4151, %v4115
      %v4153 = vsel %vm601, %v4152, %v4118
      %v4154 = vsel %vm603, %v4153, %v4121
      %v4155 = vsel %vm605, %v4154, %v4124
      %v4156 = vsel %vm607, %v4155, %v4127
      %v4157 = vsel %vm609, %v4156, %v4130
      %v4158 = vsel %vm611, %v4157, %v4134
      %v4159 = vsel %vm613, %v4158, %v4137
      %v4160 = vsel %vm615, %v4159, %v4140
      %v4161 = vsel %vm617, %v4160, %v4143
      %v4162 = vsel %vm619, %v4161, %v4146
      %v4163 = vsel %vm621, %v4162, %v4149
      %v4164 = vadd.f32 %v4163, %v626
      %v4165 = vmax.f32 %v4164, 0.0
      %4167 = vrot.lane.b32.xlu0 %v4165, 8
      %v4168 = vpop.permute.xlu0 %4167
      %v4170 = vsel %vm597, 0.0, %v4168
      %v4171 = vsel %vm333, %v4170, 0.0
      %4172 = vst [vmem:[#allocation2 + $0x70] sm:$0xff] %v4171
      %v4173 = vld [vmem:[#allocation2] sm:$0xff]
      %v4174 = vld [vmem:[#allocation2 + $0x8] sm:$0xff]
      %v4175 = vld [vmem:[#allocation2 + $0x10] sm:$0xff]
      %v4176 = vld [vmem:[#allocation2 + $0x18] sm:$0xff]
      %v4177 = vld [vmem:[#allocation2 + $0x20] sm:$0xff]
      %v4178 = vld [vmem:[#allocation2 + $0x28] sm:$0xff]
      %v4179 = vld [vmem:[#allocation2 + $0x30] sm:$0xff]
      %v4180 = vld [vmem:[#allocation2 + $0x38] sm:$0xff]
      %v4181 = vld [vmem:[#allocation2 + $0x40] sm:$0xff]
      %v4182 = vld [vmem:[#allocation2 + $0x48] sm:$0xff]
      %v4183 = vld [vmem:[#allocation2 + $0x50] sm:$0xff]
      %v4184 = vld [vmem:[#allocation2 + $0x58] sm:$0xff]
      %v4185 = vld [vmem:[#allocation2 + $0x60] sm:$0xff]
      %v4186 = vld [vmem:[#allocation2 + $0x68] sm:$0xff]
      %v4187 = vld [vmem:[#allocation2 + $0x70] sm:$0xff]
      %v4188 = vld [vmem:[#allocation2 + $0x78] sm:$0xff]
      %v4189 = vld [vmem:[#allocation2 + $0x80] sm:$0xff]
      %4205 = vrot.lane.b32.xlu0 %v4173, 120
      %v4206 = vpop.permute.xlu0 %4205
      %4207 = vrot.lane.b32.xlu0 %v4174, 120
      %v4208 = vpop.permute.xlu0 %4207
      %4209 = vrot.lane.b32.xlu0 %v4175, 120
      %v4210 = vpop.permute.xlu0 %4209
      %4211 = vrot.lane.b32.xlu0 %v4176, 120
      %v4212 = vpop.permute.xlu0 %4211
      %4213 = vrot.lane.b32.xlu0 %v4177, 120
      %v4214 = vpop.permute.xlu0 %4213
      %4215 = vrot.lane.b32.xlu0 %v4178, 120
      %v4216 = vpop.permute.xlu0 %4215
      %4217 = vrot.lane.b32.xlu0 %v4179, 120
      %v4218 = vpop.permute.xlu0 %4217
      %4219 = vrot.lane.b32.xlu0 %v4180, 120
      %v4220 = vpop.permute.xlu0 %4219
      %4221 = vrot.lane.b32.xlu0 %v4181, 120
      %v4222 = vpop.permute.xlu0 %4221
      %4223 = vrot.lane.b32.xlu0 %v4182, 120
      %v4224 = vpop.permute.xlu0 %4223
      %4225 = vrot.lane.b32.xlu0 %v4183, 120
      %v4226 = vpop.permute.xlu0 %4225
      %4227 = vrot.lane.b32.xlu0 %v4184, 120
      %v4228 = vpop.permute.xlu0 %4227
      %4229 = vrot.lane.b32.xlu0 %v4185, 120
      %v4230 = vpop.permute.xlu0 %4229
      %4231 = vrot.lane.b32.xlu0 %v4186, 120
      %v4232 = vpop.permute.xlu0 %4231
      %4233 = vrot.lane.b32.xlu0 %v4187, 120
      %v4234 = vpop.permute.xlu0 %4233
      %v4235 = vsel %vm333, %v4206, %v4208
      %v4236 = vsel %vm333, %v4208, %v4210
      %v4237 = vsel %vm333, %v4210, %v4212
      %v4238 = vsel %vm333, %v4212, %v4214
      %v4239 = vsel %vm333, %v4214, %v4216
      %v4240 = vsel %vm333, %v4216, %v4218
      %v4241 = vsel %vm333, %v4218, %v4220
      %v4242 = vsel %vm333, %v4220, %v4222
      %v4243 = vsel %vm333, %v4222, %v4224
      %v4244 = vsel %vm333, %v4224, %v4226
      %v4245 = vsel %vm333, %v4226, %v4228
      %v4246 = vsel %vm333, %v4228, %v4230
      %v4247 = vsel %vm333, %v4230, %v4232
      %v4248 = vsel %vm333, %v4232, %v4234
      %4263 = vrot.lane.b32.xlu0 %v4173, 112
      %v4264 = vpop.permute.xlu0 %4263
      %4265 = vrot.lane.b32.xlu0 %v4174, 112
      %v4266 = vpop.permute.xlu0 %4265
      %4267 = vrot.lane.b32.xlu0 %v4175, 112
      %v4268 = vpop.permute.xlu0 %4267
      %4269 = vrot.lane.b32.xlu0 %v4176, 112
      %v4270 = vpop.permute.xlu0 %4269
      %4271 = vrot.lane.b32.xlu0 %v4177, 112
      %v4272 = vpop.permute.xlu0 %4271
      %4273 = vrot.lane.b32.xlu0 %v4178, 112
      %v4274 = vpop.permute.xlu0 %4273
      %4275 = vrot.lane.b32.xlu0 %v4179, 112
      %v4276 = vpop.permute.xlu0 %4275
      %4277 = vrot.lane.b32.xlu0 %v4180, 112
      %v4278 = vpop.permute.xlu0 %4277
      %4279 = vrot.lane.b32.xlu0 %v4181, 112
      %v4280 = vpop.permute.xlu0 %4279
      %4281 = vrot.lane.b32.xlu0 %v4182, 112
      %v4282 = vpop.permute.xlu0 %4281
      %4283 = vrot.lane.b32.xlu0 %v4183, 112
      %v4284 = vpop.permute.xlu0 %4283
      %4285 = vrot.lane.b32.xlu0 %v4184, 112
      %v4286 = vpop.permute.xlu0 %4285
      %4287 = vrot.lane.b32.xlu0 %v4185, 112
      %v4288 = vpop.permute.xlu0 %4287
      %4289 = vrot.lane.b32.xlu0 %v4186, 112
      %v4290 = vpop.permute.xlu0 %4289
      %4291 = vrot.lane.b32.xlu0 %v4187, 112
      %v4292 = vpop.permute.xlu0 %4291
      %v4293 = vsel %vm364, %v4264, %v4266
      %v4294 = vsel %vm364, %v4266, %v4268
      %v4295 = vsel %vm364, %v4268, %v4270
      %v4296 = vsel %vm364, %v4270, %v4272
      %v4297 = vsel %vm364, %v4272, %v4274
      %v4298 = vsel %vm364, %v4274, %v4276
      %v4299 = vsel %vm364, %v4276, %v4278
      %v4300 = vsel %vm364, %v4278, %v4280
      %v4301 = vsel %vm364, %v4280, %v4282
      %v4302 = vsel %vm364, %v4282, %v4284
      %v4303 = vsel %vm364, %v4284, %v4286
      %v4304 = vsel %vm364, %v4286, %v4288
      %v4305 = vsel %vm364, %v4288, %v4290
      %v4306 = vsel %vm364, %v4290, %v4292
      %4322 = vrot.lane.b32.xlu0 %v4188, 120
      %v4323 = vpop.permute.xlu0 %4322
      %v4324 = vsel %vm333, %v4234, %v4323
      %4326 = vrot.lane.b32.xlu0 %v4188, 112
      %v4327 = vpop.permute.xlu0 %4326
      %v4328 = vsel %vm364, %v4292, %v4327
      %4331 = vrot.lane.b32.xlu0 %v4189, 120
      %v4332 = vpop.permute.xlu0 %4331
      %v4333 = vsel %vm333, %v4323, %v4332
      %4335 = vrot.lane.b32.xlu0 %v4189, 112
      %v4336 = vpop.permute.xlu0 %4335
      %v4337 = vsel %vm364, %v4327, %v4336
      %v4339 = vld [vmem:[%s3] sm:$0xff]
      %v4340 = vld [vmem:[%s3 + $0x8] sm:$0xff]
      %v4341 = vld [vmem:[%s4] sm:$0xff]
      %v4342 = vld [vmem:[%s4 + $0x8] sm:$0xff]
      %4344 = vset.pattern.permute.xlu0 0
      %4345 = vperm.xlu0 %4344, %v4341
      %v4346 = vpop.permute.xlu0 %4345
      %4349 = vset.pattern.permute.xlu0 0
      %4350 = vperm.xlu0 %4349, %v4342
      %v4351 = vpop.permute.xlu0 %4350
      %v4354 = vsel %vm613, %v4339, 0
      %v4357 = vsel %vm613, %v4340, 0
      %4359 = vmatprep.subr.mxu0 %v4174
      %4360 = vmatpush1.msra.mxu0 %v4173
      %4361 = vmatprep.subr.mxu0 %v4236
      %4362 = vmatpush1.msra.mxu0 %v4235
      %4363 = vmatprep.subr.mxu0 %v4294
      %4364 = vmatpush1.msra.mxu0 %v4293
      %4365 = vmatprep.subr.mxu0 %v4175
      %4366 = vmatpush1.msra.mxu0 %v4174
      %4367 = vmatprep.subr.mxu0 %v4237
      %4368 = vmatpush1.msra.mxu0 %v4236
      %4369 = vmatprep.subr.mxu0 %v4295
      %4370 = vmatpush1.msra.mxu0 %v4294
      %4371 = vmatprep.subr.mxu0 %v4176
      %4372 = vmatpush1.msra.mxu0 %v4175
      %4373 = vmatprep.subr.mxu0 %v4238
      %4374 = vmatpush1.msra.mxu0 %v4237
      %4375 = vmatprep.subr.mxu0 %v4296
      %4376 = vmatpush1.msra.mxu0 %v4295
      %4377 = vmatprep.subr.mxu0 0.0
      %4378 = vmatpush1.msra.mxu0 0.0
      %4379 = vmatprep.subr.mxu0 0.0
      %4380 = vmatpush1.msra.mxu0 0.0
      %4381 = vmatprep.subr.mxu0 0.0
      %4382 = vmatpush1.msra.mxu0 0.0
      %4383 = vmatprep.subr.mxu0 0.0
      %4384 = vmatpush1.msra.mxu0 0.0
      %4385 = vmatprep.subr.mxu0 0.0
      %4386 = vmatpush1.msra.mxu0 0.0
      %4387 = vmatprep.subr.mxu0 0.0
      %4388 = vmatpush1.msra.mxu0 0.0
      %4389 = vmatprep.subr.mxu0 0.0
      %4390 = vmatpush1.msra.mxu0 0.0
      %4391 = vmatprep.subr.mxu0 0.0
      %4392 = vmatpush1.msra.mxu0 0.0
      %4393 = vmatprep.subr.mxu0 0.0
      %4394 = vmatpush1.msra.mxu0 0.0
      %4395 = vmatprep.subr.mxu0 0.0
      %4396 = vmatpush1.msra.mxu0 0.0
      %4397 = vmatprep.subr.mxu0 0.0
      %4398 = vmatpush1.msra.mxu0 0.0
      %4399 = vmatprep.subr.mxu0 0.0
      %4400 = vmatpush1.msra.mxu0 0.0
      %4401 = vmatprep.subr.mxu0 0.0
      %4402 = vmatpush1.msra.mxu0 0.0
      %4403 = vmatprep.subr.mxu0 0.0
      %4404 = vmatpush1.msra.mxu0 0.0
      %4405 = vmatprep.subr.mxu0 0.0
      %4406 = vmatpush1.msra.mxu0 0.0
      %4407 = vmatprep.subr.mxu0 0.0
      %4408 = vmatpush1.msra.mxu0 0.0
      %4409 = vmatprep.subr.mxu0 0.0
      %4410 = vmatpush1.msra.mxu0 0.0
      %4411 = vmatprep.subr.mxu0 0.0
      %4412 = vmatpush1.msra.mxu0 0.0
      %4413 = vmatprep.subr.mxu0 0.0
      %4414 = vmatpush1.msra.mxu0 0.0
      %4415 = vmatprep.subr.mxu0 0.0
      %4416 = vmatpush1.msra.mxu0 0.0
      %4417 = vmatprep.subr.mxu0 0.0
      %4418 = vmatpush1.msra.mxu0 0.0
      %4419 = vmatprep.subr.mxu0 0.0
      %4420 = vmatpush1.msra.mxu0 0.0
      %4421 = vmatprep.subr.mxu0 0.0
      %4422 = vmatpush1.msra.mxu0 0.0
      %4423 = vmatprep.mubr.f32.mxu0 0.0
      %4424 = vmatmul.mubr.f32.gmra.mrb[0].mxu0 %v4354
      %v4425 = vpop.f32.mrb[0].mxu0
      %v4426 = vadd.f32 %v4346, %v4425
      %v4427 = vpop.f32.mrb[0].mxu0
      %v4428 = vadd.f32 %v4346, %v4427
      %4429 = vmatprep.mubr.f32.mxu0 0.0
      %4430 = vmatmul.mubr.f32.gmra.mrb[0].mxu0 %v4357
      %v4431 = vpop.f32.mrb[0].mxu0
      %v4432 = vadd.f32 %v4351, %v4431
      %v4433 = vpop.f32.mrb[0].mxu0
      %v4434 = vadd.f32 %v4351, %v4433
      %4435 = vdwg.mxu0
      %4436 = vmatprep.subr.mxu0 %v4176
      %4437 = vmatpush1.msra.mxu0 %v4175
      %4438 = vmatprep.subr.mxu0 %v4238
      %4439 = vmatpush1.msra.mxu0 %v4237
      %4440 = vmatprep.subr.mxu0 %v4296
      %4441 = vmatpush1.msra.mxu0 %v4295
      %4442 = vmatprep.subr.mxu0 %v4177
      %4443 = vmatpush1.msra.mxu0 %v4176
      %4444 = vmatprep.subr.mxu0 %v4239
      %4445 = vmatpush1.msra.mxu0 %v4238
      %4446 = vmatprep.subr.mxu0 %v4297
      %4447 = vmatpush1.msra.mxu0 %v4296
      %4448 = vmatprep.subr.mxu0 %v4178
      %4449 = vmatpush1.msra.mxu0 %v4177
      %4450 = vmatprep.subr.mxu0 %v4240
      %4451 = vmatpush1.msra.mxu0 %v4239
      %4452 = vmatprep.subr.mxu0 %v4298
      %4453 = vmatpush1.msra.mxu0 %v4297
      %4454 = vmatprep.subr.mxu0 0.0
      %4455 = vmatpush1.msra.mxu0 0.0
      %4456 = vmatprep.subr.mxu0 0.0
      %4457 = vmatpush1.msra.mxu0 0.0
      %4458 = vmatprep.subr.mxu0 0.0
      %4459 = vmatpush1.msra.mxu0 0.0
      %4460 = vmatprep.subr.mxu0 0.0
      %4461 = vmatpush1.msra.mxu0 0.0
      %4462 = vmatprep.subr.mxu0 0.0
      %4463 = vmatpush1.msra.mxu0 0.0
      %4464 = vmatprep.subr.mxu0 0.0
      %4465 = vmatpush1.msra.mxu0 0.0
      %4466 = vmatprep.subr.mxu0 0.0
      %4467 = vmatpush1.msra.mxu0 0.0
      %4468 = vmatprep.subr.mxu0 0.0
      %4469 = vmatpush1.msra.mxu0 0.0
      %4470 = vmatprep.subr.mxu0 0.0
      %4471 = vmatpush1.msra.mxu0 0.0
      %4472 = vmatprep.subr.mxu0 0.0
      %4473 = vmatpush1.msra.mxu0 0.0
      %4474 = vmatprep.subr.mxu0 0.0
      %4475 = vmatpush1.msra.mxu0 0.0
      %4476 = vmatprep.subr.mxu0 0.0
      %4477 = vmatpush1.msra.mxu0 0.0
      %4478 = vmatprep.subr.mxu0 0.0
      %4479 = vmatpush1.msra.mxu0 0.0
      %4480 = vmatprep.subr.mxu0 0.0
      %4481 = vmatpush1.msra.mxu0 0.0
      %4482 = vmatprep.subr.mxu0 0.0
      %4483 = vmatpush1.msra.mxu0 0.0
      %4484 = vmatprep.subr.mxu0 0.0
      %4485 = vmatpush1.msra.mxu0 0.0
      %4486 = vmatprep.subr.mxu0 0.0
      %4487 = vmatpush1.msra.mxu0 0.0
      %4488 = vmatprep.subr.mxu0 0.0
      %4489 = vmatpush1.msra.mxu0 0.0
      %4490 = vmatprep.subr.mxu0 0.0
      %4491 = vmatpush1.msra.mxu0 0.0
      %4492 = vmatprep.subr.mxu0 0.0
      %4493 = vmatpush1.msra.mxu0 0.0
      %4494 = vmatprep.subr.mxu0 0.0
      %4495 = vmatpush1.msra.mxu0 0.0
      %4496 = vmatprep.subr.mxu0 0.0
      %4497 = vmatpush1.msra.mxu0 0.0
      %4498 = vmatprep.subr.mxu0 0.0
      %4499 = vmatpush1.msra.mxu0 0.0
      %4500 = vmatprep.mubr.f32.mxu0 0.0
      %4501 = vmatmul.mubr.f32.gmra.mrb[0].mxu0 %v4354
      %v4502 = vpop.f32.mrb[0].mxu0
      %v4503 = vadd.f32 %v4346, %v4502
      %v4504 = vpop.f32.mrb[0].mxu0
      %v4505 = vadd.f32 %v4346, %v4504
      %4506 = vmatprep.mubr.f32.mxu0 0.0
      %4507 = vmatmul.mubr.f32.gmra.mrb[0].mxu0 %v4357
      %v4508 = vpop.f32.mrb[0].mxu0
      %v4509 = vadd.f32 %v4351, %v4508
      %v4510 = vpop.f32.mrb[0].mxu0
      %v4511 = vadd.f32 %v4351, %v4510
      %4512 = vdwg.mxu0
      %4513 = vmatprep.subr.mxu0 %v4178
      %4514 = vmatpush1.msra.mxu0 %v4177
      %4515 = vmatprep.subr.mxu0 %v4240
      %4516 = vmatpush1.msra.mxu0 %v4239
      %4517 = vmatprep.subr.mxu0 %v4298
      %4518 = vmatpush1.msra.mxu0 %v4297
      %4519 = vmatprep.subr.mxu0 %v4179
      %4520 = vmatpush1.msra.mxu0 %v4178
      %4521 = vmatprep.subr.mxu0 %v4241
      %4522 = vmatpush1.msra.mxu0 %v4240
      %4523 = vmatprep.subr.mxu0 %v4299
      %4524 = vmatpush1.msra.mxu0 %v4298
      %4525 = vmatprep.subr.mxu0 %v4180
      %4526 = vmatpush1.msra.mxu0 %v4179
      %4527 = vmatprep.subr.mxu0 %v4242
      %4528 = vmatpush1.msra.mxu0 %v4241
      %4529 = vmatprep.subr.mxu0 %v4300
      %4530 = vmatpush1.msra.mxu0 %v4299
      %4531 = vmatprep.subr.mxu0 0.0
      %4532 = vmatpush1.msra.mxu0 0.0
      %4533 = vmatprep.subr.mxu0 0.0
      %4534 = vmatpush1.msra.mxu0 0.0
      %4535 = vmatprep.subr.mxu0 0.0
      %4536 = vmatpush1.msra.mxu0 0.0
      %4537 = vmatprep.subr.mxu0 0.0
      %4538 = vmatpush1.msra.mxu0 0.0
      %4539 = vmatprep.subr.mxu0 0.0
      %4540 = vmatpush1.msra.mxu0 0.0
      %4541 = vmatprep.subr.mxu0 0.0
      %4542 = vmatpush1.msra.mxu0 0.0
      %4543 = vmatprep.subr.mxu0 0.0
      %4544 = vmatpush1.msra.mxu0 0.0
      %4545 = vmatprep.subr.mxu0 0.0
      %4546 = vmatpush1.msra.mxu0 0.0
      %4547 = vmatprep.subr.mxu0 0.0
      %4548 = vmatpush1.msra.mxu0 0.0
      %4549 = vmatprep.subr.mxu0 0.0
      %4550 = vmatpush1.msra.mxu0 0.0
      %4551 = vmatprep.subr.mxu0 0.0
      %4552 = vmatpush1.msra.mxu0 0.0
      %4553 = vmatprep.subr.mxu0 0.0
      %4554 = vmatpush1.msra.mxu0 0.0
      %4555 = vmatprep.subr.mxu0 0.0
      %4556 = vmatpush1.msra.mxu0 0.0
      %4557 = vmatprep.subr.mxu0 0.0
      %4558 = vmatpush1.msra.mxu0 0.0
      %4559 = vmatprep.subr.mxu0 0.0
      %4560 = vmatpush1.msra.mxu0 0.0
      %4561 = vmatprep.subr.mxu0 0.0
      %4562 = vmatpush1.msra.mxu0 0.0
      %4563 = vmatprep.subr.mxu0 0.0
      %4564 = vmatpush1.msra.mxu0 0.0
      %4565 = vmatprep.subr.mxu0 0.0
      %4566 = vmatpush1.msra.mxu0 0.0
      %4567 = vmatprep.subr.mxu0 0.0
      %4568 = vmatpush1.msra.mxu0 0.0
      %4569 = vmatprep.subr.mxu0 0.0
      %4570 = vmatpush1.msra.mxu0 0.0
      %4571 = vmatprep.subr.mxu0 0.0
      %4572 = vmatpush1.msra.mxu0 0.0
      %4573 = vmatprep.subr.mxu0 0.0
      %4574 = vmatpush1.msra.mxu0 0.0
      %4575 = vmatprep.subr.mxu0 0.0
      %4576 = vmatpush1.msra.mxu0 0.0
      %4577 = vmatprep.mubr.f32.mxu0 0.0
      %4578 = vmatmul.mubr.f32.gmra.mrb[0].mxu0 %v4354
      %v4579 = vpop.f32.mrb[0].mxu0
      %v4580 = vadd.f32 %v4346, %v4579
      %v4581 = vpop.f32.mrb[0].mxu0
      %v4582 = vadd.f32 %v4346, %v4581
      %4583 = vmatprep.mubr.f32.mxu0 0.0
      %4584 = vmatmul.mubr.f32.gmra.mrb[0].mxu0 %v4357
      %v4585 = vpop.f32.mrb[0].mxu0
      %v4586 = vadd.f32 %v4351, %v4585
      %v4587 = vpop.f32.mrb[0].mxu0
      %v4588 = vadd.f32 %v4351, %v4587
      %4589 = vdwg.mxu0
      %4590 = vmatprep.subr.mxu0 %v4180
      %4591 = vmatpush1.msra.mxu0 %v4179
      %4592 = vmatprep.subr.mxu0 %v4242
      %4593 = vmatpush1.msra.mxu0 %v4241
      %4594 = vmatprep.subr.mxu0 %v4300
      %4595 = vmatpush1.msra.mxu0 %v4299
      %4596 = vmatprep.subr.mxu0 %v4181
      %4597 = vmatpush1.msra.mxu0 %v4180
      %4598 = vmatprep.subr.mxu0 %v4243
      %4599 = vmatpush1.msra.mxu0 %v4242
      %4600 = vmatprep.subr.mxu0 %v4301
      %4601 = vmatpush1.msra.mxu0 %v4300
      %4602 = vmatprep.subr.mxu0 %v4182
      %4603 = vmatpush1.msra.mxu0 %v4181
      %4604 = vmatprep.subr.mxu0 %v4244
      %4605 = vmatpush1.msra.mxu0 %v4243
      %4606 = vmatprep.subr.mxu0 %v4302
      %4607 = vmatpush1.msra.mxu0 %v4301
      %4608 = vmatprep.subr.mxu0 0.0
      %4609 = vmatpush1.msra.mxu0 0.0
      %4610 = vmatprep.subr.mxu0 0.0
      %4611 = vmatpush1.msra.mxu0 0.0
      %4612 = vmatprep.subr.mxu0 0.0
      %4613 = vmatpush1.msra.mxu0 0.0
      %4614 = vmatprep.subr.mxu0 0.0
      %4615 = vmatpush1.msra.mxu0 0.0
      %4616 = vmatprep.subr.mxu0 0.0
      %4617 = vmatpush1.msra.mxu0 0.0
      %4618 = vmatprep.subr.mxu0 0.0
      %4619 = vmatpush1.msra.mxu0 0.0
      %4620 = vmatprep.subr.mxu0 0.0
      %4621 = vmatpush1.msra.mxu0 0.0
      %4622 = vmatprep.subr.mxu0 0.0
      %4623 = vmatpush1.msra.mxu0 0.0
      %4624 = vmatprep.subr.mxu0 0.0
      %4625 = vmatpush1.msra.mxu0 0.0
      %4626 = vmatprep.subr.mxu0 0.0
      %4627 = vmatpush1.msra.mxu0 0.0
      %4628 = vmatprep.subr.mxu0 0.0
      %4629 = vmatpush1.msra.mxu0 0.0
      %4630 = vmatprep.subr.mxu0 0.0
      %4631 = vmatpush1.msra.mxu0 0.0
      %4632 = vmatprep.subr.mxu0 0.0
      %4633 = vmatpush1.msra.mxu0 0.0
      %4634 = vmatprep.subr.mxu0 0.0
      %4635 = vmatpush1.msra.mxu0 0.0
      %4636 = vmatprep.subr.mxu0 0.0
      %4637 = vmatpush1.msra.mxu0 0.0
      %4638 = vmatprep.subr.mxu0 0.0
      %4639 = vmatpush1.msra.mxu0 0.0
      %4640 = vmatprep.subr.mxu0 0.0
      %4641 = vmatpush1.msra.mxu0 0.0
      %4642 = vmatprep.subr.mxu0 0.0
      %4643 = vmatpush1.msra.mxu0 0.0
      %4644 = vmatprep.subr.mxu0 0.0
      %4645 = vmatpush1.msra.mxu0 0.0
      %4646 = vmatprep.subr.mxu0 0.0
      %4647 = vmatpush1.msra.mxu0 0.0
      %4648 = vmatprep.subr.mxu0 0.0
      %4649 = vmatpush1.msra.mxu0 0.0
      %4650 = vmatprep.subr.mxu0 0.0
      %4651 = vmatpush1.msra.mxu0 0.0
      %4652 = vmatprep.subr.mxu0 0.0
      %4653 = vmatpush1.msra.mxu0 0.0
      %4654 = vmatprep.mubr.f32.mxu0 0.0
      %4655 = vmatmul.mubr.f32.gmra.mrb[0].mxu0 %v4354
      %v4656 = vpop.f32.mrb[0].mxu0
      %v4657 = vadd.f32 %v4346, %v4656
      %v4658 = vpop.f32.mrb[0].mxu0
      %v4659 = vadd.f32 %v4346, %v4658
      %4660 = vmatprep.mubr.f32.mxu0 0.0
      %4661 = vmatmul.mubr.f32.gmra.mrb[0].mxu0 %v4357
      %v4662 = vpop.f32.mrb[0].mxu0
      %v4663 = vadd.f32 %v4351, %v4662
      %v4664 = vpop.f32.mrb[0].mxu0
      %v4665 = vadd.f32 %v4351, %v4664
      %4666 = vdwg.mxu0
      %4667 = vmatprep.subr.mxu0 %v4182
      %4668 = vmatpush1.msra.mxu0 %v4181
      %4669 = vmatprep.subr.mxu0 %v4244
      %4670 = vmatpush1.msra.mxu0 %v4243
      %4671 = vmatprep.subr.mxu0 %v4302
      %4672 = vmatpush1.msra.mxu0 %v4301
      %4673 = vmatprep.subr.mxu0 %v4183
      %4674 = vmatpush1.msra.mxu0 %v4182
      %4675 = vmatprep.subr.mxu0 %v4245
      %4676 = vmatpush1.msra.mxu0 %v4244
      %4677 = vmatprep.subr.mxu0 %v4303
      %4678 = vmatpush1.msra.mxu0 %v4302
      %4679 = vmatprep.subr.mxu0 %v4184
      %4680 = vmatpush1.msra.mxu0 %v4183
      %4681 = vmatprep.subr.mxu0 %v4246
      %4682 = vmatpush1.msra.mxu0 %v4245
      %4683 = vmatprep.subr.mxu0 %v4304
      %4684 = vmatpush1.msra.mxu0 %v4303
      %4685 = vmatprep.subr.mxu0 0.0
      %4686 = vmatpush1.msra.mxu0 0.0
      %4687 = vmatprep.subr.mxu0 0.0
      %4688 = vmatpush1.msra.mxu0 0.0
      %4689 = vmatprep.subr.mxu0 0.0
      %4690 = vmatpush1.msra.mxu0 0.0
      %4691 = vmatprep.subr.mxu0 0.0
      %4692 = vmatpush1.msra.mxu0 0.0
      %4693 = vmatprep.subr.mxu0 0.0
      %4694 = vmatpush1.msra.mxu0 0.0
      %4695 = vmatprep.subr.mxu0 0.0
      %4696 = vmatpush1.msra.mxu0 0.0
      %4697 = vmatprep.subr.mxu0 0.0
      %4698 = vmatpush1.msra.mxu0 0.0
      %4699 = vmatprep.subr.mxu0 0.0
      %4700 = vmatpush1.msra.mxu0 0.0
      %4701 = vmatprep.subr.mxu0 0.0
      %4702 = vmatpush1.msra.mxu0 0.0
      %4703 = vmatprep.subr.mxu0 0.0
      %4704 = vmatpush1.msra.mxu0 0.0
      %4705 = vmatprep.subr.mxu0 0.0
      %4706 = vmatpush1.msra.mxu0 0.0
      %4707 = vmatprep.subr.mxu0 0.0
      %4708 = vmatpush1.msra.mxu0 0.0
      %4709 = vmatprep.subr.mxu0 0.0
      %4710 = vmatpush1.msra.mxu0 0.0
      %4711 = vmatprep.subr.mxu0 0.0
      %4712 = vmatpush1.msra.mxu0 0.0
      %4713 = vmatprep.subr.mxu0 0.0
      %4714 = vmatpush1.msra.mxu0 0.0
      %4715 = vmatprep.subr.mxu0 0.0
      %4716 = vmatpush1.msra.mxu0 0.0
      %4717 = vmatprep.subr.mxu0 0.0
      %4718 = vmatpush1.msra.mxu0 0.0
      %4719 = vmatprep.subr.mxu0 0.0
      %4720 = vmatpush1.msra.mxu0 0.0
      %4721 = vmatprep.subr.mxu0 0.0
      %4722 = vmatpush1.msra.mxu0 0.0
      %4723 = vmatprep.subr.mxu0 0.0
      %4724 = vmatpush1.msra.mxu0 0.0
      %4725 = vmatprep.subr.mxu0 0.0
      %4726 = vmatpush1.msra.mxu0 0.0
      %4727 = vmatprep.subr.mxu0 0.0
      %4728 = vmatpush1.msra.mxu0 0.0
      %4729 = vmatprep.subr.mxu0 0.0
      %4730 = vmatpush1.msra.mxu0 0.0
      %4731 = vmatprep.mubr.f32.mxu0 0.0
      %4732 = vmatmul.mubr.f32.gmra.mrb[0].mxu0 %v4354
      %v4733 = vpop.f32.mrb[0].mxu0
      %v4734 = vadd.f32 %v4346, %v4733
      %v4735 = vpop.f32.mrb[0].mxu0
      %v4736 = vadd.f32 %v4346, %v4735
      %4737 = vmatprep.mubr.f32.mxu0 0.0
      %4738 = vmatmul.mubr.f32.gmra.mrb[0].mxu0 %v4357
      %v4739 = vpop.f32.mrb[0].mxu0
      %v4740 = vadd.f32 %v4351, %v4739
      %v4741 = vpop.f32.mrb[0].mxu0
      %v4742 = vadd.f32 %v4351, %v4741
      %4743 = vdwg.mxu0
      %4744 = vmatprep.subr.mxu0 %v4184
      %4745 = vmatpush1.msra.mxu0 %v4183
      %4746 = vmatprep.subr.mxu0 %v4246
      %4747 = vmatpush1.msra.mxu0 %v4245
      %4748 = vmatprep.subr.mxu0 %v4304
      %4749 = vmatpush1.msra.mxu0 %v4303
      %4750 = vmatprep.subr.mxu0 %v4185
      %4751 = vmatpush1.msra.mxu0 %v4184
      %4752 = vmatprep.subr.mxu0 %v4247
      %4753 = vmatpush1.msra.mxu0 %v4246
      %4754 = vmatprep.subr.mxu0 %v4305
      %4755 = vmatpush1.msra.mxu0 %v4304
      %4756 = vmatprep.subr.mxu0 %v4186
      %4757 = vmatpush1.msra.mxu0 %v4185
      %4758 = vmatprep.subr.mxu0 %v4248
      %4759 = vmatpush1.msra.mxu0 %v4247
      %4760 = vmatprep.subr.mxu0 %v4306
      %4761 = vmatpush1.msra.mxu0 %v4305
      %4762 = vmatprep.subr.mxu0 0.0
      %4763 = vmatpush1.msra.mxu0 0.0
      %4764 = vmatprep.subr.mxu0 0.0
      %4765 = vmatpush1.msra.mxu0 0.0
      %4766 = vmatprep.subr.mxu0 0.0
      %4767 = vmatpush1.msra.mxu0 0.0
      %4768 = vmatprep.subr.mxu0 0.0
      %4769 = vmatpush1.msra.mxu0 0.0
      %4770 = vmatprep.subr.mxu0 0.0
      %4771 = vmatpush1.msra.mxu0 0.0
      %4772 = vmatprep.subr.mxu0 0.0
      %4773 = vmatpush1.msra.mxu0 0.0
      %4774 = vmatprep.subr.mxu0 0.0
      %4775 = vmatpush1.msra.mxu0 0.0
      %4776 = vmatprep.subr.mxu0 0.0
      %4777 = vmatpush1.msra.mxu0 0.0
      %4778 = vmatprep.subr.mxu0 0.0
      %4779 = vmatpush1.msra.mxu0 0.0
      %4780 = vmatprep.subr.mxu0 0.0
      %4781 = vmatpush1.msra.mxu0 0.0
      %4782 = vmatprep.subr.mxu0 0.0
      %4783 = vmatpush1.msra.mxu0 0.0
      %4784 = vmatprep.subr.mxu0 0.0
      %4785 = vmatpush1.msra.mxu0 0.0
      %4786 = vmatprep.subr.mxu0 0.0
      %4787 = vmatpush1.msra.mxu0 0.0
      %4788 = vmatprep.subr.mxu0 0.0
      %4789 = vmatpush1.msra.mxu0 0.0
      %4790 = vmatprep.subr.mxu0 0.0
      %4791 = vmatpush1.msra.mxu0 0.0
      %4792 = vmatprep.subr.mxu0 0.0
      %4793 = vmatpush1.msra.mxu0 0.0
      %4794 = vmatprep.subr.mxu0 0.0
      %4795 = vmatpush1.msra.mxu0 0.0
      %4796 = vmatprep.subr.mxu0 0.0
      %4797 = vmatpush1.msra.mxu0 0.0
      %4798 = vmatprep.subr.mxu0 0.0
      %4799 = vmatpush1.msra.mxu0 0.0
      %4800 = vmatprep.subr.mxu0 0.0
      %4801 = vmatpush1.msra.mxu0 0.0
      %4802 = vmatprep.subr.mxu0 0.0
      %4803 = vmatpush1.msra.mxu0 0.0
      %4804 = vmatprep.subr.mxu0 0.0
      %4805 = vmatpush1.msra.mxu0 0.0
      %4806 = vmatprep.subr.mxu0 0.0
      %4807 = vmatpush1.msra.mxu0 0.0
      %4808 = vmatprep.mubr.f32.mxu0 0.0
      %4809 = vmatmul.mubr.f32.gmra.mrb[0].mxu0 %v4354
      %v4810 = vpop.f32.mrb[0].mxu0
      %v4811 = vadd.f32 %v4346, %v4810
      %v4812 = vpop.f32.mrb[0].mxu0
      %v4813 = vadd.f32 %v4346, %v4812
      %4814 = vmatprep.mubr.f32.mxu0 0.0
      %4815 = vmatmul.mubr.f32.gmra.mrb[0].mxu0 %v4357
      %v4816 = vpop.f32.mrb[0].mxu0
      %v4817 = vadd.f32 %v4351, %v4816
      %v4818 = vpop.f32.mrb[0].mxu0
      %v4819 = vadd.f32 %v4351, %v4818
      %4820 = vdwg.mxu0
      %4821 = vmatprep.subr.mxu0 %v4186
      %4822 = vmatpush1.msra.mxu0 %v4185
      %4823 = vmatprep.subr.mxu0 %v4248
      %4824 = vmatpush1.msra.mxu0 %v4247
      %4825 = vmatprep.subr.mxu0 %v4306
      %4826 = vmatpush1.msra.mxu0 %v4305
      %4827 = vmatprep.subr.mxu0 %v4187
      %4828 = vmatpush1.msra.mxu0 %v4186
      %4829 = vmatprep.subr.mxu0 %v4324
      %4830 = vmatpush1.msra.mxu0 %v4248
      %4831 = vmatprep.subr.mxu0 %v4328
      %4832 = vmatpush1.msra.mxu0 %v4306
      %4833 = vmatprep.subr.mxu0 %v4188
      %4834 = vmatpush1.msra.mxu0 %v4187
      %4835 = vmatprep.subr.mxu0 %v4333
      %4836 = vmatpush1.msra.mxu0 %v4324
      %4837 = vmatprep.subr.mxu0 %v4337
      %4838 = vmatpush1.msra.mxu0 %v4328
      %4839 = vmatprep.subr.mxu0 0.0
      %4840 = vmatpush1.msra.mxu0 0.0
      %4841 = vmatprep.subr.mxu0 0.0
      %4842 = vmatpush1.msra.mxu0 0.0
      %4843 = vmatprep.subr.mxu0 0.0
      %4844 = vmatpush1.msra.mxu0 0.0
      %4845 = vmatprep.subr.mxu0 0.0
      %4846 = vmatpush1.msra.mxu0 0.0
      %4847 = vmatprep.subr.mxu0 0.0
      %4848 = vmatpush1.msra.mxu0 0.0
      %4849 = vmatprep.subr.mxu0 0.0
      %4850 = vmatpush1.msra.mxu0 0.0
      %4851 = vmatprep.subr.mxu0 0.0
      %4852 = vmatpush1.msra.mxu0 0.0
      %4853 = vmatprep.subr.mxu0 0.0
      %4854 = vmatpush1.msra.mxu0 0.0
      %4855 = vmatprep.subr.mxu0 0.0
      %4856 = vmatpush1.msra.mxu0 0.0
      %4857 = vmatprep.subr.mxu0 0.0
      %4858 = vmatpush1.msra.mxu0 0.0
      %4859 = vmatprep.subr.mxu0 0.0
      %4860 = vmatpush1.msra.mxu0 0.0
      %4861 = vmatprep.subr.mxu0 0.0
      %4862 = vmatpush1.msra.mxu0 0.0
      %4863 = vmatprep.subr.mxu0 0.0
      %4864 = vmatpush1.msra.mxu0 0.0
      %4865 = vmatprep.subr.mxu0 0.0
      %4866 = vmatpush1.msra.mxu0 0.0
      %4867 = vmatprep.subr.mxu0 0.0
      %4868 = vmatpush1.msra.mxu0 0.0
      %4869 = vmatprep.subr.mxu0 0.0
      %4870 = vmatpush1.msra.mxu0 0.0
      %4871 = vmatprep.subr.mxu0 0.0
      %4872 = vmatpush1.msra.mxu0 0.0
      %4873 = vmatprep.subr.mxu0 0.0
      %4874 = vmatpush1.msra.mxu0 0.0
      %4875 = vmatprep.subr.mxu0 0.0
      %4876 = vmatpush1.msra.mxu0 0.0
      %4877 = vmatprep.subr.mxu0 0.0
      %4878 = vmatpush1.msra.mxu0 0.0
      %4879 = vmatprep.subr.mxu0 0.0
      %4880 = vmatpush1.msra.mxu0 0.0
      %4881 = vmatprep.subr.mxu0 0.0
      %4882 = vmatpush1.msra.mxu0 0.0
      %4883 = vmatprep.subr.mxu0 0.0
      %4884 = vmatpush1.msra.mxu0 0.0
      %4885 = vmatprep.mubr.f32.mxu0 0.0
      %4886 = vmatmul.mubr.f32.gmra.mrb[0].mxu0 %v4354
      %v4887 = vpop.f32.mrb[0].mxu0
      %v4888 = vadd.f32 %v4346, %v4887
      %v4889 = vpop.f32.mrb[0].mxu0
      %v4890 = vadd.f32 %v4346, %v4889
      %4891 = vmatprep.mubr.f32.mxu0 0.0
      %4892 = vmatmul.mubr.f32.gmra.mrb[0].mxu0 %v4357
      %v4893 = vpop.f32.mrb[0].mxu0
      %v4894 = vadd.f32 %v4351, %v4893
      %v4895 = vpop.f32.mrb[0].mxu0
      %v4896 = vadd.f32 %v4351, %v4895
      %4897 = vdwg.mxu0
      %v4898 = vmax.f32 %v4426, 0.0
      %v4899 = vmax.f32 %v4428, 0.0
      %v4900 = vmax.f32 %v4503, 0.0
      %v4901 = vmax.f32 %v4505, 0.0
      %v4902 = vmax.f32 %v4580, 0.0
      %v4903 = vmax.f32 %v4582, 0.0
      %v4904 = vmax.f32 %v4657, 0.0
      %v4905 = vmax.f32 %v4659, 0.0
      %v4906 = vmax.f32 %v4734, 0.0
      %v4907 = vmax.f32 %v4736, 0.0
      %v4908 = vmax.f32 %v4811, 0.0
      %v4909 = vmax.f32 %v4813, 0.0
      %v4910 = vmax.f32 %v4888, 0.0
      %v4911 = vmax.f32 %v4890, 0.0
      %v4912 = vmax.f32 %v4432, 0.0
      %v4913 = vmax.f32 %v4434, 0.0
      %v4914 = vmax.f32 %v4509, 0.0
      %v4915 = vmax.f32 %v4511, 0.0
      %v4916 = vmax.f32 %v4586, 0.0
      %v4917 = vmax.f32 %v4588, 0.0
      %v4918 = vmax.f32 %v4663, 0.0
      %v4919 = vmax.f32 %v4665, 0.0
      %v4920 = vmax.f32 %v4740, 0.0
      %v4921 = vmax.f32 %v4742, 0.0
      %v4922 = vmax.f32 %v4817, 0.0
      %v4923 = vmax.f32 %v4819, 0.0
      %v4924 = vmax.f32 %v4894, 0.0
      %v4925 = vmax.f32 %v4896, 0.0
      %v4926 = vmax.f32 %v4898, %v4899
      %v4927 = vmax.f32 %v4912, %v4913
      %4930 = vrot.lane.b32.xlu0 %v4926, 120
      %v4931 = vpop.permute.xlu0 %4930
      %4932 = vrot.lane.b32.xlu0 %v4927, 120
      %v4933 = vpop.permute.xlu0 %4932
      %v4936 = vmax.f32 %v4926, %v4931
      %v4937 = vmax.f32 %v4927, %v4933
      %v4938 = vmax.f32 %v4900, %v4901
      %v4939 = vmax.f32 %v4914, %v4915
      %4942 = vrot.lane.b32.xlu0 %v4938, 120
      %v4943 = vpop.permute.xlu0 %4942
      %4944 = vrot.lane.b32.xlu0 %v4939, 120
      %v4945 = vpop.permute.xlu0 %4944
      %v4948 = vmax.f32 %v4938, %v4943
      %v4949 = vmax.f32 %v4939, %v4945
      %v4950 = vmax.f32 %v4902, %v4903
      %v4951 = vmax.f32 %v4916, %v4917
      %4954 = vrot.lane.b32.xlu0 %v4950, 120
      %v4955 = vpop.permute.xlu0 %4954
      %4956 = vrot.lane.b32.xlu0 %v4951, 120
      %v4957 = vpop.permute.xlu0 %4956
      %v4960 = vmax.f32 %v4950, %v4955
      %v4961 = vmax.f32 %v4951, %v4957
      %v4962 = vmax.f32 %v4904, %v4905
      %v4963 = vmax.f32 %v4918, %v4919
      %4966 = vrot.lane.b32.xlu0 %v4962, 120
      %v4967 = vpop.permute.xlu0 %4966
      %4968 = vrot.lane.b32.xlu0 %v4963, 120
      %v4969 = vpop.permute.xlu0 %4968
      %v4972 = vmax.f32 %v4962, %v4967
      %v4973 = vmax.f32 %v4963, %v4969
      %v4974 = vmax.f32 %v4906, %v4907
      %v4975 = vmax.f32 %v4920, %v4921
      %4978 = vrot.lane.b32.xlu0 %v4974, 120
      %v4979 = vpop.permute.xlu0 %4978
      %4980 = vrot.lane.b32.xlu0 %v4975, 120
      %v4981 = vpop.permute.xlu0 %4980
      %v4984 = vmax.f32 %v4974, %v4979
      %v4985 = vmax.f32 %v4975, %v4981
      %v4986 = vmax.f32 %v4908, %v4909
      %v4987 = vmax.f32 %v4922, %v4923
      %4990 = vrot.lane.b32.xlu0 %v4986, 120
      %v4991 = vpop.permute.xlu0 %4990
      %4992 = vrot.lane.b32.xlu0 %v4987, 120
      %v4993 = vpop.permute.xlu0 %4992
      %v4996 = vmax.f32 %v4986, %v4991
      %v4997 = vmax.f32 %v4987, %v4993
      %v4998 = vmax.f32 %v4910, %v4911
      %v4999 = vmax.f32 %v4924, %v4925
      %5002 = vrot.lane.b32.xlu0 %v4998, 120
      %v5003 = vpop.permute.xlu0 %5002
      %5004 = vrot.lane.b32.xlu0 %v4999, 120
      %v5005 = vpop.permute.xlu0 %5004
      %v5008 = vmax.f32 %v4998, %v5003
      %v5009 = vmax.f32 %v4999, %v5005
      %5012 = vrot.lane.b32.xlu0 %v4936, 112
      %v5013 = vpop.permute.xlu0 %5012
      %5014 = vrot.lane.b32.xlu0 %v4937, 112
      %v5015 = vpop.permute.xlu0 %5014
      %5018 = vrot.lane.b32.xlu0 %v4936, 96
      %v5019 = vpop.permute.xlu0 %5018
      %5020 = vrot.lane.b32.xlu0 %v4937, 96
      %v5021 = vpop.permute.xlu0 %5020
      %5024 = vrot.lane.b32.xlu0 %v4936, 80
      %v5025 = vpop.permute.xlu0 %5024
      %5026 = vrot.lane.b32.xlu0 %v4937, 80
      %v5027 = vpop.permute.xlu0 %5026
      %5030 = vrot.lane.b32.xlu0 %v4936, 64
      %v5031 = vpop.permute.xlu0 %5030
      %5032 = vrot.lane.b32.xlu0 %v4937, 64
      %v5033 = vpop.permute.xlu0 %5032
      %5036 = vrot.lane.b32.xlu0 %v4936, 48
      %v5037 = vpop.permute.xlu0 %5036
      %5038 = vrot.lane.b32.xlu0 %v4937, 48
      %v5039 = vpop.permute.xlu0 %5038
      %5042 = vrot.lane.b32.xlu0 %v4936, 32
      %v5043 = vpop.permute.xlu0 %5042
      %5044 = vrot.lane.b32.xlu0 %v4937, 32
      %v5045 = vpop.permute.xlu0 %5044
      %5050 = vrot.lane.b32.xlu0 %v4948, 112
      %v5051 = vpop.permute.xlu0 %5050
      %5052 = vrot.lane.b32.xlu0 %v4949, 112
      %v5053 = vpop.permute.xlu0 %5052
      %5056 = vrot.lane.b32.xlu0 %v4948, 96
      %v5057 = vpop.permute.xlu0 %5056
      %5058 = vrot.lane.b32.xlu0 %v4949, 96
      %v5059 = vpop.permute.xlu0 %5058
      %5062 = vrot.lane.b32.xlu0 %v4948, 80
      %v5063 = vpop.permute.xlu0 %5062
      %5064 = vrot.lane.b32.xlu0 %v4949, 80
      %v5065 = vpop.permute.xlu0 %5064
      %5068 = vrot.lane.b32.xlu0 %v4948, 64
      %v5069 = vpop.permute.xlu0 %5068
      %5070 = vrot.lane.b32.xlu0 %v4949, 64
      %v5071 = vpop.permute.xlu0 %5070
      %5074 = vrot.lane.b32.xlu0 %v4948, 48
      %v5075 = vpop.permute.xlu0 %5074
      %5076 = vrot.lane.b32.xlu0 %v4949, 48
      %v5077 = vpop.permute.xlu0 %5076
      %5080 = vrot.lane.b32.xlu0 %v4948, 32
      %v5081 = vpop.permute.xlu0 %5080
      %5082 = vrot.lane.b32.xlu0 %v4949, 32
      %v5083 = vpop.permute.xlu0 %5082
      %5088 = vrot.lane.b32.xlu0 %v4960, 112
      %v5089 = vpop.permute.xlu0 %5088
      %5090 = vrot.lane.b32.xlu0 %v4961, 112
      %v5091 = vpop.permute.xlu0 %5090
      %5094 = vrot.lane.b32.xlu0 %v4960, 96
      %v5095 = vpop.permute.xlu0 %5094
      %5096 = vrot.lane.b32.xlu0 %v4961, 96
      %v5097 = vpop.permute.xlu0 %5096
      %5098 = vrot.lane.b32.xlu0 %v4960, 80
      %v5099 = vpop.permute.xlu0 %5098
      %5100 = vrot.lane.b32.xlu0 %v4961, 80
      %v5101 = vpop.permute.xlu0 %5100
      %5102 = vrot.lane.b32.xlu0 %v4960, 64
      %v5103 = vpop.permute.xlu0 %5102
      %5104 = vrot.lane.b32.xlu0 %v4961, 64
      %v5105 = vpop.permute.xlu0 %5104
      %5108 = vrot.lane.b32.xlu0 %v4972, 32
      %v5109 = vpop.permute.xlu0 %5108
      %5110 = vrot.lane.b32.xlu0 %v4973, 32
      %v5111 = vpop.permute.xlu0 %5110
      %5112 = vrot.lane.b32.xlu0 %v4972, 16
      %v5113 = vpop.permute.xlu0 %5112
      %5114 = vrot.lane.b32.xlu0 %v4973, 16
      %v5115 = vpop.permute.xlu0 %5114
      %5116 = vrot.lane.b32.xlu0 %v4972, 112
      %v5117 = vpop.permute.xlu0 %5116
      %5118 = vrot.lane.b32.xlu0 %v4973, 112
      %v5119 = vpop.permute.xlu0 %5118
      %5120 = vrot.lane.b32.xlu0 %v4972, 96
      %v5121 = vpop.permute.xlu0 %5120
      %5122 = vrot.lane.b32.xlu0 %v4973, 96
      %v5123 = vpop.permute.xlu0 %5122
      %5124 = vrot.lane.b32.xlu0 %v4972, 80
      %v5125 = vpop.permute.xlu0 %5124
      %5126 = vrot.lane.b32.xlu0 %v4973, 80
      %v5127 = vpop.permute.xlu0 %5126
      %5128 = vrot.lane.b32.xlu0 %v4972, 64
      %v5129 = vpop.permute.xlu0 %5128
      %5130 = vrot.lane.b32.xlu0 %v4973, 64
      %v5131 = vpop.permute.xlu0 %5130
      %5134 = vrot.lane.b32.xlu0 %v4984, 32
      %v5135 = vpop.permute.xlu0 %5134
      %5136 = vrot.lane.b32.xlu0 %v4985, 32
      %v5137 = vpop.permute.xlu0 %5136
      %5138 = vrot.lane.b32.xlu0 %v4984, 16
      %v5139 = vpop.permute.xlu0 %5138
      %5140 = vrot.lane.b32.xlu0 %v4985, 16
      %v5141 = vpop.permute.xlu0 %5140
      %5142 = vrot.lane.b32.xlu0 %v4984, 112
      %v5143 = vpop.permute.xlu0 %5142
      %5144 = vrot.lane.b32.xlu0 %v4985, 112
      %v5145 = vpop.permute.xlu0 %5144
      %5146 = vrot.lane.b32.xlu0 %v4984, 96
      %v5147 = vpop.permute.xlu0 %5146
      %5148 = vrot.lane.b32.xlu0 %v4985, 96
      %v5149 = vpop.permute.xlu0 %5148
      %5152 = vrot.lane.b32.xlu0 %v4996, 64
      %v5153 = vpop.permute.xlu0 %5152
      %5154 = vrot.lane.b32.xlu0 %v4997, 64
      %v5155 = vpop.permute.xlu0 %5154
      %5156 = vrot.lane.b32.xlu0 %v4996, 48
      %v5157 = vpop.permute.xlu0 %5156
      %5158 = vrot.lane.b32.xlu0 %v4997, 48
      %v5159 = vpop.permute.xlu0 %5158
      %5160 = vrot.lane.b32.xlu0 %v4996, 32
      %v5161 = vpop.permute.xlu0 %5160
      %5162 = vrot.lane.b32.xlu0 %v4997, 32
      %v5163 = vpop.permute.xlu0 %5162
      %5164 = vrot.lane.b32.xlu0 %v4996, 16
      %v5165 = vpop.permute.xlu0 %5164
      %5166 = vrot.lane.b32.xlu0 %v4997, 16
      %v5167 = vpop.permute.xlu0 %5166
      %5168 = vrot.lane.b32.xlu0 %v4996, 112
      %v5169 = vpop.permute.xlu0 %5168
      %5170 = vrot.lane.b32.xlu0 %v4997, 112
      %v5171 = vpop.permute.xlu0 %5170
      %5172 = vrot.lane.b32.xlu0 %v4996, 96
      %v5173 = vpop.permute.xlu0 %5172
      %5174 = vrot.lane.b32.xlu0 %v4997, 96
      %v5175 = vpop.permute.xlu0 %5174
      %5178 = vrot.lane.b32.xlu0 %v5008, 64
      %v5179 = vpop.permute.xlu0 %5178
      %5180 = vrot.lane.b32.xlu0 %v5009, 64
      %v5181 = vpop.permute.xlu0 %5180
      %5182 = vrot.lane.b32.xlu0 %v5008, 48
      %v5183 = vpop.permute.xlu0 %5182
      %5184 = vrot.lane.b32.xlu0 %v5009, 48
      %v5185 = vpop.permute.xlu0 %5184
      %5186 = vrot.lane.b32.xlu0 %v5008, 32
      %v5187 = vpop.permute.xlu0 %5186
      %5188 = vrot.lane.b32.xlu0 %v5009, 32
      %v5189 = vpop.permute.xlu0 %5188
      %5190 = vrot.lane.b32.xlu0 %v5008, 16
      %v5191 = vpop.permute.xlu0 %5190
      %5192 = vrot.lane.b32.xlu0 %v5009, 16
      %v5193 = vpop.permute.xlu0 %5192
      %5194 = vrot.lane.b32.xlu0 %v5008, 112
      %v5195 = vpop.permute.xlu0 %5194
      %5196 = vrot.lane.b32.xlu0 %v5009, 112
      %v5197 = vpop.permute.xlu0 %5196
      %5198 = vrot.lane.b32.xlu0 %v5089, 96
      %v5199 = vpop.permute.xlu0 %5198
      %5200 = vrot.lane.b32.xlu0 %v5091, 96
      %v5201 = vpop.permute.xlu0 %5200
      %5202 = vrot.lane.b32.xlu0 %v5095, 96
      %v5203 = vpop.permute.xlu0 %5202
      %5204 = vrot.lane.b32.xlu0 %v5097, 96
      %v5205 = vpop.permute.xlu0 %5204
      %5206 = vrot.lane.b32.xlu0 %v5099, 96
      %v5207 = vpop.permute.xlu0 %5206
      %5208 = vrot.lane.b32.xlu0 %v5101, 96
      %v5209 = vpop.permute.xlu0 %5208
      %5210 = vrot.lane.b32.xlu0 %v5103, 96
      %v5211 = vpop.permute.xlu0 %5210
      %5212 = vrot.lane.b32.xlu0 %v5105, 96
      %v5213 = vpop.permute.xlu0 %5212
      %5214 = vrot.lane.b32.xlu0 %v5109, 96
      %v5215 = vpop.permute.xlu0 %5214
      %5216 = vrot.lane.b32.xlu0 %v5111, 96
      %v5217 = vpop.permute.xlu0 %5216
      %5218 = vrot.lane.b32.xlu0 %v5113, 96
      %v5219 = vpop.permute.xlu0 %5218
      %5220 = vrot.lane.b32.xlu0 %v5115, 96
      %v5221 = vpop.permute.xlu0 %5220
      %5222 = vrot.lane.b32.xlu0 %v5117, 96
      %v5223 = vpop.permute.xlu0 %5222
      %5224 = vrot.lane.b32.xlu0 %v5119, 96
      %v5225 = vpop.permute.xlu0 %5224
      %5226 = vrot.lane.b32.xlu0 %v5121, 96
      %v5227 = vpop.permute.xlu0 %5226
      %5228 = vrot.lane.b32.xlu0 %v5123, 96
      %v5229 = vpop.permute.xlu0 %5228
      %5230 = vrot.lane.b32.xlu0 %v5125, 96
      %v5231 = vpop.permute.xlu0 %5230
      %5232 = vrot.lane.b32.xlu0 %v5127, 96
      %v5233 = vpop.permute.xlu0 %5232
      %5234 = vrot.lane.b32.xlu0 %v5129, 96
      %v5235 = vpop.permute.xlu0 %5234
      %5236 = vrot.lane.b32.xlu0 %v5131, 96
      %v5237 = vpop.permute.xlu0 %5236
      %5238 = vrot.lane.b32.xlu0 %v5135, 96
      %v5239 = vpop.permute.xlu0 %5238
      %5240 = vrot.lane.b32.xlu0 %v5137, 96
      %v5241 = vpop.permute.xlu0 %5240
      %5242 = vrot.lane.b32.xlu0 %v5139, 96
      %v5243 = vpop.permute.xlu0 %5242
      %5244 = vrot.lane.b32.xlu0 %v5141, 96
      %v5245 = vpop.permute.xlu0 %5244
      %5246 = vrot.lane.b32.xlu0 %v5143, 96
      %v5247 = vpop.permute.xlu0 %5246
      %5248 = vrot.lane.b32.xlu0 %v5145, 96
      %v5249 = vpop.permute.xlu0 %5248
      %5282 = vrot.lane.b32.xlu0 %v4984, 64
      %v5283 = vpop.permute.xlu0 %5282
      %5284 = vrot.lane.b32.xlu0 %v4985, 64
      %v5285 = vpop.permute.xlu0 %5284
      %5286 = vrot.lane.b32.xlu0 %v5143, 64
      %v5287 = vpop.permute.xlu0 %5286
      %5288 = vrot.lane.b32.xlu0 %v5145, 64
      %v5289 = vpop.permute.xlu0 %5288
      %5290 = vrot.lane.b32.xlu0 %v5147, 64
      %v5291 = vpop.permute.xlu0 %5290
      %5292 = vrot.lane.b32.xlu0 %v5149, 64
      %v5293 = vpop.permute.xlu0 %5292
      %5294 = vrot.lane.b32.xlu0 %v5153, 64
      %v5295 = vpop.permute.xlu0 %5294
      %5296 = vrot.lane.b32.xlu0 %v5155, 64
      %v5297 = vpop.permute.xlu0 %5296
      %5298 = vrot.lane.b32.xlu0 %v5157, 64
      %v5299 = vpop.permute.xlu0 %5298
      %5300 = vrot.lane.b32.xlu0 %v5159, 64
      %v5301 = vpop.permute.xlu0 %5300
      %5302 = vrot.lane.b32.xlu0 %v5161, 64
      %v5303 = vpop.permute.xlu0 %5302
      %5304 = vrot.lane.b32.xlu0 %v5163, 64
      %v5305 = vpop.permute.xlu0 %5304
      %5306 = vrot.lane.b32.xlu0 %v5165, 64
      %v5307 = vpop.permute.xlu0 %5306
      %5308 = vrot.lane.b32.xlu0 %v5167, 64
      %v5309 = vpop.permute.xlu0 %5308
      %5310 = vrot.lane.b32.xlu0 %v5169, 64
      %v5311 = vpop.permute.xlu0 %5310
      %5312 = vrot.lane.b32.xlu0 %v5171, 64
      %v5313 = vpop.permute.xlu0 %5312
      %5314 = vrot.lane.b32.xlu0 %v5173, 64
      %v5315 = vpop.permute.xlu0 %5314
      %5316 = vrot.lane.b32.xlu0 %v5175, 64
      %v5317 = vpop.permute.xlu0 %5316
      %5318 = vrot.lane.b32.xlu0 %v5179, 64
      %v5319 = vpop.permute.xlu0 %5318
      %5320 = vrot.lane.b32.xlu0 %v5181, 64
      %v5321 = vpop.permute.xlu0 %5320
      %5322 = vrot.lane.b32.xlu0 %v5183, 64
      %v5323 = vpop.permute.xlu0 %5322
      %5324 = vrot.lane.b32.xlu0 %v5185, 64
      %v5325 = vpop.permute.xlu0 %5324
      %5326 = vrot.lane.b32.xlu0 %v5187, 64
      %v5327 = vpop.permute.xlu0 %5326
      %5328 = vrot.lane.b32.xlu0 %v5189, 64
      %v5329 = vpop.permute.xlu0 %5328
      %5330 = vrot.lane.b32.xlu0 %v5191, 64
      %v5331 = vpop.permute.xlu0 %5330
      %5332 = vrot.lane.b32.xlu0 %v5193, 64
      %v5333 = vpop.permute.xlu0 %5332
      %5334 = vrot.lane.b32.xlu0 %v5195, 64
      %v5335 = vpop.permute.xlu0 %5334
      %5336 = vrot.lane.b32.xlu0 %v5197, 64
      %v5337 = vpop.permute.xlu0 %5336
      %v5372 = vld [vmem:[%s5] sm:$0xff]
      %v5373 = vld [vmem:[%s5 + $0x8] sm:$0xff]
      %v5374 = vld [vmem:[%s5 + $0x10] sm:$0xff]
      %v5375 = vld [vmem:[%s5 + $0x18] sm:$0xff]
      %v5376 = vld [vmem:[%s5 + $0x20] sm:$0xff]
      %v5377 = vld [vmem:[%s5 + $0x28] sm:$0xff]
      %v5378 = vld [vmem:[%s5 + $0x30] sm:$0xff]
      %v5379 = vld [vmem:[%s5 + $0x38] sm:$0x3]
      %v5380 = vld [vmem:[%s5 + $0x40] sm:$0x3]
      %v5381 = vld [vmem:[%s5 + $0x48] sm:$0x3]
      %v5382 = vld [vmem:[%s5 + $0x50] sm:$0x3]
      %v5383 = vld [vmem:[%s5 + $0x58] sm:$0x3]
      %v5384 = vld [vmem:[%s5 + $0x60] sm:$0x3]
      %v5385 = vld [vmem:[%s5 + $0x68] sm:$0x3]
      %v5386 = vld [vmem:[%s6] sm:$0xff]
      %v5387 = vld [vmem:[%s6 + $0x8] sm:$0x3]
      %5389 = vset.pattern.permute.xlu0 0
      %5390 = vperm.xlu0 %5389, %v5386
      %v5391 = vpop.permute.xlu0 %5390
      %5394 = vset.pattern.permute.xlu0 0
      %5395 = vperm.xlu0 %5394, %v5387
      %v5396 = vpop.permute.xlu0 %5395
      %v5399 = vsel %vm599, %v5378, 0
      %v5402 = vsel %vm599, %v5385, 0
      %5404 = vmatprep.subr.mxu0 0.0
      %5405 = vmatpush1.msra.mxu0 %v4936
      %5406 = vmatprep.subr.mxu0 0.0
      %5407 = vmatpush1.msra.mxu0 %v4937
      %5408 = vmatprep.subr.mxu0 0.0
      %5409 = vmatpush1.msra.mxu0 %v5013
      %5410 = vmatprep.subr.mxu0 0.0
      %5411 = vmatpush1.msra.mxu0 %v5015
      %5412 = vmatprep.subr.mxu0 0.0
      %5413 = vmatpush1.msra.mxu0 %v5019
      %5414 = vmatprep.subr.mxu0 0.0
      %5415 = vmatpush1.msra.mxu0 %v5021
      %5416 = vmatprep.subr.mxu0 0.0
      %5417 = vmatpush1.msra.mxu0 %v5025
      %5418 = vmatprep.subr.mxu0 0.0
      %5419 = vmatpush1.msra.mxu0 %v5027
      %5420 = vmatprep.subr.mxu0 0.0
      %5421 = vmatpush1.msra.mxu0 %v5031
      %5422 = vmatprep.subr.mxu0 0.0
      %5423 = vmatpush1.msra.mxu0 %v5033
      %5424 = vmatprep.subr.mxu0 0.0
      %5425 = vmatpush1.msra.mxu0 %v5037
      %5426 = vmatprep.subr.mxu0 0.0
      %5427 = vmatpush1.msra.mxu0 %v5039
      %5428 = vmatprep.subr.mxu0 0.0
      %5429 = vmatpush1.msra.mxu0 %v5043
      %5430 = vmatprep.subr.mxu0 0.0
      %5431 = vmatpush1.msra.mxu0 %v5045
      %5432 = vmatprep.subr.mxu0 0.0
      %5433 = vmatpush1.msra.mxu0 %v4948
      %5434 = vmatprep.subr.mxu0 0.0
      %5435 = vmatpush1.msra.mxu0 %v4949
      %5436 = vmatprep.subr.mxu0 0.0
      %5437 = vmatpush1.msra.mxu0 %v5051
      %5438 = vmatprep.subr.mxu0 0.0
      %5439 = vmatpush1.msra.mxu0 %v5053
      %5440 = vmatprep.subr.mxu0 0.0
      %5441 = vmatpush1.msra.mxu0 %v5057
      %5442 = vmatprep.subr.mxu0 0.0
      %5443 = vmatpush1.msra.mxu0 %v5059
      %5444 = vmatprep.subr.mxu0 0.0
      %5445 = vmatpush1.msra.mxu0 %v5063
      %5446 = vmatprep.subr.mxu0 0.0
      %5447 = vmatpush1.msra.mxu0 %v5065
      %5448 = vmatprep.subr.mxu0 0.0
      %5449 = vmatpush1.msra.mxu0 %v5069
      %5450 = vmatprep.subr.mxu0 0.0
      %5451 = vmatpush1.msra.mxu0 %v5071
      %5452 = vmatprep.subr.mxu0 0.0
      %5453 = vmatpush1.msra.mxu0 %v5075
      %5454 = vmatprep.subr.mxu0 0.0
      %5455 = vmatpush1.msra.mxu0 %v5077
      %5456 = vmatprep.subr.mxu0 0.0
      %5457 = vmatpush1.msra.mxu0 %v5081
      %5458 = vmatprep.subr.mxu0 0.0
      %5459 = vmatpush1.msra.mxu0 %v5083
      %5460 = vmatprep.subr.mxu0 0.0
      %5461 = vmatpush1.msra.mxu0 %v4960
      %5462 = vmatprep.subr.mxu0 0.0
      %5463 = vmatpush1.msra.mxu0 %v4961
      %5464 = vmatprep.subr.mxu0 0.0
      %5465 = vmatpush1.msra.mxu0 %v5089
      %5466 = vmatprep.subr.mxu0 0.0
      %5467 = vmatpush1.msra.mxu0 %v5091
      %5468 = vmatprep.mubr.f32.mxu0 %v5373
      %5469 = vmatmul.mubr.f32.gmra.mrb[0].mxu0 %v5372
      %v5470 = vpop.f32.mrb[0].mxu0
      %v5471 = vadd.f32 %v5391, %v5470
      %v5472 = vpop.f32.mrb[0].mxu0
      %5473 = vmatprep.mubr.f32.mxu0 %v5380
      %5474 = vmatmul.mubr.f32.gmra.mrb[0].mxu0 %v5379
      %v5475 = vpop.f32.mrb[0].mxu0
      %v5476 = vadd.f32 %v5396, %v5475
      %v5477 = vpop.f32.mrb[0].mxu0
      %5478 = vdwg.mxu0
      %5479 = vmatprep.subr.mxu0 0.0
      %5480 = vmatpush1.msra.mxu0 %v5095
      %5481 = vmatprep.subr.mxu0 0.0
      %5482 = vmatpush1.msra.mxu0 %v5097
      %5483 = vmatprep.subr.mxu0 0.0
      %5484 = vmatpush1.msra.mxu0 %v5199
      %5485 = vmatprep.subr.mxu0 0.0
      %5486 = vmatpush1.msra.mxu0 %v5201
      %5487 = vmatprep.subr.mxu0 0.0
      %5488 = vmatpush1.msra.mxu0 %v5203
      %5489 = vmatprep.subr.mxu0 0.0
      %5490 = vmatpush1.msra.mxu0 %v5205
      %5491 = vmatprep.subr.mxu0 0.0
      %5492 = vmatpush1.msra.mxu0 %v5207
      %5493 = vmatprep.subr.mxu0 0.0
      %5494 = vmatpush1.msra.mxu0 %v5209
      %5495 = vmatprep.subr.mxu0 0.0
      %5496 = vmatpush1.msra.mxu0 %v5211
      %5497 = vmatprep.subr.mxu0 0.0
      %5498 = vmatpush1.msra.mxu0 %v5213
      %5499 = vmatprep.subr.mxu0 0.0
      %5500 = vmatpush1.msra.mxu0 %v5215
      %5501 = vmatprep.subr.mxu0 0.0
      %5502 = vmatpush1.msra.mxu0 %v5217
      %5503 = vmatprep.subr.mxu0 0.0
      %5504 = vmatpush1.msra.mxu0 %v5219
      %5505 = vmatprep.subr.mxu0 0.0
      %5506 = vmatpush1.msra.mxu0 %v5221
      %5507 = vmatprep.subr.mxu0 0.0
      %5508 = vmatpush1.msra.mxu0 %v5121
      %5509 = vmatprep.subr.mxu0 0.0
      %5510 = vmatpush1.msra.mxu0 %v5123
      %5511 = vmatprep.subr.mxu0 0.0
      %5512 = vmatpush1.msra.mxu0 %v5223
      %5513 = vmatprep.subr.mxu0 0.0
      %5514 = vmatpush1.msra.mxu0 %v5225
      %5515 = vmatprep.subr.mxu0 0.0
      %5516 = vmatpush1.msra.mxu0 %v5227
      %5517 = vmatprep.subr.mxu0 0.0
      %5518 = vmatpush1.msra.mxu0 %v5229
      %5519 = vmatprep.subr.mxu0 0.0
      %5520 = vmatpush1.msra.mxu0 %v5231
      %5521 = vmatprep.subr.mxu0 0.0
      %5522 = vmatpush1.msra.mxu0 %v5233
      %5523 = vmatprep.subr.mxu0 0.0
      %5524 = vmatpush1.msra.mxu0 %v5235
      %5525 = vmatprep.subr.mxu0 0.0
      %5526 = vmatpush1.msra.mxu0 %v5237
      %5527 = vmatprep.subr.mxu0 0.0
      %5528 = vmatpush1.msra.mxu0 %v5239
      %5529 = vmatprep.subr.mxu0 0.0
      %5530 = vmatpush1.msra.mxu0 %v5241
      %5531 = vmatprep.subr.mxu0 0.0
      %5532 = vmatpush1.msra.mxu0 %v5243
      %5533 = vmatprep.subr.mxu0 0.0
      %5534 = vmatpush1.msra.mxu0 %v5245
      %5535 = vmatprep.subr.mxu0 0.0
      %5536 = vmatpush1.msra.mxu0 %v5147
      %5537 = vmatprep.subr.mxu0 0.0
      %5538 = vmatpush1.msra.mxu0 %v5149
      %5539 = vmatprep.subr.mxu0 0.0
      %5540 = vmatpush1.msra.mxu0 %v5247
      %5541 = vmatprep.subr.mxu0 0.0
      %5542 = vmatpush1.msra.mxu0 %v5249
      %5543 = vmatprep.mubr.f32.mxu0 %v5375
      %5544 = vmatmul.mubr.f32.gmra.mrb[0].mxu0 %v5374
      %v5545 = vpop.f32.mrb[0].mxu0
      %v5546 = vadd.f32 %v5471, %v5545
      %v5547 = vpop.f32.mrb[0].mxu0
      %5548 = vmatprep.mubr.f32.mxu0 %v5382
      %5549 = vmatmul.mubr.f32.gmra.mrb[0].mxu0 %v5381
      %v5550 = vpop.f32.mrb[0].mxu0
      %v5551 = vadd.f32 %v5476, %v5550
      %v5552 = vpop.f32.mrb[0].mxu0
      %5553 = vdwg.mxu0
      %5554 = vmatprep.subr.mxu0 0.0
      %5555 = vmatpush1.msra.mxu0 %v5283
      %5556 = vmatprep.subr.mxu0 0.0
      %5557 = vmatpush1.msra.mxu0 %v5285
      %5558 = vmatprep.subr.mxu0 0.0
      %5559 = vmatpush1.msra.mxu0 %v5287
      %5560 = vmatprep.subr.mxu0 0.0
      %5561 = vmatpush1.msra.mxu0 %v5289
      %5562 = vmatprep.subr.mxu0 0.0
      %5563 = vmatpush1.msra.mxu0 %v5291
      %5564 = vmatprep.subr.mxu0 0.0
      %5565 = vmatpush1.msra.mxu0 %v5293
      %5566 = vmatprep.subr.mxu0 0.0
      %5567 = vmatpush1.msra.mxu0 %v5295
      %5568 = vmatprep.subr.mxu0 0.0
      %5569 = vmatpush1.msra.mxu0 %v5297
      %5570 = vmatprep.subr.mxu0 0.0
      %5571 = vmatpush1.msra.mxu0 %v5299
      %5572 = vmatprep.subr.mxu0 0.0
      %5573 = vmatpush1.msra.mxu0 %v5301
      %5574 = vmatprep.subr.mxu0 0.0
      %5575 = vmatpush1.msra.mxu0 %v5303
      %5576 = vmatprep.subr.mxu0 0.0
      %5577 = vmatpush1.msra.mxu0 %v5305
      %5578 = vmatprep.subr.mxu0 0.0
      %5579 = vmatpush1.msra.mxu0 %v5307
      %5580 = vmatprep.subr.mxu0 0.0
      %5581 = vmatpush1.msra.mxu0 %v5309
      %5582 = vmatprep.subr.mxu0 0.0
      %5583 = vmatpush1.msra.mxu0 %v5153
      %5584 = vmatprep.subr.mxu0 0.0
      %5585 = vmatpush1.msra.mxu0 %v5155
      %5586 = vmatprep.subr.mxu0 0.0
      %5587 = vmatpush1.msra.mxu0 %v5311
      %5588 = vmatprep.subr.mxu0 0.0
      %5589 = vmatpush1.msra.mxu0 %v5313
      %5590 = vmatprep.subr.mxu0 0.0
      %5591 = vmatpush1.msra.mxu0 %v5315
      %5592 = vmatprep.subr.mxu0 0.0
      %5593 = vmatpush1.msra.mxu0 %v5317
      %5594 = vmatprep.subr.mxu0 0.0
      %5595 = vmatpush1.msra.mxu0 %v5319
      %5596 = vmatprep.subr.mxu0 0.0
      %5597 = vmatpush1.msra.mxu0 %v5321
      %5598 = vmatprep.subr.mxu0 0.0
      %5599 = vmatpush1.msra.mxu0 %v5323
      %5600 = vmatprep.subr.mxu0 0.0
      %5601 = vmatpush1.msra.mxu0 %v5325
      %5602 = vmatprep.subr.mxu0 0.0
      %5603 = vmatpush1.msra.mxu0 %v5327
      %5604 = vmatprep.subr.mxu0 0.0
      %5605 = vmatpush1.msra.mxu0 %v5329
      %5606 = vmatprep.subr.mxu0 0.0
      %5607 = vmatpush1.msra.mxu0 %v5331
      %5608 = vmatprep.subr.mxu0 0.0
      %5609 = vmatpush1.msra.mxu0 %v5333
      %5610 = vmatprep.subr.mxu0 0.0
      %5611 = vmatpush1.msra.mxu0 %v5179
      %5612 = vmatprep.subr.mxu0 0.0
      %5613 = vmatpush1.msra.mxu0 %v5181
      %5614 = vmatprep.subr.mxu0 0.0
      %5615 = vmatpush1.msra.mxu0 %v5335
      %5616 = vmatprep.subr.mxu0 0.0
      %5617 = vmatpush1.msra.mxu0 %v5337
      %5618 = vmatprep.mubr.f32.mxu0 %v5377
      %5619 = vmatmul.mubr.f32.gmra.mrb[0].mxu0 %v5376
      %v5620 = vpop.f32.mrb[0].mxu0
      %v5621 = vadd.f32 %v5546, %v5620
      %v5622 = vpop.f32.mrb[0].mxu0
      %5623 = vmatprep.mubr.f32.mxu0 %v5384
      %5624 = vmatmul.mubr.f32.gmra.mrb[0].mxu0 %v5383
      %v5625 = vpop.f32.mrb[0].mxu0
      %v5626 = vadd.f32 %v5551, %v5625
      %v5627 = vpop.f32.mrb[0].mxu0
      %5628 = vdwg.mxu0
      %5629 = vmatprep.subr.mxu0 0.0
      %5630 = vmatpush1.msra.mxu0 %v5187
      %5631 = vmatprep.subr.mxu0 0.0
      %5632 = vmatpush1.msra.mxu0 %v5189
      %5633 = vmatprep.subr.mxu0 0.0
      %5634 = vmatpush1.msra.mxu0 0.0
      %5635 = vmatprep.subr.mxu0 0.0
      %5636 = vmatpush1.msra.mxu0 0.0
      %5637 = vmatprep.subr.mxu0 0.0
      %5638 = vmatpush1.msra.mxu0 0.0
      %5639 = vmatprep.subr.mxu0 0.0
      %5640 = vmatpush1.msra.mxu0 0.0
      %5641 = vmatprep.subr.mxu0 0.0
      %5642 = vmatpush1.msra.mxu0 0.0
      %5643 = vmatprep.subr.mxu0 0.0
      %5644 = vmatpush1.msra.mxu0 0.0
      %5645 = vmatprep.subr.mxu0 0.0
      %5646 = vmatpush1.msra.mxu0 0.0
      %5647 = vmatprep.subr.mxu0 0.0
      %5648 = vmatpush1.msra.mxu0 0.0
      %5649 = vmatprep.subr.mxu0 0.0
      %5650 = vmatpush1.msra.mxu0 0.0
      %5651 = vmatprep.subr.mxu0 0.0
      %5652 = vmatpush1.msra.mxu0 0.0
      %5653 = vmatprep.subr.mxu0 0.0
      %5654 = vmatpush1.msra.mxu0 0.0
      %5655 = vmatprep.subr.mxu0 0.0
      %5656 = vmatpush1.msra.mxu0 0.0
      %5657 = vmatprep.subr.mxu0 0.0
      %5658 = vmatpush1.msra.mxu0 0.0
      %5659 = vmatprep.subr.mxu0 0.0
      %5660 = vmatpush1.msra.mxu0 0.0
      %5661 = vmatprep.subr.mxu0 0.0
      %5662 = vmatpush1.msra.mxu0 0.0
      %5663 = vmatprep.subr.mxu0 0.0
      %5664 = vmatpush1.msra.mxu0 0.0
      %5665 = vmatprep.subr.mxu0 0.0
      %5666 = vmatpush1.msra.mxu0 0.0
      %5667 = vmatprep.subr.mxu0 0.0
      %5668 = vmatpush1.msra.mxu0 0.0
      %5669 = vmatprep.subr.mxu0 0.0
      %5670 = vmatpush1.msra.mxu0 0.0
      %5671 = vmatprep.subr.mxu0 0.0
      %5672 = vmatpush1.msra.mxu0 0.0
      %5673 = vmatprep.subr.mxu0 0.0
      %5674 = vmatpush1.msra.mxu0 0.0
      %5675 = vmatprep.subr.mxu0 0.0
      %5676 = vmatpush1.msra.mxu0 0.0
      %5677 = vmatprep.subr.mxu0 0.0
      %5678 = vmatpush1.msra.mxu0 0.0
      %5679 = vmatprep.subr.mxu0 0.0
      %5680 = vmatpush1.msra.mxu0 0.0
      %5681 = vmatprep.subr.mxu0 0.0
      %5682 = vmatpush1.msra.mxu0 0.0
      %5683 = vmatprep.subr.mxu0 0.0
      %5684 = vmatpush1.msra.mxu0 0.0
      %5685 = vmatprep.subr.mxu0 0.0
      %5686 = vmatpush1.msra.mxu0 0.0
      %5687 = vmatprep.subr.mxu0 0.0
      %5688 = vmatpush1.msra.mxu0 0.0
      %5689 = vmatprep.subr.mxu0 0.0
      %5690 = vmatpush1.msra.mxu0 0.0
      %5691 = vmatprep.subr.mxu0 0.0
      %5692 = vmatpush1.msra.mxu0 0.0
      %5693 = vmatprep.mubr.f32.mxu0 0.0
      %5694 = vmatmul.mubr.f32.gmra.mrb[0].mxu0 %v5399
      %v5695 = vpop.f32.mrb[0].mxu0
      %v5696 = vadd.f32 %v5621, %v5695
      %v5697 = vpop.f32.mrb[0].mxu0
      %5698 = vmatprep.mubr.f32.mxu0 0.0
      %5699 = vmatmul.mubr.f32.gmra.mrb[0].mxu0 %v5402
      %v5700 = vpop.f32.mrb[0].mxu0
      %v5701 = vadd.f32 %v5626, %v5700
      %v5702 = vpop.f32.mrb[0].mxu0
      %5703 = vdwg.mxu0
      %5704 = vst.msk [vmem:[%s278] sm:$0xff] %vm597, %v5696
      %vm5705 = vcmask 58368
      %5706 = vst.msk [vmem:[%s278 + $0x8] sm:$0x3] %vm5705, %v5701
      %p5707 = scmp.lt.s32.totalorder %s18, 1
      %s5708 = scalar_select %p5707, %s18, 1
      %s5709 = smul.addr %s5708, 2
      %s5710 = smul.addr %s5709, 8
      %s5711 = scalar_lea.vmem %s7, %s5710
      // Predicated region
      $region49: #{cnn_forward.1} parent=47 // pred_check
        %p5712 = pneg %p188
      $region50: #{cnn_forward.1} parent=47 // pred_check_branch
        %5714 = sbr.rel (%p5712) target = $region52
      $region51: #{cnn_forward.1} parent=47 // pred_region
        _
      $region52: #{cnn_forward.1} parent=47 // pred_fallthru
        _
    $region48: #{cnn_forward.1} parent=5 // pred_fallthru
      _
    %p5715 = scmp.le.s32.totalorder 2, %s13
    // Predicated region
    $region53: #{cnn_forward.1} parent=5 // pred_check
      %p5716 = pneg %p5715
    $region54: #{cnn_forward.1} parent=5 // pred_check_branch
      %5718 = sbr.rel (%p5716) target = $region56
    $region55: #{cnn_forward.1} parent=5 // pred_region
      %s5719 = ssub.s32 %s13, 2
      // Predicated region
      $region57: #{cnn_forward.1} parent=55 // pred_check
        %p5720 = pneg %p194
      $region58: #{cnn_forward.1} parent=55 // pred_check_branch
        %5722 = sbr.rel (%p5720) target = $region60
      $region59: #{cnn_forward.1} parent=55 // pred_region
        %p5723 = scmp.lt.s32.totalorder %s19, 1
        %s5724 = scalar_select %p5723, %s19, 1
        %s5725 = smul.addr %s5724, 2
        %s5726 = smul.addr %s5725, 8
        %s5727 = scalar_lea.vmem %s7, %s5726
      $region60: #{cnn_forward.1} parent=55 // pred_fallthru
        _
    $region56: #{cnn_forward.1} parent=5 // pred_fallthru
      _
  $region6: #{cnn_forward.1} parent=0 // loop_footer
    %s17 = sadd.s32 1, %s13
  $region7: #{cnn_forward.1} parent=0 // loop_footer_branch
    %12 = sbr.rel target = $region3
  $region8: #{cnn_forward.1} parent=0 // loop_exit
    _

</llo_original>
